<compile_context>
chip_gen: v7x
topology: tpu7x:2x2x1
jax: 0.10.0
libtpu: 0.0.40
codegen_flags: <defaults>
</compile_context>

<pallas_src>
import functools
import math

import jax
import jax.numpy as jnp
from jax.experimental import pallas as pl
from jax.experimental.pallas import tpu as pltpu

NEG_INF = -1e30  # additive-mask value (same softmax result as float('-inf'))


def _vmem():
    return pl.BlockSpec(memory_space=pltpu.MemorySpace.VMEM)


# --------------------------- in-kernel helpers ------------------------------ #

def _ln(x, g, b, eps=1e-5):
    """LayerNorm over last axis (torch semantics: biased variance, eps inside rsqrt)."""
    mean = jnp.mean(x, axis=-1, keepdims=True)
    var = jnp.mean((x - mean) ** 2, axis=-1, keepdims=True)
    return (x - mean) * jax.lax.rsqrt(var + eps) * g + b


def _attention(q2d, k2d, v2d, wo, bo, B, Lq, Lk, num_heads, scale,
               mask=None, want_attn=False):
    """Multi-head attention on already-projected activations, fully in VMEM.

    q2d: (B*Lq, D); k2d/v2d: (B*Lk, D); wo: (D, D); bo: (1, D).
    Heads are column slices of the fused projection; per-head outputs are folded
    directly into the output projection (sum_h o_h @ wo[h*dh:(h+1)*dh]) so no
    concat / transpose is needed. Returns (out (B*Lq, D), attn (B, Lq, Lk)|None).
    """
    D = q2d.shape[-1]
    dh = D // num_heads
    out = jnp.zeros((B * Lq, D), jnp.float32)
    attn_sum = jnp.zeros((B, Lq, Lk), jnp.float32) if want_attn else None
    for h in range(num_heads):
        q = q2d[:, h * dh:(h + 1) * dh].reshape(B, Lq, dh)
        k = k2d[:, h * dh:(h + 1) * dh].reshape(B, Lk, dh)
        v = v2d[:, h * dh:(h + 1) * dh].reshape(B, Lk, dh)
        s = jnp.einsum('bqd,bkd->bqk', q, k,
                       preferred_element_type=jnp.float32) * scale
        if mask is not None:
            s = s + mask
        s_max = jnp.max(s, axis=-1, keepdims=True)
        p = jnp.exp(s - s_max)
        denom = jnp.sum(p, axis=-1, keepdims=True)
        p = p * pl.reciprocal(denom, approx=True)
        if want_attn:
            attn_sum = attn_sum + p
        oh = jnp.einsum('bqk,bkd->bqd', p, v, preferred_element_type=jnp.float32)
        out = out + jnp.dot(oh.reshape(B * Lq, dh), wo[h * dh:(h + 1) * dh, :],
                            preferred_element_type=jnp.float32)
    out = out + bo
    if want_attn:
        attn_sum = attn_sum * (1.0 / num_heads)   # PyTorch MHA default: head-averaged
    return out, attn_sum


# ----------------------------- fused kernels -------------------------------- #

def _encoder_layer_kernel(x_ref, wqkv_ref, bqkv_ref, wo_ref, bo_ref,
                          ln1g_ref, ln1b_ref, w1_ref, b1_ref, w2_ref, b2_ref,
                          ln2g_ref, ln2b_ref, o_ref, *, num_heads):
    B, S, D = x_ref.shape
    dh = D // num_heads
    scale = 1.0 / math.sqrt(dh)
    x2 = x_ref[...].reshape(B * S, D)

    # fused QKV projection (one wide MXU op) -- self-attention, no mask needed
    qkv = jnp.dot(x2, wqkv_ref[...], preferred_element_type=jnp.float32) + bqkv_ref[...]
    sa, _ = _attention(qkv[:, :D], qkv[:, D:2 * D], qkv[:, 2 * D:],
                       wo_ref[...], bo_ref[...], B, S, S, num_heads, scale)
    h1 = _ln(x2 + sa, ln1g_ref[...], ln1b_ref[...])

    # feed-forward (Conv1d k=1 == Linear along channel dim)
    ff = jnp.maximum(jnp.dot(h1, w1_ref[...],
                             preferred_element_type=jnp.float32) + b1_ref[...], 0.0)
    ff = jnp.dot(ff, w2_ref[...], preferred_element_type=jnp.float32) + b2_ref[...]
    out = _ln(h1 + ff, ln2g_ref[...], ln2b_ref[...])
    o_ref[...] = out.reshape(B, S, D).astype(o_ref.dtype)


def _decoder_layer_kernel(t_ref, mem_ref, mask_ref,
                          s_wqkv_ref, s_bqkv_ref, s_wo_ref, s_bo_ref,
                          ln1g_ref, ln1b_ref,
                          c_wq_ref, c_bq_ref, c_wkv_ref, c_bkv_ref,
                          c_wo_ref, c_bo_ref, ln2g_ref, ln2b_ref,
                          w1_ref, b1_ref, w2_ref, b2_ref, ln3g_ref, ln3b_ref,
                          o_ref, attn_ref, *, num_heads):
    B, L, D = t_ref.shape
    S = mem_ref.shape[1]
    dh = D // num_heads
    scale = 1.0 / math.sqrt(dh)
    t2 = t_ref[...].reshape(B * L, D)
    mask = mask_ref[...]                       # (B, L, L) additive causal+pad

    # --- masked self-attention (fused QKV) ---
    qkv = jnp.dot(t2, s_wqkv_ref[...],
                  preferred_element_type=jnp.float32) + s_bqkv_ref[...]
    sa, _ = _attention(qkv[:, :D], qkv[:, D:2 * D], qkv[:, 2 * D:],
                       s_wo_ref[...], s_bo_ref[...], B, L, L, num_heads, scale,
                       mask=mask)
    h1 = _ln(t2 + sa, ln1g_ref[...], ln1b_ref[...])

    # --- cross-attention over encoder memory (fused KV, no mask) ---
    m2 = mem_ref[...].reshape(B * S, D)
    qx = jnp.dot(h1, c_wq_ref[...], preferred_element_type=jnp.float32) + c_bq_ref[...]
    kv = jnp.dot(m2, c_wkv_ref[...], preferred_element_type=jnp.float32) + c_bkv_ref[...]
    ca, attn = _attention(qx, kv[:, :D], kv[:, D:],
                          c_wo_ref[...], c_bo_ref[...], B, L, S, num_heads, scale,
                          want_attn=True)
    h2 = _ln(h1 + ca, ln2g_ref[...], ln2b_ref[...])
    attn_ref[...] = attn.astype(attn_ref.dtype)

    # --- feed-forward ---
    ff = jnp.maximum(jnp.dot(h2, w1_ref[...],
                             preferred_element_type=jnp.float32) + b1_ref[...], 0.0)
    ff = jnp.dot(ff, w2_ref[...], preferred_element_type=jnp.float32) + b2_ref[...]
    out = _ln(h2 + ff, ln3g_ref[...], ln3b_ref[...])
    o_ref[...] = out.reshape(B, L, D).astype(o_ref.dtype)


def _predictor_kernel(x_ref, w_ref, o_ref):
    # bias-free final projection (nn.Linear(d_model, vocab, bias=False))
    o_ref[...] = jnp.dot(x_ref[...], w_ref[...],
                         preferred_element_type=jnp.float32).astype(o_ref.dtype)


# ------------------------------ host wrappers -------------------------------- #

def encoder_layer(x, p, num_heads):
    B, S, D = x.shape
    return pl.pallas_call(
        functools.partial(_encoder_layer_kernel, num_heads=num_heads),
        out_shape=jax.ShapeDtypeStruct((B, S, D), jnp.float32),
        in_specs=[_vmem() for _ in range(13)],
        out_specs=_vmem(),
    )(x, p["wqkv"], p["bqkv"], p["wo"], p["bo"],
      p["ln1_g"], p["ln1_b"], p["ff_w1"], p["ff_b1"], p["ff_w2"], p["ff_b2"],
      p["ln2_g"], p["ln2_b"])


def decoder_layer(t, mem, self_mask, p, num_heads):
    B, L, D = t.shape
    S = mem.shape[1]
    return pl.pallas_call(
        functools.partial(_decoder_layer_kernel, num_heads=num_heads),
        out_shape=(jax.ShapeDtypeStruct((B, L, D), jnp.float32),
                   jax.ShapeDtypeStruct((B, L, S), jnp.float32)),
        in_specs=[_vmem() for _ in range(23)],
        out_specs=(_vmem(), _vmem()),
    )(t, mem, self_mask,
      p["s_wqkv"], p["s_bqkv"], p["s_wo"], p["s_bo"], p["ln1_g"], p["ln1_b"],
      p["c_wq"], p["c_bq"], p["c_wkv"], p["c_bkv"], p["c_wo"], p["c_bo"],
      p["ln2_g"], p["ln2_b"],
      p["ff_w1"], p["ff_b1"], p["ff_w2"], p["ff_b2"], p["ln3_g"], p["ln3_b"])


def predictor(x2d, w):
    M, D = x2d.shape
    V = w.shape[1]
    # TODO(synk): at realistic vocab/d_model sizes, tile this matmul over N (multiples
    # of 128/256) with a grid and an explicit vmem_limit_bytes; full-block is fine here.
    return pl.pallas_call(
        _predictor_kernel,
        out_shape=jax.ShapeDtypeStruct((M, V), jnp.float32),
        in_specs=[_vmem(), _vmem()],
        out_specs=_vmem(),
    )(x2d, w)


def positional_encoding_table(max_len, d_model):
    position = jnp.arange(max_len, dtype=jnp.float32)[:, None]
    div_term = jnp.exp(jnp.arange(0, d_model, 2, dtype=jnp.float32)
                       * (-math.log(10000.0) / d_model))
    pe = jnp.zeros((max_len, d_model), jnp.float32)
    pe = pe.at[:, 0::2].set(jnp.sin(position * div_term))
    pe = pe.at[:, 1::2].set(jnp.cos(position * div_term))
    return pe


def transformer_forward(params, images, captions, cfg):
    B, S_img, D = images.shape
    L = captions.shape[1]

    # ----- encoder (batch-first layout; equivalent to PyTorch's seq-first math) -----
    x = images
    for p in params["enc_layers"]:
        x = encoder_layer(x, p, cfg["enc_n_heads"])
    mem = x                                                          # (B, S_img, D)

    # ----- decoder masks (causal + key padding), additive -----
    pad_add = jnp.where(captions == cfg["pad_id"], NEG_INF, 0.0).astype(jnp.float32)
    causal = jnp.triu(jnp.full((L, L), NEG_INF, jnp.float32), k=1)
    self_mask = causal[None, :, :] + pad_add[:, None, :]             # (B, L, L)

    # ----- embedding + positional encoding (plain-JAX gather glue) -----
    emb = params["emb"][captions]                                    # (B, L, D)
    # Reproduces upstream PositionalEncoding indexing: after the permute x.size(1)
    # is the batch dim, so batch element b gets pe[b] added at every position.
    t = emb * math.sqrt(D) + params["pe"][:B][:, None, :]

    # ----- decoder -----
    attns_all = []
    for p in params["dec_layers"]:
        t, attn = decoder_layer(t, mem, self_mask, p, cfg["dec_n_heads"])
        attns_all.append(attn)
    attns_all = jnp.stack(attns_all)                                 # (n_dec, B, L, S_img)

    # ----- predictor (bias-free) -----
    preds = predictor(t.reshape(B * L, D), params["pred_w"]).reshape(B, L, -1)
    return preds, attns_all


# ------------------------------ param init --------------------------------- #

def _init_w(key, shape, scale=0.02):
    return jax.random.normal(key, shape, jnp.float32) * scale


def init_self_mha(key, d_model):
    ks = jax.random.split(key, 4)
    wqkv = jnp.concatenate([_init_w(ks[0], (d_model, d_model)),
                            _init_w(ks[1], (d_model, d_model)),
                            _init_w(ks[2], (d_model, d_model))], axis=1)
    return dict(wqkv=wqkv, bqkv=jnp.zeros((1, 3 * d_model), jnp.float32),
                wo=_init_w(ks[3], (d_model, d_model)),
                bo=jnp.zeros((1, d_model), jnp.float32))


def init_cross_mha(key, d_model):
    ks = jax.random.split(key, 4)
    wkv = jnp.concatenate([_init_w(ks[1], (d_model, d_model)),
                           _init_w(ks[2], (d_model, d_model))], axis=1)
    return dict(wq=_init_w(ks[0], (d_model, d_model)),
                bq=jnp.zeros((1, d_model), jnp.float32),
                wkv=wkv, bkv=jnp.zeros((1, 2 * d_model), jnp.float32),
                wo=_init_w(ks[3], (d_model, d_model)),
                bo=jnp.zeros((1, d_model), jnp.float32))


def init_params(key, cfg):
    D, V = cfg["d_model"], cfg["vocab_size"]
    keys = jax.random.split(key, 2 + cfg["enc_n_layers"] + cfg["dec_n_layers"])
    ki = iter(keys)

    emb = _init_w(next(ki), (V, D), scale=1.0)
    emb = emb.at[cfg["pad_id"]].set(0.0)          # padding_idx row is zero

    ones = lambda n: jnp.ones((1, n), jnp.float32)
    zeros = lambda n: jnp.zeros((1, n), jnp.float32)

    enc_layers = []
    for _ in range(cfg["enc_n_layers"]):
        k = jax.random.split(next(ki), 3)
        mha = init_self_mha(k[0], D)
        enc_layers.append(dict(
            wqkv=mha["wqkv"], bqkv=mha["bqkv"], wo=mha["wo"], bo=mha["bo"],
            ln1_g=ones(D), ln1_b=zeros(D),
            ff_w1=_init_w(k[1], (D, cfg["enc_ff_dim"])), ff_b1=zeros(cfg["enc_ff_dim"]),
            ff_w2=_init_w(k[2], (cfg["enc_ff_dim"], D)), ff_b2=zeros(D),
            ln2_g=ones(D), ln2_b=zeros(D),
        ))

    dec_layers = []
    for _ in range(cfg["dec_n_layers"]):
        k = jax.random.split(next(ki), 4)
        smha = init_self_mha(k[0], D)
        cmha = init_cross_mha(k[1], D)
        dec_layers.append(dict(
            s_wqkv=smha["wqkv"], s_bqkv=smha["bqkv"], s_wo=smha["wo"], s_bo=smha["bo"],
            ln1_g=ones(D), ln1_b=zeros(D),
            c_wq=cmha["wq"], c_bq=cmha["bq"], c_wkv=cmha["wkv"], c_bkv=cmha["bkv"],
            c_wo=cmha["wo"], c_bo=cmha["bo"],
            ln2_g=ones(D), ln2_b=zeros(D),
            ff_w1=_init_w(k[2], (D, cfg["dec_ff_dim"])), ff_b1=zeros(cfg["dec_ff_dim"]),
            ff_w2=_init_w(k[3], (cfg["dec_ff_dim"], D)), ff_b2=zeros(D),
            ln3_g=ones(D), ln3_b=zeros(D),
        ))

    pred_w = _init_w(next(ki), (D, V))
    pe = positional_encoding_table(cfg["max_len"], D)
    return dict(emb=emb, pe=pe, enc_layers=enc_layers, dec_layers=dec_layers,
                pred_w=pred_w)


# ---------------------------------- main ------------------------------------ #

if __name__ == "__main__":
    cfg = dict(
        vocab_size=50, d_model=32, img_encode_size=16,
        enc_ff_dim=64, dec_ff_dim=64,
        enc_n_layers=2, dec_n_layers=2,
        enc_n_heads=4, dec_n_heads=4,
        max_len=32, pad_id=0,
    )
    B, L = 2, 8

    key = jax.random.PRNGKey(0)
    k_param, k_img, k_cap = jax.random.split(key, 3)
    params = init_params(k_param, cfg)

    images = jax.random.normal(k_img, (B, cfg["img_encode_size"], cfg["d_model"]),
                               jnp.float32)
    captions = jax.random.randint(k_cap, (B, L), 1, cfg["vocab_size"], dtype=jnp.int32)
    captions = captions.at[1, L - 1].set(cfg["pad_id"])   # exercise the pad mask

    fwd = jax.jit(lambda p, im, cp: transformer_forward(p, im, cp, cfg))
    preds, attns = fwd(params, images, captions)
    preds = jax.block_until_ready(preds)
    attns = jax.block_until_ready(attns)

    assert preds.shape == (B, L, cfg["vocab_size"])
    assert attns.shape == (cfg["dec_n_layers"], B, L, cfg["img_encode_size"])
    assert bool(jnp.all(jnp.isfinite(preds))) and bool(jnp.all(jnp.isfinite(attns)))
    print("KERNEL_OK")
</pallas_src>

<mosaic_0001>
module attributes {stable_mosaic.version = 11 : i64} {
  func.func @_encoder_layer_kernel(%arg0: memref<2x16x32xf32, #tpu.memory_space<vmem>>, %arg1: memref<32x96xf32, #tpu.memory_space<vmem>>, %arg2: memref<1x96xf32, #tpu.memory_space<vmem>>, %arg3: memref<32x32xf32, #tpu.memory_space<vmem>>, %arg4: memref<1x32xf32, #tpu.memory_space<vmem>>, %arg5: memref<1x32xf32, #tpu.memory_space<vmem>>, %arg6: memref<1x32xf32, #tpu.memory_space<vmem>>, %arg7: memref<32x64xf32, #tpu.memory_space<vmem>>, %arg8: memref<1x64xf32, #tpu.memory_space<vmem>>, %arg9: memref<64x32xf32, #tpu.memory_space<vmem>>, %arg10: memref<1x32xf32, #tpu.memory_space<vmem>>, %arg11: memref<1x32xf32, #tpu.memory_space<vmem>>, %arg12: memref<1x32xf32, #tpu.memory_space<vmem>>, %arg13: memref<2x16x32xf32, #tpu.memory_space<vmem>>) attributes {dimension_semantics = [], scalar_prefetch = 0 : i64, scratch_operands = 0 : i64, tpu.core_type = #tpu.core_type<tc>} {
    %c0 = arith.constant 0 : index
    %c0_0 = arith.constant 0 : index
    %c0_1 = arith.constant 0 : index
    %0 = vector.load %arg0[%c0, %c0_0, %c0_1] : memref<2x16x32xf32, #tpu.memory_space<vmem>>, vector<2x16x32xf32>
    %1 = vector.shape_cast %0 : vector<2x16x32xf32> to vector<32x32xf32>
    %c0_2 = arith.constant 0 : index
    %c0_3 = arith.constant 0 : index
    %2 = vector.load %arg1[%c0_2, %c0_3] : memref<32x96xf32, #tpu.memory_space<vmem>>, vector<32x96xf32>
    %cst = arith.constant dense<0.000000e+00> : vector<32x96xf32>
    %3 = tpu.matmul %1, %2, %cst {dimension_numbers = #tpu.dot_dimension_numbers<[1], [0], [0], [1], [0, 0, 1, 1], [], []>} : vector<32x32xf32>, vector<32x96xf32>, vector<32x96xf32> -> vector<32x96xf32>
    %c0_4 = arith.constant 0 : index
    %c0_5 = arith.constant 0 : index
    %4 = vector.load %arg2[%c0_4, %c0_5] : memref<1x96xf32, #tpu.memory_space<vmem>>, vector<1x96xf32>
    %5 = vector.broadcast %4 : vector<1x96xf32> to vector<32x96xf32>
    %6 = arith.addf %3, %5 : vector<32x96xf32>
    %7 = vector.extract_strided_slice %6 {offsets = [0, 0], sizes = [32, 32], strides = [1, 1]} : vector<32x96xf32> to vector<32x32xf32>
    %8 = vector.extract_strided_slice %6 {offsets = [0, 32], sizes = [32, 32], strides = [1, 1]} : vector<32x96xf32> to vector<32x32xf32>
    %9 = vector.extract_strided_slice %6 {offsets = [0, 64], sizes = [32, 32], strides = [1, 1]} : vector<32x96xf32> to vector<32x32xf32>
    %c0_6 = arith.constant 0 : index
    %c0_7 = arith.constant 0 : index
    %10 = vector.load %arg3[%c0_6, %c0_7] : memref<32x32xf32, #tpu.memory_space<vmem>>, vector<32x32xf32>
    %c0_8 = arith.constant 0 : index
    %c0_9 = arith.constant 0 : index
    %11 = vector.load %arg4[%c0_8, %c0_9] : memref<1x32xf32, #tpu.memory_space<vmem>>, vector<1x32xf32>
    %cst_10 = arith.constant 0.000000e+00 : f32
    %12 = vector.broadcast %cst_10 : f32 to vector<32x32xf32>
    %13 = vector.extract_strided_slice %7 {offsets = [0, 0], sizes = [32, 8], strides = [1, 1]} : vector<32x32xf32> to vector<32x8xf32>
    %14 = vector.shape_cast %13 : vector<32x8xf32> to vector<2x16x8xf32>
    %15 = vector.extract_strided_slice %8 {offsets = [0, 0], sizes = [32, 8], strides = [1, 1]} : vector<32x32xf32> to vector<32x8xf32>
    %16 = vector.shape_cast %15 : vector<32x8xf32> to vector<2x16x8xf32>
    %17 = vector.extract_strided_slice %9 {offsets = [0, 0], sizes = [32, 8], strides = [1, 1]} : vector<32x32xf32> to vector<32x8xf32>
    %18 = vector.shape_cast %17 : vector<32x8xf32> to vector<2x16x8xf32>
    "tpu.trace_start"() <{level = 10 : i32, message = "bqd,bkd->bqk"}> : () -> ()
    %cst_11 = arith.constant dense<0.000000e+00> : vector<2x16x16xf32>
    %19 = tpu.matmul %14, %16, %cst_11 {dimension_numbers = #tpu.dot_dimension_numbers<[2], [2], [1], [1], [0, 0, 0, 1, 1, 1], [0], [0]>} : vector<2x16x8xf32>, vector<2x16x8xf32>, vector<2x16x16xf32> -> vector<2x16x16xf32>
    "tpu.trace_stop"() : () -> ()
    %cst_12 = arith.constant 0.353553385 : f32
    %20 = vector.broadcast %cst_12 : f32 to vector<2x16x16xf32>
    %21 = arith.mulf %19, %20 : vector<2x16x16xf32>
    %cst_13 = arith.constant dense<0xFF800000> : vector<2x16xf32>
    %22 = vector.multi_reduction <maximumf>, %21, %cst_13 [2] : vector<2x16x16xf32> to vector<2x16xf32>
    %23 = vector.shape_cast %22 : vector<2x16xf32> to vector<2x16x1xf32>
    %24 = vector.broadcast %23 : vector<2x16x1xf32> to vector<2x16x16xf32>
    %25 = arith.subf %21, %24 : vector<2x16x16xf32>
    %26 = math.exp %25 : vector<2x16x16xf32>
    %cst_14 = arith.constant dense<0.000000e+00> : vector<2x16xf32>
    %27 = vector.multi_reduction <add>, %26, %cst_14 [2] : vector<2x16x16xf32> to vector<2x16xf32>
    %28 = vector.shape_cast %27 : vector<2x16xf32> to vector<2x16x1xf32>
    %29 = tpu.reciprocal %28 {approx = true} : vector<2x16x1xf32> -> vector<2x16x1xf32>
    %30 = vector.broadcast %29 : vector<2x16x1xf32> to vector<2x16x16xf32>
    %31 = arith.mulf %26, %30 : vector<2x16x16xf32>
    "tpu.trace_start"() <{level = 10 : i32, message = "bqk,bkd->bqd"}> : () -> ()
    %cst_15 = arith.constant dense<0.000000e+00> : vector<2x16x8xf32>
    %32 = tpu.matmul %31, %18, %cst_15 {dimension_numbers = #tpu.dot_dimension_numbers<[2], [1], [1], [2], [0, 0, 0, 1, 1, 2], [0], [0]>} : vector<2x16x16xf32>, vector<2x16x8xf32>, vector<2x16x8xf32> -> vector<2x16x8xf32>
    "tpu.trace_stop"() : () -> ()
    %33 = vector.shape_cast %32 : vector<2x16x8xf32> to vector<32x8xf32>
    %34 = vector.extract_strided_slice %10 {offsets = [0, 0], sizes = [8, 32], strides = [1, 1]} : vector<32x32xf32> to vector<8x32xf32>
    %cst_16 = arith.constant dense<0.000000e+00> : vector<32x32xf32>
    %35 = tpu.matmul %33, %34, %cst_16 {dimension_numbers = #tpu.dot_dimension_numbers<[1], [0], [0], [1], [0, 0, 1, 1], [], []>} : vector<32x8xf32>, vector<8x32xf32>, vector<32x32xf32> -> vector<32x32xf32>
    %36 = arith.addf %12, %35 : vector<32x32xf32>
    %37 = vector.extract_strided_slice %7 {offsets = [0, 8], sizes = [32, 8], strides = [1, 1]} : vector<32x32xf32> to vector<32x8xf32>
    %38 = vector.shape_cast %37 : vector<32x8xf32> to vector<2x16x8xf32>
    %39 = vector.extract_strided_slice %8 {offsets = [0, 8], sizes = [32, 8], strides = [1, 1]} : vector<32x32xf32> to vector<32x8xf32>
    %40 = vector.shape_cast %39 : vector<32x8xf32> to vector<2x16x8xf32>
    %41 = vector.extract_strided_slice %9 {offsets = [0, 8], sizes = [32, 8], strides = [1, 1]} : vector<32x32xf32> to vector<32x8xf32>
    %42 = vector.shape_cast %41 : vector<32x8xf32> to vector<2x16x8xf32>
    "tpu.trace_start"() <{level = 10 : i32, message = "bqd,bkd->bqk"}> : () -> ()
    %cst_17 = arith.constant dense<0.000000e+00> : vector<2x16x16xf32>
    %43 = tpu.matmul %38, %40, %cst_17 {dimension_numbers = #tpu.dot_dimension_numbers<[2], [2], [1], [1], [0, 0, 0, 1, 1, 1], [0], [0]>} : vector<2x16x8xf32>, vector<2x16x8xf32>, vector<2x16x16xf32> -> vector<2x16x16xf32>
    "tpu.trace_stop"() : () -> ()
    %cst_18 = arith.constant 0.353553385 : f32
    %44 = vector.broadcast %cst_18 : f32 to vector<2x16x16xf32>
    %45 = arith.mulf %43, %44 : vector<2x16x16xf32>
    %cst_19 = arith.constant dense<0xFF800000> : vector<2x16xf32>
    %46 = vector.multi_reduction <maximumf>, %45, %cst_19 [2] : vector<2x16x16xf32> to vector<2x16xf32>
    %47 = vector.shape_cast %46 : vector<2x16xf32> to vector<2x16x1xf32>
    %48 = vector.broadcast %47 : vector<2x16x1xf32> to vector<2x16x16xf32>
    %49 = arith.subf %45, %48 : vector<2x16x16xf32>
    %50 = math.exp %49 : vector<2x16x16xf32>
    %cst_20 = arith.constant dense<0.000000e+00> : vector<2x16xf32>
    %51 = vector.multi_reduction <add>, %50, %cst_20 [2] : vector<2x16x16xf32> to vector<2x16xf32>
    %52 = vector.shape_cast %51 : vector<2x16xf32> to vector<2x16x1xf32>
    %53 = tpu.reciprocal %52 {approx = true} : vector<2x16x1xf32> -> vector<2x16x1xf32>
    %54 = vector.broadcast %53 : vector<2x16x1xf32> to vector<2x16x16xf32>
    %55 = arith.mulf %50, %54 : vector<2x16x16xf32>
    "tpu.trace_start"() <{level = 10 : i32, message = "bqk,bkd->bqd"}> : () -> ()
    %cst_21 = arith.constant dense<0.000000e+00> : vector<2x16x8xf32>
    %56 = tpu.matmul %55, %42, %cst_21 {dimension_numbers = #tpu.dot_dimension_numbers<[2], [1], [1], [2], [0, 0, 0, 1, 1, 2], [0], [0]>} : vector<2x16x16xf32>, vector<2x16x8xf32>, vector<2x16x8xf32> -> vector<2x16x8xf32>
    "tpu.trace_stop"() : () -> ()
    %57 = vector.shape_cast %56 : vector<2x16x8xf32> to vector<32x8xf32>
    %58 = vector.extract_strided_slice %10 {offsets = [8, 0], sizes = [8, 32], strides = [1, 1]} : vector<32x32xf32> to vector<8x32xf32>
    %cst_22 = arith.constant dense<0.000000e+00> : vector<32x32xf32>
    %59 = tpu.matmul %57, %58, %cst_22 {dimension_numbers = #tpu.dot_dimension_numbers<[1], [0], [0], [1], [0, 0, 1, 1], [], []>} : vector<32x8xf32>, vector<8x32xf32>, vector<32x32xf32> -> vector<32x32xf32>
    %60 = arith.addf %36, %59 : vector<32x32xf32>
    %61 = vector.extract_strided_slice %7 {offsets = [0, 16], sizes = [32, 8], strides = [1, 1]} : vector<32x32xf32> to vector<32x8xf32>
    %62 = vector.shape_cast %61 : vector<32x8xf32> to vector<2x16x8xf32>
    %63 = vector.extract_strided_slice %8 {offsets = [0, 16], sizes = [32, 8], strides = [1, 1]} : vector<32x32xf32> to vector<32x8xf32>
    %64 = vector.shape_cast %63 : vector<32x8xf32> to vector<2x16x8xf32>
    %65 = vector.extract_strided_slice %9 {offsets = [0, 16], sizes = [32, 8], strides = [1, 1]} : vector<32x32xf32> to vector<32x8xf32>
    %66 = vector.shape_cast %65 : vector<32x8xf32> to vector<2x16x8xf32>
    "tpu.trace_start"() <{level = 10 : i32, message = "bqd,bkd->bqk"}> : () -> ()
    %cst_23 = arith.constant dense<0.000000e+00> : vector<2x16x16xf32>
    %67 = tpu.matmul %62, %64, %cst_23 {dimension_numbers = #tpu.dot_dimension_numbers<[2], [2], [1], [1], [0, 0, 0, 1, 1, 1], [0], [0]>} : vector<2x16x8xf32>, vector<2x16x8xf32>, vector<2x16x16xf32> -> vector<2x16x16xf32>
    "tpu.trace_stop"() : () -> ()
    %cst_24 = arith.constant 0.353553385 : f32
    %68 = vector.broadcast %cst_24 : f32 to vector<2x16x16xf32>
    %69 = arith.mulf %67, %68 : vector<2x16x16xf32>
    %cst_25 = arith.constant dense<0xFF800000> : vector<2x16xf32>
    %70 = vector.multi_reduction <maximumf>, %69, %cst_25 [2] : vector<2x16x16xf32> to vector<2x16xf32>
    %71 = vector.shape_cast %70 : vector<2x16xf32> to vector<2x16x1xf32>
    %72 = vector.broadcast %71 : vector<2x16x1xf32> to vector<2x16x16xf32>
    %73 = arith.subf %69, %72 : vector<2x16x16xf32>
    %74 = math.exp %73 : vector<2x16x16xf32>
    %cst_26 = arith.constant dense<0.000000e+00> : vector<2x16xf32>
    %75 = vector.multi_reduction <add>, %74, %cst_26 [2] : vector<2x16x16xf32> to vector<2x16xf32>
    %76 = vector.shape_cast %75 : vector<2x16xf32> to vector<2x16x1xf32>
    %77 = tpu.reciprocal %76 {approx = true} : vector<2x16x1xf32> -> vector<2x16x1xf32>
    %78 = vector.broadcast %77 : vector<2x16x1xf32> to vector<2x16x16xf32>
    %79 = arith.mulf %74, %78 : vector<2x16x16xf32>
    "tpu.trace_start"() <{level = 10 : i32, message = "bqk,bkd->bqd"}> : () -> ()
    %cst_27 = arith.constant dense<0.000000e+00> : vector<2x16x8xf32>
    %80 = tpu.matmul %79, %66, %cst_27 {dimension_numbers = #tpu.dot_dimension_numbers<[2], [1], [1], [2], [0, 0, 0, 1, 1, 2], [0], [0]>} : vector<2x16x16xf32>, vector<2x16x8xf32>, vector<2x16x8xf32> -> vector<2x16x8xf32>
    "tpu.trace_stop"() : () -> ()
    %81 = vector.shape_cast %80 : vector<2x16x8xf32> to vector<32x8xf32>
    %82 = vector.extract_strided_slice %10 {offsets = [16, 0], sizes = [8, 32], strides = [1, 1]} : vector<32x32xf32> to vector<8x32xf32>
    %cst_28 = arith.constant dense<0.000000e+00> : vector<32x32xf32>
    %83 = tpu.matmul %81, %82, %cst_28 {dimension_numbers = #tpu.dot_dimension_numbers<[1], [0], [0], [1], [0, 0, 1, 1], [], []>} : vector<32x8xf32>, vector<8x32xf32>, vector<32x32xf32> -> vector<32x32xf32>
    %84 = arith.addf %60, %83 : vector<32x32xf32>
    %85 = vector.extract_strided_slice %7 {offsets = [0, 24], sizes = [32, 8], strides = [1, 1]} : vector<32x32xf32> to vector<32x8xf32>
    %86 = vector.shape_cast %85 : vector<32x8xf32> to vector<2x16x8xf32>
    %87 = vector.extract_strided_slice %8 {offsets = [0, 24], sizes = [32, 8], strides = [1, 1]} : vector<32x32xf32> to vector<32x8xf32>
    %88 = vector.shape_cast %87 : vector<32x8xf32> to vector<2x16x8xf32>
    %89 = vector.extract_strided_slice %9 {offsets = [0, 24], sizes = [32, 8], strides = [1, 1]} : vector<32x32xf32> to vector<32x8xf32>
    %90 = vector.shape_cast %89 : vector<32x8xf32> to vector<2x16x8xf32>
    "tpu.trace_start"() <{level = 10 : i32, message = "bqd,bkd->bqk"}> : () -> ()
    %cst_29 = arith.constant dense<0.000000e+00> : vector<2x16x16xf32>
    %91 = tpu.matmul %86, %88, %cst_29 {dimension_numbers = #tpu.dot_dimension_numbers<[2], [2], [1], [1], [0, 0, 0, 1, 1, 1], [0], [0]>} : vector<2x16x8xf32>, vector<2x16x8xf32>, vector<2x16x16xf32> -> vector<2x16x16xf32>
    "tpu.trace_stop"() : () -> ()
    %cst_30 = arith.constant 0.353553385 : f32
    %92 = vector.broadcast %cst_30 : f32 to vector<2x16x16xf32>
    %93 = arith.mulf %91, %92 : vector<2x16x16xf32>
    %cst_31 = arith.constant dense<0xFF800000> : vector<2x16xf32>
    %94 = vector.multi_reduction <maximumf>, %93, %cst_31 [2] : vector<2x16x16xf32> to vector<2x16xf32>
    %95 = vector.shape_cast %94 : vector<2x16xf32> to vector<2x16x1xf32>
    %96 = vector.broadcast %95 : vector<2x16x1xf32> to vector<2x16x16xf32>
    %97 = arith.subf %93, %96 : vector<2x16x16xf32>
    %98 = math.exp %97 : vector<2x16x16xf32>
    %cst_32 = arith.constant dense<0.000000e+00> : vector<2x16xf32>
    %99 = vector.multi_reduction <add>, %98, %cst_32 [2] : vector<2x16x16xf32> to vector<2x16xf32>
    %100 = vector.shape_cast %99 : vector<2x16xf32> to vector<2x16x1xf32>
    %101 = tpu.reciprocal %100 {approx = true} : vector<2x16x1xf32> -> vector<2x16x1xf32>
    %102 = vector.broadcast %101 : vector<2x16x1xf32> to vector<2x16x16xf32>
    %103 = arith.mulf %98, %102 : vector<2x16x16xf32>
    "tpu.trace_start"() <{level = 10 : i32, message = "bqk,bkd->bqd"}> : () -> ()
    %cst_33 = arith.constant dense<0.000000e+00> : vector<2x16x8xf32>
    %104 = tpu.matmul %103, %90, %cst_33 {dimension_numbers = #tpu.dot_dimension_numbers<[2], [1], [1], [2], [0, 0, 0, 1, 1, 2], [0], [0]>} : vector<2x16x16xf32>, vector<2x16x8xf32>, vector<2x16x8xf32> -> vector<2x16x8xf32>
    "tpu.trace_stop"() : () -> ()
    %105 = vector.shape_cast %104 : vector<2x16x8xf32> to vector<32x8xf32>
    %106 = vector.extract_strided_slice %10 {offsets = [24, 0], sizes = [8, 32], strides = [1, 1]} : vector<32x32xf32> to vector<8x32xf32>
    %cst_34 = arith.constant dense<0.000000e+00> : vector<32x32xf32>
    %107 = tpu.matmul %105, %106, %cst_34 {dimension_numbers = #tpu.dot_dimension_numbers<[1], [0], [0], [1], [0, 0, 1, 1], [], []>} : vector<32x8xf32>, vector<8x32xf32>, vector<32x32xf32> -> vector<32x32xf32>
    %108 = arith.addf %84, %107 : vector<32x32xf32>
    %109 = vector.broadcast %11 : vector<1x32xf32> to vector<32x32xf32>
    %110 = arith.addf %108, %109 : vector<32x32xf32>
    %111 = arith.addf %1, %110 : vector<32x32xf32>
    %c0_35 = arith.constant 0 : index
    %c0_36 = arith.constant 0 : index
    %112 = vector.load %arg5[%c0_35, %c0_36] : memref<1x32xf32, #tpu.memory_space<vmem>>, vector<1x32xf32>
    %c0_37 = arith.constant 0 : index
    %c0_38 = arith.constant 0 : index
    %113 = vector.load %arg6[%c0_37, %c0_38] : memref<1x32xf32, #tpu.memory_space<vmem>>, vector<1x32xf32>
    %cst_39 = arith.constant dense<0.000000e+00> : vector<32xf32>
    %114 = vector.multi_reduction <add>, %111, %cst_39 [1] : vector<32x32xf32> to vector<32xf32>
    %115 = vector.shape_cast %114 : vector<32xf32> to vector<32x1xf32>
    %cst_40 = arith.constant 3.200000e+01 : f32
    %116 = vector.broadcast %cst_40 : f32 to vector<32x1xf32>
    %117 = arith.divf %115, %116 : vector<32x1xf32>
    %118 = vector.broadcast %117 : vector<32x1xf32> to vector<32x32xf32>
    %119 = arith.subf %111, %118 : vector<32x32xf32>
    %120 = arith.mulf %119, %119 : vector<32x32xf32>
    %cst_41 = arith.constant dense<0.000000e+00> : vector<32xf32>
    %121 = vector.multi_reduction <add>, %120, %cst_41 [1] : vector<32x32xf32> to vector<32xf32>
    %122 = vector.shape_cast %121 : vector<32xf32> to vector<32x1xf32>
    %cst_42 = arith.constant 3.200000e+01 : f32
    %123 = vector.broadcast %cst_42 : f32 to vector<32x1xf32>
    %124 = arith.divf %122, %123 : vector<32x1xf32>
    %125 = vector.broadcast %117 : vector<32x1xf32> to vector<32x32xf32>
    %126 = arith.subf %111, %125 : vector<32x32xf32>
    %cst_43 = arith.constant 9.99999974E-6 : f32
    %127 = vector.broadcast %cst_43 : f32 to vector<32x1xf32>
    %128 = arith.addf %124, %127 : vector<32x1xf32>
    %129 = math.rsqrt %128 : vector<32x1xf32>
    %130 = vector.broadcast %129 : vector<32x1xf32> to vector<32x32xf32>
    %131 = arith.mulf %126, %130 : vector<32x32xf32>
    %132 = vector.broadcast %112 : vector<1x32xf32> to vector<32x32xf32>
    %133 = arith.mulf %131, %132 : vector<32x32xf32>
    %134 = vector.broadcast %113 : vector<1x32xf32> to vector<32x32xf32>
    %135 = arith.addf %133, %134 : vector<32x32xf32>
    %c0_44 = arith.constant 0 : index
    %c0_45 = arith.constant 0 : index
    %136 = vector.load %arg7[%c0_44, %c0_45] : memref<32x64xf32, #tpu.memory_space<vmem>>, vector<32x64xf32>
    %cst_46 = arith.constant dense<0.000000e+00> : vector<32x64xf32>
    %137 = tpu.matmul %135, %136, %cst_46 {dimension_numbers = #tpu.dot_dimension_numbers<[1], [0], [0], [1], [0, 0, 1, 1], [], []>} : vector<32x32xf32>, vector<32x64xf32>, vector<32x64xf32> -> vector<32x64xf32>
    %c0_47 = arith.constant 0 : index
    %c0_48 = arith.constant 0 : index
    %138 = vector.load %arg8[%c0_47, %c0_48] : memref<1x64xf32, #tpu.memory_space<vmem>>, vector<1x64xf32>
    %139 = vector.broadcast %138 : vector<1x64xf32> to vector<32x64xf32>
    %140 = arith.addf %137, %139 : vector<32x64xf32>
    %cst_49 = arith.constant 0.000000e+00 : f32
    %141 = vector.broadcast %cst_49 : f32 to vector<32x64xf32>
    %142 = arith.maximumf %140, %141 : vector<32x64xf32>
    %c0_50 = arith.constant 0 : index
    %c0_51 = arith.constant 0 : index
    %143 = vector.load %arg9[%c0_50, %c0_51] : memref<64x32xf32, #tpu.memory_space<vmem>>, vector<64x32xf32>
    %cst_52 = arith.constant dense<0.000000e+00> : vector<32x32xf32>
    %144 = tpu.matmul %142, %143, %cst_52 {dimension_numbers = #tpu.dot_dimension_numbers<[1], [0], [0], [1], [0, 0, 1, 1], [], []>} : vector<32x64xf32>, vector<64x32xf32>, vector<32x32xf32> -> vector<32x32xf32>
    %c0_53 = arith.constant 0 : index
    %c0_54 = arith.constant 0 : index
    %145 = vector.load %arg10[%c0_53, %c0_54] : memref<1x32xf32, #tpu.memory_space<vmem>>, vector<1x32xf32>
    %146 = vector.broadcast %145 : vector<1x32xf32> to vector<32x32xf32>
    %147 = arith.addf %144, %146 : vector<32x32xf32>
    %148 = arith.addf %135, %147 : vector<32x32xf32>
    %c0_55 = arith.constant 0 : index
    %c0_56 = arith.constant 0 : index
    %149 = vector.load %arg11[%c0_55, %c0_56] : memref<1x32xf32, #tpu.memory_space<vmem>>, vector<1x32xf32>
    %c0_57 = arith.constant 0 : index
    %c0_58 = arith.constant 0 : index
    %150 = vector.load %arg12[%c0_57, %c0_58] : memref<1x32xf32, #tpu.memory_space<vmem>>, vector<1x32xf32>
    %cst_59 = arith.constant dense<0.000000e+00> : vector<32xf32>
    %151 = vector.multi_reduction <add>, %148, %cst_59 [1] : vector<32x32xf32> to vector<32xf32>
    %152 = vector.shape_cast %151 : vector<32xf32> to vector<32x1xf32>
    %cst_60 = arith.constant 3.200000e+01 : f32
    %153 = vector.broadcast %cst_60 : f32 to vector<32x1xf32>
    %154 = arith.divf %152, %153 : vector<32x1xf32>
    %155 = vector.broadcast %154 : vector<32x1xf32> to vector<32x32xf32>
    %156 = arith.subf %148, %155 : vector<32x32xf32>
    %157 = arith.mulf %156, %156 : vector<32x32xf32>
    %cst_61 = arith.constant dense<0.000000e+00> : vector<32xf32>
    %158 = vector.multi_reduction <add>, %157, %cst_61 [1] : vector<32x32xf32> to vector<32xf32>
    %159 = vector.shape_cast %158 : vector<32xf32> to vector<32x1xf32>
    %cst_62 = arith.constant 3.200000e+01 : f32
    %160 = vector.broadcast %cst_62 : f32 to vector<32x1xf32>
    %161 = arith.divf %159, %160 : vector<32x1xf32>
    %162 = vector.broadcast %154 : vector<32x1xf32> to vector<32x32xf32>
    %163 = arith.subf %148, %162 : vector<32x32xf32>
    %cst_63 = arith.constant 9.99999974E-6 : f32
    %164 = vector.broadcast %cst_63 : f32 to vector<32x1xf32>
    %165 = arith.addf %161, %164 : vector<32x1xf32>
    %166 = math.rsqrt %165 : vector<32x1xf32>
    %167 = vector.broadcast %166 : vector<32x1xf32> to vector<32x32xf32>
    %168 = arith.mulf %163, %167 : vector<32x32xf32>
    %169 = vector.broadcast %149 : vector<1x32xf32> to vector<32x32xf32>
    %170 = arith.mulf %168, %169 : vector<32x32xf32>
    %171 = vector.broadcast %150 : vector<1x32xf32> to vector<32x32xf32>
    %172 = arith.addf %170, %171 : vector<32x32xf32>
    %173 = vector.shape_cast %172 : vector<32x32xf32> to vector<2x16x32xf32>
    %c0_64 = arith.constant 0 : index
    %c0_65 = arith.constant 0 : index
    %c0_66 = arith.constant 0 : index
    %174 = vector.load %arg13[%c0_64, %c0_65, %c0_66] : memref<2x16x32xf32, #tpu.memory_space<vmem>>, vector<2x16x32xf32>
    tpu.vector_store %arg13[%c0_64, %c0_65, %c0_66], %173 {strides = array<i32>} : memref<2x16x32xf32, #tpu.memory_space<vmem>>, vector<2x16x32xf32>,
    return
  }
}

module attributes {stable_mosaic.version = 11 : i64} {
  func.func @_predictor_kernel(%arg0: memref<16x32xf32, #tpu.memory_space<vmem>>, %arg1: memref<32x50xf32, #tpu.memory_space<vmem>>, %arg2: memref<16x50xf32, #tpu.memory_space<vmem>>) attributes {dimension_semantics = [], scalar_prefetch = 0 : i64, scratch_operands = 0 : i64, tpu.core_type = #tpu.core_type<tc>} {
    %c0 = arith.constant 0 : index
    %c0_0 = arith.constant 0 : index
    %0 = vector.load %arg0[%c0, %c0_0] : memref<16x32xf32, #tpu.memory_space<vmem>>, vector<16x32xf32>
    %c0_1 = arith.constant 0 : index
    %c0_2 = arith.constant 0 : index
    %1 = vector.load %arg1[%c0_1, %c0_2] : memref<32x50xf32, #tpu.memory_space<vmem>>, vector<32x50xf32>
    %cst = arith.constant dense<0.000000e+00> : vector<16x50xf32>
    %2 = tpu.matmul %0, %1, %cst {dimension_numbers = #tpu.dot_dimension_numbers<[1], [0], [0], [1], [0, 0, 1, 1], [], []>} : vector<16x32xf32>, vector<32x50xf32>, vector<16x50xf32> -> vector<16x50xf32>
    %c0_3 = arith.constant 0 : index
    %c0_4 = arith.constant 0 : index
    %3 = vector.load %arg2[%c0_3, %c0_4] : memref<16x50xf32, #tpu.memory_space<vmem>>, vector<16x50xf32>
    tpu.vector_store %arg2[%c0_3, %c0_4], %2 {strides = array<i32>} : memref<16x50xf32, #tpu.memory_space<vmem>>, vector<16x50xf32>,
    return
  }
}

module attributes {stable_mosaic.version = 11 : i64} {
  func.func @_decoder_layer_kernel(%arg0: memref<2x8x32xf32, #tpu.memory_space<vmem>>, %arg1: memref<2x16x32xf32, #tpu.memory_space<vmem>>, %arg2: memref<2x8x8xf32, #tpu.memory_space<vmem>>, %arg3: memref<32x96xf32, #tpu.memory_space<vmem>>, %arg4: memref<1x96xf32, #tpu.memory_space<vmem>>, %arg5: memref<32x32xf32, #tpu.memory_space<vmem>>, %arg6: memref<1x32xf32, #tpu.memory_space<vmem>>, %arg7: memref<1x32xf32, #tpu.memory_space<vmem>>, %arg8: memref<1x32xf32, #tpu.memory_space<vmem>>, %arg9: memref<32x32xf32, #tpu.memory_space<vmem>>, %arg10: memref<1x32xf32, #tpu.memory_space<vmem>>, %arg11: memref<32x64xf32, #tpu.memory_space<vmem>>, %arg12: memref<1x64xf32, #tpu.memory_space<vmem>>, %arg13: memref<32x32xf32, #tpu.memory_space<vmem>>, %arg14: memref<1x32xf32, #tpu.memory_space<vmem>>, %arg15: memref<1x32xf32, #tpu.memory_space<vmem>>, %arg16: memref<1x32xf32, #tpu.memory_space<vmem>>, %arg17: memref<32x64xf32, #tpu.memory_space<vmem>>, %arg18: memref<1x64xf32, #tpu.memory_space<vmem>>, %arg19: memref<64x32xf32, #tpu.memory_space<vmem>>, %arg20: memref<1x32xf32, #tpu.memory_space<vmem>>, %arg21: memref<1x32xf32, #tpu.memory_space<vmem>>, %arg22: memref<1x32xf32, #tpu.memory_space<vmem>>, %arg23: memref<2x8x32xf32, #tpu.memory_space<vmem>>, %arg24: memref<2x8x16xf32, #tpu.memory_space<vmem>>) attributes {dimension_semantics = [], scalar_prefetch = 0 : i64, scratch_operands = 0 : i64, tpu.core_type = #tpu.core_type<tc>} {
    %c0 = arith.constant 0 : index
    %c0_0 = arith.constant 0 : index
    %c0_1 = arith.constant 0 : index
    %0 = vector.load %arg0[%c0, %c0_0, %c0_1] : memref<2x8x32xf32, #tpu.memory_space<vmem>>, vector<2x8x32xf32>
    %1 = vector.shape_cast %0 : vector<2x8x32xf32> to vector<16x32xf32>
    %c0_2 = arith.constant 0 : index
    %c0_3 = arith.constant 0 : index
    %c0_4 = arith.constant 0 : index
    %2 = vector.load %arg2[%c0_2, %c0_3, %c0_4] : memref<2x8x8xf32, #tpu.memory_space<vmem>>, vector<2x8x8xf32>
    %c0_5 = arith.constant 0 : index
    %c0_6 = arith.constant 0 : index
    %3 = vector.load %arg3[%c0_5, %c0_6] : memref<32x96xf32, #tpu.memory_space<vmem>>, vector<32x96xf32>
    %cst = arith.constant dense<0.000000e+00> : vector<16x96xf32>
    %4 = tpu.matmul %1, %3, %cst {dimension_numbers = #tpu.dot_dimension_numbers<[1], [0], [0], [1], [0, 0, 1, 1], [], []>} : vector<16x32xf32>, vector<32x96xf32>, vector<16x96xf32> -> vector<16x96xf32>
    %c0_7 = arith.constant 0 : index
    %c0_8 = arith.constant 0 : index
    %5 = vector.load %arg4[%c0_7, %c0_8] : memref<1x96xf32, #tpu.memory_space<vmem>>, vector<1x96xf32>
    %6 = vector.broadcast %5 : vector<1x96xf32> to vector<16x96xf32>
    %7 = arith.addf %4, %6 : vector<16x96xf32>
    %8 = vector.extract_strided_slice %7 {offsets = [0, 0], sizes = [16, 32], strides = [1, 1]} : vector<16x96xf32> to vector<16x32xf32>
    %9 = vector.extract_strided_slice %7 {offsets = [0, 32], sizes = [16, 32], strides = [1, 1]} : vector<16x96xf32> to vector<16x32xf32>
    %10 = vector.extract_strided_slice %7 {offsets = [0, 64], sizes = [16, 32], strides = [1, 1]} : vector<16x96xf32> to vector<16x32xf32>
    %c0_9 = arith.constant 0 : index
    %c0_10 = arith.constant 0 : index
    %11 = vector.load %arg5[%c0_9, %c0_10] : memref<32x32xf32, #tpu.memory_space<vmem>>, vector<32x32xf32>
    %c0_11 = arith.constant 0 : index
    %c0_12 = arith.constant 0 : index
    %12 = vector.load %arg6[%c0_11, %c0_12] : memref<1x32xf32, #tpu.memory_space<vmem>>, vector<1x32xf32>
    %cst_13 = arith.constant 0.000000e+00 : f32
    %13 = vector.broadcast %cst_13 : f32 to vector<16x32xf32>
    %14 = vector.extract_strided_slice %8 {offsets = [0, 0], sizes = [16, 8], strides = [1, 1]} : vector<16x32xf32> to vector<16x8xf32>
    %15 = vector.shape_cast %14 : vector<16x8xf32> to vector<2x8x8xf32>
    %16 = vector.extract_strided_slice %9 {offsets = [0, 0], sizes = [16, 8], strides = [1, 1]} : vector<16x32xf32> to vector<16x8xf32>
    %17 = vector.shape_cast %16 : vector<16x8xf32> to vector<2x8x8xf32>
    %18 = vector.extract_strided_slice %10 {offsets = [0, 0], sizes = [16, 8], strides = [1, 1]} : vector<16x32xf32> to vector<16x8xf32>
    %19 = vector.shape_cast %18 : vector<16x8xf32> to vector<2x8x8xf32>
    "tpu.trace_start"() <{level = 10 : i32, message = "bqd,bkd->bqk"}> : () -> ()
    %cst_14 = arith.constant dense<0.000000e+00> : vector<2x8x8xf32>
    %20 = tpu.matmul %15, %17, %cst_14 {dimension_numbers = #tpu.dot_dimension_numbers<[2], [2], [1], [1], [0, 0, 0, 1, 1, 1], [0], [0]>} : vector<2x8x8xf32>, vector<2x8x8xf32>, vector<2x8x8xf32> -> vector<2x8x8xf32>
    "tpu.trace_stop"() : () -> ()
    %cst_15 = arith.constant 0.353553385 : f32
    %21 = vector.broadcast %cst_15 : f32 to vector<2x8x8xf32>
    %22 = arith.mulf %20, %21 : vector<2x8x8xf32>
    %23 = arith.addf %22, %2 : vector<2x8x8xf32>
    %cst_16 = arith.constant dense<0xFF800000> : vector<2x8xf32>
    %24 = vector.multi_reduction <maximumf>, %23, %cst_16 [2] : vector<2x8x8xf32> to vector<2x8xf32>
    %25 = vector.shape_cast %24 : vector<2x8xf32> to vector<2x8x1xf32>
    %26 = vector.broadcast %25 : vector<2x8x1xf32> to vector<2x8x8xf32>
    %27 = arith.subf %23, %26 : vector<2x8x8xf32>
    %28 = math.exp %27 : vector<2x8x8xf32>
    %cst_17 = arith.constant dense<0.000000e+00> : vector<2x8xf32>
    %29 = vector.multi_reduction <add>, %28, %cst_17 [2] : vector<2x8x8xf32> to vector<2x8xf32>
    %30 = vector.shape_cast %29 : vector<2x8xf32> to vector<2x8x1xf32>
    %31 = tpu.reciprocal %30 {approx = true} : vector<2x8x1xf32> -> vector<2x8x1xf32>
    %32 = vector.broadcast %31 : vector<2x8x1xf32> to vector<2x8x8xf32>
    %33 = arith.mulf %28, %32 : vector<2x8x8xf32>
    "tpu.trace_start"() <{level = 10 : i32, message = "bqk,bkd->bqd"}> : () -> ()
    %cst_18 = arith.constant dense<0.000000e+00> : vector<2x8x8xf32>
    %34 = tpu.matmul %33, %19, %cst_18 {dimension_numbers = #tpu.dot_dimension_numbers<[2], [1], [1], [2], [0, 0, 0, 1, 1, 2], [0], [0]>} : vector<2x8x8xf32>, vector<2x8x8xf32>, vector<2x8x8xf32> -> vector<2x8x8xf32>
    "tpu.trace_stop"() : () -> ()
    %35 = vector.shape_cast %34 : vector<2x8x8xf32> to vector<16x8xf32>
    %36 = vector.extract_strided_slice %11 {offsets = [0, 0], sizes = [8, 32], strides = [1, 1]} : vector<32x32xf32> to vector<8x32xf32>
    %cst_19 = arith.constant dense<0.000000e+00> : vector<16x32xf32>
    %37 = tpu.matmul %35, %36, %cst_19 {dimension_numbers = #tpu.dot_dimension_numbers<[1], [0], [0], [1], [0, 0, 1, 1], [], []>} : vector<16x8xf32>, vector<8x32xf32>, vector<16x32xf32> -> vector<16x32xf32>
    %38 = arith.addf %13, %37 : vector<16x32xf32>
    %39 = vector.extract_strided_slice %8 {offsets = [0, 8], sizes = [16, 8], strides = [1, 1]} : vector<16x32xf32> to vector<16x8xf32>
    %40 = vector.shape_cast %39 : vector<16x8xf32> to vector<2x8x8xf32>
    %41 = vector.extract_strided_slice %9 {offsets = [0, 8], sizes = [16, 8], strides = [1, 1]} : vector<16x32xf32> to vector<16x8xf32>
    %42 = vector.shape_cast %41 : vector<16x8xf32> to vector<2x8x8xf32>
    %43 = vector.extract_strided_slice %10 {offsets = [0, 8], sizes = [16, 8], strides = [1, 1]} : vector<16x32xf32> to vector<16x8xf32>
    %44 = vector.shape_cast %43 : vector<16x8xf32> to vector<2x8x8xf32>
    "tpu.trace_start"() <{level = 10 : i32, message = "bqd,bkd->bqk"}> : () -> ()
    %cst_20 = arith.constant dense<0.000000e+00> : vector<2x8x8xf32>
    %45 = tpu.matmul %40, %42, %cst_20 {dimension_numbers = #tpu.dot_dimension_numbers<[2], [2], [1], [1], [0, 0, 0, 1, 1, 1], [0], [0]>} : vector<2x8x8xf32>, vector<2x8x8xf32>, vector<2x8x8xf32> -> vector<2x8x8xf32>
    "tpu.trace_stop"() : () -> ()
    %cst_21 = arith.constant 0.353553385 : f32
    %46 = vector.broadcast %cst_21 : f32 to vector<2x8x8xf32>
    %47 = arith.mulf %45, %46 : vector<2x8x8xf32>
    %48 = arith.addf %47, %2 : vector<2x8x8xf32>
    %cst_22 = arith.constant dense<0xFF800000> : vector<2x8xf32>
    %49 = vector.multi_reduction <maximumf>, %48, %cst_22 [2] : vector<2x8x8xf32> to vector<2x8xf32>
    %50 = vector.shape_cast %49 : vector<2x8xf32> to vector<2x8x1xf32>
    %51 = vector.broadcast %50 : vector<2x8x1xf32> to vector<2x8x8xf32>
    %52 = arith.subf %48, %51 : vector<2x8x8xf32>
    %53 = math.exp %52 : vector<2x8x8xf32>
    %cst_23 = arith.constant dense<0.000000e+00> : vector<2x8xf32>
    %54 = vector.multi_reduction <add>, %53, %cst_23 [2] : vector<2x8x8xf32> to vector<2x8xf32>
    %55 = vector.shape_cast %54 : vector<2x8xf32> to vector<2x8x1xf32>
    %56 = tpu.reciprocal %55 {approx = true} : vector<2x8x1xf32> -> vector<2x8x1xf32>
    %57 = vector.broadcast %56 : vector<2x8x1xf32> to vector<2x8x8xf32>
    %58 = arith.mulf %53, %57 : vector<2x8x8xf32>
    "tpu.trace_start"() <{level = 10 : i32, message = "bqk,bkd->bqd"}> : () -> ()
    %cst_24 = arith.constant dense<0.000000e+00> : vector<2x8x8xf32>
    %59 = tpu.matmul %58, %44, %cst_24 {dimension_numbers = #tpu.dot_dimension_numbers<[2], [1], [1], [2], [0, 0, 0, 1, 1, 2], [0], [0]>} : vector<2x8x8xf32>, vector<2x8x8xf32>, vector<2x8x8xf32> -> vector<2x8x8xf32>
    "tpu.trace_stop"() : () -> ()
    %60 = vector.shape_cast %59 : vector<2x8x8xf32> to vector<16x8xf32>
    %61 = vector.extract_strided_slice %11 {offsets = [8, 0], sizes = [8, 32], strides = [1, 1]} : vector<32x32xf32> to vector<8x32xf32>
    %cst_25 = arith.constant dense<0.000000e+00> : vector<16x32xf32>
    %62 = tpu.matmul %60, %61, %cst_25 {dimension_numbers = #tpu.dot_dimension_numbers<[1], [0], [0], [1], [0, 0, 1, 1], [], []>} : vector<16x8xf32>, vector<8x32xf32>, vector<16x32xf32> -> vector<16x32xf32>
    %63 = arith.addf %38, %62 : vector<16x32xf32>
    %64 = vector.extract_strided_slice %8 {offsets = [0, 16], sizes = [16, 8], strides = [1, 1]} : vector<16x32xf32> to vector<16x8xf32>
    %65 = vector.shape_cast %64 : vector<16x8xf32> to vector<2x8x8xf32>
    %66 = vector.extract_strided_slice %9 {offsets = [0, 16], sizes = [16, 8], strides = [1, 1]} : vector<16x32xf32> to vector<16x8xf32>
    %67 = vector.shape_cast %66 : vector<16x8xf32> to vector<2x8x8xf32>
    %68 = vector.extract_strided_slice %10 {offsets = [0, 16], sizes = [16, 8], strides = [1, 1]} : vector<16x32xf32> to vector<16x8xf32>
    %69 = vector.shape_cast %68 : vector<16x8xf32> to vector<2x8x8xf32>
    "tpu.trace_start"() <{level = 10 : i32, message = "bqd,bkd->bqk"}> : () -> ()
    %cst_26 = arith.constant dense<0.000000e+00> : vector<2x8x8xf32>
    %70 = tpu.matmul %65, %67, %cst_26 {dimension_numbers = #tpu.dot_dimension_numbers<[2], [2], [1], [1], [0, 0, 0, 1, 1, 1], [0], [0]>} : vector<2x8x8xf32>, vector<2x8x8xf32>, vector<2x8x8xf32> -> vector<2x8x8xf32>
    "tpu.trace_stop"() : () -> ()
    %cst_27 = arith.constant 0.353553385 : f32
    %71 = vector.broadcast %cst_27 : f32 to vector<2x8x8xf32>
    %72 = arith.mulf %70, %71 : vector<2x8x8xf32>
    %73 = arith.addf %72, %2 : vector<2x8x8xf32>
    %cst_28 = arith.constant dense<0xFF800000> : vector<2x8xf32>
    %74 = vector.multi_reduction <maximumf>, %73, %cst_28 [2] : vector<2x8x8xf32> to vector<2x8xf32>
    %75 = vector.shape_cast %74 : vector<2x8xf32> to vector<2x8x1xf32>
    %76 = vector.broadcast %75 : vector<2x8x1xf32> to vector<2x8x8xf32>
    %77 = arith.subf %73, %76 : vector<2x8x8xf32>
    %78 = math.exp %77 : vector<2x8x8xf32>
    %cst_29 = arith.constant dense<0.000000e+00> : vector<2x8xf32>
    %79 = vector.multi_reduction <add>, %78, %cst_29 [2] : vector<2x8x8xf32> to vector<2x8xf32>
    %80 = vector.shape_cast %79 : vector<2x8xf32> to vector<2x8x1xf32>
    %81 = tpu.reciprocal %80 {approx = true} : vector<2x8x1xf32> -> vector<2x8x1xf32>
    %82 = vector.broadcast %81 : vector<2x8x1xf32> to vector<2x8x8xf32>
    %83 = arith.mulf %78, %82 : vector<2x8x8xf32>
    "tpu.trace_start"() <{level = 10 : i32, message = "bqk,bkd->bqd"}> : () -> ()
    %cst_30 = arith.constant dense<0.000000e+00> : vector<2x8x8xf32>
    %84 = tpu.matmul %83, %69, %cst_30 {dimension_numbers = #tpu.dot_dimension_numbers<[2], [1], [1], [2], [0, 0, 0, 1, 1, 2], [0], [0]>} : vector<2x8x8xf32>, vector<2x8x8xf32>, vector<2x8x8xf32> -> vector<2x8x8xf32>
    "tpu.trace_stop"() : () -> ()
    %85 = vector.shape_cast %84 : vector<2x8x8xf32> to vector<16x8xf32>
    %86 = vector.extract_strided_slice %11 {offsets = [16, 0], sizes = [8, 32], strides = [1, 1]} : vector<32x32xf32> to vector<8x32xf32>
    %cst_31 = arith.constant dense<0.000000e+00> : vector<16x32xf32>
    %87 = tpu.matmul %85, %86, %cst_31 {dimension_numbers = #tpu.dot_dimension_numbers<[1], [0], [0], [1], [0, 0, 1, 1], [], []>} : vector<16x8xf32>, vector<8x32xf32>, vector<16x32xf32> -> vector<16x32xf32>
    %88 = arith.addf %63, %87 : vector<16x32xf32>
    %89 = vector.extract_strided_slice %8 {offsets = [0, 24], sizes = [16, 8], strides = [1, 1]} : vector<16x32xf32> to vector<16x8xf32>
    %90 = vector.shape_cast %89 : vector<16x8xf32> to vector<2x8x8xf32>
    %91 = vector.extract_strided_slice %9 {offsets = [0, 24], sizes = [16, 8], strides = [1, 1]} : vector<16x32xf32> to vector<16x8xf32>
    %92 = vector.shape_cast %91 : vector<16x8xf32> to vector<2x8x8xf32>
    %93 = vector.extract_strided_slice %10 {offsets = [0, 24], sizes = [16, 8], strides = [1, 1]} : vector<16x32xf32> to vector<16x8xf32>
    %94 = vector.shape_cast %93 : vector<16x8xf32> to vector<2x8x8xf32>
    "tpu.trace_start"() <{level = 10 : i32, message = "bqd,bkd->bqk"}> : () -> ()
    %cst_32 = arith.constant dense<0.000000e+00> : vector<2x8x8xf32>
    %95 = tpu.matmul %90, %92, %cst_32 {dimension_numbers = #tpu.dot_dimension_numbers<[2], [2], [1], [1], [0, 0, 0, 1, 1, 1], [0], [0]>} : vector<2x8x8xf32>, vector<2x8x8xf32>, vector<2x8x8xf32> -> vector<2x8x8xf32>
    "tpu.trace_stop"() : () -> ()
    %cst_33 = arith.constant 0.353553385 : f32
    %96 = vector.broadcast %cst_33 : f32 to vector<2x8x8xf32>
    %97 = arith.mulf %95, %96 : vector<2x8x8xf32>
    %98 = arith.addf %97, %2 : vector<2x8x8xf32>
    %cst_34 = arith.constant dense<0xFF800000> : vector<2x8xf32>
    %99 = vector.multi_reduction <maximumf>, %98, %cst_34 [2] : vector<2x8x8xf32> to vector<2x8xf32>
    %100 = vector.shape_cast %99 : vector<2x8xf32> to vector<2x8x1xf32>
    %101 = vector.broadcast %100 : vector<2x8x1xf32> to vector<2x8x8xf32>
    %102 = arith.subf %98, %101 : vector<2x8x8xf32>
    %103 = math.exp %102 : vector<2x8x8xf32>
    %cst_35 = arith.constant dense<0.000000e+00> : vector<2x8xf32>
    %104 = vector.multi_reduction <add>, %103, %cst_35 [2] : vector<2x8x8xf32> to vector<2x8xf32>
    %105 = vector.shape_cast %104 : vector<2x8xf32> to vector<2x8x1xf32>
    %106 = tpu.reciprocal %105 {approx = true} : vector<2x8x1xf32> -> vector<2x8x1xf32>
    %107 = vector.broadcast %106 : vector<2x8x1xf32> to vector<2x8x8xf32>
    %108 = arith.mulf %103, %107 : vector<2x8x8xf32>
    "tpu.trace_start"() <{level = 10 : i32, message = "bqk,bkd->bqd"}> : () -> ()
    %cst_36 = arith.constant dense<0.000000e+00> : vector<2x8x8xf32>
    %109 = tpu.matmul %108, %94, %cst_36 {dimension_numbers = #tpu.dot_dimension_numbers<[2], [1], [1], [2], [0, 0, 0, 1, 1, 2], [0], [0]>} : vector<2x8x8xf32>, vector<2x8x8xf32>, vector<2x8x8xf32> -> vector<2x8x8xf32>
    "tpu.trace_stop"() : () -> ()
    %110 = vector.shape_cast %109 : vector<2x8x8xf32> to vector<16x8xf32>
    %111 = vector.extract_strided_slice %11 {offsets = [24, 0], sizes = [8, 32], strides = [1, 1]} : vector<32x32xf32> to vector<8x32xf32>
    %cst_37 = arith.constant dense<0.000000e+00> : vector<16x32xf32>
    %112 = tpu.matmul %110, %111, %cst_37 {dimension_numbers = #tpu.dot_dimension_numbers<[1], [0], [0], [1], [0, 0, 1, 1], [], []>} : vector<16x8xf32>, vector<8x32xf32>, vector<16x32xf32> -> vector<16x32xf32>
    %113 = arith.addf %88, %112 : vector<16x32xf32>
    %114 = vector.broadcast %12 : vector<1x32xf32> to vector<16x32xf32>
    %115 = arith.addf %113, %114 : vector<16x32xf32>
    %116 = arith.addf %1, %115 : vector<16x32xf32>
    %c0_38 = arith.constant 0 : index
    %c0_39 = arith.constant 0 : index
    %117 = vector.load %arg7[%c0_38, %c0_39] : memref<1x32xf32, #tpu.memory_space<vmem>>, vector<1x32xf32>
    %c0_40 = arith.constant 0 : index
    %c0_41 = arith.constant 0 : index
    %118 = vector.load %arg8[%c0_40, %c0_41] : memref<1x32xf32, #tpu.memory_space<vmem>>, vector<1x32xf32>
    %cst_42 = arith.constant dense<0.000000e+00> : vector<16xf32>
    %119 = vector.multi_reduction <add>, %116, %cst_42 [1] : vector<16x32xf32> to vector<16xf32>
    %120 = vector.shape_cast %119 : vector<16xf32> to vector<16x1xf32>
    %cst_43 = arith.constant 3.200000e+01 : f32
    %121 = vector.broadcast %cst_43 : f32 to vector<16x1xf32>
    %122 = arith.divf %120, %121 : vector<16x1xf32>
    %123 = vector.broadcast %122 : vector<16x1xf32> to vector<16x32xf32>
    %124 = arith.subf %116, %123 : vector<16x32xf32>
    %125 = arith.mulf %124, %124 : vector<16x32xf32>
    %cst_44 = arith.constant dense<0.000000e+00> : vector<16xf32>
    %126 = vector.multi_reduction <add>, %125, %cst_44 [1] : vector<16x32xf32> to vector<16xf32>
    %127 = vector.shape_cast %126 : vector<16xf32> to vector<16x1xf32>
    %cst_45 = arith.constant 3.200000e+01 : f32
    %128 = vector.broadcast %cst_45 : f32 to vector<16x1xf32>
    %129 = arith.divf %127, %128 : vector<16x1xf32>
    %130 = vector.broadcast %122 : vector<16x1xf32> to vector<16x32xf32>
    %131 = arith.subf %116, %130 : vector<16x32xf32>
    %cst_46 = arith.constant 9.99999974E-6 : f32
    %132 = vector.broadcast %cst_46 : f32 to vector<16x1xf32>
    %133 = arith.addf %129, %132 : vector<16x1xf32>
    %134 = math.rsqrt %133 : vector<16x1xf32>
    %135 = vector.broadcast %134 : vector<16x1xf32> to vector<16x32xf32>
    %136 = arith.mulf %131, %135 : vector<16x32xf32>
    %137 = vector.broadcast %117 : vector<1x32xf32> to vector<16x32xf32>
    %138 = arith.mulf %136, %137 : vector<16x32xf32>
    %139 = vector.broadcast %118 : vector<1x32xf32> to vector<16x32xf32>
    %140 = arith.addf %138, %139 : vector<16x32xf32>
    %c0_47 = arith.constant 0 : index
    %c0_48 = arith.constant 0 : index
    %c0_49 = arith.constant 0 : index
    %141 = vector.load %arg1[%c0_47, %c0_48, %c0_49] : memref<2x16x32xf32, #tpu.memory_space<vmem>>, vector<2x16x32xf32>
    %142 = vector.shape_cast %141 : vector<2x16x32xf32> to vector<32x32xf32>
    %c0_50 = arith.constant 0 : index
    %c0_51 = arith.constant 0 : index
    %143 = vector.load %arg9[%c0_50, %c0_51] : memref<32x32xf32, #tpu.memory_space<vmem>>, vector<32x32xf32>
    %cst_52 = arith.constant dense<0.000000e+00> : vector<16x32xf32>
    %144 = tpu.matmul %140, %143, %cst_52 {dimension_numbers = #tpu.dot_dimension_numbers<[1], [0], [0], [1], [0, 0, 1, 1], [], []>} : vector<16x32xf32>, vector<32x32xf32>, vector<16x32xf32> -> vector<16x32xf32>
    %c0_53 = arith.constant 0 : index
    %c0_54 = arith.constant 0 : index
    %145 = vector.load %arg10[%c0_53, %c0_54] : memref<1x32xf32, #tpu.memory_space<vmem>>, vector<1x32xf32>
    %146 = vector.broadcast %145 : vector<1x32xf32> to vector<16x32xf32>
    %147 = arith.addf %144, %146 : vector<16x32xf32>
    %c0_55 = arith.constant 0 : index
    %c0_56 = arith.constant 0 : index
    %148 = vector.load %arg11[%c0_55, %c0_56] : memref<32x64xf32, #tpu.memory_space<vmem>>, vector<32x64xf32>
    %cst_57 = arith.constant dense<0.000000e+00> : vector<32x64xf32>
    %149 = tpu.matmul %142, %148, %cst_57 {dimension_numbers = #tpu.dot_dimension_numbers<[1], [0], [0], [1], [0, 0, 1, 1], [], []>} : vector<32x32xf32>, vector<32x64xf32>, vector<32x64xf32> -> vector<32x64xf32>
    %c0_58 = arith.constant 0 : index
    %c0_59 = arith.constant 0 : index
    %150 = vector.load %arg12[%c0_58, %c0_59] : memref<1x64xf32, #tpu.memory_space<vmem>>, vector<1x64xf32>
    %151 = vector.broadcast %150 : vector<1x64xf32> to vector<32x64xf32>
    %152 = arith.addf %149, %151 : vector<32x64xf32>
    %153 = vector.extract_strided_slice %152 {offsets = [0, 0], sizes = [32, 32], strides = [1, 1]} : vector<32x64xf32> to vector<32x32xf32>
    %154 = vector.extract_strided_slice %152 {offsets = [0, 32], sizes = [32, 32], strides = [1, 1]} : vector<32x64xf32> to vector<32x32xf32>
    %c0_60 = arith.constant 0 : index
    %c0_61 = arith.constant 0 : index
    %155 = vector.load %arg13[%c0_60, %c0_61] : memref<32x32xf32, #tpu.memory_space<vmem>>, vector<32x32xf32>
    %c0_62 = arith.constant 0 : index
    %c0_63 = arith.constant 0 : index
    %156 = vector.load %arg14[%c0_62, %c0_63] : memref<1x32xf32, #tpu.memory_space<vmem>>, vector<1x32xf32>
    %cst_64 = arith.constant 0.000000e+00 : f32
    %157 = vector.broadcast %cst_64 : f32 to vector<16x32xf32>
    %cst_65 = arith.constant 0.000000e+00 : f32
    %158 = vector.broadcast %cst_65 : f32 to vector<2x8x16xf32>
    %159 = vector.extract_strided_slice %147 {offsets = [0, 0], sizes = [16, 8], strides = [1, 1]} : vector<16x32xf32> to vector<16x8xf32>
    %160 = vector.shape_cast %159 : vector<16x8xf32> to vector<2x8x8xf32>
    %161 = vector.extract_strided_slice %153 {offsets = [0, 0], sizes = [32, 8], strides = [1, 1]} : vector<32x32xf32> to vector<32x8xf32>
    %162 = vector.shape_cast %161 : vector<32x8xf32> to vector<2x16x8xf32>
    %163 = vector.extract_strided_slice %154 {offsets = [0, 0], sizes = [32, 8], strides = [1, 1]} : vector<32x32xf32> to vector<32x8xf32>
    %164 = vector.shape_cast %163 : vector<32x8xf32> to vector<2x16x8xf32>
    "tpu.trace_start"() <{level = 10 : i32, message = "bqd,bkd->bqk"}> : () -> ()
    %cst_66 = arith.constant dense<0.000000e+00> : vector<2x8x16xf32>
    %165 = tpu.matmul %160, %162, %cst_66 {dimension_numbers = #tpu.dot_dimension_numbers<[2], [2], [1], [1], [0, 0, 0, 1, 1, 1], [0], [0]>} : vector<2x8x8xf32>, vector<2x16x8xf32>, vector<2x8x16xf32> -> vector<2x8x16xf32>
    "tpu.trace_stop"() : () -> ()
    %cst_67 = arith.constant 0.353553385 : f32
    %166 = vector.broadcast %cst_67 : f32 to vector<2x8x16xf32>
    %167 = arith.mulf %165, %166 : vector<2x8x16xf32>
    %cst_68 = arith.constant dense<0xFF800000> : vector<2x8xf32>
    %168 = vector.multi_reduction <maximumf>, %167, %cst_68 [2] : vector<2x8x16xf32> to vector<2x8xf32>
    %169 = vector.shape_cast %168 : vector<2x8xf32> to vector<2x8x1xf32>
    %170 = vector.broadcast %169 : vector<2x8x1xf32> to vector<2x8x16xf32>
    %171 = arith.subf %167, %170 : vector<2x8x16xf32>
    %172 = math.exp %171 : vector<2x8x16xf32>
    %cst_69 = arith.constant dense<0.000000e+00> : vector<2x8xf32>
    %173 = vector.multi_reduction <add>, %172, %cst_69 [2] : vector<2x8x16xf32> to vector<2x8xf32>
    %174 = vector.shape_cast %173 : vector<2x8xf32> to vector<2x8x1xf32>
    %175 = tpu.reciprocal %174 {approx = true} : vector<2x8x1xf32> -> vector<2x8x1xf32>
    %176 = vector.broadcast %175 : vector<2x8x1xf32> to vector<2x8x16xf32>
    %177 = arith.mulf %172, %176 : vector<2x8x16xf32>
    %178 = arith.addf %158, %177 : vector<2x8x16xf32>
    "tpu.trace_start"() <{level = 10 : i32, message = "bqk,bkd->bqd"}> : () -> ()
    %cst_70 = arith.constant dense<0.000000e+00> : vector<2x8x8xf32>
    %179 = tpu.matmul %177, %164, %cst_70 {dimension_numbers = #tpu.dot_dimension_numbers<[2], [1], [1], [2], [0, 0, 0, 1, 1, 2], [0], [0]>} : vector<2x8x16xf32>, vector<2x16x8xf32>, vector<2x8x8xf32> -> vector<2x8x8xf32>
    "tpu.trace_stop"() : () -> ()
    %180 = vector.shape_cast %179 : vector<2x8x8xf32> to vector<16x8xf32>
    %181 = vector.extract_strided_slice %155 {offsets = [0, 0], sizes = [8, 32], strides = [1, 1]} : vector<32x32xf32> to vector<8x32xf32>
    %cst_71 = arith.constant dense<0.000000e+00> : vector<16x32xf32>
    %182 = tpu.matmul %180, %181, %cst_71 {dimension_numbers = #tpu.dot_dimension_numbers<[1], [0], [0], [1], [0, 0, 1, 1], [], []>} : vector<16x8xf32>, vector<8x32xf32>, vector<16x32xf32> -> vector<16x32xf32>
    %183 = arith.addf %157, %182 : vector<16x32xf32>
    %184 = vector.extract_strided_slice %147 {offsets = [0, 8], sizes = [16, 8], strides = [1, 1]} : vector<16x32xf32> to vector<16x8xf32>
    %185 = vector.shape_cast %184 : vector<16x8xf32> to vector<2x8x8xf32>
    %186 = vector.extract_strided_slice %153 {offsets = [0, 8], sizes = [32, 8], strides = [1, 1]} : vector<32x32xf32> to vector<32x8xf32>
    %187 = vector.shape_cast %186 : vector<32x8xf32> to vector<2x16x8xf32>
    %188 = vector.extract_strided_slice %154 {offsets = [0, 8], sizes = [32, 8], strides = [1, 1]} : vector<32x32xf32> to vector<32x8xf32>
    %189 = vector.shape_cast %188 : vector<32x8xf32> to vector<2x16x8xf32>
    "tpu.trace_start"() <{level = 10 : i32, message = "bqd,bkd->bqk"}> : () -> ()
    %cst_72 = arith.constant dense<0.000000e+00> : vector<2x8x16xf32>
    %190 = tpu.matmul %185, %187, %cst_72 {dimension_numbers = #tpu.dot_dimension_numbers<[2], [2], [1], [1], [0, 0, 0, 1, 1, 1], [0], [0]>} : vector<2x8x8xf32>, vector<2x16x8xf32>, vector<2x8x16xf32> -> vector<2x8x16xf32>
    "tpu.trace_stop"() : () -> ()
    %cst_73 = arith.constant 0.353553385 : f32
    %191 = vector.broadcast %cst_73 : f32 to vector<2x8x16xf32>
    %192 = arith.mulf %190, %191 : vector<2x8x16xf32>
    %cst_74 = arith.constant dense<0xFF800000> : vector<2x8xf32>
    %193 = vector.multi_reduction <maximumf>, %192, %cst_74 [2] : vector<2x8x16xf32> to vector<2x8xf32>
    %194 = vector.shape_cast %193 : vector<2x8xf32> to vector<2x8x1xf32>
    %195 = vector.broadcast %194 : vector<2x8x1xf32> to vector<2x8x16xf32>
    %196 = arith.subf %192, %195 : vector<2x8x16xf32>
    %197 = math.exp %196 : vector<2x8x16xf32>
    %cst_75 = arith.constant dense<0.000000e+00> : vector<2x8xf32>
    %198 = vector.multi_reduction <add>, %197, %cst_75 [2] : vector<2x8x16xf32> to vector<2x8xf32>
    %199 = vector.shape_cast %198 : vector<2x8xf32> to vector<2x8x1xf32>
    %200 = tpu.reciprocal %199 {approx = true} : vector<2x8x1xf32> -> vector<2x8x1xf32>
    %201 = vector.broadcast %200 : vector<2x8x1xf32> to vector<2x8x16xf32>
    %202 = arith.mulf %197, %201 : vector<2x8x16xf32>
    %203 = arith.addf %178, %202 : vector<2x8x16xf32>
    "tpu.trace_start"() <{level = 10 : i32, message = "bqk,bkd->bqd"}> : () -> ()
    %cst_76 = arith.constant dense<0.000000e+00> : vector<2x8x8xf32>
    %204 = tpu.matmul %202, %189, %cst_76 {dimension_numbers = #tpu.dot_dimension_numbers<[2], [1], [1], [2], [0, 0, 0, 1, 1, 2], [0], [0]>} : vector<2x8x16xf32>, vector<2x16x8xf32>, vector<2x8x8xf32> -> vector<2x8x8xf32>
    "tpu.trace_stop"() : () -> ()
    %205 = vector.shape_cast %204 : vector<2x8x8xf32> to vector<16x8xf32>
    %206 = vector.extract_strided_slice %155 {offsets = [8, 0], sizes = [8, 32], strides = [1, 1]} : vector<32x32xf32> to vector<8x32xf32>
    %cst_77 = arith.constant dense<0.000000e+00> : vector<16x32xf32>
    %207 = tpu.matmul %205, %206, %cst_77 {dimension_numbers = #tpu.dot_dimension_numbers<[1], [0], [0], [1], [0, 0, 1, 1], [], []>} : vector<16x8xf32>, vector<8x32xf32>, vector<16x32xf32> -> vector<16x32xf32>
    %208 = arith.addf %183, %207 : vector<16x32xf32>
    %209 = vector.extract_strided_slice %147 {offsets = [0, 16], sizes = [16, 8], strides = [1, 1]} : vector<16x32xf32> to vector<16x8xf32>
    %210 = vector.shape_cast %209 : vector<16x8xf32> to vector<2x8x8xf32>
    %211 = vector.extract_strided_slice %153 {offsets = [0, 16], sizes = [32, 8], strides = [1, 1]} : vector<32x32xf32> to vector<32x8xf32>
    %212 = vector.shape_cast %211 : vector<32x8xf32> to vector<2x16x8xf32>
    %213 = vector.extract_strided_slice %154 {offsets = [0, 16], sizes = [32, 8], strides = [1, 1]} : vector<32x32xf32> to vector<32x8xf32>
    %214 = vector.shape_cast %213 : vector<32x8xf32> to vector<2x16x8xf32>
    "tpu.trace_start"() <{level = 10 : i32, message = "bqd,bkd->bqk"}> : () -> ()
    %cst_78 = arith.constant dense<0.000000e+00> : vector<2x8x16xf32>
    %215 = tpu.matmul %210, %212, %cst_78 {dimension_numbers = #tpu.dot_dimension_numbers<[2], [2], [1], [1], [0, 0, 0, 1, 1, 1], [0], [0]>} : vector<2x8x8xf32>, vector<2x16x8xf32>, vector<2x8x16xf32> -> vector<2x8x16xf32>
    "tpu.trace_stop"() : () -> ()
    %cst_79 = arith.constant 0.353553385 : f32
    %216 = vector.broadcast %cst_79 : f32 to vector<2x8x16xf32>
    %217 = arith.mulf %215, %216 : vector<2x8x16xf32>
    %cst_80 = arith.constant dense<0xFF800000> : vector<2x8xf32>
    %218 = vector.multi_reduction <maximumf>, %217, %cst_80 [2] : vector<2x8x16xf32> to vector<2x8xf32>
    %219 = vector.shape_cast %218 : vector<2x8xf32> to vector<2x8x1xf32>
    %220 = vector.broadcast %219 : vector<2x8x1xf32> to vector<2x8x16xf32>
    %221 = arith.subf %217, %220 : vector<2x8x16xf32>
    %222 = math.exp %221 : vector<2x8x16xf32>
    %cst_81 = arith.constant dense<0.000000e+00> : vector<2x8xf32>
    %223 = vector.multi_reduction <add>, %222, %cst_81 [2] : vector<2x8x16xf32> to vector<2x8xf32>
    %224 = vector.shape_cast %223 : vector<2x8xf32> to vector<2x8x1xf32>
    %225 = tpu.reciprocal %224 {approx = true} : vector<2x8x1xf32> -> vector<2x8x1xf32>
    %226 = vector.broadcast %225 : vector<2x8x1xf32> to vector<2x8x16xf32>
    %227 = arith.mulf %222, %226 : vector<2x8x16xf32>
    %228 = arith.addf %203, %227 : vector<2x8x16xf32>
    "tpu.trace_start"() <{level = 10 : i32, message = "bqk,bkd->bqd"}> : () -> ()
    %cst_82 = arith.constant dense<0.000000e+00> : vector<2x8x8xf32>
    %229 = tpu.matmul %227, %214, %cst_82 {dimension_numbers = #tpu.dot_dimension_numbers<[2], [1], [1], [2], [0, 0, 0, 1, 1, 2], [0], [0]>} : vector<2x8x16xf32>, vector<2x16x8xf32>, vector<2x8x8xf32> -> vector<2x8x8xf32>
    "tpu.trace_stop"() : () -> ()
    %230 = vector.shape_cast %229 : vector<2x8x8xf32> to vector<16x8xf32>
    %231 = vector.extract_strided_slice %155 {offsets = [16, 0], sizes = [8, 32], strides = [1, 1]} : vector<32x32xf32> to vector<8x32xf32>
    %cst_83 = arith.constant dense<0.000000e+00> : vector<16x32xf32>
    %232 = tpu.matmul %230, %231, %cst_83 {dimension_numbers = #tpu.dot_dimension_numbers<[1], [0], [0], [1], [0, 0, 1, 1], [], []>} : vector<16x8xf32>, vector<8x32xf32>, vector<16x32xf32> -> vector<16x32xf32>
    %233 = arith.addf %208, %232 : vector<16x32xf32>
    %234 = vector.extract_strided_slice %147 {offsets = [0, 24], sizes = [16, 8], strides = [1, 1]} : vector<16x32xf32> to vector<16x8xf32>
    %235 = vector.shape_cast %234 : vector<16x8xf32> to vector<2x8x8xf32>
    %236 = vector.extract_strided_slice %153 {offsets = [0, 24], sizes = [32, 8], strides = [1, 1]} : vector<32x32xf32> to vector<32x8xf32>
    %237 = vector.shape_cast %236 : vector<32x8xf32> to vector<2x16x8xf32>
    %238 = vector.extract_strided_slice %154 {offsets = [0, 24], sizes = [32, 8], strides = [1, 1]} : vector<32x32xf32> to vector<32x8xf32>
    %239 = vector.shape_cast %238 : vector<32x8xf32> to vector<2x16x8xf32>
    "tpu.trace_start"() <{level = 10 : i32, message = "bqd,bkd->bqk"}> : () -> ()
    %cst_84 = arith.constant dense<0.000000e+00> : vector<2x8x16xf32>
    %240 = tpu.matmul %235, %237, %cst_84 {dimension_numbers = #tpu.dot_dimension_numbers<[2], [2], [1], [1], [0, 0, 0, 1, 1, 1], [0], [0]>} : vector<2x8x8xf32>, vector<2x16x8xf32>, vector<2x8x16xf32> -> vector<2x8x16xf32>
    "tpu.trace_stop"() : () -> ()
    %cst_85 = arith.constant 0.353553385 : f32
    %241 = vector.broadcast %cst_85 : f32 to vector<2x8x16xf32>
    %242 = arith.mulf %240, %241 : vector<2x8x16xf32>
    %cst_86 = arith.constant dense<0xFF800000> : vector<2x8xf32>
    %243 = vector.multi_reduction <maximumf>, %242, %cst_86 [2] : vector<2x8x16xf32> to vector<2x8xf32>
    %244 = vector.shape_cast %243 : vector<2x8xf32> to vector<2x8x1xf32>
    %245 = vector.broadcast %244 : vector<2x8x1xf32> to vector<2x8x16xf32>
    %246 = arith.subf %242, %245 : vector<2x8x16xf32>
    %247 = math.exp %246 : vector<2x8x16xf32>
    %cst_87 = arith.constant dense<0.000000e+00> : vector<2x8xf32>
    %248 = vector.multi_reduction <add>, %247, %cst_87 [2] : vector<2x8x16xf32> to vector<2x8xf32>
    %249 = vector.shape_cast %248 : vector<2x8xf32> to vector<2x8x1xf32>
    %250 = tpu.reciprocal %249 {approx = true} : vector<2x8x1xf32> -> vector<2x8x1xf32>
    %251 = vector.broadcast %250 : vector<2x8x1xf32> to vector<2x8x16xf32>
    %252 = arith.mulf %247, %251 : vector<2x8x16xf32>
    %253 = arith.addf %228, %252 : vector<2x8x16xf32>
    "tpu.trace_start"() <{level = 10 : i32, message = "bqk,bkd->bqd"}> : () -> ()
    %cst_88 = arith.constant dense<0.000000e+00> : vector<2x8x8xf32>
    %254 = tpu.matmul %252, %239, %cst_88 {dimension_numbers = #tpu.dot_dimension_numbers<[2], [1], [1], [2], [0, 0, 0, 1, 1, 2], [0], [0]>} : vector<2x8x16xf32>, vector<2x16x8xf32>, vector<2x8x8xf32> -> vector<2x8x8xf32>
    "tpu.trace_stop"() : () -> ()
    %255 = vector.shape_cast %254 : vector<2x8x8xf32> to vector<16x8xf32>
    %256 = vector.extract_strided_slice %155 {offsets = [24, 0], sizes = [8, 32], strides = [1, 1]} : vector<32x32xf32> to vector<8x32xf32>
    %cst_89 = arith.constant dense<0.000000e+00> : vector<16x32xf32>
    %257 = tpu.matmul %255, %256, %cst_89 {dimension_numbers = #tpu.dot_dimension_numbers<[1], [0], [0], [1], [0, 0, 1, 1], [], []>} : vector<16x8xf32>, vector<8x32xf32>, vector<16x32xf32> -> vector<16x32xf32>
    %258 = arith.addf %233, %257 : vector<16x32xf32>
    %259 = vector.broadcast %156 : vector<1x32xf32> to vector<16x32xf32>
    %260 = arith.addf %258, %259 : vector<16x32xf32>
    %cst_90 = arith.constant 2.500000e-01 : f32
    %261 = vector.broadcast %cst_90 : f32 to vector<2x8x16xf32>
    %262 = arith.mulf %253, %261 : vector<2x8x16xf32>
    %263 = arith.addf %140, %260 : vector<16x32xf32>
    %c0_91 = arith.constant 0 : index
    %c0_92 = arith.constant 0 : index
    %264 = vector.load %arg15[%c0_91, %c0_92] : memref<1x32xf32, #tpu.memory_space<vmem>>, vector<1x32xf32>
    %c0_93 = arith.constant 0 : index
    %c0_94 = arith.constant 0 : index
    %265 = vector.load %arg16[%c0_93, %c0_94] : memref<1x32xf32, #tpu.memory_space<vmem>>, vector<1x32xf32>
    %cst_95 = arith.constant dense<0.000000e+00> : vector<16xf32>
    %266 = vector.multi_reduction <add>, %263, %cst_95 [1] : vector<16x32xf32> to vector<16xf32>
    %267 = vector.shape_cast %266 : vector<16xf32> to vector<16x1xf32>
    %cst_96 = arith.constant 3.200000e+01 : f32
    %268 = vector.broadcast %cst_96 : f32 to vector<16x1xf32>
    %269 = arith.divf %267, %268 : vector<16x1xf32>
    %270 = vector.broadcast %269 : vector<16x1xf32> to vector<16x32xf32>
    %271 = arith.subf %263, %270 : vector<16x32xf32>
    %272 = arith.mulf %271, %271 : vector<16x32xf32>
    %cst_97 = arith.constant dense<0.000000e+00> : vector<16xf32>
    %273 = vector.multi_reduction <add>, %272, %cst_97 [1] : vector<16x32xf32> to vector<16xf32>
    %274 = vector.shape_cast %273 : vector<16xf32> to vector<16x1xf32>
    %cst_98 = arith.constant 3.200000e+01 : f32
    %275 = vector.broadcast %cst_98 : f32 to vector<16x1xf32>
    %276 = arith.divf %274, %275 : vector<16x1xf32>
    %277 = vector.broadcast %269 : vector<16x1xf32> to vector<16x32xf32>
    %278 = arith.subf %263, %277 : vector<16x32xf32>
    %cst_99 = arith.constant 9.99999974E-6 : f32
    %279 = vector.broadcast %cst_99 : f32 to vector<16x1xf32>
    %280 = arith.addf %276, %279 : vector<16x1xf32>
    %281 = math.rsqrt %280 : vector<16x1xf32>
    %282 = vector.broadcast %281 : vector<16x1xf32> to vector<16x32xf32>
    %283 = arith.mulf %278, %282 : vector<16x32xf32>
    %284 = vector.broadcast %264 : vector<1x32xf32> to vector<16x32xf32>
    %285 = arith.mulf %283, %284 : vector<16x32xf32>
    %286 = vector.broadcast %265 : vector<1x32xf32> to vector<16x32xf32>
    %287 = arith.addf %285, %286 : vector<16x32xf32>
    %c0_100 = arith.constant 0 : index
    %c0_101 = arith.constant 0 : index
    %c0_102 = arith.constant 0 : index
    %288 = vector.load %arg24[%c0_100, %c0_101, %c0_102] : memref<2x8x16xf32, #tpu.memory_space<vmem>>, vector<2x8x16xf32>
    tpu.vector_store %arg24[%c0_100, %c0_101, %c0_102], %262 {strides = array<i32>} : memref<2x8x16xf32, #tpu.memory_space<vmem>>, vector<2x8x16xf32>,
    %c0_103 = arith.constant 0 : index
    %c0_104 = arith.constant 0 : index
    %289 = vector.load %arg17[%c0_103, %c0_104] : memref<32x64xf32, #tpu.memory_space<vmem>>, vector<32x64xf32>
    %cst_105 = arith.constant dense<0.000000e+00> : vector<16x64xf32>
    %290 = tpu.matmul %287, %289, %cst_105 {dimension_numbers = #tpu.dot_dimension_numbers<[1], [0], [0], [1], [0, 0, 1, 1], [], []>} : vector<16x32xf32>, vector<32x64xf32>, vector<16x64xf32> -> vector<16x64xf32>
    %c0_106 = arith.constant 0 : index
    %c0_107 = arith.constant 0 : index
    %291 = vector.load %arg18[%c0_106, %c0_107] : memref<1x64xf32, #tpu.memory_space<vmem>>, vector<1x64xf32>
    %292 = vector.broadcast %291 : vector<1x64xf32> to vector<16x64xf32>
    %293 = arith.addf %290, %292 : vector<16x64xf32>
    %cst_108 = arith.constant 0.000000e+00 : f32
    %294 = vector.broadcast %cst_108 : f32 to vector<16x64xf32>
    %295 = arith.maximumf %293, %294 : vector<16x64xf32>
    %c0_109 = arith.constant 0 : index
    %c0_110 = arith.constant 0 : index
    %296 = vector.load %arg19[%c0_109, %c0_110] : memref<64x32xf32, #tpu.memory_space<vmem>>, vector<64x32xf32>
    %cst_111 = arith.constant dense<0.000000e+00> : vector<16x32xf32>
    %297 = tpu.matmul %295, %296, %cst_111 {dimension_numbers = #tpu.dot_dimension_numbers<[1], [0], [0], [1], [0, 0, 1, 1], [], []>} : vector<16x64xf32>, vector<64x32xf32>, vector<16x32xf32> -> vector<16x32xf32>
    %c0_112 = arith.constant 0 : index
    %c0_113 = arith.constant 0 : index
    %298 = vector.load %arg20[%c0_112, %c0_113] : memref<1x32xf32, #tpu.memory_space<vmem>>, vector<1x32xf32>
    %299 = vector.broadcast %298 : vector<1x32xf32> to vector<16x32xf32>
    %300 = arith.addf %297, %299 : vector<16x32xf32>
    %301 = arith.addf %287, %300 : vector<16x32xf32>
    %c0_114 = arith.constant 0 : index
    %c0_115 = arith.constant 0 : index
    %302 = vector.load %arg21[%c0_114, %c0_115] : memref<1x32xf32, #tpu.memory_space<vmem>>, vector<1x32xf32>
    %c0_116 = arith.constant 0 : index
    %c0_117 = arith.constant 0 : index
    %303 = vector.load %arg22[%c0_116, %c0_117] : memref<1x32xf32, #tpu.memory_space<vmem>>, vector<1x32xf32>
    %cst_118 = arith.constant dense<0.000000e+00> : vector<16xf32>
    %304 = vector.multi_reduction <add>, %301, %cst_118 [1] : vector<16x32xf32> to vector<16xf32>
    %305 = vector.shape_cast %304 : vector<16xf32> to vector<16x1xf32>
    %cst_119 = arith.constant 3.200000e+01 : f32
    %306 = vector.broadcast %cst_119 : f32 to vector<16x1xf32>
    %307 = arith.divf %305, %306 : vector<16x1xf32>
    %308 = vector.broadcast %307 : vector<16x1xf32> to vector<16x32xf32>
    %309 = arith.subf %301, %308 : vector<16x32xf32>
    %310 = arith.mulf %309, %309 : vector<16x32xf32>
    %cst_120 = arith.constant dense<0.000000e+00> : vector<16xf32>
    %311 = vector.multi_reduction <add>, %310, %cst_120 [1] : vector<16x32xf32> to vector<16xf32>
    %312 = vector.shape_cast %311 : vector<16xf32> to vector<16x1xf32>
    %cst_121 = arith.constant 3.200000e+01 : f32
    %313 = vector.broadcast %cst_121 : f32 to vector<16x1xf32>
    %314 = arith.divf %312, %313 : vector<16x1xf32>
    %315 = vector.broadcast %307 : vector<16x1xf32> to vector<16x32xf32>
    %316 = arith.subf %301, %315 : vector<16x32xf32>
    %cst_122 = arith.constant 9.99999974E-6 : f32
    %317 = vector.broadcast %cst_122 : f32 to vector<16x1xf32>
    %318 = arith.addf %314, %317 : vector<16x1xf32>
    %319 = math.rsqrt %318 : vector<16x1xf32>
    %320 = vector.broadcast %319 : vector<16x1xf32> to vector<16x32xf32>
    %321 = arith.mulf %316, %320 : vector<16x32xf32>
    %322 = vector.broadcast %302 : vector<1x32xf32> to vector<16x32xf32>
    %323 = arith.mulf %321, %322 : vector<16x32xf32>
    %324 = vector.broadcast %303 : vector<1x32xf32> to vector<16x32xf32>
    %325 = arith.addf %323, %324 : vector<16x32xf32>
    %326 = vector.shape_cast %325 : vector<16x32xf32> to vector<2x8x32xf32>
    %c0_123 = arith.constant 0 : index
    %c0_124 = arith.constant 0 : index
    %c0_125 = arith.constant 0 : index
    %327 = vector.load %arg23[%c0_123, %c0_124, %c0_125] : memref<2x8x32xf32, #tpu.memory_space<vmem>>, vector<2x8x32xf32>
    tpu.vector_store %arg23[%c0_123, %c0_124, %c0_125], %326 {strides = array<i32>} : memref<2x8x32xf32, #tpu.memory_space<vmem>>, vector<2x8x32xf32>,
    return
  }
}

</mosaic_0001>

<llo_original>
// kernel: _lambda_.9
$region0: #{_lambda_.9}
  #allocation0 [shape = 'u32[]', space=smem, size = 0x4, offset = 0x4, fixed_abs, tag = 'smem constant byte address 0x4 - core index']
  #allocation1 [shape = 'u32[144,128]{1,0:T(1,128)}', space=vmem, size = 0x12000, scoped, tag = 'internal scratch']
  %s0 = inlined_call_operand.vmem [shape: f32[16,32], index: 0, kind: input, shape index: {}]
  %s1 = inlined_call_operand.vmem [shape: f32[32,50], index: 1, kind: input, shape index: {}]
  %s2 = inlined_call_operand.hbm [shape: f32[16,50], index: 2, kind: output, shape index: {}]
  %s3 = sld [smem:[#allocation0]]
  $region18: #{_lambda_.9} parent=0
    _
  %s5 = ssub.s32 1, %s3
  %s6 = scalar_select 0, %s5, %s3
  $region1: #{_lambda_.9} parent=0
    #allocation2 [shape = 'u8[8192]{0}', space=vmem, size = 0x2000, scoped, tag = 'output window, operand 0, single buffered']
    #allocation3 [shape = 's32[1]{0}', space=sflag, size = 0x4, scoped, tag = 'scoped memory for _lambda_.9']
    %7 = vsyncpa [#allocation3], 0
    // Predicated region
    $region2: #{_lambda_.9} parent=1 // pred_check
      _
    $region3: #{_lambda_.9} parent=1 // pred_check_branch
      %9 = sbr.rel (0) target = $region5
    $region4: #{_lambda_.9} parent=1 // pred_region
      _
    $region5: #{_lambda_.9} parent=1 // pred_fallthru
      _
    // Predicated region
    $region6: #{_lambda_.9} parent=1 // pred_check
      _
    $region7: #{_lambda_.9} parent=1 // pred_check_branch
      %11 = sbr.rel (0) target = $region9
    $region8: #{_lambda_.9} parent=1 // pred_region
      _
    $region9: #{_lambda_.9} parent=1 // pred_fallthru
      _
    %v12 = vld [vmem:[%s0] sm:$0xff]
    %v13 = vld [vmem:[%s0 + $0x8] sm:$0xff]
    %v14 = vld [vmem:[%s1] sm:$0xff]
    %v15 = vld [vmem:[%s1 + $0x8] sm:$0xff]
    %v16 = vld [vmem:[%s1 + $0x10] sm:$0xff]
    %v17 = vld [vmem:[%s1 + $0x18] sm:$0xff]
    %vm18 = vcmask 261120
    %v20 = vsel %vm18, %v12, 0
    %v23 = vsel %vm18, %v13, 0
    %25 = vmatprep.subr.mxu0 0.0
    %26 = vmatpush1.msra.mxu0 %v14
    %27 = vmatprep.subr.mxu0 0.0
    %28 = vmatpush1.msra.mxu0 %v15
    %29 = vmatprep.subr.mxu0 0.0
    %30 = vmatpush1.msra.mxu0 %v16
    %31 = vmatprep.subr.mxu0 0.0
    %32 = vmatpush1.msra.mxu0 %v17
    %33 = vmatprep.subr.mxu0 0.0
    %34 = vmatpush1.msra.mxu0 0.0
    %35 = vmatprep.subr.mxu0 0.0
    %36 = vmatpush1.msra.mxu0 0.0
    %37 = vmatprep.subr.mxu0 0.0
    %38 = vmatpush1.msra.mxu0 0.0
    %39 = vmatprep.subr.mxu0 0.0
    %40 = vmatpush1.msra.mxu0 0.0
    %41 = vmatprep.subr.mxu0 0.0
    %42 = vmatpush1.msra.mxu0 0.0
    %43 = vmatprep.subr.mxu0 0.0
    %44 = vmatpush1.msra.mxu0 0.0
    %45 = vmatprep.subr.mxu0 0.0
    %46 = vmatpush1.msra.mxu0 0.0
    %47 = vmatprep.subr.mxu0 0.0
    %48 = vmatpush1.msra.mxu0 0.0
    %49 = vmatprep.subr.mxu0 0.0
    %50 = vmatpush1.msra.mxu0 0.0
    %51 = vmatprep.subr.mxu0 0.0
    %52 = vmatpush1.msra.mxu0 0.0
    %53 = vmatprep.subr.mxu0 0.0
    %54 = vmatpush1.msra.mxu0 0.0
    %55 = vmatprep.subr.mxu0 0.0
    %56 = vmatpush1.msra.mxu0 0.0
    %57 = vmatprep.subr.mxu0 0.0
    %58 = vmatpush1.msra.mxu0 0.0
    %59 = vmatprep.subr.mxu0 0.0
    %60 = vmatpush1.msra.mxu0 0.0
    %61 = vmatprep.subr.mxu0 0.0
    %62 = vmatpush1.msra.mxu0 0.0
    %63 = vmatprep.subr.mxu0 0.0
    %64 = vmatpush1.msra.mxu0 0.0
    %65 = vmatprep.subr.mxu0 0.0
    %66 = vmatpush1.msra.mxu0 0.0
    %67 = vmatprep.subr.mxu0 0.0
    %68 = vmatpush1.msra.mxu0 0.0
    %69 = vmatprep.subr.mxu0 0.0
    %70 = vmatpush1.msra.mxu0 0.0
    %71 = vmatprep.subr.mxu0 0.0
    %72 = vmatpush1.msra.mxu0 0.0
    %73 = vmatprep.subr.mxu0 0.0
    %74 = vmatpush1.msra.mxu0 0.0
    %75 = vmatprep.subr.mxu0 0.0
    %76 = vmatpush1.msra.mxu0 0.0
    %77 = vmatprep.subr.mxu0 0.0
    %78 = vmatpush1.msra.mxu0 0.0
    %79 = vmatprep.subr.mxu0 0.0
    %80 = vmatpush1.msra.mxu0 0.0
    %81 = vmatprep.subr.mxu0 0.0
    %82 = vmatpush1.msra.mxu0 0.0
    %83 = vmatprep.subr.mxu0 0.0
    %84 = vmatpush1.msra.mxu0 0.0
    %85 = vmatprep.subr.mxu0 0.0
    %86 = vmatpush1.msra.mxu0 0.0
    %87 = vmatprep.subr.mxu0 0.0
    %88 = vmatpush1.msra.mxu0 0.0
    %89 = vmatprep.mubr.f32.mxu0 0.0
    %90 = vmatmul.mubr.f32.gmra.mrb[0].mxu0 %v20
    %v91 = vpop.f32.mrb[0].mxu0
    %v92 = vadd.f32 0.0, %v91
    %v93 = vpop.f32.mrb[0].mxu0
    %94 = vmatprep.mubr.f32.mxu0 0.0
    %95 = vmatmul.mubr.f32.gmra.mrb[0].mxu0 %v23
    %v96 = vpop.f32.mrb[0].mxu0
    %v97 = vadd.f32 0.0, %v96
    %v98 = vpop.f32.mrb[0].mxu0
    %99 = vdwg.mxu0
    %vm100 = vcmask 408576
    %101 = vst.msk [vmem:[#allocation2] sm:$0xff] %vm100, %v92
    %102 = vst.msk [vmem:[#allocation2 + $0x8] sm:$0xff] %vm100, %v97
    // Predicated region
    $region10: #{_lambda_.9} parent=1 // pred_check
      _
    $region11: #{_lambda_.9} parent=1 // pred_check_branch
      %104 = sbr.rel (0) target = $region13
    $region12: #{_lambda_.9} parent=1 // pred_region
      %s106 = ssub.s32 256, 256
      %107 = vsyncadd [#allocation3], %s106
      %s108 = sshll.u32 [#allocation2], 4
      %s109 = int_to_ptr.vmem [resolvable:$true] %s108
      %114 = dma.vmem_to_hbm [thread:$0]  %s109, 256, %s2, [#allocation3], 128, 128, 8
    $region13: #{_lambda_.9} parent=1 // pred_fallthru
      _
    // Predicated region
    $region14: #{_lambda_.9} parent=1 // pred_check
      _
    $region15: #{_lambda_.9} parent=1 // pred_check_branch
      %116 = sbr.rel (0) target = $region17
    $region16: #{_lambda_.9} parent=1 // pred_region
      %117 = dma.done [#allocation3], 256
    $region17: #{_lambda_.9} parent=1 // pred_fallthru
      _
    %118 = vsyncpa [#allocation3], 1

// kernel: _lambda_.5
$region0: #{_lambda_.5}
  #allocation0 [shape = 'u32[]', space=smem, size = 0x4, offset = 0x4, fixed_abs, tag = 'smem constant byte address 0x4 - core index']
  #allocation1 [shape = 'u32[144,128]{1,0:T(1,128)}', space=vmem, size = 0x12000, scoped, tag = 'internal scratch']
  %s0 = inlined_call_operand.vmem [shape: f32[2,16,32], index: 0, kind: input, shape index: {}]
  %s1 = inlined_call_operand.vmem [shape: f32[32,96], index: 1, kind: input, shape index: {}]
  %s2 = inlined_call_operand.vmem [shape: f32[1,96], index: 2, kind: input, shape index: {}]
  %s3 = inlined_call_operand.vmem [shape: f32[32,32], index: 3, kind: input, shape index: {}]
  %s4 = inlined_call_operand.vmem [shape: f32[1,32], index: 4, kind: input, shape index: {}]
  %s5 = inlined_call_operand.vmem [shape: f32[1,32], index: 5, kind: input, shape index: {}]
  %s6 = inlined_call_operand.vmem [shape: f32[1,32], index: 6, kind: input, shape index: {}]
  %s7 = inlined_call_operand.vmem [shape: f32[32,64], index: 7, kind: input, shape index: {}]
  %s8 = inlined_call_operand.vmem [shape: f32[1,64], index: 8, kind: input, shape index: {}]
  %s9 = inlined_call_operand.vmem [shape: f32[64,32], index: 9, kind: input, shape index: {}]
  %s10 = inlined_call_operand.vmem [shape: f32[1,32], index: 10, kind: input, shape index: {}]
  %s11 = inlined_call_operand.vmem [shape: f32[1,32], index: 11, kind: input, shape index: {}]
  %s12 = inlined_call_operand.vmem [shape: f32[1,32], index: 12, kind: input, shape index: {}]
  %s13 = inlined_call_operand.vmem [shape: f32[2,16,32], index: 13, kind: output, shape index: {}]
  %s14 = sld [smem:[#allocation0]]
  $region62: #{_lambda_.5} parent=0
    _
  %s16 = ssub.s32 1, %s14
  %s17 = scalar_select 0, %s16, %s14
  // Predicated region
  $region2: #{_lambda_.5} parent=0 // pred_check
    _
  $region3: #{_lambda_.5} parent=0 // pred_check_branch
    %19 = sbr.rel (0) target = $region5
  $region4: #{_lambda_.5} parent=0 // pred_region
    _
  $region5: #{_lambda_.5} parent=0 // pred_fallthru
    _
  // Predicated region
  $region6: #{_lambda_.5} parent=0 // pred_check
    _
  $region7: #{_lambda_.5} parent=0 // pred_check_branch
    %21 = sbr.rel (0) target = $region9
  $region8: #{_lambda_.5} parent=0 // pred_region
    _
  $region9: #{_lambda_.5} parent=0 // pred_fallthru
    _
  // Predicated region
  $region10: #{_lambda_.5} parent=0 // pred_check
    _
  $region11: #{_lambda_.5} parent=0 // pred_check_branch
    %23 = sbr.rel (0) target = $region13
  $region12: #{_lambda_.5} parent=0 // pred_region
    _
  $region13: #{_lambda_.5} parent=0 // pred_fallthru
    _
  // Predicated region
  $region14: #{_lambda_.5} parent=0 // pred_check
    _
  $region15: #{_lambda_.5} parent=0 // pred_check_branch
    %25 = sbr.rel (0) target = $region17
  $region16: #{_lambda_.5} parent=0 // pred_region
    _
  $region17: #{_lambda_.5} parent=0 // pred_fallthru
    _
  // Predicated region
  $region18: #{_lambda_.5} parent=0 // pred_check
    _
  $region19: #{_lambda_.5} parent=0 // pred_check_branch
    %27 = sbr.rel (0) target = $region21
  $region20: #{_lambda_.5} parent=0 // pred_region
    _
  $region21: #{_lambda_.5} parent=0 // pred_fallthru
    _
  // Predicated region
  $region22: #{_lambda_.5} parent=0 // pred_check
    _
  $region23: #{_lambda_.5} parent=0 // pred_check_branch
    %29 = sbr.rel (0) target = $region25
  $region24: #{_lambda_.5} parent=0 // pred_region
    _
  $region25: #{_lambda_.5} parent=0 // pred_fallthru
    _
  // Predicated region
  $region26: #{_lambda_.5} parent=0 // pred_check
    _
  $region27: #{_lambda_.5} parent=0 // pred_check_branch
    %31 = sbr.rel (0) target = $region29
  $region28: #{_lambda_.5} parent=0 // pred_region
    _
  $region29: #{_lambda_.5} parent=0 // pred_fallthru
    _
  // Predicated region
  $region30: #{_lambda_.5} parent=0 // pred_check
    _
  $region31: #{_lambda_.5} parent=0 // pred_check_branch
    %33 = sbr.rel (0) target = $region33
  $region32: #{_lambda_.5} parent=0 // pred_region
    _
  $region33: #{_lambda_.5} parent=0 // pred_fallthru
    _
  // Predicated region
  $region34: #{_lambda_.5} parent=0 // pred_check
    _
  $region35: #{_lambda_.5} parent=0 // pred_check_branch
    %35 = sbr.rel (0) target = $region37
  $region36: #{_lambda_.5} parent=0 // pred_region
    _
  $region37: #{_lambda_.5} parent=0 // pred_fallthru
    _
  // Predicated region
  $region38: #{_lambda_.5} parent=0 // pred_check
    _
  $region39: #{_lambda_.5} parent=0 // pred_check_branch
    %37 = sbr.rel (0) target = $region41
  $region40: #{_lambda_.5} parent=0 // pred_region
    _
  $region41: #{_lambda_.5} parent=0 // pred_fallthru
    _
  // Predicated region
  $region42: #{_lambda_.5} parent=0 // pred_check
    _
  $region43: #{_lambda_.5} parent=0 // pred_check_branch
    %39 = sbr.rel (0) target = $region45
  $region44: #{_lambda_.5} parent=0 // pred_region
    _
  $region45: #{_lambda_.5} parent=0 // pred_fallthru
    _
  // Predicated region
  $region46: #{_lambda_.5} parent=0 // pred_check
    _
  $region47: #{_lambda_.5} parent=0 // pred_check_branch
    %41 = sbr.rel (0) target = $region49
  $region48: #{_lambda_.5} parent=0 // pred_region
    _
  $region49: #{_lambda_.5} parent=0 // pred_fallthru
    _
  // Predicated region
  $region50: #{_lambda_.5} parent=0 // pred_check
    _
  $region51: #{_lambda_.5} parent=0 // pred_check_branch
    %43 = sbr.rel (0) target = $region53
  $region52: #{_lambda_.5} parent=0 // pred_region
    _
  $region53: #{_lambda_.5} parent=0 // pred_fallthru
    _
  %v44 = vld [vmem:[%s0] sm:$0xff]
  %v45 = vld [vmem:[%s0 + $0x8] sm:$0xff]
  %v46 = vld [vmem:[%s0 + $0x10] sm:$0xff]
  %v47 = vld [vmem:[%s0 + $0x18] sm:$0xff]
  %v48 = vld [vmem:[%s1] sm:$0xff]
  %v49 = vld [vmem:[%s1 + $0x8] sm:$0xff]
  %v50 = vld [vmem:[%s1 + $0x10] sm:$0xff]
  %v51 = vld [vmem:[%s1 + $0x18] sm:$0xff]
  %v52 = vld [vmem:[%s2] sm:$0x1]
  %v54 = vlaneseq
  %v55 = vshrl.u32 %v54, 7
  %v56 = vsub.s32 0, %v55
  %v57 = vrot.slane %v52, %v56
  %vm59 = vcmask 261120
  %v61 = vsel %vm59, %v44, 0
  %v64 = vsel %vm59, %v45, 0
  %v67 = vsel %vm59, %v46, 0
  %v70 = vsel %vm59, %v47, 0
  %72 = vmatprep.subr.mxu0 0.0
  %73 = vmatpush1.msra.mxu0 %v48
  %74 = vmatprep.subr.mxu0 0.0
  %75 = vmatpush1.msra.mxu0 %v49
  %76 = vmatprep.subr.mxu0 0.0
  %77 = vmatpush1.msra.mxu0 %v50
  %78 = vmatprep.subr.mxu0 0.0
  %79 = vmatpush1.msra.mxu0 %v51
  %80 = vmatprep.subr.mxu0 0.0
  %81 = vmatpush1.msra.mxu0 0.0
  %82 = vmatprep.subr.mxu0 0.0
  %83 = vmatpush1.msra.mxu0 0.0
  %84 = vmatprep.subr.mxu0 0.0
  %85 = vmatpush1.msra.mxu0 0.0
  %86 = vmatprep.subr.mxu0 0.0
  %87 = vmatpush1.msra.mxu0 0.0
  %88 = vmatprep.subr.mxu0 0.0
  %89 = vmatpush1.msra.mxu0 0.0
  %90 = vmatprep.subr.mxu0 0.0
  %91 = vmatpush1.msra.mxu0 0.0
  %92 = vmatprep.subr.mxu0 0.0
  %93 = vmatpush1.msra.mxu0 0.0
  %94 = vmatprep.subr.mxu0 0.0
  %95 = vmatpush1.msra.mxu0 0.0
  %96 = vmatprep.subr.mxu0 0.0
  %97 = vmatpush1.msra.mxu0 0.0
  %98 = vmatprep.subr.mxu0 0.0
  %99 = vmatpush1.msra.mxu0 0.0
  %100 = vmatprep.subr.mxu0 0.0
  %101 = vmatpush1.msra.mxu0 0.0
  %102 = vmatprep.subr.mxu0 0.0
  %103 = vmatpush1.msra.mxu0 0.0
  %104 = vmatprep.subr.mxu0 0.0
  %105 = vmatpush1.msra.mxu0 0.0
  %106 = vmatprep.subr.mxu0 0.0
  %107 = vmatpush1.msra.mxu0 0.0
  %108 = vmatprep.subr.mxu0 0.0
  %109 = vmatpush1.msra.mxu0 0.0
  %110 = vmatprep.subr.mxu0 0.0
  %111 = vmatpush1.msra.mxu0 0.0
  %112 = vmatprep.subr.mxu0 0.0
  %113 = vmatpush1.msra.mxu0 0.0
  %114 = vmatprep.subr.mxu0 0.0
  %115 = vmatpush1.msra.mxu0 0.0
  %116 = vmatprep.subr.mxu0 0.0
  %117 = vmatpush1.msra.mxu0 0.0
  %118 = vmatprep.subr.mxu0 0.0
  %119 = vmatpush1.msra.mxu0 0.0
  %120 = vmatprep.subr.mxu0 0.0
  %121 = vmatpush1.msra.mxu0 0.0
  %122 = vmatprep.subr.mxu0 0.0
  %123 = vmatpush1.msra.mxu0 0.0
  %124 = vmatprep.subr.mxu0 0.0
  %125 = vmatpush1.msra.mxu0 0.0
  %126 = vmatprep.subr.mxu0 0.0
  %127 = vmatpush1.msra.mxu0 0.0
  %128 = vmatprep.subr.mxu0 0.0
  %129 = vmatpush1.msra.mxu0 0.0
  %130 = vmatprep.subr.mxu0 0.0
  %131 = vmatpush1.msra.mxu0 0.0
  %132 = vmatprep.subr.mxu0 0.0
  %133 = vmatpush1.msra.mxu0 0.0
  %134 = vmatprep.subr.mxu0 0.0
  %135 = vmatpush1.msra.mxu0 0.0
  %136 = vmatprep.mubr.f32.mxu0 0.0
  %137 = vmatmul.mubr.f32.gmra.mrb[0].mxu0 %v61
  %v138 = vpop.f32.mrb[0].mxu0
  %v139 = vadd.f32 %v57, %v138
  %v140 = vpop.f32.mrb[0].mxu0
  %141 = vmatprep.mubr.f32.mxu0 0.0
  %142 = vmatmul.mubr.f32.gmra.mrb[0].mxu0 %v64
  %v143 = vpop.f32.mrb[0].mxu0
  %v144 = vadd.f32 %v57, %v143
  %v145 = vpop.f32.mrb[0].mxu0
  %146 = vmatprep.mubr.f32.mxu0 0.0
  %147 = vmatmul.mubr.f32.gmra.mrb[0].mxu0 %v67
  %v148 = vpop.f32.mrb[0].mxu0
  %v149 = vadd.f32 %v57, %v148
  %v150 = vpop.f32.mrb[0].mxu0
  %151 = vmatprep.mubr.f32.mxu0 0.0
  %152 = vmatmul.mubr.f32.gmra.mrb[0].mxu0 %v70
  %v153 = vpop.f32.mrb[0].mxu0
  %v154 = vadd.f32 %v57, %v153
  %v155 = vpop.f32.mrb[0].mxu0
  %156 = vdwg.mxu0
  %v157 = vld [vmem:[%s3] sm:$0xff]
  %v158 = vld [vmem:[%s3 + $0x8] sm:$0xff]
  %v159 = vld [vmem:[%s3 + $0x10] sm:$0xff]
  %v160 = vld [vmem:[%s3 + $0x18] sm:$0xff]
  %v161 = vld [vmem:[%s4] sm:$0x1]
  %164 = vrot.lane.b32.xlu0 %v139, 96
  %v165 = vpop.permute.xlu0 %164
  %166 = vrot.lane.b32.xlu0 %v144, 96
  %v167 = vpop.permute.xlu0 %166
  %vm168 = vcmask 64512
  %v169 = vsel %vm168, %v139, 0
  %v171 = vsel %vm168, %v144, 0
  %v173 = vsel %vm168, %v165, 0
  %v175 = vsel %vm168, %v167, 0
  %177 = vmatprep.subr.mxu0 0.0
  %178 = vmatpush1.xpose.msra.mxu0 %v173
  %179 = vmatprep.subr.mxu0 0.0
  %180 = vmatpush1.xpose.msra.mxu0 %v175
  %181 = vmatprep.subr.mxu0 0.0
  %182 = vmatpush1.xpose.msra.mxu0 0.0
  %183 = vmatprep.subr.mxu0 0.0
  %184 = vmatpush1.xpose.msra.mxu0 0.0
  %185 = vmatprep.subr.mxu0 0.0
  %186 = vmatpush1.xpose.msra.mxu0 0.0
  %187 = vmatprep.subr.mxu0 0.0
  %188 = vmatpush1.xpose.msra.mxu0 0.0
  %189 = vmatprep.subr.mxu0 0.0
  %190 = vmatpush1.xpose.msra.mxu0 0.0
  %191 = vmatprep.subr.mxu0 0.0
  %192 = vmatpush1.xpose.msra.mxu0 0.0
  %193 = vmatprep.subr.mxu0 0.0
  %194 = vmatpush1.xpose.msra.mxu0 0.0
  %195 = vmatprep.subr.mxu0 0.0
  %196 = vmatpush1.xpose.msra.mxu0 0.0
  %197 = vmatprep.subr.mxu0 0.0
  %198 = vmatpush1.xpose.msra.mxu0 0.0
  %199 = vmatprep.subr.mxu0 0.0
  %200 = vmatpush1.xpose.msra.mxu0 0.0
  %201 = vmatprep.subr.mxu0 0.0
  %202 = vmatpush1.xpose.msra.mxu0 0.0
  %203 = vmatprep.subr.mxu0 0.0
  %204 = vmatpush1.xpose.msra.mxu0 0.0
  %205 = vmatprep.subr.mxu0 0.0
  %206 = vmatpush1.xpose.msra.mxu0 0.0
  %207 = vmatprep.subr.mxu0 0.0
  %208 = vmatpush1.xpose.msra.mxu0 0.0
  %209 = vmatprep.subr.mxu0 0.0
  %210 = vmatpush1.xpose.msra.mxu0 0.0
  %211 = vmatprep.subr.mxu0 0.0
  %212 = vmatpush1.xpose.msra.mxu0 0.0
  %213 = vmatprep.subr.mxu0 0.0
  %214 = vmatpush1.xpose.msra.mxu0 0.0
  %215 = vmatprep.subr.mxu0 0.0
  %216 = vmatpush1.xpose.msra.mxu0 0.0
  %217 = vmatprep.subr.mxu0 0.0
  %218 = vmatpush1.xpose.msra.mxu0 0.0
  %219 = vmatprep.subr.mxu0 0.0
  %220 = vmatpush1.xpose.msra.mxu0 0.0
  %221 = vmatprep.subr.mxu0 0.0
  %222 = vmatpush1.xpose.msra.mxu0 0.0
  %223 = vmatprep.subr.mxu0 0.0
  %224 = vmatpush1.xpose.msra.mxu0 0.0
  %225 = vmatprep.subr.mxu0 0.0
  %226 = vmatpush1.xpose.msra.mxu0 0.0
  %227 = vmatprep.subr.mxu0 0.0
  %228 = vmatpush1.xpose.msra.mxu0 0.0
  %229 = vmatprep.subr.mxu0 0.0
  %230 = vmatpush1.xpose.msra.mxu0 0.0
  %231 = vmatprep.subr.mxu0 0.0
  %232 = vmatpush1.xpose.msra.mxu0 0.0
  %233 = vmatprep.subr.mxu0 0.0
  %234 = vmatpush1.xpose.msra.mxu0 0.0
  %235 = vmatprep.subr.mxu0 0.0
  %236 = vmatpush1.xpose.msra.mxu0 0.0
  %237 = vmatprep.subr.mxu0 0.0
  %238 = vmatpush1.xpose.msra.mxu0 0.0
  %239 = vmatprep.subr.mxu0 0.0
  %240 = vmatpush1.xpose.msra.mxu0 0.0
  %241 = vmatprep.mubr.f32.mxu0 0.0
  %242 = vmatmul.mubr.f32.gmra.mrb[0].mxu0 %v169
  %v243 = vpop.f32.mrb[0].mxu0
  %v244 = vadd.f32 0.0, %v243
  %v245 = vpop.f32.mrb[0].mxu0
  %246 = vmatprep.mubr.f32.mxu0 0.0
  %247 = vmatmul.mubr.f32.gmra.mrb[0].mxu0 %v171
  %v248 = vpop.f32.mrb[0].mxu0
  %v249 = vadd.f32 0.0, %v248
  %v250 = vpop.f32.mrb[0].mxu0
  %251 = vdwg.mxu0
  %254 = vrot.lane.b32.xlu0 %v149, 96
  %v255 = vpop.permute.xlu0 %254
  %256 = vrot.lane.b32.xlu0 %v154, 96
  %v257 = vpop.permute.xlu0 %256
  %v258 = vsel %vm168, %v149, 0
  %v260 = vsel %vm168, %v154, 0
  %v262 = vsel %vm168, %v255, 0
  %v264 = vsel %vm168, %v257, 0
  %266 = vmatprep.subr.mxu0 0.0
  %267 = vmatpush1.xpose.msra.mxu0 %v262
  %268 = vmatprep.subr.mxu0 0.0
  %269 = vmatpush1.xpose.msra.mxu0 %v264
  %270 = vmatprep.subr.mxu0 0.0
  %271 = vmatpush1.xpose.msra.mxu0 0.0
  %272 = vmatprep.subr.mxu0 0.0
  %273 = vmatpush1.xpose.msra.mxu0 0.0
  %274 = vmatprep.subr.mxu0 0.0
  %275 = vmatpush1.xpose.msra.mxu0 0.0
  %276 = vmatprep.subr.mxu0 0.0
  %277 = vmatpush1.xpose.msra.mxu0 0.0
  %278 = vmatprep.subr.mxu0 0.0
  %279 = vmatpush1.xpose.msra.mxu0 0.0
  %280 = vmatprep.subr.mxu0 0.0
  %281 = vmatpush1.xpose.msra.mxu0 0.0
  %282 = vmatprep.subr.mxu0 0.0
  %283 = vmatpush1.xpose.msra.mxu0 0.0
  %284 = vmatprep.subr.mxu0 0.0
  %285 = vmatpush1.xpose.msra.mxu0 0.0
  %286 = vmatprep.subr.mxu0 0.0
  %287 = vmatpush1.xpose.msra.mxu0 0.0
  %288 = vmatprep.subr.mxu0 0.0
  %289 = vmatpush1.xpose.msra.mxu0 0.0
  %290 = vmatprep.subr.mxu0 0.0
  %291 = vmatpush1.xpose.msra.mxu0 0.0
  %292 = vmatprep.subr.mxu0 0.0
  %293 = vmatpush1.xpose.msra.mxu0 0.0
  %294 = vmatprep.subr.mxu0 0.0
  %295 = vmatpush1.xpose.msra.mxu0 0.0
  %296 = vmatprep.subr.mxu0 0.0
  %297 = vmatpush1.xpose.msra.mxu0 0.0
  %298 = vmatprep.subr.mxu0 0.0
  %299 = vmatpush1.xpose.msra.mxu0 0.0
  %300 = vmatprep.subr.mxu0 0.0
  %301 = vmatpush1.xpose.msra.mxu0 0.0
  %302 = vmatprep.subr.mxu0 0.0
  %303 = vmatpush1.xpose.msra.mxu0 0.0
  %304 = vmatprep.subr.mxu0 0.0
  %305 = vmatpush1.xpose.msra.mxu0 0.0
  %306 = vmatprep.subr.mxu0 0.0
  %307 = vmatpush1.xpose.msra.mxu0 0.0
  %308 = vmatprep.subr.mxu0 0.0
  %309 = vmatpush1.xpose.msra.mxu0 0.0
  %310 = vmatprep.subr.mxu0 0.0
  %311 = vmatpush1.xpose.msra.mxu0 0.0
  %312 = vmatprep.subr.mxu0 0.0
  %313 = vmatpush1.xpose.msra.mxu0 0.0
  %314 = vmatprep.subr.mxu0 0.0
  %315 = vmatpush1.xpose.msra.mxu0 0.0
  %316 = vmatprep.subr.mxu0 0.0
  %317 = vmatpush1.xpose.msra.mxu0 0.0
  %318 = vmatprep.subr.mxu0 0.0
  %319 = vmatpush1.xpose.msra.mxu0 0.0
  %320 = vmatprep.subr.mxu0 0.0
  %321 = vmatpush1.xpose.msra.mxu0 0.0
  %322 = vmatprep.subr.mxu0 0.0
  %323 = vmatpush1.xpose.msra.mxu0 0.0
  %324 = vmatprep.subr.mxu0 0.0
  %325 = vmatpush1.xpose.msra.mxu0 0.0
  %326 = vmatprep.subr.mxu0 0.0
  %327 = vmatpush1.xpose.msra.mxu0 0.0
  %328 = vmatprep.subr.mxu0 0.0
  %329 = vmatpush1.xpose.msra.mxu0 0.0
  %330 = vmatprep.mubr.f32.mxu0 0.0
  %331 = vmatmul.mubr.f32.gmra.mrb[0].mxu0 %v258
  %v332 = vpop.f32.mrb[0].mxu0
  %v333 = vadd.f32 0.0, %v332
  %v334 = vpop.f32.mrb[0].mxu0
  %335 = vmatprep.mubr.f32.mxu0 0.0
  %336 = vmatmul.mubr.f32.gmra.mrb[0].mxu0 %v260
  %v337 = vpop.f32.mrb[0].mxu0
  %v338 = vadd.f32 0.0, %v337
  %v339 = vpop.f32.mrb[0].mxu0
  %340 = vdwg.mxu0
  %v341 = vmul.f32 %v244, 0.35355338
  %v342 = vmul.f32 %v249, 0.35355338
  %v343 = vmul.f32 %v333, 0.35355338
  %v344 = vmul.f32 %v338, 0.35355338
  %vm345 = vcmask 130048
  %v346 = vsel %vm345, %v341, -inf
  %347 = vmax.xlane.f32.xlu0 %v346
  %v348 = vpop.xlane.xlu0 %347
  %v349 = vsel %vm345, %v342, -inf
  %350 = vmax.xlane.f32.xlu0 %v349
  %v351 = vpop.xlane.xlu0 %350
  %v352 = vsel %vm345, %v343, -inf
  %353 = vmax.xlane.f32.xlu0 %v352
  %v354 = vpop.xlane.xlu0 %353
  %v355 = vsel %vm345, %v344, -inf
  %356 = vmax.xlane.f32.xlu0 %v355
  %v357 = vpop.xlane.xlu0 %356
  %v358 = vsub.f32 %v341, %v348
  %v359 = vsub.f32 %v342, %v351
  %v360 = vsub.f32 %v343, %v354
  %v361 = vsub.f32 %v344, %v357
  %v362 = vmul.f32 %v358, 1.442695
  %v363 = vpow.pop %v362
  %v364 = vmul.f32 %v359, 1.442695
  %v365 = vpow.pop %v364
  %v366 = vmul.f32 %v360, 1.442695
  %v367 = vpow.pop %v366
  %v368 = vmul.f32 %v361, 1.442695
  %v369 = vpow.pop %v368
  %v370 = vsel %vm345, %v363, 0.0
  %371 = vadd.xlane.f32.xlu0 %v370
  %v372 = vpop.xlane.xlu0 %371
  %v373 = vsel %vm345, %v365, 0.0
  %374 = vadd.xlane.f32.xlu0 %v373
  %v375 = vpop.xlane.xlu0 %374
  %v376 = vsel %vm345, %v367, 0.0
  %377 = vadd.xlane.f32.xlu0 %v376
  %v378 = vpop.xlane.xlu0 %377
  %v379 = vsel %vm345, %v369, 0.0
  %380 = vadd.xlane.f32.xlu0 %v379
  %v381 = vpop.xlane.xlu0 %380
  %v382 = vrcp.pop %v372
  %v383 = vrcp.pop %v375
  %v384 = vrcp.pop %v378
  %v385 = vrcp.pop %v381
  %v386 = vmul.f32 %v363, %v382
  %v387 = vmul.f32 %v365, %v383
  %v388 = vmul.f32 %v367, %v384
  %v389 = vmul.f32 %v369, %v385
  %390 = vrot.lane.b32.xlu0 %v139, 64
  %v391 = vpop.permute.xlu0 %390
  %392 = vrot.lane.b32.xlu0 %v144, 64
  %v393 = vpop.permute.xlu0 %392
  %v397 = vsel %vm345, %v386, 0
  %v400 = vsel %vm345, %v387, 0
  %402 = vmatprep.subr.mxu0 0.0
  %403 = vmatpush1.msra.mxu0 %v391
  %404 = vmatprep.subr.mxu0 0.0
  %405 = vmatpush1.msra.mxu0 %v393
  %406 = vmatprep.subr.mxu0 0.0
  %407 = vmatpush1.msra.mxu0 0.0
  %408 = vmatprep.subr.mxu0 0.0
  %409 = vmatpush1.msra.mxu0 0.0
  %410 = vmatprep.subr.mxu0 0.0
  %411 = vmatpush1.msra.mxu0 0.0
  %412 = vmatprep.subr.mxu0 0.0
  %413 = vmatpush1.msra.mxu0 0.0
  %414 = vmatprep.subr.mxu0 0.0
  %415 = vmatpush1.msra.mxu0 0.0
  %416 = vmatprep.subr.mxu0 0.0
  %417 = vmatpush1.msra.mxu0 0.0
  %418 = vmatprep.subr.mxu0 0.0
  %419 = vmatpush1.msra.mxu0 0.0
  %420 = vmatprep.subr.mxu0 0.0
  %421 = vmatpush1.msra.mxu0 0.0
  %422 = vmatprep.subr.mxu0 0.0
  %423 = vmatpush1.msra.mxu0 0.0
  %424 = vmatprep.subr.mxu0 0.0
  %425 = vmatpush1.msra.mxu0 0.0
  %426 = vmatprep.subr.mxu0 0.0
  %427 = vmatpush1.msra.mxu0 0.0
  %428 = vmatprep.subr.mxu0 0.0
  %429 = vmatpush1.msra.mxu0 0.0
  %430 = vmatprep.subr.mxu0 0.0
  %431 = vmatpush1.msra.mxu0 0.0
  %432 = vmatprep.subr.mxu0 0.0
  %433 = vmatpush1.msra.mxu0 0.0
  %434 = vmatprep.subr.mxu0 0.0
  %435 = vmatpush1.msra.mxu0 0.0
  %436 = vmatprep.subr.mxu0 0.0
  %437 = vmatpush1.msra.mxu0 0.0
  %438 = vmatprep.subr.mxu0 0.0
  %439 = vmatpush1.msra.mxu0 0.0
  %440 = vmatprep.subr.mxu0 0.0
  %441 = vmatpush1.msra.mxu0 0.0
  %442 = vmatprep.subr.mxu0 0.0
  %443 = vmatpush1.msra.mxu0 0.0
  %444 = vmatprep.subr.mxu0 0.0
  %445 = vmatpush1.msra.mxu0 0.0
  %446 = vmatprep.subr.mxu0 0.0
  %447 = vmatpush1.msra.mxu0 0.0
  %448 = vmatprep.subr.mxu0 0.0
  %449 = vmatpush1.msra.mxu0 0.0
  %450 = vmatprep.subr.mxu0 0.0
  %451 = vmatpush1.msra.mxu0 0.0
  %452 = vmatprep.subr.mxu0 0.0
  %453 = vmatpush1.msra.mxu0 0.0
  %454 = vmatprep.subr.mxu0 0.0
  %455 = vmatpush1.msra.mxu0 0.0
  %456 = vmatprep.subr.mxu0 0.0
  %457 = vmatpush1.msra.mxu0 0.0
  %458 = vmatprep.subr.mxu0 0.0
  %459 = vmatpush1.msra.mxu0 0.0
  %460 = vmatprep.subr.mxu0 0.0
  %461 = vmatpush1.msra.mxu0 0.0
  %462 = vmatprep.subr.mxu0 0.0
  %463 = vmatpush1.msra.mxu0 0.0
  %464 = vmatprep.subr.mxu0 0.0
  %465 = vmatpush1.msra.mxu0 0.0
  %466 = vmatprep.mubr.f32.mxu0 0.0
  %467 = vmatmul.mubr.f32.gmra.mrb[0].mxu0 %v397
  %v468 = vpop.f32.mrb[0].mxu0
  %v469 = vadd.f32 0.0, %v468
  %v470 = vpop.f32.mrb[0].mxu0
  %471 = vmatprep.mubr.f32.mxu0 0.0
  %472 = vmatmul.mubr.f32.gmra.mrb[0].mxu0 %v400
  %v473 = vpop.f32.mrb[0].mxu0
  %v474 = vadd.f32 0.0, %v473
  %v475 = vpop.f32.mrb[0].mxu0
  %476 = vdwg.mxu0
  %477 = vrot.lane.b32.xlu0 %v149, 64
  %v478 = vpop.permute.xlu0 %477
  %479 = vrot.lane.b32.xlu0 %v154, 64
  %v480 = vpop.permute.xlu0 %479
  %v484 = vsel %vm345, %v388, 0
  %v487 = vsel %vm345, %v389, 0
  %489 = vmatprep.subr.mxu0 0.0
  %490 = vmatpush1.msra.mxu0 %v478
  %491 = vmatprep.subr.mxu0 0.0
  %492 = vmatpush1.msra.mxu0 %v480
  %493 = vmatprep.subr.mxu0 0.0
  %494 = vmatpush1.msra.mxu0 0.0
  %495 = vmatprep.subr.mxu0 0.0
  %496 = vmatpush1.msra.mxu0 0.0
  %497 = vmatprep.subr.mxu0 0.0
  %498 = vmatpush1.msra.mxu0 0.0
  %499 = vmatprep.subr.mxu0 0.0
  %500 = vmatpush1.msra.mxu0 0.0
  %501 = vmatprep.subr.mxu0 0.0
  %502 = vmatpush1.msra.mxu0 0.0
  %503 = vmatprep.subr.mxu0 0.0
  %504 = vmatpush1.msra.mxu0 0.0
  %505 = vmatprep.subr.mxu0 0.0
  %506 = vmatpush1.msra.mxu0 0.0
  %507 = vmatprep.subr.mxu0 0.0
  %508 = vmatpush1.msra.mxu0 0.0
  %509 = vmatprep.subr.mxu0 0.0
  %510 = vmatpush1.msra.mxu0 0.0
  %511 = vmatprep.subr.mxu0 0.0
  %512 = vmatpush1.msra.mxu0 0.0
  %513 = vmatprep.subr.mxu0 0.0
  %514 = vmatpush1.msra.mxu0 0.0
  %515 = vmatprep.subr.mxu0 0.0
  %516 = vmatpush1.msra.mxu0 0.0
  %517 = vmatprep.subr.mxu0 0.0
  %518 = vmatpush1.msra.mxu0 0.0
  %519 = vmatprep.subr.mxu0 0.0
  %520 = vmatpush1.msra.mxu0 0.0
  %521 = vmatprep.subr.mxu0 0.0
  %522 = vmatpush1.msra.mxu0 0.0
  %523 = vmatprep.subr.mxu0 0.0
  %524 = vmatpush1.msra.mxu0 0.0
  %525 = vmatprep.subr.mxu0 0.0
  %526 = vmatpush1.msra.mxu0 0.0
  %527 = vmatprep.subr.mxu0 0.0
  %528 = vmatpush1.msra.mxu0 0.0
  %529 = vmatprep.subr.mxu0 0.0
  %530 = vmatpush1.msra.mxu0 0.0
  %531 = vmatprep.subr.mxu0 0.0
  %532 = vmatpush1.msra.mxu0 0.0
  %533 = vmatprep.subr.mxu0 0.0
  %534 = vmatpush1.msra.mxu0 0.0
  %535 = vmatprep.subr.mxu0 0.0
  %536 = vmatpush1.msra.mxu0 0.0
  %537 = vmatprep.subr.mxu0 0.0
  %538 = vmatpush1.msra.mxu0 0.0
  %539 = vmatprep.subr.mxu0 0.0
  %540 = vmatpush1.msra.mxu0 0.0
  %541 = vmatprep.subr.mxu0 0.0
  %542 = vmatpush1.msra.mxu0 0.0
  %543 = vmatprep.subr.mxu0 0.0
  %544 = vmatpush1.msra.mxu0 0.0
  %545 = vmatprep.subr.mxu0 0.0
  %546 = vmatpush1.msra.mxu0 0.0
  %547 = vmatprep.subr.mxu0 0.0
  %548 = vmatpush1.msra.mxu0 0.0
  %549 = vmatprep.subr.mxu0 0.0
  %550 = vmatpush1.msra.mxu0 0.0
  %551 = vmatprep.subr.mxu0 0.0
  %552 = vmatpush1.msra.mxu0 0.0
  %553 = vmatprep.mubr.f32.mxu0 0.0
  %554 = vmatmul.mubr.f32.gmra.mrb[0].mxu0 %v484
  %v555 = vpop.f32.mrb[0].mxu0
  %v556 = vadd.f32 0.0, %v555
  %v557 = vpop.f32.mrb[0].mxu0
  %558 = vmatprep.mubr.f32.mxu0 0.0
  %559 = vmatmul.mubr.f32.gmra.mrb[0].mxu0 %v487
  %v560 = vpop.f32.mrb[0].mxu0
  %v561 = vadd.f32 0.0, %v560
  %v562 = vpop.f32.mrb[0].mxu0
  %563 = vdwg.mxu0
  %564 = vrot.lane.b32.xlu0 %v139, 120
  %v565 = vpop.permute.xlu0 %564
  %566 = vrot.lane.b32.xlu0 %v144, 120
  %v567 = vpop.permute.xlu0 %566
  %568 = vrot.lane.b32.xlu0 %v139, 88
  %v569 = vpop.permute.xlu0 %568
  %570 = vrot.lane.b32.xlu0 %v144, 88
  %v571 = vpop.permute.xlu0 %570
  %v572 = vsel %vm168, %v565, 0
  %v574 = vsel %vm168, %v567, 0
  %v576 = vsel %vm168, %v569, 0
  %v578 = vsel %vm168, %v571, 0
  %580 = vmatprep.subr.mxu0 0.0
  %581 = vmatpush1.xpose.msra.mxu0 %v576
  %582 = vmatprep.subr.mxu0 0.0
  %583 = vmatpush1.xpose.msra.mxu0 %v578
  %584 = vmatprep.subr.mxu0 0.0
  %585 = vmatpush1.xpose.msra.mxu0 0.0
  %586 = vmatprep.subr.mxu0 0.0
  %587 = vmatpush1.xpose.msra.mxu0 0.0
  %588 = vmatprep.subr.mxu0 0.0
  %589 = vmatpush1.xpose.msra.mxu0 0.0
  %590 = vmatprep.subr.mxu0 0.0
  %591 = vmatpush1.xpose.msra.mxu0 0.0
  %592 = vmatprep.subr.mxu0 0.0
  %593 = vmatpush1.xpose.msra.mxu0 0.0
  %594 = vmatprep.subr.mxu0 0.0
  %595 = vmatpush1.xpose.msra.mxu0 0.0
  %596 = vmatprep.subr.mxu0 0.0
  %597 = vmatpush1.xpose.msra.mxu0 0.0
  %598 = vmatprep.subr.mxu0 0.0
  %599 = vmatpush1.xpose.msra.mxu0 0.0
  %600 = vmatprep.subr.mxu0 0.0
  %601 = vmatpush1.xpose.msra.mxu0 0.0
  %602 = vmatprep.subr.mxu0 0.0
  %603 = vmatpush1.xpose.msra.mxu0 0.0
  %604 = vmatprep.subr.mxu0 0.0
  %605 = vmatpush1.xpose.msra.mxu0 0.0
  %606 = vmatprep.subr.mxu0 0.0
  %607 = vmatpush1.xpose.msra.mxu0 0.0
  %608 = vmatprep.subr.mxu0 0.0
  %609 = vmatpush1.xpose.msra.mxu0 0.0
  %610 = vmatprep.subr.mxu0 0.0
  %611 = vmatpush1.xpose.msra.mxu0 0.0
  %612 = vmatprep.subr.mxu0 0.0
  %613 = vmatpush1.xpose.msra.mxu0 0.0
  %614 = vmatprep.subr.mxu0 0.0
  %615 = vmatpush1.xpose.msra.mxu0 0.0
  %616 = vmatprep.subr.mxu0 0.0
  %617 = vmatpush1.xpose.msra.mxu0 0.0
  %618 = vmatprep.subr.mxu0 0.0
  %619 = vmatpush1.xpose.msra.mxu0 0.0
  %620 = vmatprep.subr.mxu0 0.0
  %621 = vmatpush1.xpose.msra.mxu0 0.0
  %622 = vmatprep.subr.mxu0 0.0
  %623 = vmatpush1.xpose.msra.mxu0 0.0
  %624 = vmatprep.subr.mxu0 0.0
  %625 = vmatpush1.xpose.msra.mxu0 0.0
  %626 = vmatprep.subr.mxu0 0.0
  %627 = vmatpush1.xpose.msra.mxu0 0.0
  %628 = vmatprep.subr.mxu0 0.0
  %629 = vmatpush1.xpose.msra.mxu0 0.0
  %630 = vmatprep.subr.mxu0 0.0
  %631 = vmatpush1.xpose.msra.mxu0 0.0
  %632 = vmatprep.subr.mxu0 0.0
  %633 = vmatpush1.xpose.msra.mxu0 0.0
  %634 = vmatprep.subr.mxu0 0.0
  %635 = vmatpush1.xpose.msra.mxu0 0.0
  %636 = vmatprep.subr.mxu0 0.0
  %637 = vmatpush1.xpose.msra.mxu0 0.0
  %638 = vmatprep.subr.mxu0 0.0
  %639 = vmatpush1.xpose.msra.mxu0 0.0
  %640 = vmatprep.subr.mxu0 0.0
  %641 = vmatpush1.xpose.msra.mxu0 0.0
  %642 = vmatprep.subr.mxu0 0.0
  %643 = vmatpush1.xpose.msra.mxu0 0.0
  %644 = vmatprep.mubr.f32.mxu0 0.0
  %645 = vmatmul.mubr.f32.gmra.mrb[0].mxu0 %v572
  %v646 = vpop.f32.mrb[0].mxu0
  %v647 = vadd.f32 0.0, %v646
  %v648 = vpop.f32.mrb[0].mxu0
  %649 = vmatprep.mubr.f32.mxu0 0.0
  %650 = vmatmul.mubr.f32.gmra.mrb[0].mxu0 %v574
  %v651 = vpop.f32.mrb[0].mxu0
  %v652 = vadd.f32 0.0, %v651
  %v653 = vpop.f32.mrb[0].mxu0
  %654 = vdwg.mxu0
  %655 = vrot.lane.b32.xlu0 %v149, 120
  %v656 = vpop.permute.xlu0 %655
  %657 = vrot.lane.b32.xlu0 %v154, 120
  %v658 = vpop.permute.xlu0 %657
  %659 = vrot.lane.b32.xlu0 %v149, 88
  %v660 = vpop.permute.xlu0 %659
  %661 = vrot.lane.b32.xlu0 %v154, 88
  %v662 = vpop.permute.xlu0 %661
  %v663 = vsel %vm168, %v656, 0
  %v665 = vsel %vm168, %v658, 0
  %v667 = vsel %vm168, %v660, 0
  %v669 = vsel %vm168, %v662, 0
  %671 = vmatprep.subr.mxu0 0.0
  %672 = vmatpush1.xpose.msra.mxu0 %v667
  %673 = vmatprep.subr.mxu0 0.0
  %674 = vmatpush1.xpose.msra.mxu0 %v669
  %675 = vmatprep.subr.mxu0 0.0
  %676 = vmatpush1.xpose.msra.mxu0 0.0
  %677 = vmatprep.subr.mxu0 0.0
  %678 = vmatpush1.xpose.msra.mxu0 0.0
  %679 = vmatprep.subr.mxu0 0.0
  %680 = vmatpush1.xpose.msra.mxu0 0.0
  %681 = vmatprep.subr.mxu0 0.0
  %682 = vmatpush1.xpose.msra.mxu0 0.0
  %683 = vmatprep.subr.mxu0 0.0
  %684 = vmatpush1.xpose.msra.mxu0 0.0
  %685 = vmatprep.subr.mxu0 0.0
  %686 = vmatpush1.xpose.msra.mxu0 0.0
  %687 = vmatprep.subr.mxu0 0.0
  %688 = vmatpush1.xpose.msra.mxu0 0.0
  %689 = vmatprep.subr.mxu0 0.0
  %690 = vmatpush1.xpose.msra.mxu0 0.0
  %691 = vmatprep.subr.mxu0 0.0
  %692 = vmatpush1.xpose.msra.mxu0 0.0
  %693 = vmatprep.subr.mxu0 0.0
  %694 = vmatpush1.xpose.msra.mxu0 0.0
  %695 = vmatprep.subr.mxu0 0.0
  %696 = vmatpush1.xpose.msra.mxu0 0.0
  %697 = vmatprep.subr.mxu0 0.0
  %698 = vmatpush1.xpose.msra.mxu0 0.0
  %699 = vmatprep.subr.mxu0 0.0
  %700 = vmatpush1.xpose.msra.mxu0 0.0
  %701 = vmatprep.subr.mxu0 0.0
  %702 = vmatpush1.xpose.msra.mxu0 0.0
  %703 = vmatprep.subr.mxu0 0.0
  %704 = vmatpush1.xpose.msra.mxu0 0.0
  %705 = vmatprep.subr.mxu0 0.0
  %706 = vmatpush1.xpose.msra.mxu0 0.0
  %707 = vmatprep.subr.mxu0 0.0
  %708 = vmatpush1.xpose.msra.mxu0 0.0
  %709 = vmatprep.subr.mxu0 0.0
  %710 = vmatpush1.xpose.msra.mxu0 0.0
  %711 = vmatprep.subr.mxu0 0.0
  %712 = vmatpush1.xpose.msra.mxu0 0.0
  %713 = vmatprep.subr.mxu0 0.0
  %714 = vmatpush1.xpose.msra.mxu0 0.0
  %715 = vmatprep.subr.mxu0 0.0
  %716 = vmatpush1.xpose.msra.mxu0 0.0
  %717 = vmatprep.subr.mxu0 0.0
  %718 = vmatpush1.xpose.msra.mxu0 0.0
  %719 = vmatprep.subr.mxu0 0.0
  %720 = vmatpush1.xpose.msra.mxu0 0.0
  %721 = vmatprep.subr.mxu0 0.0
  %722 = vmatpush1.xpose.msra.mxu0 0.0
  %723 = vmatprep.subr.mxu0 0.0
  %724 = vmatpush1.xpose.msra.mxu0 0.0
  %725 = vmatprep.subr.mxu0 0.0
  %726 = vmatpush1.xpose.msra.mxu0 0.0
  %727 = vmatprep.subr.mxu0 0.0
  %728 = vmatpush1.xpose.msra.mxu0 0.0
  %729 = vmatprep.subr.mxu0 0.0
  %730 = vmatpush1.xpose.msra.mxu0 0.0
  %731 = vmatprep.subr.mxu0 0.0
  %732 = vmatpush1.xpose.msra.mxu0 0.0
  %733 = vmatprep.subr.mxu0 0.0
  %734 = vmatpush1.xpose.msra.mxu0 0.0
  %735 = vmatprep.mubr.f32.mxu0 0.0
  %736 = vmatmul.mubr.f32.gmra.mrb[0].mxu0 %v663
  %v737 = vpop.f32.mrb[0].mxu0
  %v738 = vadd.f32 0.0, %v737
  %v739 = vpop.f32.mrb[0].mxu0
  %740 = vmatprep.mubr.f32.mxu0 0.0
  %741 = vmatmul.mubr.f32.gmra.mrb[0].mxu0 %v665
  %v742 = vpop.f32.mrb[0].mxu0
  %v743 = vadd.f32 0.0, %v742
  %v744 = vpop.f32.mrb[0].mxu0
  %745 = vdwg.mxu0
  %v746 = vmul.f32 %v647, 0.35355338
  %v747 = vmul.f32 %v652, 0.35355338
  %v748 = vmul.f32 %v738, 0.35355338
  %v749 = vmul.f32 %v743, 0.35355338
  %v750 = vsel %vm345, %v746, -inf
  %751 = vmax.xlane.f32.xlu0 %v750
  %v752 = vpop.xlane.xlu0 %751
  %v753 = vsel %vm345, %v747, -inf
  %754 = vmax.xlane.f32.xlu0 %v753
  %v755 = vpop.xlane.xlu0 %754
  %v756 = vsel %vm345, %v748, -inf
  %757 = vmax.xlane.f32.xlu0 %v756
  %v758 = vpop.xlane.xlu0 %757
  %v759 = vsel %vm345, %v749, -inf
  %760 = vmax.xlane.f32.xlu0 %v759
  %v761 = vpop.xlane.xlu0 %760
  %v762 = vsub.f32 %v746, %v752
  %v763 = vsub.f32 %v747, %v755
  %v764 = vsub.f32 %v748, %v758
  %v765 = vsub.f32 %v749, %v761
  %v766 = vmul.f32 %v762, 1.442695
  %v767 = vpow.pop %v766
  %v768 = vmul.f32 %v763, 1.442695
  %v769 = vpow.pop %v768
  %v770 = vmul.f32 %v764, 1.442695
  %v771 = vpow.pop %v770
  %v772 = vmul.f32 %v765, 1.442695
  %v773 = vpow.pop %v772
  %v774 = vsel %vm345, %v767, 0.0
  %775 = vadd.xlane.f32.xlu0 %v774
  %v776 = vpop.xlane.xlu0 %775
  %v777 = vsel %vm345, %v769, 0.0
  %778 = vadd.xlane.f32.xlu0 %v777
  %v779 = vpop.xlane.xlu0 %778
  %v780 = vsel %vm345, %v771, 0.0
  %781 = vadd.xlane.f32.xlu0 %v780
  %v782 = vpop.xlane.xlu0 %781
  %v783 = vsel %vm345, %v773, 0.0
  %784 = vadd.xlane.f32.xlu0 %v783
  %v785 = vpop.xlane.xlu0 %784
  %v786 = vrcp.pop %v776
  %v787 = vrcp.pop %v779
  %v788 = vrcp.pop %v782
  %v789 = vrcp.pop %v785
  %v790 = vmul.f32 %v767, %v786
  %v791 = vmul.f32 %v769, %v787
  %v792 = vmul.f32 %v771, %v788
  %v793 = vmul.f32 %v773, %v789
  %794 = vrot.lane.b32.xlu0 %v139, 56
  %v795 = vpop.permute.xlu0 %794
  %796 = vrot.lane.b32.xlu0 %v144, 56
  %v797 = vpop.permute.xlu0 %796
  %v801 = vsel %vm345, %v790, 0
  %v804 = vsel %vm345, %v791, 0
  %806 = vmatprep.subr.mxu0 0.0
  %807 = vmatpush1.msra.mxu0 %v795
  %808 = vmatprep.subr.mxu0 0.0
  %809 = vmatpush1.msra.mxu0 %v797
  %810 = vmatprep.subr.mxu0 0.0
  %811 = vmatpush1.msra.mxu0 0.0
  %812 = vmatprep.subr.mxu0 0.0
  %813 = vmatpush1.msra.mxu0 0.0
  %814 = vmatprep.subr.mxu0 0.0
  %815 = vmatpush1.msra.mxu0 0.0
  %816 = vmatprep.subr.mxu0 0.0
  %817 = vmatpush1.msra.mxu0 0.0
  %818 = vmatprep.subr.mxu0 0.0
  %819 = vmatpush1.msra.mxu0 0.0
  %820 = vmatprep.subr.mxu0 0.0
  %821 = vmatpush1.msra.mxu0 0.0
  %822 = vmatprep.subr.mxu0 0.0
  %823 = vmatpush1.msra.mxu0 0.0
  %824 = vmatprep.subr.mxu0 0.0
  %825 = vmatpush1.msra.mxu0 0.0
  %826 = vmatprep.subr.mxu0 0.0
  %827 = vmatpush1.msra.mxu0 0.0
  %828 = vmatprep.subr.mxu0 0.0
  %829 = vmatpush1.msra.mxu0 0.0
  %830 = vmatprep.subr.mxu0 0.0
  %831 = vmatpush1.msra.mxu0 0.0
  %832 = vmatprep.subr.mxu0 0.0
  %833 = vmatpush1.msra.mxu0 0.0
  %834 = vmatprep.subr.mxu0 0.0
  %835 = vmatpush1.msra.mxu0 0.0
  %836 = vmatprep.subr.mxu0 0.0
  %837 = vmatpush1.msra.mxu0 0.0
  %838 = vmatprep.subr.mxu0 0.0
  %839 = vmatpush1.msra.mxu0 0.0
  %840 = vmatprep.subr.mxu0 0.0
  %841 = vmatpush1.msra.mxu0 0.0
  %842 = vmatprep.subr.mxu0 0.0
  %843 = vmatpush1.msra.mxu0 0.0
  %844 = vmatprep.subr.mxu0 0.0
  %845 = vmatpush1.msra.mxu0 0.0
  %846 = vmatprep.subr.mxu0 0.0
  %847 = vmatpush1.msra.mxu0 0.0
  %848 = vmatprep.subr.mxu0 0.0
  %849 = vmatpush1.msra.mxu0 0.0
  %850 = vmatprep.subr.mxu0 0.0
  %851 = vmatpush1.msra.mxu0 0.0
  %852 = vmatprep.subr.mxu0 0.0
  %853 = vmatpush1.msra.mxu0 0.0
  %854 = vmatprep.subr.mxu0 0.0
  %855 = vmatpush1.msra.mxu0 0.0
  %856 = vmatprep.subr.mxu0 0.0
  %857 = vmatpush1.msra.mxu0 0.0
  %858 = vmatprep.subr.mxu0 0.0
  %859 = vmatpush1.msra.mxu0 0.0
  %860 = vmatprep.subr.mxu0 0.0
  %861 = vmatpush1.msra.mxu0 0.0
  %862 = vmatprep.subr.mxu0 0.0
  %863 = vmatpush1.msra.mxu0 0.0
  %864 = vmatprep.subr.mxu0 0.0
  %865 = vmatpush1.msra.mxu0 0.0
  %866 = vmatprep.subr.mxu0 0.0
  %867 = vmatpush1.msra.mxu0 0.0
  %868 = vmatprep.subr.mxu0 0.0
  %869 = vmatpush1.msra.mxu0 0.0
  %870 = vmatprep.mubr.f32.mxu0 0.0
  %871 = vmatmul.mubr.f32.gmra.mrb[0].mxu0 %v801
  %v872 = vpop.f32.mrb[0].mxu0
  %v873 = vadd.f32 0.0, %v872
  %v874 = vpop.f32.mrb[0].mxu0
  %875 = vmatprep.mubr.f32.mxu0 0.0
  %876 = vmatmul.mubr.f32.gmra.mrb[0].mxu0 %v804
  %v877 = vpop.f32.mrb[0].mxu0
  %v878 = vadd.f32 0.0, %v877
  %v879 = vpop.f32.mrb[0].mxu0
  %880 = vdwg.mxu0
  %881 = vrot.lane.b32.xlu0 %v149, 56
  %v882 = vpop.permute.xlu0 %881
  %883 = vrot.lane.b32.xlu0 %v154, 56
  %v884 = vpop.permute.xlu0 %883
  %v888 = vsel %vm345, %v792, 0
  %v891 = vsel %vm345, %v793, 0
  %893 = vmatprep.subr.mxu0 0.0
  %894 = vmatpush1.msra.mxu0 %v882
  %895 = vmatprep.subr.mxu0 0.0
  %896 = vmatpush1.msra.mxu0 %v884
  %897 = vmatprep.subr.mxu0 0.0
  %898 = vmatpush1.msra.mxu0 0.0
  %899 = vmatprep.subr.mxu0 0.0
  %900 = vmatpush1.msra.mxu0 0.0
  %901 = vmatprep.subr.mxu0 0.0
  %902 = vmatpush1.msra.mxu0 0.0
  %903 = vmatprep.subr.mxu0 0.0
  %904 = vmatpush1.msra.mxu0 0.0
  %905 = vmatprep.subr.mxu0 0.0
  %906 = vmatpush1.msra.mxu0 0.0
  %907 = vmatprep.subr.mxu0 0.0
  %908 = vmatpush1.msra.mxu0 0.0
  %909 = vmatprep.subr.mxu0 0.0
  %910 = vmatpush1.msra.mxu0 0.0
  %911 = vmatprep.subr.mxu0 0.0
  %912 = vmatpush1.msra.mxu0 0.0
  %913 = vmatprep.subr.mxu0 0.0
  %914 = vmatpush1.msra.mxu0 0.0
  %915 = vmatprep.subr.mxu0 0.0
  %916 = vmatpush1.msra.mxu0 0.0
  %917 = vmatprep.subr.mxu0 0.0
  %918 = vmatpush1.msra.mxu0 0.0
  %919 = vmatprep.subr.mxu0 0.0
  %920 = vmatpush1.msra.mxu0 0.0
  %921 = vmatprep.subr.mxu0 0.0
  %922 = vmatpush1.msra.mxu0 0.0
  %923 = vmatprep.subr.mxu0 0.0
  %924 = vmatpush1.msra.mxu0 0.0
  %925 = vmatprep.subr.mxu0 0.0
  %926 = vmatpush1.msra.mxu0 0.0
  %927 = vmatprep.subr.mxu0 0.0
  %928 = vmatpush1.msra.mxu0 0.0
  %929 = vmatprep.subr.mxu0 0.0
  %930 = vmatpush1.msra.mxu0 0.0
  %931 = vmatprep.subr.mxu0 0.0
  %932 = vmatpush1.msra.mxu0 0.0
  %933 = vmatprep.subr.mxu0 0.0
  %934 = vmatpush1.msra.mxu0 0.0
  %935 = vmatprep.subr.mxu0 0.0
  %936 = vmatpush1.msra.mxu0 0.0
  %937 = vmatprep.subr.mxu0 0.0
  %938 = vmatpush1.msra.mxu0 0.0
  %939 = vmatprep.subr.mxu0 0.0
  %940 = vmatpush1.msra.mxu0 0.0
  %941 = vmatprep.subr.mxu0 0.0
  %942 = vmatpush1.msra.mxu0 0.0
  %943 = vmatprep.subr.mxu0 0.0
  %944 = vmatpush1.msra.mxu0 0.0
  %945 = vmatprep.subr.mxu0 0.0
  %946 = vmatpush1.msra.mxu0 0.0
  %947 = vmatprep.subr.mxu0 0.0
  %948 = vmatpush1.msra.mxu0 0.0
  %949 = vmatprep.subr.mxu0 0.0
  %950 = vmatpush1.msra.mxu0 0.0
  %951 = vmatprep.subr.mxu0 0.0
  %952 = vmatpush1.msra.mxu0 0.0
  %953 = vmatprep.subr.mxu0 0.0
  %954 = vmatpush1.msra.mxu0 0.0
  %955 = vmatprep.subr.mxu0 0.0
  %956 = vmatpush1.msra.mxu0 0.0
  %957 = vmatprep.mubr.f32.mxu0 0.0
  %958 = vmatmul.mubr.f32.gmra.mrb[0].mxu0 %v888
  %v959 = vpop.f32.mrb[0].mxu0
  %v960 = vadd.f32 0.0, %v959
  %v961 = vpop.f32.mrb[0].mxu0
  %962 = vmatprep.mubr.f32.mxu0 0.0
  %963 = vmatmul.mubr.f32.gmra.mrb[0].mxu0 %v891
  %v964 = vpop.f32.mrb[0].mxu0
  %v965 = vadd.f32 0.0, %v964
  %v966 = vpop.f32.mrb[0].mxu0
  %967 = vdwg.mxu0
  %v969 = vsel %vm168, %v873, 0
  %v972 = vsel %vm168, %v878, 0
  %v975 = vsel %vm168, %v960, 0
  %v978 = vsel %vm168, %v965, 0
  %980 = vmatprep.subr.mxu0 0.0
  %981 = vmatpush1.msra.mxu0 %v158
  %982 = vmatprep.subr.mxu0 0.0
  %983 = vmatpush1.msra.mxu0 0.0
  %984 = vmatprep.subr.mxu0 0.0
  %985 = vmatpush1.msra.mxu0 0.0
  %986 = vmatprep.subr.mxu0 0.0
  %987 = vmatpush1.msra.mxu0 0.0
  %988 = vmatprep.subr.mxu0 0.0
  %989 = vmatpush1.msra.mxu0 0.0
  %990 = vmatprep.subr.mxu0 0.0
  %991 = vmatpush1.msra.mxu0 0.0
  %992 = vmatprep.subr.mxu0 0.0
  %993 = vmatpush1.msra.mxu0 0.0
  %994 = vmatprep.subr.mxu0 0.0
  %995 = vmatpush1.msra.mxu0 0.0
  %996 = vmatprep.subr.mxu0 0.0
  %997 = vmatpush1.msra.mxu0 0.0
  %998 = vmatprep.subr.mxu0 0.0
  %999 = vmatpush1.msra.mxu0 0.0
  %1000 = vmatprep.subr.mxu0 0.0
  %1001 = vmatpush1.msra.mxu0 0.0
  %1002 = vmatprep.subr.mxu0 0.0
  %1003 = vmatpush1.msra.mxu0 0.0
  %1004 = vmatprep.subr.mxu0 0.0
  %1005 = vmatpush1.msra.mxu0 0.0
  %1006 = vmatprep.subr.mxu0 0.0
  %1007 = vmatpush1.msra.mxu0 0.0
  %1008 = vmatprep.subr.mxu0 0.0
  %1009 = vmatpush1.msra.mxu0 0.0
  %1010 = vmatprep.subr.mxu0 0.0
  %1011 = vmatpush1.msra.mxu0 0.0
  %1012 = vmatprep.subr.mxu0 0.0
  %1013 = vmatpush1.msra.mxu0 0.0
  %1014 = vmatprep.subr.mxu0 0.0
  %1015 = vmatpush1.msra.mxu0 0.0
  %1016 = vmatprep.subr.mxu0 0.0
  %1017 = vmatpush1.msra.mxu0 0.0
  %1018 = vmatprep.subr.mxu0 0.0
  %1019 = vmatpush1.msra.mxu0 0.0
  %1020 = vmatprep.subr.mxu0 0.0
  %1021 = vmatpush1.msra.mxu0 0.0
  %1022 = vmatprep.subr.mxu0 0.0
  %1023 = vmatpush1.msra.mxu0 0.0
  %1024 = vmatprep.subr.mxu0 0.0
  %1025 = vmatpush1.msra.mxu0 0.0
  %1026 = vmatprep.subr.mxu0 0.0
  %1027 = vmatpush1.msra.mxu0 0.0
  %1028 = vmatprep.subr.mxu0 0.0
  %1029 = vmatpush1.msra.mxu0 0.0
  %1030 = vmatprep.subr.mxu0 0.0
  %1031 = vmatpush1.msra.mxu0 0.0
  %1032 = vmatprep.subr.mxu0 0.0
  %1033 = vmatpush1.msra.mxu0 0.0
  %1034 = vmatprep.subr.mxu0 0.0
  %1035 = vmatpush1.msra.mxu0 0.0
  %1036 = vmatprep.subr.mxu0 0.0
  %1037 = vmatpush1.msra.mxu0 0.0
  %1038 = vmatprep.subr.mxu0 0.0
  %1039 = vmatpush1.msra.mxu0 0.0
  %1040 = vmatprep.subr.mxu0 0.0
  %1041 = vmatpush1.msra.mxu0 0.0
  %1042 = vmatprep.subr.mxu0 0.0
  %1043 = vmatpush1.msra.mxu0 0.0
  %1044 = vmatprep.mubr.f32.mxu0 0.0
  %1045 = vmatmul.mubr.f32.gmra.mrb[0].mxu0 %v969
  %v1046 = vpop.f32.mrb[0].mxu0
  %v1047 = vadd.f32 0.0, %v1046
  %v1048 = vpop.f32.mrb[0].mxu0
  %1049 = vmatprep.mubr.f32.mxu0 0.0
  %1050 = vmatmul.mubr.f32.gmra.mrb[0].mxu0 %v972
  %v1051 = vpop.f32.mrb[0].mxu0
  %v1052 = vadd.f32 0.0, %v1051
  %v1053 = vpop.f32.mrb[0].mxu0
  %1054 = vmatprep.mubr.f32.mxu0 0.0
  %1055 = vmatmul.mubr.f32.gmra.mrb[0].mxu0 %v975
  %v1056 = vpop.f32.mrb[0].mxu0
  %v1057 = vadd.f32 0.0, %v1056
  %v1058 = vpop.f32.mrb[0].mxu0
  %1059 = vmatprep.mubr.f32.mxu0 0.0
  %1060 = vmatmul.mubr.f32.gmra.mrb[0].mxu0 %v978
  %v1061 = vpop.f32.mrb[0].mxu0
  %v1062 = vadd.f32 0.0, %v1061
  %v1063 = vpop.f32.mrb[0].mxu0
  %1064 = vdwg.mxu0
  %v1066 = vsel %vm168, %v469, 0
  %v1069 = vsel %vm168, %v474, 0
  %v1072 = vsel %vm168, %v556, 0
  %v1075 = vsel %vm168, %v561, 0
  %1077 = vmatprep.subr.mxu0 0.0
  %1078 = vmatpush1.msra.mxu0 %v157
  %1079 = vmatprep.subr.mxu0 0.0
  %1080 = vmatpush1.msra.mxu0 0.0
  %1081 = vmatprep.subr.mxu0 0.0
  %1082 = vmatpush1.msra.mxu0 0.0
  %1083 = vmatprep.subr.mxu0 0.0
  %1084 = vmatpush1.msra.mxu0 0.0
  %1085 = vmatprep.subr.mxu0 0.0
  %1086 = vmatpush1.msra.mxu0 0.0
  %1087 = vmatprep.subr.mxu0 0.0
  %1088 = vmatpush1.msra.mxu0 0.0
  %1089 = vmatprep.subr.mxu0 0.0
  %1090 = vmatpush1.msra.mxu0 0.0
  %1091 = vmatprep.subr.mxu0 0.0
  %1092 = vmatpush1.msra.mxu0 0.0
  %1093 = vmatprep.subr.mxu0 0.0
  %1094 = vmatpush1.msra.mxu0 0.0
  %1095 = vmatprep.subr.mxu0 0.0
  %1096 = vmatpush1.msra.mxu0 0.0
  %1097 = vmatprep.subr.mxu0 0.0
  %1098 = vmatpush1.msra.mxu0 0.0
  %1099 = vmatprep.subr.mxu0 0.0
  %1100 = vmatpush1.msra.mxu0 0.0
  %1101 = vmatprep.subr.mxu0 0.0
  %1102 = vmatpush1.msra.mxu0 0.0
  %1103 = vmatprep.subr.mxu0 0.0
  %1104 = vmatpush1.msra.mxu0 0.0
  %1105 = vmatprep.subr.mxu0 0.0
  %1106 = vmatpush1.msra.mxu0 0.0
  %1107 = vmatprep.subr.mxu0 0.0
  %1108 = vmatpush1.msra.mxu0 0.0
  %1109 = vmatprep.subr.mxu0 0.0
  %1110 = vmatpush1.msra.mxu0 0.0
  %1111 = vmatprep.subr.mxu0 0.0
  %1112 = vmatpush1.msra.mxu0 0.0
  %1113 = vmatprep.subr.mxu0 0.0
  %1114 = vmatpush1.msra.mxu0 0.0
  %1115 = vmatprep.subr.mxu0 0.0
  %1116 = vmatpush1.msra.mxu0 0.0
  %1117 = vmatprep.subr.mxu0 0.0
  %1118 = vmatpush1.msra.mxu0 0.0
  %1119 = vmatprep.subr.mxu0 0.0
  %1120 = vmatpush1.msra.mxu0 0.0
  %1121 = vmatprep.subr.mxu0 0.0
  %1122 = vmatpush1.msra.mxu0 0.0
  %1123 = vmatprep.subr.mxu0 0.0
  %1124 = vmatpush1.msra.mxu0 0.0
  %1125 = vmatprep.subr.mxu0 0.0
  %1126 = vmatpush1.msra.mxu0 0.0
  %1127 = vmatprep.subr.mxu0 0.0
  %1128 = vmatpush1.msra.mxu0 0.0
  %1129 = vmatprep.subr.mxu0 0.0
  %1130 = vmatpush1.msra.mxu0 0.0
  %1131 = vmatprep.subr.mxu0 0.0
  %1132 = vmatpush1.msra.mxu0 0.0
  %1133 = vmatprep.subr.mxu0 0.0
  %1134 = vmatpush1.msra.mxu0 0.0
  %1135 = vmatprep.subr.mxu0 0.0
  %1136 = vmatpush1.msra.mxu0 0.0
  %1137 = vmatprep.subr.mxu0 0.0
  %1138 = vmatpush1.msra.mxu0 0.0
  %1139 = vmatprep.subr.mxu0 0.0
  %1140 = vmatpush1.msra.mxu0 0.0
  %1141 = vmatprep.mubr.f32.mxu0 0.0
  %1142 = vmatmul.mubr.f32.gmra.mrb[0].mxu0 %v1066
  %v1143 = vpop.f32.mrb[0].mxu0
  %v1144 = vadd.f32 %v1047, %v1143
  %v1145 = vpop.f32.mrb[0].mxu0
  %1146 = vmatprep.mubr.f32.mxu0 0.0
  %1147 = vmatmul.mubr.f32.gmra.mrb[0].mxu0 %v1069
  %v1148 = vpop.f32.mrb[0].mxu0
  %v1149 = vadd.f32 %v1052, %v1148
  %v1150 = vpop.f32.mrb[0].mxu0
  %1151 = vmatprep.mubr.f32.mxu0 0.0
  %1152 = vmatmul.mubr.f32.gmra.mrb[0].mxu0 %v1072
  %v1153 = vpop.f32.mrb[0].mxu0
  %v1154 = vadd.f32 %v1057, %v1153
  %v1155 = vpop.f32.mrb[0].mxu0
  %1156 = vmatprep.mubr.f32.mxu0 0.0
  %1157 = vmatmul.mubr.f32.gmra.mrb[0].mxu0 %v1075
  %v1158 = vpop.f32.mrb[0].mxu0
  %v1159 = vadd.f32 %v1062, %v1158
  %v1160 = vpop.f32.mrb[0].mxu0
  %1161 = vdwg.mxu0
  %1162 = vrot.lane.b32.xlu0 %v139, 112
  %v1163 = vpop.permute.xlu0 %1162
  %1164 = vrot.lane.b32.xlu0 %v144, 112
  %v1165 = vpop.permute.xlu0 %1164
  %1166 = vrot.lane.b32.xlu0 %v139, 80
  %v1167 = vpop.permute.xlu0 %1166
  %1168 = vrot.lane.b32.xlu0 %v144, 80
  %v1169 = vpop.permute.xlu0 %1168
  %v1170 = vsel %vm168, %v1163, 0
  %v1172 = vsel %vm168, %v1165, 0
  %v1174 = vsel %vm168, %v1167, 0
  %v1176 = vsel %vm168, %v1169, 0
  %1178 = vmatprep.subr.mxu0 0.0
  %1179 = vmatpush1.xpose.msra.mxu0 %v1174
  %1180 = vmatprep.subr.mxu0 0.0
  %1181 = vmatpush1.xpose.msra.mxu0 %v1176
  %1182 = vmatprep.subr.mxu0 0.0
  %1183 = vmatpush1.xpose.msra.mxu0 0.0
  %1184 = vmatprep.subr.mxu0 0.0
  %1185 = vmatpush1.xpose.msra.mxu0 0.0
  %1186 = vmatprep.subr.mxu0 0.0
  %1187 = vmatpush1.xpose.msra.mxu0 0.0
  %1188 = vmatprep.subr.mxu0 0.0
  %1189 = vmatpush1.xpose.msra.mxu0 0.0
  %1190 = vmatprep.subr.mxu0 0.0
  %1191 = vmatpush1.xpose.msra.mxu0 0.0
  %1192 = vmatprep.subr.mxu0 0.0
  %1193 = vmatpush1.xpose.msra.mxu0 0.0
  %1194 = vmatprep.subr.mxu0 0.0
  %1195 = vmatpush1.xpose.msra.mxu0 0.0
  %1196 = vmatprep.subr.mxu0 0.0
  %1197 = vmatpush1.xpose.msra.mxu0 0.0
  %1198 = vmatprep.subr.mxu0 0.0
  %1199 = vmatpush1.xpose.msra.mxu0 0.0
  %1200 = vmatprep.subr.mxu0 0.0
  %1201 = vmatpush1.xpose.msra.mxu0 0.0
  %1202 = vmatprep.subr.mxu0 0.0
  %1203 = vmatpush1.xpose.msra.mxu0 0.0
  %1204 = vmatprep.subr.mxu0 0.0
  %1205 = vmatpush1.xpose.msra.mxu0 0.0
  %1206 = vmatprep.subr.mxu0 0.0
  %1207 = vmatpush1.xpose.msra.mxu0 0.0
  %1208 = vmatprep.subr.mxu0 0.0
  %1209 = vmatpush1.xpose.msra.mxu0 0.0
  %1210 = vmatprep.subr.mxu0 0.0
  %1211 = vmatpush1.xpose.msra.mxu0 0.0
  %1212 = vmatprep.subr.mxu0 0.0
  %1213 = vmatpush1.xpose.msra.mxu0 0.0
  %1214 = vmatprep.subr.mxu0 0.0
  %1215 = vmatpush1.xpose.msra.mxu0 0.0
  %1216 = vmatprep.subr.mxu0 0.0
  %1217 = vmatpush1.xpose.msra.mxu0 0.0
  %1218 = vmatprep.subr.mxu0 0.0
  %1219 = vmatpush1.xpose.msra.mxu0 0.0
  %1220 = vmatprep.subr.mxu0 0.0
  %1221 = vmatpush1.xpose.msra.mxu0 0.0
  %1222 = vmatprep.subr.mxu0 0.0
  %1223 = vmatpush1.xpose.msra.mxu0 0.0
  %1224 = vmatprep.subr.mxu0 0.0
  %1225 = vmatpush1.xpose.msra.mxu0 0.0
  %1226 = vmatprep.subr.mxu0 0.0
  %1227 = vmatpush1.xpose.msra.mxu0 0.0
  %1228 = vmatprep.subr.mxu0 0.0
  %1229 = vmatpush1.xpose.msra.mxu0 0.0
  %1230 = vmatprep.subr.mxu0 0.0
  %1231 = vmatpush1.xpose.msra.mxu0 0.0
  %1232 = vmatprep.subr.mxu0 0.0
  %1233 = vmatpush1.xpose.msra.mxu0 0.0
  %1234 = vmatprep.subr.mxu0 0.0
  %1235 = vmatpush1.xpose.msra.mxu0 0.0
  %1236 = vmatprep.subr.mxu0 0.0
  %1237 = vmatpush1.xpose.msra.mxu0 0.0
  %1238 = vmatprep.subr.mxu0 0.0
  %1239 = vmatpush1.xpose.msra.mxu0 0.0
  %1240 = vmatprep.subr.mxu0 0.0
  %1241 = vmatpush1.xpose.msra.mxu0 0.0
  %1242 = vmatprep.mubr.f32.mxu0 0.0
  %1243 = vmatmul.mubr.f32.gmra.mrb[0].mxu0 %v1170
  %v1244 = vpop.f32.mrb[0].mxu0
  %v1245 = vadd.f32 0.0, %v1244
  %v1246 = vpop.f32.mrb[0].mxu0
  %1247 = vmatprep.mubr.f32.mxu0 0.0
  %1248 = vmatmul.mubr.f32.gmra.mrb[0].mxu0 %v1172
  %v1249 = vpop.f32.mrb[0].mxu0
  %v1250 = vadd.f32 0.0, %v1249
  %v1251 = vpop.f32.mrb[0].mxu0
  %1252 = vdwg.mxu0
  %1253 = vrot.lane.b32.xlu0 %v149, 112
  %v1254 = vpop.permute.xlu0 %1253
  %1255 = vrot.lane.b32.xlu0 %v154, 112
  %v1256 = vpop.permute.xlu0 %1255
  %1257 = vrot.lane.b32.xlu0 %v149, 80
  %v1258 = vpop.permute.xlu0 %1257
  %1259 = vrot.lane.b32.xlu0 %v154, 80
  %v1260 = vpop.permute.xlu0 %1259
  %v1261 = vsel %vm168, %v1254, 0
  %v1263 = vsel %vm168, %v1256, 0
  %v1265 = vsel %vm168, %v1258, 0
  %v1267 = vsel %vm168, %v1260, 0
  %1269 = vmatprep.subr.mxu0 0.0
  %1270 = vmatpush1.xpose.msra.mxu0 %v1265
  %1271 = vmatprep.subr.mxu0 0.0
  %1272 = vmatpush1.xpose.msra.mxu0 %v1267
  %1273 = vmatprep.subr.mxu0 0.0
  %1274 = vmatpush1.xpose.msra.mxu0 0.0
  %1275 = vmatprep.subr.mxu0 0.0
  %1276 = vmatpush1.xpose.msra.mxu0 0.0
  %1277 = vmatprep.subr.mxu0 0.0
  %1278 = vmatpush1.xpose.msra.mxu0 0.0
  %1279 = vmatprep.subr.mxu0 0.0
  %1280 = vmatpush1.xpose.msra.mxu0 0.0
  %1281 = vmatprep.subr.mxu0 0.0
  %1282 = vmatpush1.xpose.msra.mxu0 0.0
  %1283 = vmatprep.subr.mxu0 0.0
  %1284 = vmatpush1.xpose.msra.mxu0 0.0
  %1285 = vmatprep.subr.mxu0 0.0
  %1286 = vmatpush1.xpose.msra.mxu0 0.0
  %1287 = vmatprep.subr.mxu0 0.0
  %1288 = vmatpush1.xpose.msra.mxu0 0.0
  %1289 = vmatprep.subr.mxu0 0.0
  %1290 = vmatpush1.xpose.msra.mxu0 0.0
  %1291 = vmatprep.subr.mxu0 0.0
  %1292 = vmatpush1.xpose.msra.mxu0 0.0
  %1293 = vmatprep.subr.mxu0 0.0
  %1294 = vmatpush1.xpose.msra.mxu0 0.0
  %1295 = vmatprep.subr.mxu0 0.0
  %1296 = vmatpush1.xpose.msra.mxu0 0.0
  %1297 = vmatprep.subr.mxu0 0.0
  %1298 = vmatpush1.xpose.msra.mxu0 0.0
  %1299 = vmatprep.subr.mxu0 0.0
  %1300 = vmatpush1.xpose.msra.mxu0 0.0
  %1301 = vmatprep.subr.mxu0 0.0
  %1302 = vmatpush1.xpose.msra.mxu0 0.0
  %1303 = vmatprep.subr.mxu0 0.0
  %1304 = vmatpush1.xpose.msra.mxu0 0.0
  %1305 = vmatprep.subr.mxu0 0.0
  %1306 = vmatpush1.xpose.msra.mxu0 0.0
  %1307 = vmatprep.subr.mxu0 0.0
  %1308 = vmatpush1.xpose.msra.mxu0 0.0
  %1309 = vmatprep.subr.mxu0 0.0
  %1310 = vmatpush1.xpose.msra.mxu0 0.0
  %1311 = vmatprep.subr.mxu0 0.0
  %1312 = vmatpush1.xpose.msra.mxu0 0.0
  %1313 = vmatprep.subr.mxu0 0.0
  %1314 = vmatpush1.xpose.msra.mxu0 0.0
  %1315 = vmatprep.subr.mxu0 0.0
  %1316 = vmatpush1.xpose.msra.mxu0 0.0
  %1317 = vmatprep.subr.mxu0 0.0
  %1318 = vmatpush1.xpose.msra.mxu0 0.0
  %1319 = vmatprep.subr.mxu0 0.0
  %1320 = vmatpush1.xpose.msra.mxu0 0.0
  %1321 = vmatprep.subr.mxu0 0.0
  %1322 = vmatpush1.xpose.msra.mxu0 0.0
  %1323 = vmatprep.subr.mxu0 0.0
  %1324 = vmatpush1.xpose.msra.mxu0 0.0
  %1325 = vmatprep.subr.mxu0 0.0
  %1326 = vmatpush1.xpose.msra.mxu0 0.0
  %1327 = vmatprep.subr.mxu0 0.0
  %1328 = vmatpush1.xpose.msra.mxu0 0.0
  %1329 = vmatprep.subr.mxu0 0.0
  %1330 = vmatpush1.xpose.msra.mxu0 0.0
  %1331 = vmatprep.subr.mxu0 0.0
  %1332 = vmatpush1.xpose.msra.mxu0 0.0
  %1333 = vmatprep.mubr.f32.mxu0 0.0
  %1334 = vmatmul.mubr.f32.gmra.mrb[0].mxu0 %v1261
  %v1335 = vpop.f32.mrb[0].mxu0
  %v1336 = vadd.f32 0.0, %v1335
  %v1337 = vpop.f32.mrb[0].mxu0
  %1338 = vmatprep.mubr.f32.mxu0 0.0
  %1339 = vmatmul.mubr.f32.gmra.mrb[0].mxu0 %v1263
  %v1340 = vpop.f32.mrb[0].mxu0
  %v1341 = vadd.f32 0.0, %v1340
  %v1342 = vpop.f32.mrb[0].mxu0
  %1343 = vdwg.mxu0
  %v1344 = vmul.f32 %v1245, 0.35355338
  %v1345 = vmul.f32 %v1250, 0.35355338
  %v1346 = vmul.f32 %v1336, 0.35355338
  %v1347 = vmul.f32 %v1341, 0.35355338
  %v1348 = vsel %vm345, %v1344, -inf
  %1349 = vmax.xlane.f32.xlu0 %v1348
  %v1350 = vpop.xlane.xlu0 %1349
  %v1351 = vsel %vm345, %v1345, -inf
  %1352 = vmax.xlane.f32.xlu0 %v1351
  %v1353 = vpop.xlane.xlu0 %1352
  %v1354 = vsel %vm345, %v1346, -inf
  %1355 = vmax.xlane.f32.xlu0 %v1354
  %v1356 = vpop.xlane.xlu0 %1355
  %v1357 = vsel %vm345, %v1347, -inf
  %1358 = vmax.xlane.f32.xlu0 %v1357
  %v1359 = vpop.xlane.xlu0 %1358
  %v1360 = vsub.f32 %v1344, %v1350
  %v1361 = vsub.f32 %v1345, %v1353
  %v1362 = vsub.f32 %v1346, %v1356
  %v1363 = vsub.f32 %v1347, %v1359
  %v1364 = vmul.f32 %v1360, 1.442695
  %v1365 = vpow.pop %v1364
  %v1366 = vmul.f32 %v1361, 1.442695
  %v1367 = vpow.pop %v1366
  %v1368 = vmul.f32 %v1362, 1.442695
  %v1369 = vpow.pop %v1368
  %v1370 = vmul.f32 %v1363, 1.442695
  %v1371 = vpow.pop %v1370
  %v1372 = vsel %vm345, %v1365, 0.0
  %1373 = vadd.xlane.f32.xlu0 %v1372
  %v1374 = vpop.xlane.xlu0 %1373
  %v1375 = vsel %vm345, %v1367, 0.0
  %1376 = vadd.xlane.f32.xlu0 %v1375
  %v1377 = vpop.xlane.xlu0 %1376
  %v1378 = vsel %vm345, %v1369, 0.0
  %1379 = vadd.xlane.f32.xlu0 %v1378
  %v1380 = vpop.xlane.xlu0 %1379
  %v1381 = vsel %vm345, %v1371, 0.0
  %1382 = vadd.xlane.f32.xlu0 %v1381
  %v1383 = vpop.xlane.xlu0 %1382
  %v1384 = vrcp.pop %v1374
  %v1385 = vrcp.pop %v1377
  %v1386 = vrcp.pop %v1380
  %v1387 = vrcp.pop %v1383
  %v1388 = vmul.f32 %v1365, %v1384
  %v1389 = vmul.f32 %v1367, %v1385
  %v1390 = vmul.f32 %v1369, %v1386
  %v1391 = vmul.f32 %v1371, %v1387
  %1392 = vrot.lane.b32.xlu0 %v139, 48
  %v1393 = vpop.permute.xlu0 %1392
  %1394 = vrot.lane.b32.xlu0 %v144, 48
  %v1395 = vpop.permute.xlu0 %1394
  %v1399 = vsel %vm345, %v1388, 0
  %v1402 = vsel %vm345, %v1389, 0
  %1404 = vmatprep.subr.mxu0 0.0
  %1405 = vmatpush1.msra.mxu0 %v1393
  %1406 = vmatprep.subr.mxu0 0.0
  %1407 = vmatpush1.msra.mxu0 %v1395
  %1408 = vmatprep.subr.mxu0 0.0
  %1409 = vmatpush1.msra.mxu0 0.0
  %1410 = vmatprep.subr.mxu0 0.0
  %1411 = vmatpush1.msra.mxu0 0.0
  %1412 = vmatprep.subr.mxu0 0.0
  %1413 = vmatpush1.msra.mxu0 0.0
  %1414 = vmatprep.subr.mxu0 0.0
  %1415 = vmatpush1.msra.mxu0 0.0
  %1416 = vmatprep.subr.mxu0 0.0
  %1417 = vmatpush1.msra.mxu0 0.0
  %1418 = vmatprep.subr.mxu0 0.0
  %1419 = vmatpush1.msra.mxu0 0.0
  %1420 = vmatprep.subr.mxu0 0.0
  %1421 = vmatpush1.msra.mxu0 0.0
  %1422 = vmatprep.subr.mxu0 0.0
  %1423 = vmatpush1.msra.mxu0 0.0
  %1424 = vmatprep.subr.mxu0 0.0
  %1425 = vmatpush1.msra.mxu0 0.0
  %1426 = vmatprep.subr.mxu0 0.0
  %1427 = vmatpush1.msra.mxu0 0.0
  %1428 = vmatprep.subr.mxu0 0.0
  %1429 = vmatpush1.msra.mxu0 0.0
  %1430 = vmatprep.subr.mxu0 0.0
  %1431 = vmatpush1.msra.mxu0 0.0
  %1432 = vmatprep.subr.mxu0 0.0
  %1433 = vmatpush1.msra.mxu0 0.0
  %1434 = vmatprep.subr.mxu0 0.0
  %1435 = vmatpush1.msra.mxu0 0.0
  %1436 = vmatprep.subr.mxu0 0.0
  %1437 = vmatpush1.msra.mxu0 0.0
  %1438 = vmatprep.subr.mxu0 0.0
  %1439 = vmatpush1.msra.mxu0 0.0
  %1440 = vmatprep.subr.mxu0 0.0
  %1441 = vmatpush1.msra.mxu0 0.0
  %1442 = vmatprep.subr.mxu0 0.0
  %1443 = vmatpush1.msra.mxu0 0.0
  %1444 = vmatprep.subr.mxu0 0.0
  %1445 = vmatpush1.msra.mxu0 0.0
  %1446 = vmatprep.subr.mxu0 0.0
  %1447 = vmatpush1.msra.mxu0 0.0
  %1448 = vmatprep.subr.mxu0 0.0
  %1449 = vmatpush1.msra.mxu0 0.0
  %1450 = vmatprep.subr.mxu0 0.0
  %1451 = vmatpush1.msra.mxu0 0.0
  %1452 = vmatprep.subr.mxu0 0.0
  %1453 = vmatpush1.msra.mxu0 0.0
  %1454 = vmatprep.subr.mxu0 0.0
  %1455 = vmatpush1.msra.mxu0 0.0
  %1456 = vmatprep.subr.mxu0 0.0
  %1457 = vmatpush1.msra.mxu0 0.0
  %1458 = vmatprep.subr.mxu0 0.0
  %1459 = vmatpush1.msra.mxu0 0.0
  %1460 = vmatprep.subr.mxu0 0.0
  %1461 = vmatpush1.msra.mxu0 0.0
  %1462 = vmatprep.subr.mxu0 0.0
  %1463 = vmatpush1.msra.mxu0 0.0
  %1464 = vmatprep.subr.mxu0 0.0
  %1465 = vmatpush1.msra.mxu0 0.0
  %1466 = vmatprep.subr.mxu0 0.0
  %1467 = vmatpush1.msra.mxu0 0.0
  %1468 = vmatprep.mubr.f32.mxu0 0.0
  %1469 = vmatmul.mubr.f32.gmra.mrb[0].mxu0 %v1399
  %v1470 = vpop.f32.mrb[0].mxu0
  %v1471 = vadd.f32 0.0, %v1470
  %v1472 = vpop.f32.mrb[0].mxu0
  %1473 = vmatprep.mubr.f32.mxu0 0.0
  %1474 = vmatmul.mubr.f32.gmra.mrb[0].mxu0 %v1402
  %v1475 = vpop.f32.mrb[0].mxu0
  %v1476 = vadd.f32 0.0, %v1475
  %v1477 = vpop.f32.mrb[0].mxu0
  %1478 = vdwg.mxu0
  %1479 = vrot.lane.b32.xlu0 %v149, 48
  %v1480 = vpop.permute.xlu0 %1479
  %1481 = vrot.lane.b32.xlu0 %v154, 48
  %v1482 = vpop.permute.xlu0 %1481
  %v1486 = vsel %vm345, %v1390, 0
  %v1489 = vsel %vm345, %v1391, 0
  %1491 = vmatprep.subr.mxu0 0.0
  %1492 = vmatpush1.msra.mxu0 %v1480
  %1493 = vmatprep.subr.mxu0 0.0
  %1494 = vmatpush1.msra.mxu0 %v1482
  %1495 = vmatprep.subr.mxu0 0.0
  %1496 = vmatpush1.msra.mxu0 0.0
  %1497 = vmatprep.subr.mxu0 0.0
  %1498 = vmatpush1.msra.mxu0 0.0
  %1499 = vmatprep.subr.mxu0 0.0
  %1500 = vmatpush1.msra.mxu0 0.0
  %1501 = vmatprep.subr.mxu0 0.0
  %1502 = vmatpush1.msra.mxu0 0.0
  %1503 = vmatprep.subr.mxu0 0.0
  %1504 = vmatpush1.msra.mxu0 0.0
  %1505 = vmatprep.subr.mxu0 0.0
  %1506 = vmatpush1.msra.mxu0 0.0
  %1507 = vmatprep.subr.mxu0 0.0
  %1508 = vmatpush1.msra.mxu0 0.0
  %1509 = vmatprep.subr.mxu0 0.0
  %1510 = vmatpush1.msra.mxu0 0.0
  %1511 = vmatprep.subr.mxu0 0.0
  %1512 = vmatpush1.msra.mxu0 0.0
  %1513 = vmatprep.subr.mxu0 0.0
  %1514 = vmatpush1.msra.mxu0 0.0
  %1515 = vmatprep.subr.mxu0 0.0
  %1516 = vmatpush1.msra.mxu0 0.0
  %1517 = vmatprep.subr.mxu0 0.0
  %1518 = vmatpush1.msra.mxu0 0.0
  %1519 = vmatprep.subr.mxu0 0.0
  %1520 = vmatpush1.msra.mxu0 0.0
  %1521 = vmatprep.subr.mxu0 0.0
  %1522 = vmatpush1.msra.mxu0 0.0
  %1523 = vmatprep.subr.mxu0 0.0
  %1524 = vmatpush1.msra.mxu0 0.0
  %1525 = vmatprep.subr.mxu0 0.0
  %1526 = vmatpush1.msra.mxu0 0.0
  %1527 = vmatprep.subr.mxu0 0.0
  %1528 = vmatpush1.msra.mxu0 0.0
  %1529 = vmatprep.subr.mxu0 0.0
  %1530 = vmatpush1.msra.mxu0 0.0
  %1531 = vmatprep.subr.mxu0 0.0
  %1532 = vmatpush1.msra.mxu0 0.0
  %1533 = vmatprep.subr.mxu0 0.0
  %1534 = vmatpush1.msra.mxu0 0.0
  %1535 = vmatprep.subr.mxu0 0.0
  %1536 = vmatpush1.msra.mxu0 0.0
  %1537 = vmatprep.subr.mxu0 0.0
  %1538 = vmatpush1.msra.mxu0 0.0
  %1539 = vmatprep.subr.mxu0 0.0
  %1540 = vmatpush1.msra.mxu0 0.0
  %1541 = vmatprep.subr.mxu0 0.0
  %1542 = vmatpush1.msra.mxu0 0.0
  %1543 = vmatprep.subr.mxu0 0.0
  %1544 = vmatpush1.msra.mxu0 0.0
  %1545 = vmatprep.subr.mxu0 0.0
  %1546 = vmatpush1.msra.mxu0 0.0
  %1547 = vmatprep.subr.mxu0 0.0
  %1548 = vmatpush1.msra.mxu0 0.0
  %1549 = vmatprep.subr.mxu0 0.0
  %1550 = vmatpush1.msra.mxu0 0.0
  %1551 = vmatprep.subr.mxu0 0.0
  %1552 = vmatpush1.msra.mxu0 0.0
  %1553 = vmatprep.subr.mxu0 0.0
  %1554 = vmatpush1.msra.mxu0 0.0
  %1555 = vmatprep.mubr.f32.mxu0 0.0
  %1556 = vmatmul.mubr.f32.gmra.mrb[0].mxu0 %v1486
  %v1557 = vpop.f32.mrb[0].mxu0
  %v1558 = vadd.f32 0.0, %v1557
  %v1559 = vpop.f32.mrb[0].mxu0
  %1560 = vmatprep.mubr.f32.mxu0 0.0
  %1561 = vmatmul.mubr.f32.gmra.mrb[0].mxu0 %v1489
  %v1562 = vpop.f32.mrb[0].mxu0
  %v1563 = vadd.f32 0.0, %v1562
  %v1564 = vpop.f32.mrb[0].mxu0
  %1565 = vdwg.mxu0
  %v1567 = vsel %vm168, %v1471, 0
  %v1570 = vsel %vm168, %v1476, 0
  %v1573 = vsel %vm168, %v1558, 0
  %v1576 = vsel %vm168, %v1563, 0
  %1578 = vmatprep.subr.mxu0 0.0
  %1579 = vmatpush1.msra.mxu0 %v159
  %1580 = vmatprep.subr.mxu0 0.0
  %1581 = vmatpush1.msra.mxu0 0.0
  %1582 = vmatprep.subr.mxu0 0.0
  %1583 = vmatpush1.msra.mxu0 0.0
  %1584 = vmatprep.subr.mxu0 0.0
  %1585 = vmatpush1.msra.mxu0 0.0
  %1586 = vmatprep.subr.mxu0 0.0
  %1587 = vmatpush1.msra.mxu0 0.0
  %1588 = vmatprep.subr.mxu0 0.0
  %1589 = vmatpush1.msra.mxu0 0.0
  %1590 = vmatprep.subr.mxu0 0.0
  %1591 = vmatpush1.msra.mxu0 0.0
  %1592 = vmatprep.subr.mxu0 0.0
  %1593 = vmatpush1.msra.mxu0 0.0
  %1594 = vmatprep.subr.mxu0 0.0
  %1595 = vmatpush1.msra.mxu0 0.0
  %1596 = vmatprep.subr.mxu0 0.0
  %1597 = vmatpush1.msra.mxu0 0.0
  %1598 = vmatprep.subr.mxu0 0.0
  %1599 = vmatpush1.msra.mxu0 0.0
  %1600 = vmatprep.subr.mxu0 0.0
  %1601 = vmatpush1.msra.mxu0 0.0
  %1602 = vmatprep.subr.mxu0 0.0
  %1603 = vmatpush1.msra.mxu0 0.0
  %1604 = vmatprep.subr.mxu0 0.0
  %1605 = vmatpush1.msra.mxu0 0.0
  %1606 = vmatprep.subr.mxu0 0.0
  %1607 = vmatpush1.msra.mxu0 0.0
  %1608 = vmatprep.subr.mxu0 0.0
  %1609 = vmatpush1.msra.mxu0 0.0
  %1610 = vmatprep.subr.mxu0 0.0
  %1611 = vmatpush1.msra.mxu0 0.0
  %1612 = vmatprep.subr.mxu0 0.0
  %1613 = vmatpush1.msra.mxu0 0.0
  %1614 = vmatprep.subr.mxu0 0.0
  %1615 = vmatpush1.msra.mxu0 0.0
  %1616 = vmatprep.subr.mxu0 0.0
  %1617 = vmatpush1.msra.mxu0 0.0
  %1618 = vmatprep.subr.mxu0 0.0
  %1619 = vmatpush1.msra.mxu0 0.0
  %1620 = vmatprep.subr.mxu0 0.0
  %1621 = vmatpush1.msra.mxu0 0.0
  %1622 = vmatprep.subr.mxu0 0.0
  %1623 = vmatpush1.msra.mxu0 0.0
  %1624 = vmatprep.subr.mxu0 0.0
  %1625 = vmatpush1.msra.mxu0 0.0
  %1626 = vmatprep.subr.mxu0 0.0
  %1627 = vmatpush1.msra.mxu0 0.0
  %1628 = vmatprep.subr.mxu0 0.0
  %1629 = vmatpush1.msra.mxu0 0.0
  %1630 = vmatprep.subr.mxu0 0.0
  %1631 = vmatpush1.msra.mxu0 0.0
  %1632 = vmatprep.subr.mxu0 0.0
  %1633 = vmatpush1.msra.mxu0 0.0
  %1634 = vmatprep.subr.mxu0 0.0
  %1635 = vmatpush1.msra.mxu0 0.0
  %1636 = vmatprep.subr.mxu0 0.0
  %1637 = vmatpush1.msra.mxu0 0.0
  %1638 = vmatprep.subr.mxu0 0.0
  %1639 = vmatpush1.msra.mxu0 0.0
  %1640 = vmatprep.subr.mxu0 0.0
  %1641 = vmatpush1.msra.mxu0 0.0
  %1642 = vmatprep.mubr.f32.mxu0 0.0
  %1643 = vmatmul.mubr.f32.gmra.mrb[0].mxu0 %v1567
  %v1644 = vpop.f32.mrb[0].mxu0
  %v1645 = vadd.f32 0.0, %v1644
  %v1646 = vpop.f32.mrb[0].mxu0
  %1647 = vmatprep.mubr.f32.mxu0 0.0
  %1648 = vmatmul.mubr.f32.gmra.mrb[0].mxu0 %v1570
  %v1649 = vpop.f32.mrb[0].mxu0
  %v1650 = vadd.f32 0.0, %v1649
  %v1651 = vpop.f32.mrb[0].mxu0
  %1652 = vmatprep.mubr.f32.mxu0 0.0
  %1653 = vmatmul.mubr.f32.gmra.mrb[0].mxu0 %v1573
  %v1654 = vpop.f32.mrb[0].mxu0
  %v1655 = vadd.f32 0.0, %v1654
  %v1656 = vpop.f32.mrb[0].mxu0
  %1657 = vmatprep.mubr.f32.mxu0 0.0
  %1658 = vmatmul.mubr.f32.gmra.mrb[0].mxu0 %v1576
  %v1659 = vpop.f32.mrb[0].mxu0
  %v1660 = vadd.f32 0.0, %v1659
  %v1661 = vpop.f32.mrb[0].mxu0
  %1662 = vdwg.mxu0
  %v1663 = vadd.f32 %v1144, %v1645
  %v1664 = vadd.f32 %v1149, %v1650
  %v1665 = vadd.f32 %v1154, %v1655
  %v1666 = vadd.f32 %v1159, %v1660
  %1667 = vrot.lane.b32.xlu0 %v139, 104
  %v1668 = vpop.permute.xlu0 %1667
  %1669 = vrot.lane.b32.xlu0 %v144, 104
  %v1670 = vpop.permute.xlu0 %1669
  %1671 = vrot.lane.b32.xlu0 %v139, 72
  %v1672 = vpop.permute.xlu0 %1671
  %1673 = vrot.lane.b32.xlu0 %v144, 72
  %v1674 = vpop.permute.xlu0 %1673
  %v1675 = vsel %vm168, %v1668, 0
  %v1677 = vsel %vm168, %v1670, 0
  %v1679 = vsel %vm168, %v1672, 0
  %v1681 = vsel %vm168, %v1674, 0
  %1683 = vmatprep.subr.mxu0 0.0
  %1684 = vmatpush1.xpose.msra.mxu0 %v1679
  %1685 = vmatprep.subr.mxu0 0.0
  %1686 = vmatpush1.xpose.msra.mxu0 %v1681
  %1687 = vmatprep.subr.mxu0 0.0
  %1688 = vmatpush1.xpose.msra.mxu0 0.0
  %1689 = vmatprep.subr.mxu0 0.0
  %1690 = vmatpush1.xpose.msra.mxu0 0.0
  %1691 = vmatprep.subr.mxu0 0.0
  %1692 = vmatpush1.xpose.msra.mxu0 0.0
  %1693 = vmatprep.subr.mxu0 0.0
  %1694 = vmatpush1.xpose.msra.mxu0 0.0
  %1695 = vmatprep.subr.mxu0 0.0
  %1696 = vmatpush1.xpose.msra.mxu0 0.0
  %1697 = vmatprep.subr.mxu0 0.0
  %1698 = vmatpush1.xpose.msra.mxu0 0.0
  %1699 = vmatprep.subr.mxu0 0.0
  %1700 = vmatpush1.xpose.msra.mxu0 0.0
  %1701 = vmatprep.subr.mxu0 0.0
  %1702 = vmatpush1.xpose.msra.mxu0 0.0
  %1703 = vmatprep.subr.mxu0 0.0
  %1704 = vmatpush1.xpose.msra.mxu0 0.0
  %1705 = vmatprep.subr.mxu0 0.0
  %1706 = vmatpush1.xpose.msra.mxu0 0.0
  %1707 = vmatprep.subr.mxu0 0.0
  %1708 = vmatpush1.xpose.msra.mxu0 0.0
  %1709 = vmatprep.subr.mxu0 0.0
  %1710 = vmatpush1.xpose.msra.mxu0 0.0
  %1711 = vmatprep.subr.mxu0 0.0
  %1712 = vmatpush1.xpose.msra.mxu0 0.0
  %1713 = vmatprep.subr.mxu0 0.0
  %1714 = vmatpush1.xpose.msra.mxu0 0.0
  %1715 = vmatprep.subr.mxu0 0.0
  %1716 = vmatpush1.xpose.msra.mxu0 0.0
  %1717 = vmatprep.subr.mxu0 0.0
  %1718 = vmatpush1.xpose.msra.mxu0 0.0
  %1719 = vmatprep.subr.mxu0 0.0
  %1720 = vmatpush1.xpose.msra.mxu0 0.0
  %1721 = vmatprep.subr.mxu0 0.0
  %1722 = vmatpush1.xpose.msra.mxu0 0.0
  %1723 = vmatprep.subr.mxu0 0.0
  %1724 = vmatpush1.xpose.msra.mxu0 0.0
  %1725 = vmatprep.subr.mxu0 0.0
  %1726 = vmatpush1.xpose.msra.mxu0 0.0
  %1727 = vmatprep.subr.mxu0 0.0
  %1728 = vmatpush1.xpose.msra.mxu0 0.0
  %1729 = vmatprep.subr.mxu0 0.0
  %1730 = vmatpush1.xpose.msra.mxu0 0.0
  %1731 = vmatprep.subr.mxu0 0.0
  %1732 = vmatpush1.xpose.msra.mxu0 0.0
  %1733 = vmatprep.subr.mxu0 0.0
  %1734 = vmatpush1.xpose.msra.mxu0 0.0
  %1735 = vmatprep.subr.mxu0 0.0
  %1736 = vmatpush1.xpose.msra.mxu0 0.0
  %1737 = vmatprep.subr.mxu0 0.0
  %1738 = vmatpush1.xpose.msra.mxu0 0.0
  %1739 = vmatprep.subr.mxu0 0.0
  %1740 = vmatpush1.xpose.msra.mxu0 0.0
  %1741 = vmatprep.subr.mxu0 0.0
  %1742 = vmatpush1.xpose.msra.mxu0 0.0
  %1743 = vmatprep.subr.mxu0 0.0
  %1744 = vmatpush1.xpose.msra.mxu0 0.0
  %1745 = vmatprep.subr.mxu0 0.0
  %1746 = vmatpush1.xpose.msra.mxu0 0.0
  %1747 = vmatprep.mubr.f32.mxu0 0.0
  %1748 = vmatmul.mubr.f32.gmra.mrb[0].mxu0 %v1675
  %v1749 = vpop.f32.mrb[0].mxu0
  %v1750 = vadd.f32 0.0, %v1749
  %v1751 = vpop.f32.mrb[0].mxu0
  %1752 = vmatprep.mubr.f32.mxu0 0.0
  %1753 = vmatmul.mubr.f32.gmra.mrb[0].mxu0 %v1677
  %v1754 = vpop.f32.mrb[0].mxu0
  %v1755 = vadd.f32 0.0, %v1754
  %v1756 = vpop.f32.mrb[0].mxu0
  %1757 = vdwg.mxu0
  %1758 = vrot.lane.b32.xlu0 %v149, 104
  %v1759 = vpop.permute.xlu0 %1758
  %1760 = vrot.lane.b32.xlu0 %v154, 104
  %v1761 = vpop.permute.xlu0 %1760
  %1762 = vrot.lane.b32.xlu0 %v149, 72
  %v1763 = vpop.permute.xlu0 %1762
  %1764 = vrot.lane.b32.xlu0 %v154, 72
  %v1765 = vpop.permute.xlu0 %1764
  %v1766 = vsel %vm168, %v1759, 0
  %v1768 = vsel %vm168, %v1761, 0
  %v1770 = vsel %vm168, %v1763, 0
  %v1772 = vsel %vm168, %v1765, 0
  %1774 = vmatprep.subr.mxu0 0.0
  %1775 = vmatpush1.xpose.msra.mxu0 %v1770
  %1776 = vmatprep.subr.mxu0 0.0
  %1777 = vmatpush1.xpose.msra.mxu0 %v1772
  %1778 = vmatprep.subr.mxu0 0.0
  %1779 = vmatpush1.xpose.msra.mxu0 0.0
  %1780 = vmatprep.subr.mxu0 0.0
  %1781 = vmatpush1.xpose.msra.mxu0 0.0
  %1782 = vmatprep.subr.mxu0 0.0
  %1783 = vmatpush1.xpose.msra.mxu0 0.0
  %1784 = vmatprep.subr.mxu0 0.0
  %1785 = vmatpush1.xpose.msra.mxu0 0.0
  %1786 = vmatprep.subr.mxu0 0.0
  %1787 = vmatpush1.xpose.msra.mxu0 0.0
  %1788 = vmatprep.subr.mxu0 0.0
  %1789 = vmatpush1.xpose.msra.mxu0 0.0
  %1790 = vmatprep.subr.mxu0 0.0
  %1791 = vmatpush1.xpose.msra.mxu0 0.0
  %1792 = vmatprep.subr.mxu0 0.0
  %1793 = vmatpush1.xpose.msra.mxu0 0.0
  %1794 = vmatprep.subr.mxu0 0.0
  %1795 = vmatpush1.xpose.msra.mxu0 0.0
  %1796 = vmatprep.subr.mxu0 0.0
  %1797 = vmatpush1.xpose.msra.mxu0 0.0
  %1798 = vmatprep.subr.mxu0 0.0
  %1799 = vmatpush1.xpose.msra.mxu0 0.0
  %1800 = vmatprep.subr.mxu0 0.0
  %1801 = vmatpush1.xpose.msra.mxu0 0.0
  %1802 = vmatprep.subr.mxu0 0.0
  %1803 = vmatpush1.xpose.msra.mxu0 0.0
  %1804 = vmatprep.subr.mxu0 0.0
  %1805 = vmatpush1.xpose.msra.mxu0 0.0
  %1806 = vmatprep.subr.mxu0 0.0
  %1807 = vmatpush1.xpose.msra.mxu0 0.0
  %1808 = vmatprep.subr.mxu0 0.0
  %1809 = vmatpush1.xpose.msra.mxu0 0.0
  %1810 = vmatprep.subr.mxu0 0.0
  %1811 = vmatpush1.xpose.msra.mxu0 0.0
  %1812 = vmatprep.subr.mxu0 0.0
  %1813 = vmatpush1.xpose.msra.mxu0 0.0
  %1814 = vmatprep.subr.mxu0 0.0
  %1815 = vmatpush1.xpose.msra.mxu0 0.0
  %1816 = vmatprep.subr.mxu0 0.0
  %1817 = vmatpush1.xpose.msra.mxu0 0.0
  %1818 = vmatprep.subr.mxu0 0.0
  %1819 = vmatpush1.xpose.msra.mxu0 0.0
  %1820 = vmatprep.subr.mxu0 0.0
  %1821 = vmatpush1.xpose.msra.mxu0 0.0
  %1822 = vmatprep.subr.mxu0 0.0
  %1823 = vmatpush1.xpose.msra.mxu0 0.0
  %1824 = vmatprep.subr.mxu0 0.0
  %1825 = vmatpush1.xpose.msra.mxu0 0.0
  %1826 = vmatprep.subr.mxu0 0.0
  %1827 = vmatpush1.xpose.msra.mxu0 0.0
  %1828 = vmatprep.subr.mxu0 0.0
  %1829 = vmatpush1.xpose.msra.mxu0 0.0
  %1830 = vmatprep.subr.mxu0 0.0
  %1831 = vmatpush1.xpose.msra.mxu0 0.0
  %1832 = vmatprep.subr.mxu0 0.0
  %1833 = vmatpush1.xpose.msra.mxu0 0.0
  %1834 = vmatprep.subr.mxu0 0.0
  %1835 = vmatpush1.xpose.msra.mxu0 0.0
  %1836 = vmatprep.subr.mxu0 0.0
  %1837 = vmatpush1.xpose.msra.mxu0 0.0
  %1838 = vmatprep.mubr.f32.mxu0 0.0
  %1839 = vmatmul.mubr.f32.gmra.mrb[0].mxu0 %v1766
  %v1840 = vpop.f32.mrb[0].mxu0
  %v1841 = vadd.f32 0.0, %v1840
  %v1842 = vpop.f32.mrb[0].mxu0
  %1843 = vmatprep.mubr.f32.mxu0 0.0
  %1844 = vmatmul.mubr.f32.gmra.mrb[0].mxu0 %v1768
  %v1845 = vpop.f32.mrb[0].mxu0
  %v1846 = vadd.f32 0.0, %v1845
  %v1847 = vpop.f32.mrb[0].mxu0
  %1848 = vdwg.mxu0
  %v1849 = vmul.f32 %v1750, 0.35355338
  %v1850 = vmul.f32 %v1755, 0.35355338
  %v1851 = vmul.f32 %v1841, 0.35355338
  %v1852 = vmul.f32 %v1846, 0.35355338
  %v1853 = vsel %vm345, %v1849, -inf
  %1854 = vmax.xlane.f32.xlu0 %v1853
  %v1855 = vpop.xlane.xlu0 %1854
  %v1856 = vsel %vm345, %v1850, -inf
  %1857 = vmax.xlane.f32.xlu0 %v1856
  %v1858 = vpop.xlane.xlu0 %1857
  %v1859 = vsel %vm345, %v1851, -inf
  %1860 = vmax.xlane.f32.xlu0 %v1859
  %v1861 = vpop.xlane.xlu0 %1860
  %v1862 = vsel %vm345, %v1852, -inf
  %1863 = vmax.xlane.f32.xlu0 %v1862
  %v1864 = vpop.xlane.xlu0 %1863
  %v1865 = vsub.f32 %v1849, %v1855
  %v1866 = vsub.f32 %v1850, %v1858
  %v1867 = vsub.f32 %v1851, %v1861
  %v1868 = vsub.f32 %v1852, %v1864
  %v1869 = vmul.f32 %v1865, 1.442695
  %v1870 = vpow.pop %v1869
  %v1871 = vmul.f32 %v1866, 1.442695
  %v1872 = vpow.pop %v1871
  %v1873 = vmul.f32 %v1867, 1.442695
  %v1874 = vpow.pop %v1873
  %v1875 = vmul.f32 %v1868, 1.442695
  %v1876 = vpow.pop %v1875
  %v1877 = vsel %vm345, %v1870, 0.0
  %1878 = vadd.xlane.f32.xlu0 %v1877
  %v1879 = vpop.xlane.xlu0 %1878
  %v1880 = vsel %vm345, %v1872, 0.0
  %1881 = vadd.xlane.f32.xlu0 %v1880
  %v1882 = vpop.xlane.xlu0 %1881
  %v1883 = vsel %vm345, %v1874, 0.0
  %1884 = vadd.xlane.f32.xlu0 %v1883
  %v1885 = vpop.xlane.xlu0 %1884
  %v1886 = vsel %vm345, %v1876, 0.0
  %1887 = vadd.xlane.f32.xlu0 %v1886
  %v1888 = vpop.xlane.xlu0 %1887
  %v1889 = vrcp.pop %v1879
  %v1890 = vrcp.pop %v1882
  %v1891 = vrcp.pop %v1885
  %v1892 = vrcp.pop %v1888
  %v1893 = vmul.f32 %v1870, %v1889
  %v1894 = vmul.f32 %v1872, %v1890
  %v1895 = vmul.f32 %v1874, %v1891
  %v1896 = vmul.f32 %v1876, %v1892
  %1897 = vrot.lane.b32.xlu0 %v139, 40
  %v1898 = vpop.permute.xlu0 %1897
  %1899 = vrot.lane.b32.xlu0 %v144, 40
  %v1900 = vpop.permute.xlu0 %1899
  %v1904 = vsel %vm345, %v1893, 0
  %v1907 = vsel %vm345, %v1894, 0
  %1909 = vmatprep.subr.mxu0 0.0
  %1910 = vmatpush1.msra.mxu0 %v1898
  %1911 = vmatprep.subr.mxu0 0.0
  %1912 = vmatpush1.msra.mxu0 %v1900
  %1913 = vmatprep.subr.mxu0 0.0
  %1914 = vmatpush1.msra.mxu0 0.0
  %1915 = vmatprep.subr.mxu0 0.0
  %1916 = vmatpush1.msra.mxu0 0.0
  %1917 = vmatprep.subr.mxu0 0.0
  %1918 = vmatpush1.msra.mxu0 0.0
  %1919 = vmatprep.subr.mxu0 0.0
  %1920 = vmatpush1.msra.mxu0 0.0
  %1921 = vmatprep.subr.mxu0 0.0
  %1922 = vmatpush1.msra.mxu0 0.0
  %1923 = vmatprep.subr.mxu0 0.0
  %1924 = vmatpush1.msra.mxu0 0.0
  %1925 = vmatprep.subr.mxu0 0.0
  %1926 = vmatpush1.msra.mxu0 0.0
  %1927 = vmatprep.subr.mxu0 0.0
  %1928 = vmatpush1.msra.mxu0 0.0
  %1929 = vmatprep.subr.mxu0 0.0
  %1930 = vmatpush1.msra.mxu0 0.0
  %1931 = vmatprep.subr.mxu0 0.0
  %1932 = vmatpush1.msra.mxu0 0.0
  %1933 = vmatprep.subr.mxu0 0.0
  %1934 = vmatpush1.msra.mxu0 0.0
  %1935 = vmatprep.subr.mxu0 0.0
  %1936 = vmatpush1.msra.mxu0 0.0
  %1937 = vmatprep.subr.mxu0 0.0
  %1938 = vmatpush1.msra.mxu0 0.0
  %1939 = vmatprep.subr.mxu0 0.0
  %1940 = vmatpush1.msra.mxu0 0.0
  %1941 = vmatprep.subr.mxu0 0.0
  %1942 = vmatpush1.msra.mxu0 0.0
  %1943 = vmatprep.subr.mxu0 0.0
  %1944 = vmatpush1.msra.mxu0 0.0
  %1945 = vmatprep.subr.mxu0 0.0
  %1946 = vmatpush1.msra.mxu0 0.0
  %1947 = vmatprep.subr.mxu0 0.0
  %1948 = vmatpush1.msra.mxu0 0.0
  %1949 = vmatprep.subr.mxu0 0.0
  %1950 = vmatpush1.msra.mxu0 0.0
  %1951 = vmatprep.subr.mxu0 0.0
  %1952 = vmatpush1.msra.mxu0 0.0
  %1953 = vmatprep.subr.mxu0 0.0
  %1954 = vmatpush1.msra.mxu0 0.0
  %1955 = vmatprep.subr.mxu0 0.0
  %1956 = vmatpush1.msra.mxu0 0.0
  %1957 = vmatprep.subr.mxu0 0.0
  %1958 = vmatpush1.msra.mxu0 0.0
  %1959 = vmatprep.subr.mxu0 0.0
  %1960 = vmatpush1.msra.mxu0 0.0
  %1961 = vmatprep.subr.mxu0 0.0
  %1962 = vmatpush1.msra.mxu0 0.0
  %1963 = vmatprep.subr.mxu0 0.0
  %1964 = vmatpush1.msra.mxu0 0.0
  %1965 = vmatprep.subr.mxu0 0.0
  %1966 = vmatpush1.msra.mxu0 0.0
  %1967 = vmatprep.subr.mxu0 0.0
  %1968 = vmatpush1.msra.mxu0 0.0
  %1969 = vmatprep.subr.mxu0 0.0
  %1970 = vmatpush1.msra.mxu0 0.0
  %1971 = vmatprep.subr.mxu0 0.0
  %1972 = vmatpush1.msra.mxu0 0.0
  %1973 = vmatprep.mubr.f32.mxu0 0.0
  %1974 = vmatmul.mubr.f32.gmra.mrb[0].mxu0 %v1904
  %v1975 = vpop.f32.mrb[0].mxu0
  %v1976 = vadd.f32 0.0, %v1975
  %v1977 = vpop.f32.mrb[0].mxu0
  %1978 = vmatprep.mubr.f32.mxu0 0.0
  %1979 = vmatmul.mubr.f32.gmra.mrb[0].mxu0 %v1907
  %v1980 = vpop.f32.mrb[0].mxu0
  %v1981 = vadd.f32 0.0, %v1980
  %v1982 = vpop.f32.mrb[0].mxu0
  %1983 = vdwg.mxu0
  %1984 = vrot.lane.b32.xlu0 %v149, 40
  %v1985 = vpop.permute.xlu0 %1984
  %1986 = vrot.lane.b32.xlu0 %v154, 40
  %v1987 = vpop.permute.xlu0 %1986
  %v1991 = vsel %vm345, %v1895, 0
  %v1994 = vsel %vm345, %v1896, 0
  %1996 = vmatprep.subr.mxu0 0.0
  %1997 = vmatpush1.msra.mxu0 %v1985
  %1998 = vmatprep.subr.mxu0 0.0
  %1999 = vmatpush1.msra.mxu0 %v1987
  %2000 = vmatprep.subr.mxu0 0.0
  %2001 = vmatpush1.msra.mxu0 0.0
  %2002 = vmatprep.subr.mxu0 0.0
  %2003 = vmatpush1.msra.mxu0 0.0
  %2004 = vmatprep.subr.mxu0 0.0
  %2005 = vmatpush1.msra.mxu0 0.0
  %2006 = vmatprep.subr.mxu0 0.0
  %2007 = vmatpush1.msra.mxu0 0.0
  %2008 = vmatprep.subr.mxu0 0.0
  %2009 = vmatpush1.msra.mxu0 0.0
  %2010 = vmatprep.subr.mxu0 0.0
  %2011 = vmatpush1.msra.mxu0 0.0
  %2012 = vmatprep.subr.mxu0 0.0
  %2013 = vmatpush1.msra.mxu0 0.0
  %2014 = vmatprep.subr.mxu0 0.0
  %2015 = vmatpush1.msra.mxu0 0.0
  %2016 = vmatprep.subr.mxu0 0.0
  %2017 = vmatpush1.msra.mxu0 0.0
  %2018 = vmatprep.subr.mxu0 0.0
  %2019 = vmatpush1.msra.mxu0 0.0
  %2020 = vmatprep.subr.mxu0 0.0
  %2021 = vmatpush1.msra.mxu0 0.0
  %2022 = vmatprep.subr.mxu0 0.0
  %2023 = vmatpush1.msra.mxu0 0.0
  %2024 = vmatprep.subr.mxu0 0.0
  %2025 = vmatpush1.msra.mxu0 0.0
  %2026 = vmatprep.subr.mxu0 0.0
  %2027 = vmatpush1.msra.mxu0 0.0
  %2028 = vmatprep.subr.mxu0 0.0
  %2029 = vmatpush1.msra.mxu0 0.0
  %2030 = vmatprep.subr.mxu0 0.0
  %2031 = vmatpush1.msra.mxu0 0.0
  %2032 = vmatprep.subr.mxu0 0.0
  %2033 = vmatpush1.msra.mxu0 0.0
  %2034 = vmatprep.subr.mxu0 0.0
  %2035 = vmatpush1.msra.mxu0 0.0
  %2036 = vmatprep.subr.mxu0 0.0
  %2037 = vmatpush1.msra.mxu0 0.0
  %2038 = vmatprep.subr.mxu0 0.0
  %2039 = vmatpush1.msra.mxu0 0.0
  %2040 = vmatprep.subr.mxu0 0.0
  %2041 = vmatpush1.msra.mxu0 0.0
  %2042 = vmatprep.subr.mxu0 0.0
  %2043 = vmatpush1.msra.mxu0 0.0
  %2044 = vmatprep.subr.mxu0 0.0
  %2045 = vmatpush1.msra.mxu0 0.0
  %2046 = vmatprep.subr.mxu0 0.0
  %2047 = vmatpush1.msra.mxu0 0.0
  %2048 = vmatprep.subr.mxu0 0.0
  %2049 = vmatpush1.msra.mxu0 0.0
  %2050 = vmatprep.subr.mxu0 0.0
  %2051 = vmatpush1.msra.mxu0 0.0
  %2052 = vmatprep.subr.mxu0 0.0
  %2053 = vmatpush1.msra.mxu0 0.0
  %2054 = vmatprep.subr.mxu0 0.0
  %2055 = vmatpush1.msra.mxu0 0.0
  %2056 = vmatprep.subr.mxu0 0.0
  %2057 = vmatpush1.msra.mxu0 0.0
  %2058 = vmatprep.subr.mxu0 0.0
  %2059 = vmatpush1.msra.mxu0 0.0
  %2060 = vmatprep.mubr.f32.mxu0 0.0
  %2061 = vmatmul.mubr.f32.gmra.mrb[0].mxu0 %v1991
  %v2062 = vpop.f32.mrb[0].mxu0
  %v2063 = vadd.f32 0.0, %v2062
  %v2064 = vpop.f32.mrb[0].mxu0
  %2065 = vmatprep.mubr.f32.mxu0 0.0
  %2066 = vmatmul.mubr.f32.gmra.mrb[0].mxu0 %v1994
  %v2067 = vpop.f32.mrb[0].mxu0
  %v2068 = vadd.f32 0.0, %v2067
  %v2069 = vpop.f32.mrb[0].mxu0
  %2070 = vdwg.mxu0
  %v2072 = vsel %vm168, %v1976, 0
  %v2075 = vsel %vm168, %v1981, 0
  %v2078 = vsel %vm168, %v2063, 0
  %v2081 = vsel %vm168, %v2068, 0
  %2083 = vmatprep.subr.mxu0 0.0
  %2084 = vmatpush1.msra.mxu0 %v160
  %2085 = vmatprep.subr.mxu0 0.0
  %2086 = vmatpush1.msra.mxu0 0.0
  %2087 = vmatprep.subr.mxu0 0.0
  %2088 = vmatpush1.msra.mxu0 0.0
  %2089 = vmatprep.subr.mxu0 0.0
  %2090 = vmatpush1.msra.mxu0 0.0
  %2091 = vmatprep.subr.mxu0 0.0
  %2092 = vmatpush1.msra.mxu0 0.0
  %2093 = vmatprep.subr.mxu0 0.0
  %2094 = vmatpush1.msra.mxu0 0.0
  %2095 = vmatprep.subr.mxu0 0.0
  %2096 = vmatpush1.msra.mxu0 0.0
  %2097 = vmatprep.subr.mxu0 0.0
  %2098 = vmatpush1.msra.mxu0 0.0
  %2099 = vmatprep.subr.mxu0 0.0
  %2100 = vmatpush1.msra.mxu0 0.0
  %2101 = vmatprep.subr.mxu0 0.0
  %2102 = vmatpush1.msra.mxu0 0.0
  %2103 = vmatprep.subr.mxu0 0.0
  %2104 = vmatpush1.msra.mxu0 0.0
  %2105 = vmatprep.subr.mxu0 0.0
  %2106 = vmatpush1.msra.mxu0 0.0
  %2107 = vmatprep.subr.mxu0 0.0
  %2108 = vmatpush1.msra.mxu0 0.0
  %2109 = vmatprep.subr.mxu0 0.0
  %2110 = vmatpush1.msra.mxu0 0.0
  %2111 = vmatprep.subr.mxu0 0.0
  %2112 = vmatpush1.msra.mxu0 0.0
  %2113 = vmatprep.subr.mxu0 0.0
  %2114 = vmatpush1.msra.mxu0 0.0
  %2115 = vmatprep.subr.mxu0 0.0
  %2116 = vmatpush1.msra.mxu0 0.0
  %2117 = vmatprep.subr.mxu0 0.0
  %2118 = vmatpush1.msra.mxu0 0.0
  %2119 = vmatprep.subr.mxu0 0.0
  %2120 = vmatpush1.msra.mxu0 0.0
  %2121 = vmatprep.subr.mxu0 0.0
  %2122 = vmatpush1.msra.mxu0 0.0
  %2123 = vmatprep.subr.mxu0 0.0
  %2124 = vmatpush1.msra.mxu0 0.0
  %2125 = vmatprep.subr.mxu0 0.0
  %2126 = vmatpush1.msra.mxu0 0.0
  %2127 = vmatprep.subr.mxu0 0.0
  %2128 = vmatpush1.msra.mxu0 0.0
  %2129 = vmatprep.subr.mxu0 0.0
  %2130 = vmatpush1.msra.mxu0 0.0
  %2131 = vmatprep.subr.mxu0 0.0
  %2132 = vmatpush1.msra.mxu0 0.0
  %2133 = vmatprep.subr.mxu0 0.0
  %2134 = vmatpush1.msra.mxu0 0.0
  %2135 = vmatprep.subr.mxu0 0.0
  %2136 = vmatpush1.msra.mxu0 0.0
  %2137 = vmatprep.subr.mxu0 0.0
  %2138 = vmatpush1.msra.mxu0 0.0
  %2139 = vmatprep.subr.mxu0 0.0
  %2140 = vmatpush1.msra.mxu0 0.0
  %2141 = vmatprep.subr.mxu0 0.0
  %2142 = vmatpush1.msra.mxu0 0.0
  %2143 = vmatprep.subr.mxu0 0.0
  %2144 = vmatpush1.msra.mxu0 0.0
  %2145 = vmatprep.subr.mxu0 0.0
  %2146 = vmatpush1.msra.mxu0 0.0
  %2147 = vmatprep.mubr.f32.mxu0 0.0
  %2148 = vmatmul.mubr.f32.gmra.mrb[0].mxu0 %v2072
  %v2149 = vpop.f32.mrb[0].mxu0
  %v2150 = vadd.f32 0.0, %v2149
  %v2151 = vpop.f32.mrb[0].mxu0
  %2152 = vmatprep.mubr.f32.mxu0 0.0
  %2153 = vmatmul.mubr.f32.gmra.mrb[0].mxu0 %v2075
  %v2154 = vpop.f32.mrb[0].mxu0
  %v2155 = vadd.f32 0.0, %v2154
  %v2156 = vpop.f32.mrb[0].mxu0
  %2157 = vmatprep.mubr.f32.mxu0 0.0
  %2158 = vmatmul.mubr.f32.gmra.mrb[0].mxu0 %v2078
  %v2159 = vpop.f32.mrb[0].mxu0
  %v2160 = vadd.f32 0.0, %v2159
  %v2161 = vpop.f32.mrb[0].mxu0
  %2162 = vmatprep.mubr.f32.mxu0 0.0
  %2163 = vmatmul.mubr.f32.gmra.mrb[0].mxu0 %v2081
  %v2164 = vpop.f32.mrb[0].mxu0
  %v2165 = vadd.f32 0.0, %v2164
  %v2166 = vpop.f32.mrb[0].mxu0
  %2167 = vdwg.mxu0
  %v2168 = vadd.f32 %v1663, %v2150
  %v2169 = vadd.f32 %v1664, %v2155
  %v2170 = vadd.f32 %v1665, %v2160
  %v2171 = vadd.f32 %v1666, %v2165
  %v2173 = vlaneseq
  %v2174 = vshrl.u32 %v2173, 7
  %v2175 = vsub.s32 0, %v2174
  %v2176 = vrot.slane %v161, %v2175
  %v2178 = vadd.f32 %v2168, %v2176
  %v2179 = vadd.f32 %v2169, %v2176
  %v2180 = vadd.f32 %v2170, %v2176
  %v2181 = vadd.f32 %v2171, %v2176
  %v2182 = vadd.f32 %v44, %v2178
  %v2183 = vadd.f32 %v45, %v2179
  %v2184 = vadd.f32 %v46, %v2180
  %v2185 = vadd.f32 %v47, %v2181
  %v2186 = vld [vmem:[%s5] sm:$0x1]
  %v2187 = vld [vmem:[%s6] sm:$0x1]
  %v2188 = vsel %vm59, %v2182, 0.0
  %2189 = vadd.xlane.f32.xlu0 %v2188
  %v2190 = vpop.xlane.xlu0 %2189
  %v2191 = vsel %vm59, %v2183, 0.0
  %2192 = vadd.xlane.f32.xlu0 %v2191
  %v2193 = vpop.xlane.xlu0 %2192
  %v2194 = vsel %vm59, %v2184, 0.0
  %2195 = vadd.xlane.f32.xlu0 %v2194
  %v2196 = vpop.xlane.xlu0 %2195
  %v2197 = vsel %vm59, %v2185, 0.0
  %2198 = vadd.xlane.f32.xlu0 %v2197
  %v2199 = vpop.xlane.xlu0 %2198
  %v2200 = vrcp.pop 32.0
  %v2201 = vmul.f32 %v2190, %v2200
  %v2202 = vmul.f32 %v2193, %v2200
  %v2203 = vmul.f32 %v2196, %v2200
  %v2204 = vmul.f32 %v2199, %v2200
  %v2205 = vsub.f32 %v2182, %v2201
  %v2206 = vsub.f32 %v2183, %v2202
  %v2207 = vsub.f32 %v2184, %v2203
  %v2208 = vsub.f32 %v2185, %v2204
  %v2209 = vmul.f32 %v2205, %v2205
  %v2210 = vmul.f32 %v2206, %v2206
  %v2211 = vmul.f32 %v2207, %v2207
  %v2212 = vmul.f32 %v2208, %v2208
  %v2213 = vsel %vm59, %v2209, 0.0
  %2214 = vadd.xlane.f32.xlu0 %v2213
  %v2215 = vpop.xlane.xlu0 %2214
  %v2216 = vsel %vm59, %v2210, 0.0
  %2217 = vadd.xlane.f32.xlu0 %v2216
  %v2218 = vpop.xlane.xlu0 %2217
  %v2219 = vsel %vm59, %v2211, 0.0
  %2220 = vadd.xlane.f32.xlu0 %v2219
  %v2221 = vpop.xlane.xlu0 %2220
  %v2222 = vsel %vm59, %v2212, 0.0
  %2223 = vadd.xlane.f32.xlu0 %v2222
  %v2224 = vpop.xlane.xlu0 %2223
  %v2225 = vmul.f32 %v2215, %v2200
  %v2226 = vmul.f32 %v2218, %v2200
  %v2227 = vmul.f32 %v2221, %v2200
  %v2228 = vmul.f32 %v2224, %v2200
  %v2229 = vadd.f32 %v2225, 1e-05
  %v2230 = vadd.f32 %v2226, 1e-05
  %v2231 = vadd.f32 %v2227, 1e-05
  %v2232 = vadd.f32 %v2228, 1e-05
  %v2233 = vrsqrt.pop %v2229
  %v2234 = vrsqrt.pop %v2230
  %v2235 = vrsqrt.pop %v2231
  %v2236 = vrsqrt.pop %v2232
  %v2237 = vmul.f32 %v2205, %v2233
  %v2238 = vmul.f32 %v2206, %v2234
  %v2239 = vmul.f32 %v2207, %v2235
  %v2240 = vmul.f32 %v2208, %v2236
  %v2242 = vlaneseq
  %v2243 = vshrl.u32 %v2242, 7
  %v2244 = vsub.s32 0, %v2243
  %v2245 = vrot.slane %v2186, %v2244
  %v2247 = vmul.f32 %v2237, %v2245
  %v2248 = vmul.f32 %v2238, %v2245
  %v2249 = vmul.f32 %v2239, %v2245
  %v2250 = vmul.f32 %v2240, %v2245
  %v2252 = vlaneseq
  %v2253 = vshrl.u32 %v2252, 7
  %v2254 = vsub.s32 0, %v2253
  %v2255 = vrot.slane %v2187, %v2254
  %v2257 = vadd.f32 %v2247, %v2255
  %v2258 = vadd.f32 %v2248, %v2255
  %v2259 = vadd.f32 %v2249, %v2255
  %v2260 = vadd.f32 %v2250, %v2255
  %v2261 = vld [vmem:[%s7] sm:$0xff]
  %v2262 = vld [vmem:[%s7 + $0x8] sm:$0xff]
  %v2263 = vld [vmem:[%s7 + $0x10] sm:$0xff]
  %v2264 = vld [vmem:[%s7 + $0x18] sm:$0xff]
  %v2265 = vld [vmem:[%s8] sm:$0x1]
  %v2267 = vlaneseq
  %v2268 = vshrl.u32 %v2267, 7
  %v2269 = vsub.s32 0, %v2268
  %v2270 = vrot.slane %v2265, %v2269
  %v2273 = vsel %vm59, %v2257, 0
  %v2276 = vsel %vm59, %v2258, 0
  %v2279 = vsel %vm59, %v2259, 0
  %v2282 = vsel %vm59, %v2260, 0
  %2284 = vmatprep.subr.mxu0 0.0
  %2285 = vmatpush1.msra.mxu0 %v2261
  %2286 = vmatprep.subr.mxu0 0.0
  %2287 = vmatpush1.msra.mxu0 %v2262
  %2288 = vmatprep.subr.mxu0 0.0
  %2289 = vmatpush1.msra.mxu0 %v2263
  %2290 = vmatprep.subr.mxu0 0.0
  %2291 = vmatpush1.msra.mxu0 %v2264
  %2292 = vmatprep.subr.mxu0 0.0
  %2293 = vmatpush1.msra.mxu0 0.0
  %2294 = vmatprep.subr.mxu0 0.0
  %2295 = vmatpush1.msra.mxu0 0.0
  %2296 = vmatprep.subr.mxu0 0.0
  %2297 = vmatpush1.msra.mxu0 0.0
  %2298 = vmatprep.subr.mxu0 0.0
  %2299 = vmatpush1.msra.mxu0 0.0
  %2300 = vmatprep.subr.mxu0 0.0
  %2301 = vmatpush1.msra.mxu0 0.0
  %2302 = vmatprep.subr.mxu0 0.0
  %2303 = vmatpush1.msra.mxu0 0.0
  %2304 = vmatprep.subr.mxu0 0.0
  %2305 = vmatpush1.msra.mxu0 0.0
  %2306 = vmatprep.subr.mxu0 0.0
  %2307 = vmatpush1.msra.mxu0 0.0
  %2308 = vmatprep.subr.mxu0 0.0
  %2309 = vmatpush1.msra.mxu0 0.0
  %2310 = vmatprep.subr.mxu0 0.0
  %2311 = vmatpush1.msra.mxu0 0.0
  %2312 = vmatprep.subr.mxu0 0.0
  %2313 = vmatpush1.msra.mxu0 0.0
  %2314 = vmatprep.subr.mxu0 0.0
  %2315 = vmatpush1.msra.mxu0 0.0
  %2316 = vmatprep.subr.mxu0 0.0
  %2317 = vmatpush1.msra.mxu0 0.0
  %2318 = vmatprep.subr.mxu0 0.0
  %2319 = vmatpush1.msra.mxu0 0.0
  %2320 = vmatprep.subr.mxu0 0.0
  %2321 = vmatpush1.msra.mxu0 0.0
  %2322 = vmatprep.subr.mxu0 0.0
  %2323 = vmatpush1.msra.mxu0 0.0
  %2324 = vmatprep.subr.mxu0 0.0
  %2325 = vmatpush1.msra.mxu0 0.0
  %2326 = vmatprep.subr.mxu0 0.0
  %2327 = vmatpush1.msra.mxu0 0.0
  %2328 = vmatprep.subr.mxu0 0.0
  %2329 = vmatpush1.msra.mxu0 0.0
  %2330 = vmatprep.subr.mxu0 0.0
  %2331 = vmatpush1.msra.mxu0 0.0
  %2332 = vmatprep.subr.mxu0 0.0
  %2333 = vmatpush1.msra.mxu0 0.0
  %2334 = vmatprep.subr.mxu0 0.0
  %2335 = vmatpush1.msra.mxu0 0.0
  %2336 = vmatprep.subr.mxu0 0.0
  %2337 = vmatpush1.msra.mxu0 0.0
  %2338 = vmatprep.subr.mxu0 0.0
  %2339 = vmatpush1.msra.mxu0 0.0
  %2340 = vmatprep.subr.mxu0 0.0
  %2341 = vmatpush1.msra.mxu0 0.0
  %2342 = vmatprep.subr.mxu0 0.0
  %2343 = vmatpush1.msra.mxu0 0.0
  %2344 = vmatprep.subr.mxu0 0.0
  %2345 = vmatpush1.msra.mxu0 0.0
  %2346 = vmatprep.subr.mxu0 0.0
  %2347 = vmatpush1.msra.mxu0 0.0
  %2348 = vmatprep.mubr.f32.mxu0 0.0
  %2349 = vmatmul.mubr.f32.gmra.mrb[0].mxu0 %v2273
  %v2350 = vpop.f32.mrb[0].mxu0
  %v2351 = vadd.f32 %v2270, %v2350
  %v2352 = vpop.f32.mrb[0].mxu0
  %2353 = vmatprep.mubr.f32.mxu0 0.0
  %2354 = vmatmul.mubr.f32.gmra.mrb[0].mxu0 %v2276
  %v2355 = vpop.f32.mrb[0].mxu0
  %v2356 = vadd.f32 %v2270, %v2355
  %v2357 = vpop.f32.mrb[0].mxu0
  %2358 = vmatprep.mubr.f32.mxu0 0.0
  %2359 = vmatmul.mubr.f32.gmra.mrb[0].mxu0 %v2279
  %v2360 = vpop.f32.mrb[0].mxu0
  %v2361 = vadd.f32 %v2270, %v2360
  %v2362 = vpop.f32.mrb[0].mxu0
  %2363 = vmatprep.mubr.f32.mxu0 0.0
  %2364 = vmatmul.mubr.f32.gmra.mrb[0].mxu0 %v2282
  %v2365 = vpop.f32.mrb[0].mxu0
  %v2366 = vadd.f32 %v2270, %v2365
  %v2367 = vpop.f32.mrb[0].mxu0
  %2368 = vdwg.mxu0
  %v2369 = vmax.f32 %v2351, 0.0
  %v2370 = vmax.f32 %v2356, 0.0
  %v2371 = vmax.f32 %v2361, 0.0
  %v2372 = vmax.f32 %v2366, 0.0
  %v2373 = vld [vmem:[%s9] sm:$0xff]
  %v2374 = vld [vmem:[%s9 + $0x8] sm:$0xff]
  %v2375 = vld [vmem:[%s9 + $0x10] sm:$0xff]
  %v2376 = vld [vmem:[%s9 + $0x18] sm:$0xff]
  %v2377 = vld [vmem:[%s9 + $0x20] sm:$0xff]
  %v2378 = vld [vmem:[%s9 + $0x28] sm:$0xff]
  %v2379 = vld [vmem:[%s9 + $0x30] sm:$0xff]
  %v2380 = vld [vmem:[%s9 + $0x38] sm:$0xff]
  %v2381 = vld [vmem:[%s10] sm:$0x1]
  %v2383 = vlaneseq
  %v2384 = vshrl.u32 %v2383, 7
  %v2385 = vsub.s32 0, %v2384
  %v2386 = vrot.slane %v2381, %v2385
  %vm2388 = vcmask 523264
  %v2390 = vsel %vm2388, %v2369, 0
  %v2393 = vsel %vm2388, %v2370, 0
  %v2396 = vsel %vm2388, %v2371, 0
  %v2399 = vsel %vm2388, %v2372, 0
  %2401 = vmatprep.subr.mxu0 0.0
  %2402 = vmatpush1.msra.mxu0 %v2373
  %2403 = vmatprep.subr.mxu0 0.0
  %2404 = vmatpush1.msra.mxu0 %v2374
  %2405 = vmatprep.subr.mxu0 0.0
  %2406 = vmatpush1.msra.mxu0 %v2375
  %2407 = vmatprep.subr.mxu0 0.0
  %2408 = vmatpush1.msra.mxu0 %v2376
  %2409 = vmatprep.subr.mxu0 0.0
  %2410 = vmatpush1.msra.mxu0 %v2377
  %2411 = vmatprep.subr.mxu0 0.0
  %2412 = vmatpush1.msra.mxu0 %v2378
  %2413 = vmatprep.subr.mxu0 0.0
  %2414 = vmatpush1.msra.mxu0 %v2379
  %2415 = vmatprep.subr.mxu0 0.0
  %2416 = vmatpush1.msra.mxu0 %v2380
  %2417 = vmatprep.subr.mxu0 0.0
  %2418 = vmatpush1.msra.mxu0 0.0
  %2419 = vmatprep.subr.mxu0 0.0
  %2420 = vmatpush1.msra.mxu0 0.0
  %2421 = vmatprep.subr.mxu0 0.0
  %2422 = vmatpush1.msra.mxu0 0.0
  %2423 = vmatprep.subr.mxu0 0.0
  %2424 = vmatpush1.msra.mxu0 0.0
  %2425 = vmatprep.subr.mxu0 0.0
  %2426 = vmatpush1.msra.mxu0 0.0
  %2427 = vmatprep.subr.mxu0 0.0
  %2428 = vmatpush1.msra.mxu0 0.0
  %2429 = vmatprep.subr.mxu0 0.0
  %2430 = vmatpush1.msra.mxu0 0.0
  %2431 = vmatprep.subr.mxu0 0.0
  %2432 = vmatpush1.msra.mxu0 0.0
  %2433 = vmatprep.subr.mxu0 0.0
  %2434 = vmatpush1.msra.mxu0 0.0
  %2435 = vmatprep.subr.mxu0 0.0
  %2436 = vmatpush1.msra.mxu0 0.0
  %2437 = vmatprep.subr.mxu0 0.0
  %2438 = vmatpush1.msra.mxu0 0.0
  %2439 = vmatprep.subr.mxu0 0.0
  %2440 = vmatpush1.msra.mxu0 0.0
  %2441 = vmatprep.subr.mxu0 0.0
  %2442 = vmatpush1.msra.mxu0 0.0
  %2443 = vmatprep.subr.mxu0 0.0
  %2444 = vmatpush1.msra.mxu0 0.0
  %2445 = vmatprep.subr.mxu0 0.0
  %2446 = vmatpush1.msra.mxu0 0.0
  %2447 = vmatprep.subr.mxu0 0.0
  %2448 = vmatpush1.msra.mxu0 0.0
  %2449 = vmatprep.subr.mxu0 0.0
  %2450 = vmatpush1.msra.mxu0 0.0
  %2451 = vmatprep.subr.mxu0 0.0
  %2452 = vmatpush1.msra.mxu0 0.0
  %2453 = vmatprep.subr.mxu0 0.0
  %2454 = vmatpush1.msra.mxu0 0.0
  %2455 = vmatprep.subr.mxu0 0.0
  %2456 = vmatpush1.msra.mxu0 0.0
  %2457 = vmatprep.subr.mxu0 0.0
  %2458 = vmatpush1.msra.mxu0 0.0
  %2459 = vmatprep.subr.mxu0 0.0
  %2460 = vmatpush1.msra.mxu0 0.0
  %2461 = vmatprep.subr.mxu0 0.0
  %2462 = vmatpush1.msra.mxu0 0.0
  %2463 = vmatprep.subr.mxu0 0.0
  %2464 = vmatpush1.msra.mxu0 0.0
  %2465 = vmatprep.mubr.f32.mxu0 0.0
  %2466 = vmatmul.mubr.f32.gmra.mrb[0].mxu0 %v2390
  %v2467 = vpop.f32.mrb[0].mxu0
  %v2468 = vadd.f32 %v2386, %v2467
  %v2469 = vpop.f32.mrb[0].mxu0
  %2470 = vmatprep.mubr.f32.mxu0 0.0
  %2471 = vmatmul.mubr.f32.gmra.mrb[0].mxu0 %v2393
  %v2472 = vpop.f32.mrb[0].mxu0
  %v2473 = vadd.f32 %v2386, %v2472
  %v2474 = vpop.f32.mrb[0].mxu0
  %2475 = vmatprep.mubr.f32.mxu0 0.0
  %2476 = vmatmul.mubr.f32.gmra.mrb[0].mxu0 %v2396
  %v2477 = vpop.f32.mrb[0].mxu0
  %v2478 = vadd.f32 %v2386, %v2477
  %v2479 = vpop.f32.mrb[0].mxu0
  %2480 = vmatprep.mubr.f32.mxu0 0.0
  %2481 = vmatmul.mubr.f32.gmra.mrb[0].mxu0 %v2399
  %v2482 = vpop.f32.mrb[0].mxu0
  %v2483 = vadd.f32 %v2386, %v2482
  %v2484 = vpop.f32.mrb[0].mxu0
  %2485 = vdwg.mxu0
  %v2486 = vadd.f32 %v2257, %v2468
  %v2487 = vadd.f32 %v2258, %v2473
  %v2488 = vadd.f32 %v2259, %v2478
  %v2489 = vadd.f32 %v2260, %v2483
  %v2490 = vld [vmem:[%s11] sm:$0x1]
  %v2491 = vld [vmem:[%s12] sm:$0x1]
  %v2492 = vsel %vm59, %v2486, 0.0
  %2493 = vadd.xlane.f32.xlu0 %v2492
  %v2494 = vpop.xlane.xlu0 %2493
  %v2495 = vsel %vm59, %v2487, 0.0
  %2496 = vadd.xlane.f32.xlu0 %v2495
  %v2497 = vpop.xlane.xlu0 %2496
  %v2498 = vsel %vm59, %v2488, 0.0
  %2499 = vadd.xlane.f32.xlu0 %v2498
  %v2500 = vpop.xlane.xlu0 %2499
  %v2501 = vsel %vm59, %v2489, 0.0
  %2502 = vadd.xlane.f32.xlu0 %v2501
  %v2503 = vpop.xlane.xlu0 %2502
  %v2504 = vmul.f32 %v2494, %v2200
  %v2505 = vmul.f32 %v2497, %v2200
  %v2506 = vmul.f32 %v2500, %v2200
  %v2507 = vmul.f32 %v2503, %v2200
  %v2508 = vsub.f32 %v2486, %v2504
  %v2509 = vsub.f32 %v2487, %v2505
  %v2510 = vsub.f32 %v2488, %v2506
  %v2511 = vsub.f32 %v2489, %v2507
  %v2512 = vmul.f32 %v2508, %v2508
  %v2513 = vmul.f32 %v2509, %v2509
  %v2514 = vmul.f32 %v2510, %v2510
  %v2515 = vmul.f32 %v2511, %v2511
  %v2516 = vsel %vm59, %v2512, 0.0
  %2517 = vadd.xlane.f32.xlu0 %v2516
  %v2518 = vpop.xlane.xlu0 %2517
  %v2519 = vsel %vm59, %v2513, 0.0
  %2520 = vadd.xlane.f32.xlu0 %v2519
  %v2521 = vpop.xlane.xlu0 %2520
  %v2522 = vsel %vm59, %v2514, 0.0
  %2523 = vadd.xlane.f32.xlu0 %v2522
  %v2524 = vpop.xlane.xlu0 %2523
  %v2525 = vsel %vm59, %v2515, 0.0
  %2526 = vadd.xlane.f32.xlu0 %v2525
  %v2527 = vpop.xlane.xlu0 %2526
  %v2528 = vmul.f32 %v2518, %v2200
  %v2529 = vmul.f32 %v2521, %v2200
  %v2530 = vmul.f32 %v2524, %v2200
  %v2531 = vmul.f32 %v2527, %v2200
  %v2532 = vadd.f32 %v2528, 1e-05
  %v2533 = vadd.f32 %v2529, 1e-05
  %v2534 = vadd.f32 %v2530, 1e-05
  %v2535 = vadd.f32 %v2531, 1e-05
  %v2536 = vrsqrt.pop %v2532
  %v2537 = vrsqrt.pop %v2533
  %v2538 = vrsqrt.pop %v2534
  %v2539 = vrsqrt.pop %v2535
  %v2540 = vmul.f32 %v2508, %v2536
  %v2541 = vmul.f32 %v2509, %v2537
  %v2542 = vmul.f32 %v2510, %v2538
  %v2543 = vmul.f32 %v2511, %v2539
  %v2545 = vlaneseq
  %v2546 = vshrl.u32 %v2545, 7
  %v2547 = vsub.s32 0, %v2546
  %v2548 = vrot.slane %v2490, %v2547
  %v2550 = vmul.f32 %v2540, %v2548
  %v2551 = vmul.f32 %v2541, %v2548
  %v2552 = vmul.f32 %v2542, %v2548
  %v2553 = vmul.f32 %v2543, %v2548
  %v2555 = vlaneseq
  %v2556 = vshrl.u32 %v2555, 7
  %v2557 = vsub.s32 0, %v2556
  %v2558 = vrot.slane %v2491, %v2557
  %v2560 = vadd.f32 %v2550, %v2558
  %v2561 = vadd.f32 %v2551, %v2558
  %v2562 = vadd.f32 %v2552, %v2558
  %v2563 = vadd.f32 %v2553, %v2558
  %2564 = vst.msk [vmem:[%s13] sm:$0xff] %vm59, %v2560
  %2565 = vst.msk [vmem:[%s13 + $0x8] sm:$0xff] %vm59, %v2561
  %2566 = vst.msk [vmem:[%s13 + $0x10] sm:$0xff] %vm59, %v2562
  %2567 = vst.msk [vmem:[%s13 + $0x18] sm:$0xff] %vm59, %v2563
  // Predicated region
  $region54: #{_lambda_.5} parent=0 // pred_check
    _
  $region55: #{_lambda_.5} parent=0 // pred_check_branch
    %2569 = sbr.rel (0) target = $region57
  $region56: #{_lambda_.5} parent=0 // pred_region
    _
  $region57: #{_lambda_.5} parent=0 // pred_fallthru
    _
  // Predicated region
  $region58: #{_lambda_.5} parent=0 // pred_check
    _
  $region59: #{_lambda_.5} parent=0 // pred_check_branch
    %2571 = sbr.rel (0) target = $region61
  $region60: #{_lambda_.5} parent=0 // pred_region
    _
  $region61: #{_lambda_.5} parent=0 // pred_fallthru
    _

// kernel: _lambda_.7
$region0: #{_lambda_.7}
  #allocation0 [shape = 'u32[]', space=smem, size = 0x4, offset = 0x4, fixed_abs, tag = 'smem constant byte address 0x4 - core index']
  #allocation1 [shape = 'u32[144,128]{1,0:T(1,128)}', space=vmem, size = 0x12000, scoped, tag = 'internal scratch']
  %s0 = inlined_call_operand.vmem [shape: f32[2,8,32], index: 0, kind: input, shape index: {}]
  %s1 = inlined_call_operand.vmem [shape: f32[2,16,32], index: 1, kind: input, shape index: {}]
  %s2 = inlined_call_operand.vmem [shape: f32[2,8,8], index: 2, kind: input, shape index: {}]
  %s3 = inlined_call_operand.vmem [shape: f32[32,96], index: 3, kind: input, shape index: {}]
  %s4 = inlined_call_operand.vmem [shape: f32[1,96], index: 4, kind: input, shape index: {}]
  %s5 = inlined_call_operand.vmem [shape: f32[32,32], index: 5, kind: input, shape index: {}]
  %s6 = inlined_call_operand.vmem [shape: f32[1,32], index: 6, kind: input, shape index: {}]
  %s7 = inlined_call_operand.vmem [shape: f32[1,32], index: 7, kind: input, shape index: {}]
  %s8 = inlined_call_operand.vmem [shape: f32[1,32], index: 8, kind: input, shape index: {}]
  %s9 = inlined_call_operand.vmem [shape: f32[32,32], index: 9, kind: input, shape index: {}]
  %s10 = inlined_call_operand.vmem [shape: f32[1,32], index: 10, kind: input, shape index: {}]
  %s11 = inlined_call_operand.vmem [shape: f32[32,64], index: 11, kind: input, shape index: {}]
  %s12 = inlined_call_operand.vmem [shape: f32[1,64], index: 12, kind: input, shape index: {}]
  %s13 = inlined_call_operand.vmem [shape: f32[32,32], index: 13, kind: input, shape index: {}]
  %s14 = inlined_call_operand.vmem [shape: f32[1,32], index: 14, kind: input, shape index: {}]
  %s15 = inlined_call_operand.vmem [shape: f32[1,32], index: 15, kind: input, shape index: {}]
  %s16 = inlined_call_operand.vmem [shape: f32[1,32], index: 16, kind: input, shape index: {}]
  %s17 = inlined_call_operand.vmem [shape: f32[32,64], index: 17, kind: input, shape index: {}]
  %s18 = inlined_call_operand.vmem [shape: f32[1,64], index: 18, kind: input, shape index: {}]
  %s19 = inlined_call_operand.vmem [shape: f32[64,32], index: 19, kind: input, shape index: {}]
  %s20 = inlined_call_operand.vmem [shape: f32[1,32], index: 20, kind: input, shape index: {}]
  %s21 = inlined_call_operand.vmem [shape: f32[1,32], index: 21, kind: input, shape index: {}]
  %s22 = inlined_call_operand.vmem [shape: f32[1,32], index: 22, kind: input, shape index: {}]
  %s23 = inlined_call_operand.vmem [shape: f32[2,8,32], index: 23, kind: output, shape index: {0}]
  %s24 = inlined_call_operand.vmem [shape: f32[2,8,16], index: 24, kind: output, shape index: {1}]
  %25 = xla_tuple %s23, %s24
  %s26 = sld [smem:[#allocation0]]
  $region110: #{_lambda_.7} parent=0
    _
  %s28 = ssub.s32 1, %s26
  %s29 = scalar_select 0, %s28, %s26
  // Predicated region
  $region2: #{_lambda_.7} parent=0 // pred_check
    _
  $region3: #{_lambda_.7} parent=0 // pred_check_branch
    %31 = sbr.rel (0) target = $region5
  $region4: #{_lambda_.7} parent=0 // pred_region
    _
  $region5: #{_lambda_.7} parent=0 // pred_fallthru
    _
  // Predicated region
  $region6: #{_lambda_.7} parent=0 // pred_check
    _
  $region7: #{_lambda_.7} parent=0 // pred_check_branch
    %33 = sbr.rel (0) target = $region9
  $region8: #{_lambda_.7} parent=0 // pred_region
    _
  $region9: #{_lambda_.7} parent=0 // pred_fallthru
    _
  // Predicated region
  $region10: #{_lambda_.7} parent=0 // pred_check
    _
  $region11: #{_lambda_.7} parent=0 // pred_check_branch
    %35 = sbr.rel (0) target = $region13
  $region12: #{_lambda_.7} parent=0 // pred_region
    _
  $region13: #{_lambda_.7} parent=0 // pred_fallthru
    _
  // Predicated region
  $region14: #{_lambda_.7} parent=0 // pred_check
    _
  $region15: #{_lambda_.7} parent=0 // pred_check_branch
    %37 = sbr.rel (0) target = $region17
  $region16: #{_lambda_.7} parent=0 // pred_region
    _
  $region17: #{_lambda_.7} parent=0 // pred_fallthru
    _
  // Predicated region
  $region18: #{_lambda_.7} parent=0 // pred_check
    _
  $region19: #{_lambda_.7} parent=0 // pred_check_branch
    %39 = sbr.rel (0) target = $region21
  $region20: #{_lambda_.7} parent=0 // pred_region
    _
  $region21: #{_lambda_.7} parent=0 // pred_fallthru
    _
  // Predicated region
  $region22: #{_lambda_.7} parent=0 // pred_check
    _
  $region23: #{_lambda_.7} parent=0 // pred_check_branch
    %41 = sbr.rel (0) target = $region25
  $region24: #{_lambda_.7} parent=0 // pred_region
    _
  $region25: #{_lambda_.7} parent=0 // pred_fallthru
    _
  // Predicated region
  $region26: #{_lambda_.7} parent=0 // pred_check
    _
  $region27: #{_lambda_.7} parent=0 // pred_check_branch
    %43 = sbr.rel (0) target = $region29
  $region28: #{_lambda_.7} parent=0 // pred_region
    _
  $region29: #{_lambda_.7} parent=0 // pred_fallthru
    _
  // Predicated region
  $region30: #{_lambda_.7} parent=0 // pred_check
    _
  $region31: #{_lambda_.7} parent=0 // pred_check_branch
    %45 = sbr.rel (0) target = $region33
  $region32: #{_lambda_.7} parent=0 // pred_region
    _
  $region33: #{_lambda_.7} parent=0 // pred_fallthru
    _
  // Predicated region
  $region34: #{_lambda_.7} parent=0 // pred_check
    _
  $region35: #{_lambda_.7} parent=0 // pred_check_branch
    %47 = sbr.rel (0) target = $region37
  $region36: #{_lambda_.7} parent=0 // pred_region
    _
  $region37: #{_lambda_.7} parent=0 // pred_fallthru
    _
  // Predicated region
  $region38: #{_lambda_.7} parent=0 // pred_check
    _
  $region39: #{_lambda_.7} parent=0 // pred_check_branch
    %49 = sbr.rel (0) target = $region41
  $region40: #{_lambda_.7} parent=0 // pred_region
    _
  $region41: #{_lambda_.7} parent=0 // pred_fallthru
    _
  // Predicated region
  $region42: #{_lambda_.7} parent=0 // pred_check
    _
  $region43: #{_lambda_.7} parent=0 // pred_check_branch
    %51 = sbr.rel (0) target = $region45
  $region44: #{_lambda_.7} parent=0 // pred_region
    _
  $region45: #{_lambda_.7} parent=0 // pred_fallthru
    _
  // Predicated region
  $region46: #{_lambda_.7} parent=0 // pred_check
    _
  $region47: #{_lambda_.7} parent=0 // pred_check_branch
    %53 = sbr.rel (0) target = $region49
  $region48: #{_lambda_.7} parent=0 // pred_region
    _
  $region49: #{_lambda_.7} parent=0 // pred_fallthru
    _
  // Predicated region
  $region50: #{_lambda_.7} parent=0 // pred_check
    _
  $region51: #{_lambda_.7} parent=0 // pred_check_branch
    %55 = sbr.rel (0) target = $region53
  $region52: #{_lambda_.7} parent=0 // pred_region
    _
  $region53: #{_lambda_.7} parent=0 // pred_fallthru
    _
  // Predicated region
  $region54: #{_lambda_.7} parent=0 // pred_check
    _
  $region55: #{_lambda_.7} parent=0 // pred_check_branch
    %57 = sbr.rel (0) target = $region57
  $region56: #{_lambda_.7} parent=0 // pred_region
    _
  $region57: #{_lambda_.7} parent=0 // pred_fallthru
    _
  // Predicated region
  $region58: #{_lambda_.7} parent=0 // pred_check
    _
  $region59: #{_lambda_.7} parent=0 // pred_check_branch
    %59 = sbr.rel (0) target = $region61
  $region60: #{_lambda_.7} parent=0 // pred_region
    _
  $region61: #{_lambda_.7} parent=0 // pred_fallthru
    _
  // Predicated region
  $region62: #{_lambda_.7} parent=0 // pred_check
    _
  $region63: #{_lambda_.7} parent=0 // pred_check_branch
    %61 = sbr.rel (0) target = $region65
  $region64: #{_lambda_.7} parent=0 // pred_region
    _
  $region65: #{_lambda_.7} parent=0 // pred_fallthru
    _
  // Predicated region
  $region66: #{_lambda_.7} parent=0 // pred_check
    _
  $region67: #{_lambda_.7} parent=0 // pred_check_branch
    %63 = sbr.rel (0) target = $region69
  $region68: #{_lambda_.7} parent=0 // pred_region
    _
  $region69: #{_lambda_.7} parent=0 // pred_fallthru
    _
  // Predicated region
  $region70: #{_lambda_.7} parent=0 // pred_check
    _
  $region71: #{_lambda_.7} parent=0 // pred_check_branch
    %65 = sbr.rel (0) target = $region73
  $region72: #{_lambda_.7} parent=0 // pred_region
    _
  $region73: #{_lambda_.7} parent=0 // pred_fallthru
    _
  // Predicated region
  $region74: #{_lambda_.7} parent=0 // pred_check
    _
  $region75: #{_lambda_.7} parent=0 // pred_check_branch
    %67 = sbr.rel (0) target = $region77
  $region76: #{_lambda_.7} parent=0 // pred_region
    _
  $region77: #{_lambda_.7} parent=0 // pred_fallthru
    _
  // Predicated region
  $region78: #{_lambda_.7} parent=0 // pred_check
    _
  $region79: #{_lambda_.7} parent=0 // pred_check_branch
    %69 = sbr.rel (0) target = $region81
  $region80: #{_lambda_.7} parent=0 // pred_region
    _
  $region81: #{_lambda_.7} parent=0 // pred_fallthru
    _
  // Predicated region
  $region82: #{_lambda_.7} parent=0 // pred_check
    _
  $region83: #{_lambda_.7} parent=0 // pred_check_branch
    %71 = sbr.rel (0) target = $region85
  $region84: #{_lambda_.7} parent=0 // pred_region
    _
  $region85: #{_lambda_.7} parent=0 // pred_fallthru
    _
  // Predicated region
  $region86: #{_lambda_.7} parent=0 // pred_check
    _
  $region87: #{_lambda_.7} parent=0 // pred_check_branch
    %73 = sbr.rel (0) target = $region89
  $region88: #{_lambda_.7} parent=0 // pred_region
    _
  $region89: #{_lambda_.7} parent=0 // pred_fallthru
    _
  // Predicated region
  $region90: #{_lambda_.7} parent=0 // pred_check
    _
  $region91: #{_lambda_.7} parent=0 // pred_check_branch
    %75 = sbr.rel (0) target = $region93
  $region92: #{_lambda_.7} parent=0 // pred_region
    _
  $region93: #{_lambda_.7} parent=0 // pred_fallthru
    _
  %v76 = vld [vmem:[%s0] sm:$0xff]
  %v77 = vld [vmem:[%s0 + $0x8] sm:$0xff]
  %v78 = vld [vmem:[%s2] sm:$0xff]
  %v79 = vld [vmem:[%s2 + $0x8] sm:$0xff]
  %v80 = vld [vmem:[%s3] sm:$0xff]
  %v81 = vld [vmem:[%s3 + $0x8] sm:$0xff]
  %v82 = vld [vmem:[%s3 + $0x10] sm:$0xff]
  %v83 = vld [vmem:[%s3 + $0x18] sm:$0xff]
  %v84 = vld [vmem:[%s4] sm:$0x1]
  %v86 = vlaneseq
  %v87 = vshrl.u32 %v86, 7
  %v88 = vsub.s32 0, %v87
  %v89 = vrot.slane %v84, %v88
  %vm91 = vcmask 261120
  %v93 = vsel %vm91, %v76, 0
  %v96 = vsel %vm91, %v77, 0
  %98 = vmatprep.subr.mxu0 0.0
  %99 = vmatpush1.msra.mxu0 %v80
  %100 = vmatprep.subr.mxu0 0.0
  %101 = vmatpush1.msra.mxu0 %v81
  %102 = vmatprep.subr.mxu0 0.0
  %103 = vmatpush1.msra.mxu0 %v82
  %104 = vmatprep.subr.mxu0 0.0
  %105 = vmatpush1.msra.mxu0 %v83
  %106 = vmatprep.subr.mxu0 0.0
  %107 = vmatpush1.msra.mxu0 0.0
  %108 = vmatprep.subr.mxu0 0.0
  %109 = vmatpush1.msra.mxu0 0.0
  %110 = vmatprep.subr.mxu0 0.0
  %111 = vmatpush1.msra.mxu0 0.0
  %112 = vmatprep.subr.mxu0 0.0
  %113 = vmatpush1.msra.mxu0 0.0
  %114 = vmatprep.subr.mxu0 0.0
  %115 = vmatpush1.msra.mxu0 0.0
  %116 = vmatprep.subr.mxu0 0.0
  %117 = vmatpush1.msra.mxu0 0.0
  %118 = vmatprep.subr.mxu0 0.0
  %119 = vmatpush1.msra.mxu0 0.0
  %120 = vmatprep.subr.mxu0 0.0
  %121 = vmatpush1.msra.mxu0 0.0
  %122 = vmatprep.subr.mxu0 0.0
  %123 = vmatpush1.msra.mxu0 0.0
  %124 = vmatprep.subr.mxu0 0.0
  %125 = vmatpush1.msra.mxu0 0.0
  %126 = vmatprep.subr.mxu0 0.0
  %127 = vmatpush1.msra.mxu0 0.0
  %128 = vmatprep.subr.mxu0 0.0
  %129 = vmatpush1.msra.mxu0 0.0
  %130 = vmatprep.subr.mxu0 0.0
  %131 = vmatpush1.msra.mxu0 0.0
  %132 = vmatprep.subr.mxu0 0.0
  %133 = vmatpush1.msra.mxu0 0.0
  %134 = vmatprep.subr.mxu0 0.0
  %135 = vmatpush1.msra.mxu0 0.0
  %136 = vmatprep.subr.mxu0 0.0
  %137 = vmatpush1.msra.mxu0 0.0
  %138 = vmatprep.subr.mxu0 0.0
  %139 = vmatpush1.msra.mxu0 0.0
  %140 = vmatprep.subr.mxu0 0.0
  %141 = vmatpush1.msra.mxu0 0.0
  %142 = vmatprep.subr.mxu0 0.0
  %143 = vmatpush1.msra.mxu0 0.0
  %144 = vmatprep.subr.mxu0 0.0
  %145 = vmatpush1.msra.mxu0 0.0
  %146 = vmatprep.subr.mxu0 0.0
  %147 = vmatpush1.msra.mxu0 0.0
  %148 = vmatprep.subr.mxu0 0.0
  %149 = vmatpush1.msra.mxu0 0.0
  %150 = vmatprep.subr.mxu0 0.0
  %151 = vmatpush1.msra.mxu0 0.0
  %152 = vmatprep.subr.mxu0 0.0
  %153 = vmatpush1.msra.mxu0 0.0
  %154 = vmatprep.subr.mxu0 0.0
  %155 = vmatpush1.msra.mxu0 0.0
  %156 = vmatprep.subr.mxu0 0.0
  %157 = vmatpush1.msra.mxu0 0.0
  %158 = vmatprep.subr.mxu0 0.0
  %159 = vmatpush1.msra.mxu0 0.0
  %160 = vmatprep.subr.mxu0 0.0
  %161 = vmatpush1.msra.mxu0 0.0
  %162 = vmatprep.mubr.f32.mxu0 0.0
  %163 = vmatmul.mubr.f32.gmra.mrb[0].mxu0 %v93
  %v164 = vpop.f32.mrb[0].mxu0
  %v165 = vadd.f32 %v89, %v164
  %v166 = vpop.f32.mrb[0].mxu0
  %167 = vmatprep.mubr.f32.mxu0 0.0
  %168 = vmatmul.mubr.f32.gmra.mrb[0].mxu0 %v96
  %v169 = vpop.f32.mrb[0].mxu0
  %v170 = vadd.f32 %v89, %v169
  %v171 = vpop.f32.mrb[0].mxu0
  %172 = vdwg.mxu0
  %v173 = vld [vmem:[%s5] sm:$0xff]
  %v174 = vld [vmem:[%s5 + $0x8] sm:$0xff]
  %v175 = vld [vmem:[%s5 + $0x10] sm:$0xff]
  %v176 = vld [vmem:[%s5 + $0x18] sm:$0xff]
  %v177 = vld [vmem:[%s6] sm:$0x1]
  %179 = vrot.lane.b32.xlu0 %v165, 96
  %v180 = vpop.permute.xlu0 %179
  %vm181 = vcmask 64512
  %v182 = vsel %vm181, %v165, 0
  %v184 = vsel %vm181, %v180, 0
  %186 = vmatprep.subr.mxu0 0.0
  %187 = vmatpush1.xpose.msra.mxu0 %v184
  %188 = vmatprep.subr.mxu0 0.0
  %189 = vmatpush1.xpose.msra.mxu0 0.0
  %190 = vmatprep.subr.mxu0 0.0
  %191 = vmatpush1.xpose.msra.mxu0 0.0
  %192 = vmatprep.subr.mxu0 0.0
  %193 = vmatpush1.xpose.msra.mxu0 0.0
  %194 = vmatprep.subr.mxu0 0.0
  %195 = vmatpush1.xpose.msra.mxu0 0.0
  %196 = vmatprep.subr.mxu0 0.0
  %197 = vmatpush1.xpose.msra.mxu0 0.0
  %198 = vmatprep.subr.mxu0 0.0
  %199 = vmatpush1.xpose.msra.mxu0 0.0
  %200 = vmatprep.subr.mxu0 0.0
  %201 = vmatpush1.xpose.msra.mxu0 0.0
  %202 = vmatprep.subr.mxu0 0.0
  %203 = vmatpush1.xpose.msra.mxu0 0.0
  %204 = vmatprep.subr.mxu0 0.0
  %205 = vmatpush1.xpose.msra.mxu0 0.0
  %206 = vmatprep.subr.mxu0 0.0
  %207 = vmatpush1.xpose.msra.mxu0 0.0
  %208 = vmatprep.subr.mxu0 0.0
  %209 = vmatpush1.xpose.msra.mxu0 0.0
  %210 = vmatprep.subr.mxu0 0.0
  %211 = vmatpush1.xpose.msra.mxu0 0.0
  %212 = vmatprep.subr.mxu0 0.0
  %213 = vmatpush1.xpose.msra.mxu0 0.0
  %214 = vmatprep.subr.mxu0 0.0
  %215 = vmatpush1.xpose.msra.mxu0 0.0
  %216 = vmatprep.subr.mxu0 0.0
  %217 = vmatpush1.xpose.msra.mxu0 0.0
  %218 = vmatprep.subr.mxu0 0.0
  %219 = vmatpush1.xpose.msra.mxu0 0.0
  %220 = vmatprep.subr.mxu0 0.0
  %221 = vmatpush1.xpose.msra.mxu0 0.0
  %222 = vmatprep.subr.mxu0 0.0
  %223 = vmatpush1.xpose.msra.mxu0 0.0
  %224 = vmatprep.subr.mxu0 0.0
  %225 = vmatpush1.xpose.msra.mxu0 0.0
  %226 = vmatprep.subr.mxu0 0.0
  %227 = vmatpush1.xpose.msra.mxu0 0.0
  %228 = vmatprep.subr.mxu0 0.0
  %229 = vmatpush1.xpose.msra.mxu0 0.0
  %230 = vmatprep.subr.mxu0 0.0
  %231 = vmatpush1.xpose.msra.mxu0 0.0
  %232 = vmatprep.subr.mxu0 0.0
  %233 = vmatpush1.xpose.msra.mxu0 0.0
  %234 = vmatprep.subr.mxu0 0.0
  %235 = vmatpush1.xpose.msra.mxu0 0.0
  %236 = vmatprep.subr.mxu0 0.0
  %237 = vmatpush1.xpose.msra.mxu0 0.0
  %238 = vmatprep.subr.mxu0 0.0
  %239 = vmatpush1.xpose.msra.mxu0 0.0
  %240 = vmatprep.subr.mxu0 0.0
  %241 = vmatpush1.xpose.msra.mxu0 0.0
  %242 = vmatprep.subr.mxu0 0.0
  %243 = vmatpush1.xpose.msra.mxu0 0.0
  %244 = vmatprep.subr.mxu0 0.0
  %245 = vmatpush1.xpose.msra.mxu0 0.0
  %246 = vmatprep.subr.mxu0 0.0
  %247 = vmatpush1.xpose.msra.mxu0 0.0
  %248 = vmatprep.subr.mxu0 0.0
  %249 = vmatpush1.xpose.msra.mxu0 0.0
  %250 = vmatprep.mubr.f32.mxu0 0.0
  %251 = vmatmul.mubr.f32.gmra.mrb[0].mxu0 %v182
  %v252 = vpop.f32.mrb[0].mxu0
  %v253 = vadd.f32 0.0, %v252
  %v254 = vpop.f32.mrb[0].mxu0
  %255 = vdwg.mxu0
  %257 = vrot.lane.b32.xlu0 %v170, 96
  %v258 = vpop.permute.xlu0 %257
  %v259 = vsel %vm181, %v170, 0
  %v261 = vsel %vm181, %v258, 0
  %263 = vmatprep.subr.mxu0 0.0
  %264 = vmatpush1.xpose.msra.mxu0 %v261
  %265 = vmatprep.subr.mxu0 0.0
  %266 = vmatpush1.xpose.msra.mxu0 0.0
  %267 = vmatprep.subr.mxu0 0.0
  %268 = vmatpush1.xpose.msra.mxu0 0.0
  %269 = vmatprep.subr.mxu0 0.0
  %270 = vmatpush1.xpose.msra.mxu0 0.0
  %271 = vmatprep.subr.mxu0 0.0
  %272 = vmatpush1.xpose.msra.mxu0 0.0
  %273 = vmatprep.subr.mxu0 0.0
  %274 = vmatpush1.xpose.msra.mxu0 0.0
  %275 = vmatprep.subr.mxu0 0.0
  %276 = vmatpush1.xpose.msra.mxu0 0.0
  %277 = vmatprep.subr.mxu0 0.0
  %278 = vmatpush1.xpose.msra.mxu0 0.0
  %279 = vmatprep.subr.mxu0 0.0
  %280 = vmatpush1.xpose.msra.mxu0 0.0
  %281 = vmatprep.subr.mxu0 0.0
  %282 = vmatpush1.xpose.msra.mxu0 0.0
  %283 = vmatprep.subr.mxu0 0.0
  %284 = vmatpush1.xpose.msra.mxu0 0.0
  %285 = vmatprep.subr.mxu0 0.0
  %286 = vmatpush1.xpose.msra.mxu0 0.0
  %287 = vmatprep.subr.mxu0 0.0
  %288 = vmatpush1.xpose.msra.mxu0 0.0
  %289 = vmatprep.subr.mxu0 0.0
  %290 = vmatpush1.xpose.msra.mxu0 0.0
  %291 = vmatprep.subr.mxu0 0.0
  %292 = vmatpush1.xpose.msra.mxu0 0.0
  %293 = vmatprep.subr.mxu0 0.0
  %294 = vmatpush1.xpose.msra.mxu0 0.0
  %295 = vmatprep.subr.mxu0 0.0
  %296 = vmatpush1.xpose.msra.mxu0 0.0
  %297 = vmatprep.subr.mxu0 0.0
  %298 = vmatpush1.xpose.msra.mxu0 0.0
  %299 = vmatprep.subr.mxu0 0.0
  %300 = vmatpush1.xpose.msra.mxu0 0.0
  %301 = vmatprep.subr.mxu0 0.0
  %302 = vmatpush1.xpose.msra.mxu0 0.0
  %303 = vmatprep.subr.mxu0 0.0
  %304 = vmatpush1.xpose.msra.mxu0 0.0
  %305 = vmatprep.subr.mxu0 0.0
  %306 = vmatpush1.xpose.msra.mxu0 0.0
  %307 = vmatprep.subr.mxu0 0.0
  %308 = vmatpush1.xpose.msra.mxu0 0.0
  %309 = vmatprep.subr.mxu0 0.0
  %310 = vmatpush1.xpose.msra.mxu0 0.0
  %311 = vmatprep.subr.mxu0 0.0
  %312 = vmatpush1.xpose.msra.mxu0 0.0
  %313 = vmatprep.subr.mxu0 0.0
  %314 = vmatpush1.xpose.msra.mxu0 0.0
  %315 = vmatprep.subr.mxu0 0.0
  %316 = vmatpush1.xpose.msra.mxu0 0.0
  %317 = vmatprep.subr.mxu0 0.0
  %318 = vmatpush1.xpose.msra.mxu0 0.0
  %319 = vmatprep.subr.mxu0 0.0
  %320 = vmatpush1.xpose.msra.mxu0 0.0
  %321 = vmatprep.subr.mxu0 0.0
  %322 = vmatpush1.xpose.msra.mxu0 0.0
  %323 = vmatprep.subr.mxu0 0.0
  %324 = vmatpush1.xpose.msra.mxu0 0.0
  %325 = vmatprep.subr.mxu0 0.0
  %326 = vmatpush1.xpose.msra.mxu0 0.0
  %327 = vmatprep.mubr.f32.mxu0 0.0
  %328 = vmatmul.mubr.f32.gmra.mrb[0].mxu0 %v259
  %v329 = vpop.f32.mrb[0].mxu0
  %v330 = vadd.f32 0.0, %v329
  %v331 = vpop.f32.mrb[0].mxu0
  %332 = vdwg.mxu0
  %v333 = vmul.f32 %v253, 0.35355338
  %v334 = vmul.f32 %v330, 0.35355338
  %v335 = vadd.f32 %v333, %v78
  %v336 = vadd.f32 %v334, %v79
  %v337 = vsel %vm181, %v335, -inf
  %338 = vmax.xlane.f32.xlu0 %v337
  %v339 = vpop.xlane.xlu0 %338
  %v340 = vsel %vm181, %v336, -inf
  %341 = vmax.xlane.f32.xlu0 %v340
  %v342 = vpop.xlane.xlu0 %341
  %v343 = vsub.f32 %v335, %v339
  %v344 = vsub.f32 %v336, %v342
  %v345 = vmul.f32 %v343, 1.442695
  %v346 = vpow.pop %v345
  %v347 = vmul.f32 %v344, 1.442695
  %v348 = vpow.pop %v347
  %v349 = vsel %vm181, %v346, 0.0
  %350 = vadd.xlane.f32.xlu0 %v349
  %v351 = vpop.xlane.xlu0 %350
  %v352 = vsel %vm181, %v348, 0.0
  %353 = vadd.xlane.f32.xlu0 %v352
  %v354 = vpop.xlane.xlu0 %353
  %v355 = vrcp.pop %v351
  %v356 = vrcp.pop %v354
  %v357 = vmul.f32 %v346, %v355
  %v358 = vmul.f32 %v348, %v356
  %359 = vrot.lane.b32.xlu0 %v165, 64
  %v360 = vpop.permute.xlu0 %359
  %v363 = vsel %vm181, %v357, 0
  %365 = vmatprep.subr.mxu0 0.0
  %366 = vmatpush1.msra.mxu0 %v360
  %367 = vmatprep.subr.mxu0 0.0
  %368 = vmatpush1.msra.mxu0 0.0
  %369 = vmatprep.subr.mxu0 0.0
  %370 = vmatpush1.msra.mxu0 0.0
  %371 = vmatprep.subr.mxu0 0.0
  %372 = vmatpush1.msra.mxu0 0.0
  %373 = vmatprep.subr.mxu0 0.0
  %374 = vmatpush1.msra.mxu0 0.0
  %375 = vmatprep.subr.mxu0 0.0
  %376 = vmatpush1.msra.mxu0 0.0
  %377 = vmatprep.subr.mxu0 0.0
  %378 = vmatpush1.msra.mxu0 0.0
  %379 = vmatprep.subr.mxu0 0.0
  %380 = vmatpush1.msra.mxu0 0.0
  %381 = vmatprep.subr.mxu0 0.0
  %382 = vmatpush1.msra.mxu0 0.0
  %383 = vmatprep.subr.mxu0 0.0
  %384 = vmatpush1.msra.mxu0 0.0
  %385 = vmatprep.subr.mxu0 0.0
  %386 = vmatpush1.msra.mxu0 0.0
  %387 = vmatprep.subr.mxu0 0.0
  %388 = vmatpush1.msra.mxu0 0.0
  %389 = vmatprep.subr.mxu0 0.0
  %390 = vmatpush1.msra.mxu0 0.0
  %391 = vmatprep.subr.mxu0 0.0
  %392 = vmatpush1.msra.mxu0 0.0
  %393 = vmatprep.subr.mxu0 0.0
  %394 = vmatpush1.msra.mxu0 0.0
  %395 = vmatprep.subr.mxu0 0.0
  %396 = vmatpush1.msra.mxu0 0.0
  %397 = vmatprep.subr.mxu0 0.0
  %398 = vmatpush1.msra.mxu0 0.0
  %399 = vmatprep.subr.mxu0 0.0
  %400 = vmatpush1.msra.mxu0 0.0
  %401 = vmatprep.subr.mxu0 0.0
  %402 = vmatpush1.msra.mxu0 0.0
  %403 = vmatprep.subr.mxu0 0.0
  %404 = vmatpush1.msra.mxu0 0.0
  %405 = vmatprep.subr.mxu0 0.0
  %406 = vmatpush1.msra.mxu0 0.0
  %407 = vmatprep.subr.mxu0 0.0
  %408 = vmatpush1.msra.mxu0 0.0
  %409 = vmatprep.subr.mxu0 0.0
  %410 = vmatpush1.msra.mxu0 0.0
  %411 = vmatprep.subr.mxu0 0.0
  %412 = vmatpush1.msra.mxu0 0.0
  %413 = vmatprep.subr.mxu0 0.0
  %414 = vmatpush1.msra.mxu0 0.0
  %415 = vmatprep.subr.mxu0 0.0
  %416 = vmatpush1.msra.mxu0 0.0
  %417 = vmatprep.subr.mxu0 0.0
  %418 = vmatpush1.msra.mxu0 0.0
  %419 = vmatprep.subr.mxu0 0.0
  %420 = vmatpush1.msra.mxu0 0.0
  %421 = vmatprep.subr.mxu0 0.0
  %422 = vmatpush1.msra.mxu0 0.0
  %423 = vmatprep.subr.mxu0 0.0
  %424 = vmatpush1.msra.mxu0 0.0
  %425 = vmatprep.subr.mxu0 0.0
  %426 = vmatpush1.msra.mxu0 0.0
  %427 = vmatprep.subr.mxu0 0.0
  %428 = vmatpush1.msra.mxu0 0.0
  %429 = vmatprep.mubr.f32.mxu0 0.0
  %430 = vmatmul.mubr.f32.gmra.mrb[0].mxu0 %v363
  %v431 = vpop.f32.mrb[0].mxu0
  %v432 = vadd.f32 0.0, %v431
  %v433 = vpop.f32.mrb[0].mxu0
  %434 = vdwg.mxu0
  %435 = vrot.lane.b32.xlu0 %v170, 64
  %v436 = vpop.permute.xlu0 %435
  %v439 = vsel %vm181, %v358, 0
  %441 = vmatprep.subr.mxu0 0.0
  %442 = vmatpush1.msra.mxu0 %v436
  %443 = vmatprep.subr.mxu0 0.0
  %444 = vmatpush1.msra.mxu0 0.0
  %445 = vmatprep.subr.mxu0 0.0
  %446 = vmatpush1.msra.mxu0 0.0
  %447 = vmatprep.subr.mxu0 0.0
  %448 = vmatpush1.msra.mxu0 0.0
  %449 = vmatprep.subr.mxu0 0.0
  %450 = vmatpush1.msra.mxu0 0.0
  %451 = vmatprep.subr.mxu0 0.0
  %452 = vmatpush1.msra.mxu0 0.0
  %453 = vmatprep.subr.mxu0 0.0
  %454 = vmatpush1.msra.mxu0 0.0
  %455 = vmatprep.subr.mxu0 0.0
  %456 = vmatpush1.msra.mxu0 0.0
  %457 = vmatprep.subr.mxu0 0.0
  %458 = vmatpush1.msra.mxu0 0.0
  %459 = vmatprep.subr.mxu0 0.0
  %460 = vmatpush1.msra.mxu0 0.0
  %461 = vmatprep.subr.mxu0 0.0
  %462 = vmatpush1.msra.mxu0 0.0
  %463 = vmatprep.subr.mxu0 0.0
  %464 = vmatpush1.msra.mxu0 0.0
  %465 = vmatprep.subr.mxu0 0.0
  %466 = vmatpush1.msra.mxu0 0.0
  %467 = vmatprep.subr.mxu0 0.0
  %468 = vmatpush1.msra.mxu0 0.0
  %469 = vmatprep.subr.mxu0 0.0
  %470 = vmatpush1.msra.mxu0 0.0
  %471 = vmatprep.subr.mxu0 0.0
  %472 = vmatpush1.msra.mxu0 0.0
  %473 = vmatprep.subr.mxu0 0.0
  %474 = vmatpush1.msra.mxu0 0.0
  %475 = vmatprep.subr.mxu0 0.0
  %476 = vmatpush1.msra.mxu0 0.0
  %477 = vmatprep.subr.mxu0 0.0
  %478 = vmatpush1.msra.mxu0 0.0
  %479 = vmatprep.subr.mxu0 0.0
  %480 = vmatpush1.msra.mxu0 0.0
  %481 = vmatprep.subr.mxu0 0.0
  %482 = vmatpush1.msra.mxu0 0.0
  %483 = vmatprep.subr.mxu0 0.0
  %484 = vmatpush1.msra.mxu0 0.0
  %485 = vmatprep.subr.mxu0 0.0
  %486 = vmatpush1.msra.mxu0 0.0
  %487 = vmatprep.subr.mxu0 0.0
  %488 = vmatpush1.msra.mxu0 0.0
  %489 = vmatprep.subr.mxu0 0.0
  %490 = vmatpush1.msra.mxu0 0.0
  %491 = vmatprep.subr.mxu0 0.0
  %492 = vmatpush1.msra.mxu0 0.0
  %493 = vmatprep.subr.mxu0 0.0
  %494 = vmatpush1.msra.mxu0 0.0
  %495 = vmatprep.subr.mxu0 0.0
  %496 = vmatpush1.msra.mxu0 0.0
  %497 = vmatprep.subr.mxu0 0.0
  %498 = vmatpush1.msra.mxu0 0.0
  %499 = vmatprep.subr.mxu0 0.0
  %500 = vmatpush1.msra.mxu0 0.0
  %501 = vmatprep.subr.mxu0 0.0
  %502 = vmatpush1.msra.mxu0 0.0
  %503 = vmatprep.subr.mxu0 0.0
  %504 = vmatpush1.msra.mxu0 0.0
  %505 = vmatprep.mubr.f32.mxu0 0.0
  %506 = vmatmul.mubr.f32.gmra.mrb[0].mxu0 %v439
  %v507 = vpop.f32.mrb[0].mxu0
  %v508 = vadd.f32 0.0, %v507
  %v509 = vpop.f32.mrb[0].mxu0
  %510 = vdwg.mxu0
  %511 = vrot.lane.b32.xlu0 %v165, 120
  %v512 = vpop.permute.xlu0 %511
  %513 = vrot.lane.b32.xlu0 %v165, 88
  %v514 = vpop.permute.xlu0 %513
  %v515 = vsel %vm181, %v512, 0
  %v517 = vsel %vm181, %v514, 0
  %519 = vmatprep.subr.mxu0 0.0
  %520 = vmatpush1.xpose.msra.mxu0 %v517
  %521 = vmatprep.subr.mxu0 0.0
  %522 = vmatpush1.xpose.msra.mxu0 0.0
  %523 = vmatprep.subr.mxu0 0.0
  %524 = vmatpush1.xpose.msra.mxu0 0.0
  %525 = vmatprep.subr.mxu0 0.0
  %526 = vmatpush1.xpose.msra.mxu0 0.0
  %527 = vmatprep.subr.mxu0 0.0
  %528 = vmatpush1.xpose.msra.mxu0 0.0
  %529 = vmatprep.subr.mxu0 0.0
  %530 = vmatpush1.xpose.msra.mxu0 0.0
  %531 = vmatprep.subr.mxu0 0.0
  %532 = vmatpush1.xpose.msra.mxu0 0.0
  %533 = vmatprep.subr.mxu0 0.0
  %534 = vmatpush1.xpose.msra.mxu0 0.0
  %535 = vmatprep.subr.mxu0 0.0
  %536 = vmatpush1.xpose.msra.mxu0 0.0
  %537 = vmatprep.subr.mxu0 0.0
  %538 = vmatpush1.xpose.msra.mxu0 0.0
  %539 = vmatprep.subr.mxu0 0.0
  %540 = vmatpush1.xpose.msra.mxu0 0.0
  %541 = vmatprep.subr.mxu0 0.0
  %542 = vmatpush1.xpose.msra.mxu0 0.0
  %543 = vmatprep.subr.mxu0 0.0
  %544 = vmatpush1.xpose.msra.mxu0 0.0
  %545 = vmatprep.subr.mxu0 0.0
  %546 = vmatpush1.xpose.msra.mxu0 0.0
  %547 = vmatprep.subr.mxu0 0.0
  %548 = vmatpush1.xpose.msra.mxu0 0.0
  %549 = vmatprep.subr.mxu0 0.0
  %550 = vmatpush1.xpose.msra.mxu0 0.0
  %551 = vmatprep.subr.mxu0 0.0
  %552 = vmatpush1.xpose.msra.mxu0 0.0
  %553 = vmatprep.subr.mxu0 0.0
  %554 = vmatpush1.xpose.msra.mxu0 0.0
  %555 = vmatprep.subr.mxu0 0.0
  %556 = vmatpush1.xpose.msra.mxu0 0.0
  %557 = vmatprep.subr.mxu0 0.0
  %558 = vmatpush1.xpose.msra.mxu0 0.0
  %559 = vmatprep.subr.mxu0 0.0
  %560 = vmatpush1.xpose.msra.mxu0 0.0
  %561 = vmatprep.subr.mxu0 0.0
  %562 = vmatpush1.xpose.msra.mxu0 0.0
  %563 = vmatprep.subr.mxu0 0.0
  %564 = vmatpush1.xpose.msra.mxu0 0.0
  %565 = vmatprep.subr.mxu0 0.0
  %566 = vmatpush1.xpose.msra.mxu0 0.0
  %567 = vmatprep.subr.mxu0 0.0
  %568 = vmatpush1.xpose.msra.mxu0 0.0
  %569 = vmatprep.subr.mxu0 0.0
  %570 = vmatpush1.xpose.msra.mxu0 0.0
  %571 = vmatprep.subr.mxu0 0.0
  %572 = vmatpush1.xpose.msra.mxu0 0.0
  %573 = vmatprep.subr.mxu0 0.0
  %574 = vmatpush1.xpose.msra.mxu0 0.0
  %575 = vmatprep.subr.mxu0 0.0
  %576 = vmatpush1.xpose.msra.mxu0 0.0
  %577 = vmatprep.subr.mxu0 0.0
  %578 = vmatpush1.xpose.msra.mxu0 0.0
  %579 = vmatprep.subr.mxu0 0.0
  %580 = vmatpush1.xpose.msra.mxu0 0.0
  %581 = vmatprep.subr.mxu0 0.0
  %582 = vmatpush1.xpose.msra.mxu0 0.0
  %583 = vmatprep.mubr.f32.mxu0 0.0
  %584 = vmatmul.mubr.f32.gmra.mrb[0].mxu0 %v515
  %v585 = vpop.f32.mrb[0].mxu0
  %v586 = vadd.f32 0.0, %v585
  %v587 = vpop.f32.mrb[0].mxu0
  %588 = vdwg.mxu0
  %589 = vrot.lane.b32.xlu0 %v170, 120
  %v590 = vpop.permute.xlu0 %589
  %591 = vrot.lane.b32.xlu0 %v170, 88
  %v592 = vpop.permute.xlu0 %591
  %v593 = vsel %vm181, %v590, 0
  %v595 = vsel %vm181, %v592, 0
  %597 = vmatprep.subr.mxu0 0.0
  %598 = vmatpush1.xpose.msra.mxu0 %v595
  %599 = vmatprep.subr.mxu0 0.0
  %600 = vmatpush1.xpose.msra.mxu0 0.0
  %601 = vmatprep.subr.mxu0 0.0
  %602 = vmatpush1.xpose.msra.mxu0 0.0
  %603 = vmatprep.subr.mxu0 0.0
  %604 = vmatpush1.xpose.msra.mxu0 0.0
  %605 = vmatprep.subr.mxu0 0.0
  %606 = vmatpush1.xpose.msra.mxu0 0.0
  %607 = vmatprep.subr.mxu0 0.0
  %608 = vmatpush1.xpose.msra.mxu0 0.0
  %609 = vmatprep.subr.mxu0 0.0
  %610 = vmatpush1.xpose.msra.mxu0 0.0
  %611 = vmatprep.subr.mxu0 0.0
  %612 = vmatpush1.xpose.msra.mxu0 0.0
  %613 = vmatprep.subr.mxu0 0.0
  %614 = vmatpush1.xpose.msra.mxu0 0.0
  %615 = vmatprep.subr.mxu0 0.0
  %616 = vmatpush1.xpose.msra.mxu0 0.0
  %617 = vmatprep.subr.mxu0 0.0
  %618 = vmatpush1.xpose.msra.mxu0 0.0
  %619 = vmatprep.subr.mxu0 0.0
  %620 = vmatpush1.xpose.msra.mxu0 0.0
  %621 = vmatprep.subr.mxu0 0.0
  %622 = vmatpush1.xpose.msra.mxu0 0.0
  %623 = vmatprep.subr.mxu0 0.0
  %624 = vmatpush1.xpose.msra.mxu0 0.0
  %625 = vmatprep.subr.mxu0 0.0
  %626 = vmatpush1.xpose.msra.mxu0 0.0
  %627 = vmatprep.subr.mxu0 0.0
  %628 = vmatpush1.xpose.msra.mxu0 0.0
  %629 = vmatprep.subr.mxu0 0.0
  %630 = vmatpush1.xpose.msra.mxu0 0.0
  %631 = vmatprep.subr.mxu0 0.0
  %632 = vmatpush1.xpose.msra.mxu0 0.0
  %633 = vmatprep.subr.mxu0 0.0
  %634 = vmatpush1.xpose.msra.mxu0 0.0
  %635 = vmatprep.subr.mxu0 0.0
  %636 = vmatpush1.xpose.msra.mxu0 0.0
  %637 = vmatprep.subr.mxu0 0.0
  %638 = vmatpush1.xpose.msra.mxu0 0.0
  %639 = vmatprep.subr.mxu0 0.0
  %640 = vmatpush1.xpose.msra.mxu0 0.0
  %641 = vmatprep.subr.mxu0 0.0
  %642 = vmatpush1.xpose.msra.mxu0 0.0
  %643 = vmatprep.subr.mxu0 0.0
  %644 = vmatpush1.xpose.msra.mxu0 0.0
  %645 = vmatprep.subr.mxu0 0.0
  %646 = vmatpush1.xpose.msra.mxu0 0.0
  %647 = vmatprep.subr.mxu0 0.0
  %648 = vmatpush1.xpose.msra.mxu0 0.0
  %649 = vmatprep.subr.mxu0 0.0
  %650 = vmatpush1.xpose.msra.mxu0 0.0
  %651 = vmatprep.subr.mxu0 0.0
  %652 = vmatpush1.xpose.msra.mxu0 0.0
  %653 = vmatprep.subr.mxu0 0.0
  %654 = vmatpush1.xpose.msra.mxu0 0.0
  %655 = vmatprep.subr.mxu0 0.0
  %656 = vmatpush1.xpose.msra.mxu0 0.0
  %657 = vmatprep.subr.mxu0 0.0
  %658 = vmatpush1.xpose.msra.mxu0 0.0
  %659 = vmatprep.subr.mxu0 0.0
  %660 = vmatpush1.xpose.msra.mxu0 0.0
  %661 = vmatprep.mubr.f32.mxu0 0.0
  %662 = vmatmul.mubr.f32.gmra.mrb[0].mxu0 %v593
  %v663 = vpop.f32.mrb[0].mxu0
  %v664 = vadd.f32 0.0, %v663
  %v665 = vpop.f32.mrb[0].mxu0
  %666 = vdwg.mxu0
  %v667 = vmul.f32 %v586, 0.35355338
  %v668 = vmul.f32 %v664, 0.35355338
  %v669 = vadd.f32 %v667, %v78
  %v670 = vadd.f32 %v668, %v79
  %v671 = vsel %vm181, %v669, -inf
  %672 = vmax.xlane.f32.xlu0 %v671
  %v673 = vpop.xlane.xlu0 %672
  %v674 = vsel %vm181, %v670, -inf
  %675 = vmax.xlane.f32.xlu0 %v674
  %v676 = vpop.xlane.xlu0 %675
  %v677 = vsub.f32 %v669, %v673
  %v678 = vsub.f32 %v670, %v676
  %v679 = vmul.f32 %v677, 1.442695
  %v680 = vpow.pop %v679
  %v681 = vmul.f32 %v678, 1.442695
  %v682 = vpow.pop %v681
  %v683 = vsel %vm181, %v680, 0.0
  %684 = vadd.xlane.f32.xlu0 %v683
  %v685 = vpop.xlane.xlu0 %684
  %v686 = vsel %vm181, %v682, 0.0
  %687 = vadd.xlane.f32.xlu0 %v686
  %v688 = vpop.xlane.xlu0 %687
  %v689 = vrcp.pop %v685
  %v690 = vrcp.pop %v688
  %v691 = vmul.f32 %v680, %v689
  %v692 = vmul.f32 %v682, %v690
  %693 = vrot.lane.b32.xlu0 %v165, 56
  %v694 = vpop.permute.xlu0 %693
  %v697 = vsel %vm181, %v691, 0
  %699 = vmatprep.subr.mxu0 0.0
  %700 = vmatpush1.msra.mxu0 %v694
  %701 = vmatprep.subr.mxu0 0.0
  %702 = vmatpush1.msra.mxu0 0.0
  %703 = vmatprep.subr.mxu0 0.0
  %704 = vmatpush1.msra.mxu0 0.0
  %705 = vmatprep.subr.mxu0 0.0
  %706 = vmatpush1.msra.mxu0 0.0
  %707 = vmatprep.subr.mxu0 0.0
  %708 = vmatpush1.msra.mxu0 0.0
  %709 = vmatprep.subr.mxu0 0.0
  %710 = vmatpush1.msra.mxu0 0.0
  %711 = vmatprep.subr.mxu0 0.0
  %712 = vmatpush1.msra.mxu0 0.0
  %713 = vmatprep.subr.mxu0 0.0
  %714 = vmatpush1.msra.mxu0 0.0
  %715 = vmatprep.subr.mxu0 0.0
  %716 = vmatpush1.msra.mxu0 0.0
  %717 = vmatprep.subr.mxu0 0.0
  %718 = vmatpush1.msra.mxu0 0.0
  %719 = vmatprep.subr.mxu0 0.0
  %720 = vmatpush1.msra.mxu0 0.0
  %721 = vmatprep.subr.mxu0 0.0
  %722 = vmatpush1.msra.mxu0 0.0
  %723 = vmatprep.subr.mxu0 0.0
  %724 = vmatpush1.msra.mxu0 0.0
  %725 = vmatprep.subr.mxu0 0.0
  %726 = vmatpush1.msra.mxu0 0.0
  %727 = vmatprep.subr.mxu0 0.0
  %728 = vmatpush1.msra.mxu0 0.0
  %729 = vmatprep.subr.mxu0 0.0
  %730 = vmatpush1.msra.mxu0 0.0
  %731 = vmatprep.subr.mxu0 0.0
  %732 = vmatpush1.msra.mxu0 0.0
  %733 = vmatprep.subr.mxu0 0.0
  %734 = vmatpush1.msra.mxu0 0.0
  %735 = vmatprep.subr.mxu0 0.0
  %736 = vmatpush1.msra.mxu0 0.0
  %737 = vmatprep.subr.mxu0 0.0
  %738 = vmatpush1.msra.mxu0 0.0
  %739 = vmatprep.subr.mxu0 0.0
  %740 = vmatpush1.msra.mxu0 0.0
  %741 = vmatprep.subr.mxu0 0.0
  %742 = vmatpush1.msra.mxu0 0.0
  %743 = vmatprep.subr.mxu0 0.0
  %744 = vmatpush1.msra.mxu0 0.0
  %745 = vmatprep.subr.mxu0 0.0
  %746 = vmatpush1.msra.mxu0 0.0
  %747 = vmatprep.subr.mxu0 0.0
  %748 = vmatpush1.msra.mxu0 0.0
  %749 = vmatprep.subr.mxu0 0.0
  %750 = vmatpush1.msra.mxu0 0.0
  %751 = vmatprep.subr.mxu0 0.0
  %752 = vmatpush1.msra.mxu0 0.0
  %753 = vmatprep.subr.mxu0 0.0
  %754 = vmatpush1.msra.mxu0 0.0
  %755 = vmatprep.subr.mxu0 0.0
  %756 = vmatpush1.msra.mxu0 0.0
  %757 = vmatprep.subr.mxu0 0.0
  %758 = vmatpush1.msra.mxu0 0.0
  %759 = vmatprep.subr.mxu0 0.0
  %760 = vmatpush1.msra.mxu0 0.0
  %761 = vmatprep.subr.mxu0 0.0
  %762 = vmatpush1.msra.mxu0 0.0
  %763 = vmatprep.mubr.f32.mxu0 0.0
  %764 = vmatmul.mubr.f32.gmra.mrb[0].mxu0 %v697
  %v765 = vpop.f32.mrb[0].mxu0
  %v766 = vadd.f32 0.0, %v765
  %v767 = vpop.f32.mrb[0].mxu0
  %768 = vdwg.mxu0
  %769 = vrot.lane.b32.xlu0 %v170, 56
  %v770 = vpop.permute.xlu0 %769
  %v773 = vsel %vm181, %v692, 0
  %775 = vmatprep.subr.mxu0 0.0
  %776 = vmatpush1.msra.mxu0 %v770
  %777 = vmatprep.subr.mxu0 0.0
  %778 = vmatpush1.msra.mxu0 0.0
  %779 = vmatprep.subr.mxu0 0.0
  %780 = vmatpush1.msra.mxu0 0.0
  %781 = vmatprep.subr.mxu0 0.0
  %782 = vmatpush1.msra.mxu0 0.0
  %783 = vmatprep.subr.mxu0 0.0
  %784 = vmatpush1.msra.mxu0 0.0
  %785 = vmatprep.subr.mxu0 0.0
  %786 = vmatpush1.msra.mxu0 0.0
  %787 = vmatprep.subr.mxu0 0.0
  %788 = vmatpush1.msra.mxu0 0.0
  %789 = vmatprep.subr.mxu0 0.0
  %790 = vmatpush1.msra.mxu0 0.0
  %791 = vmatprep.subr.mxu0 0.0
  %792 = vmatpush1.msra.mxu0 0.0
  %793 = vmatprep.subr.mxu0 0.0
  %794 = vmatpush1.msra.mxu0 0.0
  %795 = vmatprep.subr.mxu0 0.0
  %796 = vmatpush1.msra.mxu0 0.0
  %797 = vmatprep.subr.mxu0 0.0
  %798 = vmatpush1.msra.mxu0 0.0
  %799 = vmatprep.subr.mxu0 0.0
  %800 = vmatpush1.msra.mxu0 0.0
  %801 = vmatprep.subr.mxu0 0.0
  %802 = vmatpush1.msra.mxu0 0.0
  %803 = vmatprep.subr.mxu0 0.0
  %804 = vmatpush1.msra.mxu0 0.0
  %805 = vmatprep.subr.mxu0 0.0
  %806 = vmatpush1.msra.mxu0 0.0
  %807 = vmatprep.subr.mxu0 0.0
  %808 = vmatpush1.msra.mxu0 0.0
  %809 = vmatprep.subr.mxu0 0.0
  %810 = vmatpush1.msra.mxu0 0.0
  %811 = vmatprep.subr.mxu0 0.0
  %812 = vmatpush1.msra.mxu0 0.0
  %813 = vmatprep.subr.mxu0 0.0
  %814 = vmatpush1.msra.mxu0 0.0
  %815 = vmatprep.subr.mxu0 0.0
  %816 = vmatpush1.msra.mxu0 0.0
  %817 = vmatprep.subr.mxu0 0.0
  %818 = vmatpush1.msra.mxu0 0.0
  %819 = vmatprep.subr.mxu0 0.0
  %820 = vmatpush1.msra.mxu0 0.0
  %821 = vmatprep.subr.mxu0 0.0
  %822 = vmatpush1.msra.mxu0 0.0
  %823 = vmatprep.subr.mxu0 0.0
  %824 = vmatpush1.msra.mxu0 0.0
  %825 = vmatprep.subr.mxu0 0.0
  %826 = vmatpush1.msra.mxu0 0.0
  %827 = vmatprep.subr.mxu0 0.0
  %828 = vmatpush1.msra.mxu0 0.0
  %829 = vmatprep.subr.mxu0 0.0
  %830 = vmatpush1.msra.mxu0 0.0
  %831 = vmatprep.subr.mxu0 0.0
  %832 = vmatpush1.msra.mxu0 0.0
  %833 = vmatprep.subr.mxu0 0.0
  %834 = vmatpush1.msra.mxu0 0.0
  %835 = vmatprep.subr.mxu0 0.0
  %836 = vmatpush1.msra.mxu0 0.0
  %837 = vmatprep.subr.mxu0 0.0
  %838 = vmatpush1.msra.mxu0 0.0
  %839 = vmatprep.mubr.f32.mxu0 0.0
  %840 = vmatmul.mubr.f32.gmra.mrb[0].mxu0 %v773
  %v841 = vpop.f32.mrb[0].mxu0
  %v842 = vadd.f32 0.0, %v841
  %v843 = vpop.f32.mrb[0].mxu0
  %844 = vdwg.mxu0
  %v846 = vsel %vm181, %v766, 0
  %v849 = vsel %vm181, %v842, 0
  %851 = vmatprep.subr.mxu0 0.0
  %852 = vmatpush1.msra.mxu0 %v174
  %853 = vmatprep.subr.mxu0 0.0
  %854 = vmatpush1.msra.mxu0 0.0
  %855 = vmatprep.subr.mxu0 0.0
  %856 = vmatpush1.msra.mxu0 0.0
  %857 = vmatprep.subr.mxu0 0.0
  %858 = vmatpush1.msra.mxu0 0.0
  %859 = vmatprep.subr.mxu0 0.0
  %860 = vmatpush1.msra.mxu0 0.0
  %861 = vmatprep.subr.mxu0 0.0
  %862 = vmatpush1.msra.mxu0 0.0
  %863 = vmatprep.subr.mxu0 0.0
  %864 = vmatpush1.msra.mxu0 0.0
  %865 = vmatprep.subr.mxu0 0.0
  %866 = vmatpush1.msra.mxu0 0.0
  %867 = vmatprep.subr.mxu0 0.0
  %868 = vmatpush1.msra.mxu0 0.0
  %869 = vmatprep.subr.mxu0 0.0
  %870 = vmatpush1.msra.mxu0 0.0
  %871 = vmatprep.subr.mxu0 0.0
  %872 = vmatpush1.msra.mxu0 0.0
  %873 = vmatprep.subr.mxu0 0.0
  %874 = vmatpush1.msra.mxu0 0.0
  %875 = vmatprep.subr.mxu0 0.0
  %876 = vmatpush1.msra.mxu0 0.0
  %877 = vmatprep.subr.mxu0 0.0
  %878 = vmatpush1.msra.mxu0 0.0
  %879 = vmatprep.subr.mxu0 0.0
  %880 = vmatpush1.msra.mxu0 0.0
  %881 = vmatprep.subr.mxu0 0.0
  %882 = vmatpush1.msra.mxu0 0.0
  %883 = vmatprep.subr.mxu0 0.0
  %884 = vmatpush1.msra.mxu0 0.0
  %885 = vmatprep.subr.mxu0 0.0
  %886 = vmatpush1.msra.mxu0 0.0
  %887 = vmatprep.subr.mxu0 0.0
  %888 = vmatpush1.msra.mxu0 0.0
  %889 = vmatprep.subr.mxu0 0.0
  %890 = vmatpush1.msra.mxu0 0.0
  %891 = vmatprep.subr.mxu0 0.0
  %892 = vmatpush1.msra.mxu0 0.0
  %893 = vmatprep.subr.mxu0 0.0
  %894 = vmatpush1.msra.mxu0 0.0
  %895 = vmatprep.subr.mxu0 0.0
  %896 = vmatpush1.msra.mxu0 0.0
  %897 = vmatprep.subr.mxu0 0.0
  %898 = vmatpush1.msra.mxu0 0.0
  %899 = vmatprep.subr.mxu0 0.0
  %900 = vmatpush1.msra.mxu0 0.0
  %901 = vmatprep.subr.mxu0 0.0
  %902 = vmatpush1.msra.mxu0 0.0
  %903 = vmatprep.subr.mxu0 0.0
  %904 = vmatpush1.msra.mxu0 0.0
  %905 = vmatprep.subr.mxu0 0.0
  %906 = vmatpush1.msra.mxu0 0.0
  %907 = vmatprep.subr.mxu0 0.0
  %908 = vmatpush1.msra.mxu0 0.0
  %909 = vmatprep.subr.mxu0 0.0
  %910 = vmatpush1.msra.mxu0 0.0
  %911 = vmatprep.subr.mxu0 0.0
  %912 = vmatpush1.msra.mxu0 0.0
  %913 = vmatprep.subr.mxu0 0.0
  %914 = vmatpush1.msra.mxu0 0.0
  %915 = vmatprep.mubr.f32.mxu0 0.0
  %916 = vmatmul.mubr.f32.gmra.mrb[0].mxu0 %v846
  %v917 = vpop.f32.mrb[0].mxu0
  %v918 = vadd.f32 0.0, %v917
  %v919 = vpop.f32.mrb[0].mxu0
  %920 = vmatprep.mubr.f32.mxu0 0.0
  %921 = vmatmul.mubr.f32.gmra.mrb[0].mxu0 %v849
  %v922 = vpop.f32.mrb[0].mxu0
  %v923 = vadd.f32 0.0, %v922
  %v924 = vpop.f32.mrb[0].mxu0
  %925 = vdwg.mxu0
  %v927 = vsel %vm181, %v432, 0
  %v930 = vsel %vm181, %v508, 0
  %932 = vmatprep.subr.mxu0 0.0
  %933 = vmatpush1.msra.mxu0 %v173
  %934 = vmatprep.subr.mxu0 0.0
  %935 = vmatpush1.msra.mxu0 0.0
  %936 = vmatprep.subr.mxu0 0.0
  %937 = vmatpush1.msra.mxu0 0.0
  %938 = vmatprep.subr.mxu0 0.0
  %939 = vmatpush1.msra.mxu0 0.0
  %940 = vmatprep.subr.mxu0 0.0
  %941 = vmatpush1.msra.mxu0 0.0
  %942 = vmatprep.subr.mxu0 0.0
  %943 = vmatpush1.msra.mxu0 0.0
  %944 = vmatprep.subr.mxu0 0.0
  %945 = vmatpush1.msra.mxu0 0.0
  %946 = vmatprep.subr.mxu0 0.0
  %947 = vmatpush1.msra.mxu0 0.0
  %948 = vmatprep.subr.mxu0 0.0
  %949 = vmatpush1.msra.mxu0 0.0
  %950 = vmatprep.subr.mxu0 0.0
  %951 = vmatpush1.msra.mxu0 0.0
  %952 = vmatprep.subr.mxu0 0.0
  %953 = vmatpush1.msra.mxu0 0.0
  %954 = vmatprep.subr.mxu0 0.0
  %955 = vmatpush1.msra.mxu0 0.0
  %956 = vmatprep.subr.mxu0 0.0
  %957 = vmatpush1.msra.mxu0 0.0
  %958 = vmatprep.subr.mxu0 0.0
  %959 = vmatpush1.msra.mxu0 0.0
  %960 = vmatprep.subr.mxu0 0.0
  %961 = vmatpush1.msra.mxu0 0.0
  %962 = vmatprep.subr.mxu0 0.0
  %963 = vmatpush1.msra.mxu0 0.0
  %964 = vmatprep.subr.mxu0 0.0
  %965 = vmatpush1.msra.mxu0 0.0
  %966 = vmatprep.subr.mxu0 0.0
  %967 = vmatpush1.msra.mxu0 0.0
  %968 = vmatprep.subr.mxu0 0.0
  %969 = vmatpush1.msra.mxu0 0.0
  %970 = vmatprep.subr.mxu0 0.0
  %971 = vmatpush1.msra.mxu0 0.0
  %972 = vmatprep.subr.mxu0 0.0
  %973 = vmatpush1.msra.mxu0 0.0
  %974 = vmatprep.subr.mxu0 0.0
  %975 = vmatpush1.msra.mxu0 0.0
  %976 = vmatprep.subr.mxu0 0.0
  %977 = vmatpush1.msra.mxu0 0.0
  %978 = vmatprep.subr.mxu0 0.0
  %979 = vmatpush1.msra.mxu0 0.0
  %980 = vmatprep.subr.mxu0 0.0
  %981 = vmatpush1.msra.mxu0 0.0
  %982 = vmatprep.subr.mxu0 0.0
  %983 = vmatpush1.msra.mxu0 0.0
  %984 = vmatprep.subr.mxu0 0.0
  %985 = vmatpush1.msra.mxu0 0.0
  %986 = vmatprep.subr.mxu0 0.0
  %987 = vmatpush1.msra.mxu0 0.0
  %988 = vmatprep.subr.mxu0 0.0
  %989 = vmatpush1.msra.mxu0 0.0
  %990 = vmatprep.subr.mxu0 0.0
  %991 = vmatpush1.msra.mxu0 0.0
  %992 = vmatprep.subr.mxu0 0.0
  %993 = vmatpush1.msra.mxu0 0.0
  %994 = vmatprep.subr.mxu0 0.0
  %995 = vmatpush1.msra.mxu0 0.0
  %996 = vmatprep.mubr.f32.mxu0 0.0
  %997 = vmatmul.mubr.f32.gmra.mrb[0].mxu0 %v927
  %v998 = vpop.f32.mrb[0].mxu0
  %v999 = vadd.f32 %v918, %v998
  %v1000 = vpop.f32.mrb[0].mxu0
  %1001 = vmatprep.mubr.f32.mxu0 0.0
  %1002 = vmatmul.mubr.f32.gmra.mrb[0].mxu0 %v930
  %v1003 = vpop.f32.mrb[0].mxu0
  %v1004 = vadd.f32 %v923, %v1003
  %v1005 = vpop.f32.mrb[0].mxu0
  %1006 = vdwg.mxu0
  %1007 = vrot.lane.b32.xlu0 %v165, 112
  %v1008 = vpop.permute.xlu0 %1007
  %1009 = vrot.lane.b32.xlu0 %v165, 80
  %v1010 = vpop.permute.xlu0 %1009
  %v1011 = vsel %vm181, %v1008, 0
  %v1013 = vsel %vm181, %v1010, 0
  %1015 = vmatprep.subr.mxu0 0.0
  %1016 = vmatpush1.xpose.msra.mxu0 %v1013
  %1017 = vmatprep.subr.mxu0 0.0
  %1018 = vmatpush1.xpose.msra.mxu0 0.0
  %1019 = vmatprep.subr.mxu0 0.0
  %1020 = vmatpush1.xpose.msra.mxu0 0.0
  %1021 = vmatprep.subr.mxu0 0.0
  %1022 = vmatpush1.xpose.msra.mxu0 0.0
  %1023 = vmatprep.subr.mxu0 0.0
  %1024 = vmatpush1.xpose.msra.mxu0 0.0
  %1025 = vmatprep.subr.mxu0 0.0
  %1026 = vmatpush1.xpose.msra.mxu0 0.0
  %1027 = vmatprep.subr.mxu0 0.0
  %1028 = vmatpush1.xpose.msra.mxu0 0.0
  %1029 = vmatprep.subr.mxu0 0.0
  %1030 = vmatpush1.xpose.msra.mxu0 0.0
  %1031 = vmatprep.subr.mxu0 0.0
  %1032 = vmatpush1.xpose.msra.mxu0 0.0
  %1033 = vmatprep.subr.mxu0 0.0
  %1034 = vmatpush1.xpose.msra.mxu0 0.0
  %1035 = vmatprep.subr.mxu0 0.0
  %1036 = vmatpush1.xpose.msra.mxu0 0.0
  %1037 = vmatprep.subr.mxu0 0.0
  %1038 = vmatpush1.xpose.msra.mxu0 0.0
  %1039 = vmatprep.subr.mxu0 0.0
  %1040 = vmatpush1.xpose.msra.mxu0 0.0
  %1041 = vmatprep.subr.mxu0 0.0
  %1042 = vmatpush1.xpose.msra.mxu0 0.0
  %1043 = vmatprep.subr.mxu0 0.0
  %1044 = vmatpush1.xpose.msra.mxu0 0.0
  %1045 = vmatprep.subr.mxu0 0.0
  %1046 = vmatpush1.xpose.msra.mxu0 0.0
  %1047 = vmatprep.subr.mxu0 0.0
  %1048 = vmatpush1.xpose.msra.mxu0 0.0
  %1049 = vmatprep.subr.mxu0 0.0
  %1050 = vmatpush1.xpose.msra.mxu0 0.0
  %1051 = vmatprep.subr.mxu0 0.0
  %1052 = vmatpush1.xpose.msra.mxu0 0.0
  %1053 = vmatprep.subr.mxu0 0.0
  %1054 = vmatpush1.xpose.msra.mxu0 0.0
  %1055 = vmatprep.subr.mxu0 0.0
  %1056 = vmatpush1.xpose.msra.mxu0 0.0
  %1057 = vmatprep.subr.mxu0 0.0
  %1058 = vmatpush1.xpose.msra.mxu0 0.0
  %1059 = vmatprep.subr.mxu0 0.0
  %1060 = vmatpush1.xpose.msra.mxu0 0.0
  %1061 = vmatprep.subr.mxu0 0.0
  %1062 = vmatpush1.xpose.msra.mxu0 0.0
  %1063 = vmatprep.subr.mxu0 0.0
  %1064 = vmatpush1.xpose.msra.mxu0 0.0
  %1065 = vmatprep.subr.mxu0 0.0
  %1066 = vmatpush1.xpose.msra.mxu0 0.0
  %1067 = vmatprep.subr.mxu0 0.0
  %1068 = vmatpush1.xpose.msra.mxu0 0.0
  %1069 = vmatprep.subr.mxu0 0.0
  %1070 = vmatpush1.xpose.msra.mxu0 0.0
  %1071 = vmatprep.subr.mxu0 0.0
  %1072 = vmatpush1.xpose.msra.mxu0 0.0
  %1073 = vmatprep.subr.mxu0 0.0
  %1074 = vmatpush1.xpose.msra.mxu0 0.0
  %1075 = vmatprep.subr.mxu0 0.0
  %1076 = vmatpush1.xpose.msra.mxu0 0.0
  %1077 = vmatprep.subr.mxu0 0.0
  %1078 = vmatpush1.xpose.msra.mxu0 0.0
  %1079 = vmatprep.mubr.f32.mxu0 0.0
  %1080 = vmatmul.mubr.f32.gmra.mrb[0].mxu0 %v1011
  %v1081 = vpop.f32.mrb[0].mxu0
  %v1082 = vadd.f32 0.0, %v1081
  %v1083 = vpop.f32.mrb[0].mxu0
  %1084 = vdwg.mxu0
  %1085 = vrot.lane.b32.xlu0 %v170, 112
  %v1086 = vpop.permute.xlu0 %1085
  %1087 = vrot.lane.b32.xlu0 %v170, 80
  %v1088 = vpop.permute.xlu0 %1087
  %v1089 = vsel %vm181, %v1086, 0
  %v1091 = vsel %vm181, %v1088, 0
  %1093 = vmatprep.subr.mxu0 0.0
  %1094 = vmatpush1.xpose.msra.mxu0 %v1091
  %1095 = vmatprep.subr.mxu0 0.0
  %1096 = vmatpush1.xpose.msra.mxu0 0.0
  %1097 = vmatprep.subr.mxu0 0.0
  %1098 = vmatpush1.xpose.msra.mxu0 0.0
  %1099 = vmatprep.subr.mxu0 0.0
  %1100 = vmatpush1.xpose.msra.mxu0 0.0
  %1101 = vmatprep.subr.mxu0 0.0
  %1102 = vmatpush1.xpose.msra.mxu0 0.0
  %1103 = vmatprep.subr.mxu0 0.0
  %1104 = vmatpush1.xpose.msra.mxu0 0.0
  %1105 = vmatprep.subr.mxu0 0.0
  %1106 = vmatpush1.xpose.msra.mxu0 0.0
  %1107 = vmatprep.subr.mxu0 0.0
  %1108 = vmatpush1.xpose.msra.mxu0 0.0
  %1109 = vmatprep.subr.mxu0 0.0
  %1110 = vmatpush1.xpose.msra.mxu0 0.0
  %1111 = vmatprep.subr.mxu0 0.0
  %1112 = vmatpush1.xpose.msra.mxu0 0.0
  %1113 = vmatprep.subr.mxu0 0.0
  %1114 = vmatpush1.xpose.msra.mxu0 0.0
  %1115 = vmatprep.subr.mxu0 0.0
  %1116 = vmatpush1.xpose.msra.mxu0 0.0
  %1117 = vmatprep.subr.mxu0 0.0
  %1118 = vmatpush1.xpose.msra.mxu0 0.0
  %1119 = vmatprep.subr.mxu0 0.0
  %1120 = vmatpush1.xpose.msra.mxu0 0.0
  %1121 = vmatprep.subr.mxu0 0.0
  %1122 = vmatpush1.xpose.msra.mxu0 0.0
  %1123 = vmatprep.subr.mxu0 0.0
  %1124 = vmatpush1.xpose.msra.mxu0 0.0
  %1125 = vmatprep.subr.mxu0 0.0
  %1126 = vmatpush1.xpose.msra.mxu0 0.0
  %1127 = vmatprep.subr.mxu0 0.0
  %1128 = vmatpush1.xpose.msra.mxu0 0.0
  %1129 = vmatprep.subr.mxu0 0.0
  %1130 = vmatpush1.xpose.msra.mxu0 0.0
  %1131 = vmatprep.subr.mxu0 0.0
  %1132 = vmatpush1.xpose.msra.mxu0 0.0
  %1133 = vmatprep.subr.mxu0 0.0
  %1134 = vmatpush1.xpose.msra.mxu0 0.0
  %1135 = vmatprep.subr.mxu0 0.0
  %1136 = vmatpush1.xpose.msra.mxu0 0.0
  %1137 = vmatprep.subr.mxu0 0.0
  %1138 = vmatpush1.xpose.msra.mxu0 0.0
  %1139 = vmatprep.subr.mxu0 0.0
  %1140 = vmatpush1.xpose.msra.mxu0 0.0
  %1141 = vmatprep.subr.mxu0 0.0
  %1142 = vmatpush1.xpose.msra.mxu0 0.0
  %1143 = vmatprep.subr.mxu0 0.0
  %1144 = vmatpush1.xpose.msra.mxu0 0.0
  %1145 = vmatprep.subr.mxu0 0.0
  %1146 = vmatpush1.xpose.msra.mxu0 0.0
  %1147 = vmatprep.subr.mxu0 0.0
  %1148 = vmatpush1.xpose.msra.mxu0 0.0
  %1149 = vmatprep.subr.mxu0 0.0
  %1150 = vmatpush1.xpose.msra.mxu0 0.0
  %1151 = vmatprep.subr.mxu0 0.0
  %1152 = vmatpush1.xpose.msra.mxu0 0.0
  %1153 = vmatprep.subr.mxu0 0.0
  %1154 = vmatpush1.xpose.msra.mxu0 0.0
  %1155 = vmatprep.subr.mxu0 0.0
  %1156 = vmatpush1.xpose.msra.mxu0 0.0
  %1157 = vmatprep.mubr.f32.mxu0 0.0
  %1158 = vmatmul.mubr.f32.gmra.mrb[0].mxu0 %v1089
  %v1159 = vpop.f32.mrb[0].mxu0
  %v1160 = vadd.f32 0.0, %v1159
  %v1161 = vpop.f32.mrb[0].mxu0
  %1162 = vdwg.mxu0
  %v1163 = vmul.f32 %v1082, 0.35355338
  %v1164 = vmul.f32 %v1160, 0.35355338
  %v1165 = vadd.f32 %v1163, %v78
  %v1166 = vadd.f32 %v1164, %v79
  %v1167 = vsel %vm181, %v1165, -inf
  %1168 = vmax.xlane.f32.xlu0 %v1167
  %v1169 = vpop.xlane.xlu0 %1168
  %v1170 = vsel %vm181, %v1166, -inf
  %1171 = vmax.xlane.f32.xlu0 %v1170
  %v1172 = vpop.xlane.xlu0 %1171
  %v1173 = vsub.f32 %v1165, %v1169
  %v1174 = vsub.f32 %v1166, %v1172
  %v1175 = vmul.f32 %v1173, 1.442695
  %v1176 = vpow.pop %v1175
  %v1177 = vmul.f32 %v1174, 1.442695
  %v1178 = vpow.pop %v1177
  %v1179 = vsel %vm181, %v1176, 0.0
  %1180 = vadd.xlane.f32.xlu0 %v1179
  %v1181 = vpop.xlane.xlu0 %1180
  %v1182 = vsel %vm181, %v1178, 0.0
  %1183 = vadd.xlane.f32.xlu0 %v1182
  %v1184 = vpop.xlane.xlu0 %1183
  %v1185 = vrcp.pop %v1181
  %v1186 = vrcp.pop %v1184
  %v1187 = vmul.f32 %v1176, %v1185
  %v1188 = vmul.f32 %v1178, %v1186
  %1189 = vrot.lane.b32.xlu0 %v165, 48
  %v1190 = vpop.permute.xlu0 %1189
  %v1193 = vsel %vm181, %v1187, 0
  %1195 = vmatprep.subr.mxu0 0.0
  %1196 = vmatpush1.msra.mxu0 %v1190
  %1197 = vmatprep.subr.mxu0 0.0
  %1198 = vmatpush1.msra.mxu0 0.0
  %1199 = vmatprep.subr.mxu0 0.0
  %1200 = vmatpush1.msra.mxu0 0.0
  %1201 = vmatprep.subr.mxu0 0.0
  %1202 = vmatpush1.msra.mxu0 0.0
  %1203 = vmatprep.subr.mxu0 0.0
  %1204 = vmatpush1.msra.mxu0 0.0
  %1205 = vmatprep.subr.mxu0 0.0
  %1206 = vmatpush1.msra.mxu0 0.0
  %1207 = vmatprep.subr.mxu0 0.0
  %1208 = vmatpush1.msra.mxu0 0.0
  %1209 = vmatprep.subr.mxu0 0.0
  %1210 = vmatpush1.msra.mxu0 0.0
  %1211 = vmatprep.subr.mxu0 0.0
  %1212 = vmatpush1.msra.mxu0 0.0
  %1213 = vmatprep.subr.mxu0 0.0
  %1214 = vmatpush1.msra.mxu0 0.0
  %1215 = vmatprep.subr.mxu0 0.0
  %1216 = vmatpush1.msra.mxu0 0.0
  %1217 = vmatprep.subr.mxu0 0.0
  %1218 = vmatpush1.msra.mxu0 0.0
  %1219 = vmatprep.subr.mxu0 0.0
  %1220 = vmatpush1.msra.mxu0 0.0
  %1221 = vmatprep.subr.mxu0 0.0
  %1222 = vmatpush1.msra.mxu0 0.0
  %1223 = vmatprep.subr.mxu0 0.0
  %1224 = vmatpush1.msra.mxu0 0.0
  %1225 = vmatprep.subr.mxu0 0.0
  %1226 = vmatpush1.msra.mxu0 0.0
  %1227 = vmatprep.subr.mxu0 0.0
  %1228 = vmatpush1.msra.mxu0 0.0
  %1229 = vmatprep.subr.mxu0 0.0
  %1230 = vmatpush1.msra.mxu0 0.0
  %1231 = vmatprep.subr.mxu0 0.0
  %1232 = vmatpush1.msra.mxu0 0.0
  %1233 = vmatprep.subr.mxu0 0.0
  %1234 = vmatpush1.msra.mxu0 0.0
  %1235 = vmatprep.subr.mxu0 0.0
  %1236 = vmatpush1.msra.mxu0 0.0
  %1237 = vmatprep.subr.mxu0 0.0
  %1238 = vmatpush1.msra.mxu0 0.0
  %1239 = vmatprep.subr.mxu0 0.0
  %1240 = vmatpush1.msra.mxu0 0.0
  %1241 = vmatprep.subr.mxu0 0.0
  %1242 = vmatpush1.msra.mxu0 0.0
  %1243 = vmatprep.subr.mxu0 0.0
  %1244 = vmatpush1.msra.mxu0 0.0
  %1245 = vmatprep.subr.mxu0 0.0
  %1246 = vmatpush1.msra.mxu0 0.0
  %1247 = vmatprep.subr.mxu0 0.0
  %1248 = vmatpush1.msra.mxu0 0.0
  %1249 = vmatprep.subr.mxu0 0.0
  %1250 = vmatpush1.msra.mxu0 0.0
  %1251 = vmatprep.subr.mxu0 0.0
  %1252 = vmatpush1.msra.mxu0 0.0
  %1253 = vmatprep.subr.mxu0 0.0
  %1254 = vmatpush1.msra.mxu0 0.0
  %1255 = vmatprep.subr.mxu0 0.0
  %1256 = vmatpush1.msra.mxu0 0.0
  %1257 = vmatprep.subr.mxu0 0.0
  %1258 = vmatpush1.msra.mxu0 0.0
  %1259 = vmatprep.mubr.f32.mxu0 0.0
  %1260 = vmatmul.mubr.f32.gmra.mrb[0].mxu0 %v1193
  %v1261 = vpop.f32.mrb[0].mxu0
  %v1262 = vadd.f32 0.0, %v1261
  %v1263 = vpop.f32.mrb[0].mxu0
  %1264 = vdwg.mxu0
  %1265 = vrot.lane.b32.xlu0 %v170, 48
  %v1266 = vpop.permute.xlu0 %1265
  %v1269 = vsel %vm181, %v1188, 0
  %1271 = vmatprep.subr.mxu0 0.0
  %1272 = vmatpush1.msra.mxu0 %v1266
  %1273 = vmatprep.subr.mxu0 0.0
  %1274 = vmatpush1.msra.mxu0 0.0
  %1275 = vmatprep.subr.mxu0 0.0
  %1276 = vmatpush1.msra.mxu0 0.0
  %1277 = vmatprep.subr.mxu0 0.0
  %1278 = vmatpush1.msra.mxu0 0.0
  %1279 = vmatprep.subr.mxu0 0.0
  %1280 = vmatpush1.msra.mxu0 0.0
  %1281 = vmatprep.subr.mxu0 0.0
  %1282 = vmatpush1.msra.mxu0 0.0
  %1283 = vmatprep.subr.mxu0 0.0
  %1284 = vmatpush1.msra.mxu0 0.0
  %1285 = vmatprep.subr.mxu0 0.0
  %1286 = vmatpush1.msra.mxu0 0.0
  %1287 = vmatprep.subr.mxu0 0.0
  %1288 = vmatpush1.msra.mxu0 0.0
  %1289 = vmatprep.subr.mxu0 0.0
  %1290 = vmatpush1.msra.mxu0 0.0
  %1291 = vmatprep.subr.mxu0 0.0
  %1292 = vmatpush1.msra.mxu0 0.0
  %1293 = vmatprep.subr.mxu0 0.0
  %1294 = vmatpush1.msra.mxu0 0.0
  %1295 = vmatprep.subr.mxu0 0.0
  %1296 = vmatpush1.msra.mxu0 0.0
  %1297 = vmatprep.subr.mxu0 0.0
  %1298 = vmatpush1.msra.mxu0 0.0
  %1299 = vmatprep.subr.mxu0 0.0
  %1300 = vmatpush1.msra.mxu0 0.0
  %1301 = vmatprep.subr.mxu0 0.0
  %1302 = vmatpush1.msra.mxu0 0.0
  %1303 = vmatprep.subr.mxu0 0.0
  %1304 = vmatpush1.msra.mxu0 0.0
  %1305 = vmatprep.subr.mxu0 0.0
  %1306 = vmatpush1.msra.mxu0 0.0
  %1307 = vmatprep.subr.mxu0 0.0
  %1308 = vmatpush1.msra.mxu0 0.0
  %1309 = vmatprep.subr.mxu0 0.0
  %1310 = vmatpush1.msra.mxu0 0.0
  %1311 = vmatprep.subr.mxu0 0.0
  %1312 = vmatpush1.msra.mxu0 0.0
  %1313 = vmatprep.subr.mxu0 0.0
  %1314 = vmatpush1.msra.mxu0 0.0
  %1315 = vmatprep.subr.mxu0 0.0
  %1316 = vmatpush1.msra.mxu0 0.0
  %1317 = vmatprep.subr.mxu0 0.0
  %1318 = vmatpush1.msra.mxu0 0.0
  %1319 = vmatprep.subr.mxu0 0.0
  %1320 = vmatpush1.msra.mxu0 0.0
  %1321 = vmatprep.subr.mxu0 0.0
  %1322 = vmatpush1.msra.mxu0 0.0
  %1323 = vmatprep.subr.mxu0 0.0
  %1324 = vmatpush1.msra.mxu0 0.0
  %1325 = vmatprep.subr.mxu0 0.0
  %1326 = vmatpush1.msra.mxu0 0.0
  %1327 = vmatprep.subr.mxu0 0.0
  %1328 = vmatpush1.msra.mxu0 0.0
  %1329 = vmatprep.subr.mxu0 0.0
  %1330 = vmatpush1.msra.mxu0 0.0
  %1331 = vmatprep.subr.mxu0 0.0
  %1332 = vmatpush1.msra.mxu0 0.0
  %1333 = vmatprep.subr.mxu0 0.0
  %1334 = vmatpush1.msra.mxu0 0.0
  %1335 = vmatprep.mubr.f32.mxu0 0.0
  %1336 = vmatmul.mubr.f32.gmra.mrb[0].mxu0 %v1269
  %v1337 = vpop.f32.mrb[0].mxu0
  %v1338 = vadd.f32 0.0, %v1337
  %v1339 = vpop.f32.mrb[0].mxu0
  %1340 = vdwg.mxu0
  %v1342 = vsel %vm181, %v1262, 0
  %v1345 = vsel %vm181, %v1338, 0
  %1347 = vmatprep.subr.mxu0 0.0
  %1348 = vmatpush1.msra.mxu0 %v175
  %1349 = vmatprep.subr.mxu0 0.0
  %1350 = vmatpush1.msra.mxu0 0.0
  %1351 = vmatprep.subr.mxu0 0.0
  %1352 = vmatpush1.msra.mxu0 0.0
  %1353 = vmatprep.subr.mxu0 0.0
  %1354 = vmatpush1.msra.mxu0 0.0
  %1355 = vmatprep.subr.mxu0 0.0
  %1356 = vmatpush1.msra.mxu0 0.0
  %1357 = vmatprep.subr.mxu0 0.0
  %1358 = vmatpush1.msra.mxu0 0.0
  %1359 = vmatprep.subr.mxu0 0.0
  %1360 = vmatpush1.msra.mxu0 0.0
  %1361 = vmatprep.subr.mxu0 0.0
  %1362 = vmatpush1.msra.mxu0 0.0
  %1363 = vmatprep.subr.mxu0 0.0
  %1364 = vmatpush1.msra.mxu0 0.0
  %1365 = vmatprep.subr.mxu0 0.0
  %1366 = vmatpush1.msra.mxu0 0.0
  %1367 = vmatprep.subr.mxu0 0.0
  %1368 = vmatpush1.msra.mxu0 0.0
  %1369 = vmatprep.subr.mxu0 0.0
  %1370 = vmatpush1.msra.mxu0 0.0
  %1371 = vmatprep.subr.mxu0 0.0
  %1372 = vmatpush1.msra.mxu0 0.0
  %1373 = vmatprep.subr.mxu0 0.0
  %1374 = vmatpush1.msra.mxu0 0.0
  %1375 = vmatprep.subr.mxu0 0.0
  %1376 = vmatpush1.msra.mxu0 0.0
  %1377 = vmatprep.subr.mxu0 0.0
  %1378 = vmatpush1.msra.mxu0 0.0
  %1379 = vmatprep.subr.mxu0 0.0
  %1380 = vmatpush1.msra.mxu0 0.0
  %1381 = vmatprep.subr.mxu0 0.0
  %1382 = vmatpush1.msra.mxu0 0.0
  %1383 = vmatprep.subr.mxu0 0.0
  %1384 = vmatpush1.msra.mxu0 0.0
  %1385 = vmatprep.subr.mxu0 0.0
  %1386 = vmatpush1.msra.mxu0 0.0
  %1387 = vmatprep.subr.mxu0 0.0
  %1388 = vmatpush1.msra.mxu0 0.0
  %1389 = vmatprep.subr.mxu0 0.0
  %1390 = vmatpush1.msra.mxu0 0.0
  %1391 = vmatprep.subr.mxu0 0.0
  %1392 = vmatpush1.msra.mxu0 0.0
  %1393 = vmatprep.subr.mxu0 0.0
  %1394 = vmatpush1.msra.mxu0 0.0
  %1395 = vmatprep.subr.mxu0 0.0
  %1396 = vmatpush1.msra.mxu0 0.0
  %1397 = vmatprep.subr.mxu0 0.0
  %1398 = vmatpush1.msra.mxu0 0.0
  %1399 = vmatprep.subr.mxu0 0.0
  %1400 = vmatpush1.msra.mxu0 0.0
  %1401 = vmatprep.subr.mxu0 0.0
  %1402 = vmatpush1.msra.mxu0 0.0
  %1403 = vmatprep.subr.mxu0 0.0
  %1404 = vmatpush1.msra.mxu0 0.0
  %1405 = vmatprep.subr.mxu0 0.0
  %1406 = vmatpush1.msra.mxu0 0.0
  %1407 = vmatprep.subr.mxu0 0.0
  %1408 = vmatpush1.msra.mxu0 0.0
  %1409 = vmatprep.subr.mxu0 0.0
  %1410 = vmatpush1.msra.mxu0 0.0
  %1411 = vmatprep.mubr.f32.mxu0 0.0
  %1412 = vmatmul.mubr.f32.gmra.mrb[0].mxu0 %v1342
  %v1413 = vpop.f32.mrb[0].mxu0
  %v1414 = vadd.f32 0.0, %v1413
  %v1415 = vpop.f32.mrb[0].mxu0
  %1416 = vmatprep.mubr.f32.mxu0 0.0
  %1417 = vmatmul.mubr.f32.gmra.mrb[0].mxu0 %v1345
  %v1418 = vpop.f32.mrb[0].mxu0
  %v1419 = vadd.f32 0.0, %v1418
  %v1420 = vpop.f32.mrb[0].mxu0
  %1421 = vdwg.mxu0
  %v1422 = vadd.f32 %v999, %v1414
  %v1423 = vadd.f32 %v1004, %v1419
  %1424 = vrot.lane.b32.xlu0 %v165, 104
  %v1425 = vpop.permute.xlu0 %1424
  %1426 = vrot.lane.b32.xlu0 %v165, 72
  %v1427 = vpop.permute.xlu0 %1426
  %v1428 = vsel %vm181, %v1425, 0
  %v1430 = vsel %vm181, %v1427, 0
  %1432 = vmatprep.subr.mxu0 0.0
  %1433 = vmatpush1.xpose.msra.mxu0 %v1430
  %1434 = vmatprep.subr.mxu0 0.0
  %1435 = vmatpush1.xpose.msra.mxu0 0.0
  %1436 = vmatprep.subr.mxu0 0.0
  %1437 = vmatpush1.xpose.msra.mxu0 0.0
  %1438 = vmatprep.subr.mxu0 0.0
  %1439 = vmatpush1.xpose.msra.mxu0 0.0
  %1440 = vmatprep.subr.mxu0 0.0
  %1441 = vmatpush1.xpose.msra.mxu0 0.0
  %1442 = vmatprep.subr.mxu0 0.0
  %1443 = vmatpush1.xpose.msra.mxu0 0.0
  %1444 = vmatprep.subr.mxu0 0.0
  %1445 = vmatpush1.xpose.msra.mxu0 0.0
  %1446 = vmatprep.subr.mxu0 0.0
  %1447 = vmatpush1.xpose.msra.mxu0 0.0
  %1448 = vmatprep.subr.mxu0 0.0
  %1449 = vmatpush1.xpose.msra.mxu0 0.0
  %1450 = vmatprep.subr.mxu0 0.0
  %1451 = vmatpush1.xpose.msra.mxu0 0.0
  %1452 = vmatprep.subr.mxu0 0.0
  %1453 = vmatpush1.xpose.msra.mxu0 0.0
  %1454 = vmatprep.subr.mxu0 0.0
  %1455 = vmatpush1.xpose.msra.mxu0 0.0
  %1456 = vmatprep.subr.mxu0 0.0
  %1457 = vmatpush1.xpose.msra.mxu0 0.0
  %1458 = vmatprep.subr.mxu0 0.0
  %1459 = vmatpush1.xpose.msra.mxu0 0.0
  %1460 = vmatprep.subr.mxu0 0.0
  %1461 = vmatpush1.xpose.msra.mxu0 0.0
  %1462 = vmatprep.subr.mxu0 0.0
  %1463 = vmatpush1.xpose.msra.mxu0 0.0
  %1464 = vmatprep.subr.mxu0 0.0
  %1465 = vmatpush1.xpose.msra.mxu0 0.0
  %1466 = vmatprep.subr.mxu0 0.0
  %1467 = vmatpush1.xpose.msra.mxu0 0.0
  %1468 = vmatprep.subr.mxu0 0.0
  %1469 = vmatpush1.xpose.msra.mxu0 0.0
  %1470 = vmatprep.subr.mxu0 0.0
  %1471 = vmatpush1.xpose.msra.mxu0 0.0
  %1472 = vmatprep.subr.mxu0 0.0
  %1473 = vmatpush1.xpose.msra.mxu0 0.0
  %1474 = vmatprep.subr.mxu0 0.0
  %1475 = vmatpush1.xpose.msra.mxu0 0.0
  %1476 = vmatprep.subr.mxu0 0.0
  %1477 = vmatpush1.xpose.msra.mxu0 0.0
  %1478 = vmatprep.subr.mxu0 0.0
  %1479 = vmatpush1.xpose.msra.mxu0 0.0
  %1480 = vmatprep.subr.mxu0 0.0
  %1481 = vmatpush1.xpose.msra.mxu0 0.0
  %1482 = vmatprep.subr.mxu0 0.0
  %1483 = vmatpush1.xpose.msra.mxu0 0.0
  %1484 = vmatprep.subr.mxu0 0.0
  %1485 = vmatpush1.xpose.msra.mxu0 0.0
  %1486 = vmatprep.subr.mxu0 0.0
  %1487 = vmatpush1.xpose.msra.mxu0 0.0
  %1488 = vmatprep.subr.mxu0 0.0
  %1489 = vmatpush1.xpose.msra.mxu0 0.0
  %1490 = vmatprep.subr.mxu0 0.0
  %1491 = vmatpush1.xpose.msra.mxu0 0.0
  %1492 = vmatprep.subr.mxu0 0.0
  %1493 = vmatpush1.xpose.msra.mxu0 0.0
  %1494 = vmatprep.subr.mxu0 0.0
  %1495 = vmatpush1.xpose.msra.mxu0 0.0
  %1496 = vmatprep.mubr.f32.mxu0 0.0
  %1497 = vmatmul.mubr.f32.gmra.mrb[0].mxu0 %v1428
  %v1498 = vpop.f32.mrb[0].mxu0
  %v1499 = vadd.f32 0.0, %v1498
  %v1500 = vpop.f32.mrb[0].mxu0
  %1501 = vdwg.mxu0
  %1502 = vrot.lane.b32.xlu0 %v170, 104
  %v1503 = vpop.permute.xlu0 %1502
  %1504 = vrot.lane.b32.xlu0 %v170, 72
  %v1505 = vpop.permute.xlu0 %1504
  %v1506 = vsel %vm181, %v1503, 0
  %v1508 = vsel %vm181, %v1505, 0
  %1510 = vmatprep.subr.mxu0 0.0
  %1511 = vmatpush1.xpose.msra.mxu0 %v1508
  %1512 = vmatprep.subr.mxu0 0.0
  %1513 = vmatpush1.xpose.msra.mxu0 0.0
  %1514 = vmatprep.subr.mxu0 0.0
  %1515 = vmatpush1.xpose.msra.mxu0 0.0
  %1516 = vmatprep.subr.mxu0 0.0
  %1517 = vmatpush1.xpose.msra.mxu0 0.0
  %1518 = vmatprep.subr.mxu0 0.0
  %1519 = vmatpush1.xpose.msra.mxu0 0.0
  %1520 = vmatprep.subr.mxu0 0.0
  %1521 = vmatpush1.xpose.msra.mxu0 0.0
  %1522 = vmatprep.subr.mxu0 0.0
  %1523 = vmatpush1.xpose.msra.mxu0 0.0
  %1524 = vmatprep.subr.mxu0 0.0
  %1525 = vmatpush1.xpose.msra.mxu0 0.0
  %1526 = vmatprep.subr.mxu0 0.0
  %1527 = vmatpush1.xpose.msra.mxu0 0.0
  %1528 = vmatprep.subr.mxu0 0.0
  %1529 = vmatpush1.xpose.msra.mxu0 0.0
  %1530 = vmatprep.subr.mxu0 0.0
  %1531 = vmatpush1.xpose.msra.mxu0 0.0
  %1532 = vmatprep.subr.mxu0 0.0
  %1533 = vmatpush1.xpose.msra.mxu0 0.0
  %1534 = vmatprep.subr.mxu0 0.0
  %1535 = vmatpush1.xpose.msra.mxu0 0.0
  %1536 = vmatprep.subr.mxu0 0.0
  %1537 = vmatpush1.xpose.msra.mxu0 0.0
  %1538 = vmatprep.subr.mxu0 0.0
  %1539 = vmatpush1.xpose.msra.mxu0 0.0
  %1540 = vmatprep.subr.mxu0 0.0
  %1541 = vmatpush1.xpose.msra.mxu0 0.0
  %1542 = vmatprep.subr.mxu0 0.0
  %1543 = vmatpush1.xpose.msra.mxu0 0.0
  %1544 = vmatprep.subr.mxu0 0.0
  %1545 = vmatpush1.xpose.msra.mxu0 0.0
  %1546 = vmatprep.subr.mxu0 0.0
  %1547 = vmatpush1.xpose.msra.mxu0 0.0
  %1548 = vmatprep.subr.mxu0 0.0
  %1549 = vmatpush1.xpose.msra.mxu0 0.0
  %1550 = vmatprep.subr.mxu0 0.0
  %1551 = vmatpush1.xpose.msra.mxu0 0.0
  %1552 = vmatprep.subr.mxu0 0.0
  %1553 = vmatpush1.xpose.msra.mxu0 0.0
  %1554 = vmatprep.subr.mxu0 0.0
  %1555 = vmatpush1.xpose.msra.mxu0 0.0
  %1556 = vmatprep.subr.mxu0 0.0
  %1557 = vmatpush1.xpose.msra.mxu0 0.0
  %1558 = vmatprep.subr.mxu0 0.0
  %1559 = vmatpush1.xpose.msra.mxu0 0.0
  %1560 = vmatprep.subr.mxu0 0.0
  %1561 = vmatpush1.xpose.msra.mxu0 0.0
  %1562 = vmatprep.subr.mxu0 0.0
  %1563 = vmatpush1.xpose.msra.mxu0 0.0
  %1564 = vmatprep.subr.mxu0 0.0
  %1565 = vmatpush1.xpose.msra.mxu0 0.0
  %1566 = vmatprep.subr.mxu0 0.0
  %1567 = vmatpush1.xpose.msra.mxu0 0.0
  %1568 = vmatprep.subr.mxu0 0.0
  %1569 = vmatpush1.xpose.msra.mxu0 0.0
  %1570 = vmatprep.subr.mxu0 0.0
  %1571 = vmatpush1.xpose.msra.mxu0 0.0
  %1572 = vmatprep.subr.mxu0 0.0
  %1573 = vmatpush1.xpose.msra.mxu0 0.0
  %1574 = vmatprep.mubr.f32.mxu0 0.0
  %1575 = vmatmul.mubr.f32.gmra.mrb[0].mxu0 %v1506
  %v1576 = vpop.f32.mrb[0].mxu0
  %v1577 = vadd.f32 0.0, %v1576
  %v1578 = vpop.f32.mrb[0].mxu0
  %1579 = vdwg.mxu0
  %v1580 = vmul.f32 %v1499, 0.35355338
  %v1581 = vmul.f32 %v1577, 0.35355338
  %v1582 = vadd.f32 %v1580, %v78
  %v1583 = vadd.f32 %v1581, %v79
  %v1584 = vsel %vm181, %v1582, -inf
  %1585 = vmax.xlane.f32.xlu0 %v1584
  %v1586 = vpop.xlane.xlu0 %1585
  %v1587 = vsel %vm181, %v1583, -inf
  %1588 = vmax.xlane.f32.xlu0 %v1587
  %v1589 = vpop.xlane.xlu0 %1588
  %v1590 = vsub.f32 %v1582, %v1586
  %v1591 = vsub.f32 %v1583, %v1589
  %v1592 = vmul.f32 %v1590, 1.442695
  %v1593 = vpow.pop %v1592
  %v1594 = vmul.f32 %v1591, 1.442695
  %v1595 = vpow.pop %v1594
  %v1596 = vsel %vm181, %v1593, 0.0
  %1597 = vadd.xlane.f32.xlu0 %v1596
  %v1598 = vpop.xlane.xlu0 %1597
  %v1599 = vsel %vm181, %v1595, 0.0
  %1600 = vadd.xlane.f32.xlu0 %v1599
  %v1601 = vpop.xlane.xlu0 %1600
  %v1602 = vrcp.pop %v1598
  %v1603 = vrcp.pop %v1601
  %v1604 = vmul.f32 %v1593, %v1602
  %v1605 = vmul.f32 %v1595, %v1603
  %1606 = vrot.lane.b32.xlu0 %v165, 40
  %v1607 = vpop.permute.xlu0 %1606
  %v1610 = vsel %vm181, %v1604, 0
  %1612 = vmatprep.subr.mxu0 0.0
  %1613 = vmatpush1.msra.mxu0 %v1607
  %1614 = vmatprep.subr.mxu0 0.0
  %1615 = vmatpush1.msra.mxu0 0.0
  %1616 = vmatprep.subr.mxu0 0.0
  %1617 = vmatpush1.msra.mxu0 0.0
  %1618 = vmatprep.subr.mxu0 0.0
  %1619 = vmatpush1.msra.mxu0 0.0
  %1620 = vmatprep.subr.mxu0 0.0
  %1621 = vmatpush1.msra.mxu0 0.0
  %1622 = vmatprep.subr.mxu0 0.0
  %1623 = vmatpush1.msra.mxu0 0.0
  %1624 = vmatprep.subr.mxu0 0.0
  %1625 = vmatpush1.msra.mxu0 0.0
  %1626 = vmatprep.subr.mxu0 0.0
  %1627 = vmatpush1.msra.mxu0 0.0
  %1628 = vmatprep.subr.mxu0 0.0
  %1629 = vmatpush1.msra.mxu0 0.0
  %1630 = vmatprep.subr.mxu0 0.0
  %1631 = vmatpush1.msra.mxu0 0.0
  %1632 = vmatprep.subr.mxu0 0.0
  %1633 = vmatpush1.msra.mxu0 0.0
  %1634 = vmatprep.subr.mxu0 0.0
  %1635 = vmatpush1.msra.mxu0 0.0
  %1636 = vmatprep.subr.mxu0 0.0
  %1637 = vmatpush1.msra.mxu0 0.0
  %1638 = vmatprep.subr.mxu0 0.0
  %1639 = vmatpush1.msra.mxu0 0.0
  %1640 = vmatprep.subr.mxu0 0.0
  %1641 = vmatpush1.msra.mxu0 0.0
  %1642 = vmatprep.subr.mxu0 0.0
  %1643 = vmatpush1.msra.mxu0 0.0
  %1644 = vmatprep.subr.mxu0 0.0
  %1645 = vmatpush1.msra.mxu0 0.0
  %1646 = vmatprep.subr.mxu0 0.0
  %1647 = vmatpush1.msra.mxu0 0.0
  %1648 = vmatprep.subr.mxu0 0.0
  %1649 = vmatpush1.msra.mxu0 0.0
  %1650 = vmatprep.subr.mxu0 0.0
  %1651 = vmatpush1.msra.mxu0 0.0
  %1652 = vmatprep.subr.mxu0 0.0
  %1653 = vmatpush1.msra.mxu0 0.0
  %1654 = vmatprep.subr.mxu0 0.0
  %1655 = vmatpush1.msra.mxu0 0.0
  %1656 = vmatprep.subr.mxu0 0.0
  %1657 = vmatpush1.msra.mxu0 0.0
  %1658 = vmatprep.subr.mxu0 0.0
  %1659 = vmatpush1.msra.mxu0 0.0
  %1660 = vmatprep.subr.mxu0 0.0
  %1661 = vmatpush1.msra.mxu0 0.0
  %1662 = vmatprep.subr.mxu0 0.0
  %1663 = vmatpush1.msra.mxu0 0.0
  %1664 = vmatprep.subr.mxu0 0.0
  %1665 = vmatpush1.msra.mxu0 0.0
  %1666 = vmatprep.subr.mxu0 0.0
  %1667 = vmatpush1.msra.mxu0 0.0
  %1668 = vmatprep.subr.mxu0 0.0
  %1669 = vmatpush1.msra.mxu0 0.0
  %1670 = vmatprep.subr.mxu0 0.0
  %1671 = vmatpush1.msra.mxu0 0.0
  %1672 = vmatprep.subr.mxu0 0.0
  %1673 = vmatpush1.msra.mxu0 0.0
  %1674 = vmatprep.subr.mxu0 0.0
  %1675 = vmatpush1.msra.mxu0 0.0
  %1676 = vmatprep.mubr.f32.mxu0 0.0
  %1677 = vmatmul.mubr.f32.gmra.mrb[0].mxu0 %v1610
  %v1678 = vpop.f32.mrb[0].mxu0
  %v1679 = vadd.f32 0.0, %v1678
  %v1680 = vpop.f32.mrb[0].mxu0
  %1681 = vdwg.mxu0
  %1682 = vrot.lane.b32.xlu0 %v170, 40
  %v1683 = vpop.permute.xlu0 %1682
  %v1686 = vsel %vm181, %v1605, 0
  %1688 = vmatprep.subr.mxu0 0.0
  %1689 = vmatpush1.msra.mxu0 %v1683
  %1690 = vmatprep.subr.mxu0 0.0
  %1691 = vmatpush1.msra.mxu0 0.0
  %1692 = vmatprep.subr.mxu0 0.0
  %1693 = vmatpush1.msra.mxu0 0.0
  %1694 = vmatprep.subr.mxu0 0.0
  %1695 = vmatpush1.msra.mxu0 0.0
  %1696 = vmatprep.subr.mxu0 0.0
  %1697 = vmatpush1.msra.mxu0 0.0
  %1698 = vmatprep.subr.mxu0 0.0
  %1699 = vmatpush1.msra.mxu0 0.0
  %1700 = vmatprep.subr.mxu0 0.0
  %1701 = vmatpush1.msra.mxu0 0.0
  %1702 = vmatprep.subr.mxu0 0.0
  %1703 = vmatpush1.msra.mxu0 0.0
  %1704 = vmatprep.subr.mxu0 0.0
  %1705 = vmatpush1.msra.mxu0 0.0
  %1706 = vmatprep.subr.mxu0 0.0
  %1707 = vmatpush1.msra.mxu0 0.0
  %1708 = vmatprep.subr.mxu0 0.0
  %1709 = vmatpush1.msra.mxu0 0.0
  %1710 = vmatprep.subr.mxu0 0.0
  %1711 = vmatpush1.msra.mxu0 0.0
  %1712 = vmatprep.subr.mxu0 0.0
  %1713 = vmatpush1.msra.mxu0 0.0
  %1714 = vmatprep.subr.mxu0 0.0
  %1715 = vmatpush1.msra.mxu0 0.0
  %1716 = vmatprep.subr.mxu0 0.0
  %1717 = vmatpush1.msra.mxu0 0.0
  %1718 = vmatprep.subr.mxu0 0.0
  %1719 = vmatpush1.msra.mxu0 0.0
  %1720 = vmatprep.subr.mxu0 0.0
  %1721 = vmatpush1.msra.mxu0 0.0
  %1722 = vmatprep.subr.mxu0 0.0
  %1723 = vmatpush1.msra.mxu0 0.0
  %1724 = vmatprep.subr.mxu0 0.0
  %1725 = vmatpush1.msra.mxu0 0.0
  %1726 = vmatprep.subr.mxu0 0.0
  %1727 = vmatpush1.msra.mxu0 0.0
  %1728 = vmatprep.subr.mxu0 0.0
  %1729 = vmatpush1.msra.mxu0 0.0
  %1730 = vmatprep.subr.mxu0 0.0
  %1731 = vmatpush1.msra.mxu0 0.0
  %1732 = vmatprep.subr.mxu0 0.0
  %1733 = vmatpush1.msra.mxu0 0.0
  %1734 = vmatprep.subr.mxu0 0.0
  %1735 = vmatpush1.msra.mxu0 0.0
  %1736 = vmatprep.subr.mxu0 0.0
  %1737 = vmatpush1.msra.mxu0 0.0
  %1738 = vmatprep.subr.mxu0 0.0
  %1739 = vmatpush1.msra.mxu0 0.0
  %1740 = vmatprep.subr.mxu0 0.0
  %1741 = vmatpush1.msra.mxu0 0.0
  %1742 = vmatprep.subr.mxu0 0.0
  %1743 = vmatpush1.msra.mxu0 0.0
  %1744 = vmatprep.subr.mxu0 0.0
  %1745 = vmatpush1.msra.mxu0 0.0
  %1746 = vmatprep.subr.mxu0 0.0
  %1747 = vmatpush1.msra.mxu0 0.0
  %1748 = vmatprep.subr.mxu0 0.0
  %1749 = vmatpush1.msra.mxu0 0.0
  %1750 = vmatprep.subr.mxu0 0.0
  %1751 = vmatpush1.msra.mxu0 0.0
  %1752 = vmatprep.mubr.f32.mxu0 0.0
  %1753 = vmatmul.mubr.f32.gmra.mrb[0].mxu0 %v1686
  %v1754 = vpop.f32.mrb[0].mxu0
  %v1755 = vadd.f32 0.0, %v1754
  %v1756 = vpop.f32.mrb[0].mxu0
  %1757 = vdwg.mxu0
  %v1759 = vsel %vm181, %v1679, 0
  %v1762 = vsel %vm181, %v1755, 0
  %1764 = vmatprep.subr.mxu0 0.0
  %1765 = vmatpush1.msra.mxu0 %v176
  %1766 = vmatprep.subr.mxu0 0.0
  %1767 = vmatpush1.msra.mxu0 0.0
  %1768 = vmatprep.subr.mxu0 0.0
  %1769 = vmatpush1.msra.mxu0 0.0
  %1770 = vmatprep.subr.mxu0 0.0
  %1771 = vmatpush1.msra.mxu0 0.0
  %1772 = vmatprep.subr.mxu0 0.0
  %1773 = vmatpush1.msra.mxu0 0.0
  %1774 = vmatprep.subr.mxu0 0.0
  %1775 = vmatpush1.msra.mxu0 0.0
  %1776 = vmatprep.subr.mxu0 0.0
  %1777 = vmatpush1.msra.mxu0 0.0
  %1778 = vmatprep.subr.mxu0 0.0
  %1779 = vmatpush1.msra.mxu0 0.0
  %1780 = vmatprep.subr.mxu0 0.0
  %1781 = vmatpush1.msra.mxu0 0.0
  %1782 = vmatprep.subr.mxu0 0.0
  %1783 = vmatpush1.msra.mxu0 0.0
  %1784 = vmatprep.subr.mxu0 0.0
  %1785 = vmatpush1.msra.mxu0 0.0
  %1786 = vmatprep.subr.mxu0 0.0
  %1787 = vmatpush1.msra.mxu0 0.0
  %1788 = vmatprep.subr.mxu0 0.0
  %1789 = vmatpush1.msra.mxu0 0.0
  %1790 = vmatprep.subr.mxu0 0.0
  %1791 = vmatpush1.msra.mxu0 0.0
  %1792 = vmatprep.subr.mxu0 0.0
  %1793 = vmatpush1.msra.mxu0 0.0
  %1794 = vmatprep.subr.mxu0 0.0
  %1795 = vmatpush1.msra.mxu0 0.0
  %1796 = vmatprep.subr.mxu0 0.0
  %1797 = vmatpush1.msra.mxu0 0.0
  %1798 = vmatprep.subr.mxu0 0.0
  %1799 = vmatpush1.msra.mxu0 0.0
  %1800 = vmatprep.subr.mxu0 0.0
  %1801 = vmatpush1.msra.mxu0 0.0
  %1802 = vmatprep.subr.mxu0 0.0
  %1803 = vmatpush1.msra.mxu0 0.0
  %1804 = vmatprep.subr.mxu0 0.0
  %1805 = vmatpush1.msra.mxu0 0.0
  %1806 = vmatprep.subr.mxu0 0.0
  %1807 = vmatpush1.msra.mxu0 0.0
  %1808 = vmatprep.subr.mxu0 0.0
  %1809 = vmatpush1.msra.mxu0 0.0
  %1810 = vmatprep.subr.mxu0 0.0
  %1811 = vmatpush1.msra.mxu0 0.0
  %1812 = vmatprep.subr.mxu0 0.0
  %1813 = vmatpush1.msra.mxu0 0.0
  %1814 = vmatprep.subr.mxu0 0.0
  %1815 = vmatpush1.msra.mxu0 0.0
  %1816 = vmatprep.subr.mxu0 0.0
  %1817 = vmatpush1.msra.mxu0 0.0
  %1818 = vmatprep.subr.mxu0 0.0
  %1819 = vmatpush1.msra.mxu0 0.0
  %1820 = vmatprep.subr.mxu0 0.0
  %1821 = vmatpush1.msra.mxu0 0.0
  %1822 = vmatprep.subr.mxu0 0.0
  %1823 = vmatpush1.msra.mxu0 0.0
  %1824 = vmatprep.subr.mxu0 0.0
  %1825 = vmatpush1.msra.mxu0 0.0
  %1826 = vmatprep.subr.mxu0 0.0
  %1827 = vmatpush1.msra.mxu0 0.0
  %1828 = vmatprep.mubr.f32.mxu0 0.0
  %1829 = vmatmul.mubr.f32.gmra.mrb[0].mxu0 %v1759
  %v1830 = vpop.f32.mrb[0].mxu0
  %v1831 = vadd.f32 0.0, %v1830
  %v1832 = vpop.f32.mrb[0].mxu0
  %1833 = vmatprep.mubr.f32.mxu0 0.0
  %1834 = vmatmul.mubr.f32.gmra.mrb[0].mxu0 %v1762
  %v1835 = vpop.f32.mrb[0].mxu0
  %v1836 = vadd.f32 0.0, %v1835
  %v1837 = vpop.f32.mrb[0].mxu0
  %1838 = vdwg.mxu0
  %v1839 = vadd.f32 %v1422, %v1831
  %v1840 = vadd.f32 %v1423, %v1836
  %v1842 = vlaneseq
  %v1843 = vshrl.u32 %v1842, 7
  %v1844 = vsub.s32 0, %v1843
  %v1845 = vrot.slane %v177, %v1844
  %v1847 = vadd.f32 %v1839, %v1845
  %v1848 = vadd.f32 %v1840, %v1845
  %v1849 = vadd.f32 %v76, %v1847
  %v1850 = vadd.f32 %v77, %v1848
  %v1851 = vld [vmem:[%s7] sm:$0x1]
  %v1852 = vld [vmem:[%s8] sm:$0x1]
  %v1853 = vsel %vm91, %v1849, 0.0
  %1854 = vadd.xlane.f32.xlu0 %v1853
  %v1855 = vpop.xlane.xlu0 %1854
  %v1856 = vsel %vm91, %v1850, 0.0
  %1857 = vadd.xlane.f32.xlu0 %v1856
  %v1858 = vpop.xlane.xlu0 %1857
  %v1859 = vrcp.pop 32.0
  %v1860 = vmul.f32 %v1855, %v1859
  %v1861 = vmul.f32 %v1858, %v1859
  %v1862 = vsub.f32 %v1849, %v1860
  %v1863 = vsub.f32 %v1850, %v1861
  %v1864 = vmul.f32 %v1862, %v1862
  %v1865 = vmul.f32 %v1863, %v1863
  %v1866 = vsel %vm91, %v1864, 0.0
  %1867 = vadd.xlane.f32.xlu0 %v1866
  %v1868 = vpop.xlane.xlu0 %1867
  %v1869 = vsel %vm91, %v1865, 0.0
  %1870 = vadd.xlane.f32.xlu0 %v1869
  %v1871 = vpop.xlane.xlu0 %1870
  %v1872 = vmul.f32 %v1868, %v1859
  %v1873 = vmul.f32 %v1871, %v1859
  %v1874 = vadd.f32 %v1872, 1e-05
  %v1875 = vadd.f32 %v1873, 1e-05
  %v1876 = vrsqrt.pop %v1874
  %v1877 = vrsqrt.pop %v1875
  %v1878 = vmul.f32 %v1862, %v1876
  %v1879 = vmul.f32 %v1863, %v1877
  %v1881 = vlaneseq
  %v1882 = vshrl.u32 %v1881, 7
  %v1883 = vsub.s32 0, %v1882
  %v1884 = vrot.slane %v1851, %v1883
  %v1886 = vmul.f32 %v1878, %v1884
  %v1887 = vmul.f32 %v1879, %v1884
  %v1889 = vlaneseq
  %v1890 = vshrl.u32 %v1889, 7
  %v1891 = vsub.s32 0, %v1890
  %v1892 = vrot.slane %v1852, %v1891
  %v1894 = vadd.f32 %v1886, %v1892
  %v1895 = vadd.f32 %v1887, %v1892
  %v1896 = vld [vmem:[%s1] sm:$0xff]
  %v1897 = vld [vmem:[%s1 + $0x8] sm:$0xff]
  %v1898 = vld [vmem:[%s1 + $0x10] sm:$0xff]
  %v1899 = vld [vmem:[%s1 + $0x18] sm:$0xff]
  %v1900 = vld [vmem:[%s9] sm:$0xff]
  %v1901 = vld [vmem:[%s9 + $0x8] sm:$0xff]
  %v1902 = vld [vmem:[%s9 + $0x10] sm:$0xff]
  %v1903 = vld [vmem:[%s9 + $0x18] sm:$0xff]
  %v1904 = vld [vmem:[%s10] sm:$0x1]
  %v1906 = vlaneseq
  %v1907 = vshrl.u32 %v1906, 7
  %v1908 = vsub.s32 0, %v1907
  %v1909 = vrot.slane %v1904, %v1908
  %v1912 = vsel %vm91, %v1894, 0
  %v1915 = vsel %vm91, %v1895, 0
  %1917 = vmatprep.subr.mxu0 0.0
  %1918 = vmatpush1.msra.mxu0 %v1900
  %1919 = vmatprep.subr.mxu0 0.0
  %1920 = vmatpush1.msra.mxu0 %v1901
  %1921 = vmatprep.subr.mxu0 0.0
  %1922 = vmatpush1.msra.mxu0 %v1902
  %1923 = vmatprep.subr.mxu0 0.0
  %1924 = vmatpush1.msra.mxu0 %v1903
  %1925 = vmatprep.subr.mxu0 0.0
  %1926 = vmatpush1.msra.mxu0 0.0
  %1927 = vmatprep.subr.mxu0 0.0
  %1928 = vmatpush1.msra.mxu0 0.0
  %1929 = vmatprep.subr.mxu0 0.0
  %1930 = vmatpush1.msra.mxu0 0.0
  %1931 = vmatprep.subr.mxu0 0.0
  %1932 = vmatpush1.msra.mxu0 0.0
  %1933 = vmatprep.subr.mxu0 0.0
  %1934 = vmatpush1.msra.mxu0 0.0
  %1935 = vmatprep.subr.mxu0 0.0
  %1936 = vmatpush1.msra.mxu0 0.0
  %1937 = vmatprep.subr.mxu0 0.0
  %1938 = vmatpush1.msra.mxu0 0.0
  %1939 = vmatprep.subr.mxu0 0.0
  %1940 = vmatpush1.msra.mxu0 0.0
  %1941 = vmatprep.subr.mxu0 0.0
  %1942 = vmatpush1.msra.mxu0 0.0
  %1943 = vmatprep.subr.mxu0 0.0
  %1944 = vmatpush1.msra.mxu0 0.0
  %1945 = vmatprep.subr.mxu0 0.0
  %1946 = vmatpush1.msra.mxu0 0.0
  %1947 = vmatprep.subr.mxu0 0.0
  %1948 = vmatpush1.msra.mxu0 0.0
  %1949 = vmatprep.subr.mxu0 0.0
  %1950 = vmatpush1.msra.mxu0 0.0
  %1951 = vmatprep.subr.mxu0 0.0
  %1952 = vmatpush1.msra.mxu0 0.0
  %1953 = vmatprep.subr.mxu0 0.0
  %1954 = vmatpush1.msra.mxu0 0.0
  %1955 = vmatprep.subr.mxu0 0.0
  %1956 = vmatpush1.msra.mxu0 0.0
  %1957 = vmatprep.subr.mxu0 0.0
  %1958 = vmatpush1.msra.mxu0 0.0
  %1959 = vmatprep.subr.mxu0 0.0
  %1960 = vmatpush1.msra.mxu0 0.0
  %1961 = vmatprep.subr.mxu0 0.0
  %1962 = vmatpush1.msra.mxu0 0.0
  %1963 = vmatprep.subr.mxu0 0.0
  %1964 = vmatpush1.msra.mxu0 0.0
  %1965 = vmatprep.subr.mxu0 0.0
  %1966 = vmatpush1.msra.mxu0 0.0
  %1967 = vmatprep.subr.mxu0 0.0
  %1968 = vmatpush1.msra.mxu0 0.0
  %1969 = vmatprep.subr.mxu0 0.0
  %1970 = vmatpush1.msra.mxu0 0.0
  %1971 = vmatprep.subr.mxu0 0.0
  %1972 = vmatpush1.msra.mxu0 0.0
  %1973 = vmatprep.subr.mxu0 0.0
  %1974 = vmatpush1.msra.mxu0 0.0
  %1975 = vmatprep.subr.mxu0 0.0
  %1976 = vmatpush1.msra.mxu0 0.0
  %1977 = vmatprep.subr.mxu0 0.0
  %1978 = vmatpush1.msra.mxu0 0.0
  %1979 = vmatprep.subr.mxu0 0.0
  %1980 = vmatpush1.msra.mxu0 0.0
  %1981 = vmatprep.mubr.f32.mxu0 0.0
  %1982 = vmatmul.mubr.f32.gmra.mrb[0].mxu0 %v1912
  %v1983 = vpop.f32.mrb[0].mxu0
  %v1984 = vadd.f32 %v1909, %v1983
  %v1985 = vpop.f32.mrb[0].mxu0
  %1986 = vmatprep.mubr.f32.mxu0 0.0
  %1987 = vmatmul.mubr.f32.gmra.mrb[0].mxu0 %v1915
  %v1988 = vpop.f32.mrb[0].mxu0
  %v1989 = vadd.f32 %v1909, %v1988
  %v1990 = vpop.f32.mrb[0].mxu0
  %1991 = vdwg.mxu0
  %v1992 = vld [vmem:[%s11] sm:$0xff]
  %v1993 = vld [vmem:[%s11 + $0x8] sm:$0xff]
  %v1994 = vld [vmem:[%s11 + $0x10] sm:$0xff]
  %v1995 = vld [vmem:[%s11 + $0x18] sm:$0xff]
  %v1996 = vld [vmem:[%s12] sm:$0x1]
  %v1998 = vlaneseq
  %v1999 = vshrl.u32 %v1998, 7
  %v2000 = vsub.s32 0, %v1999
  %v2001 = vrot.slane %v1996, %v2000
  %v2004 = vsel %vm91, %v1896, 0
  %v2007 = vsel %vm91, %v1897, 0
  %v2010 = vsel %vm91, %v1898, 0
  %v2013 = vsel %vm91, %v1899, 0
  %2015 = vmatprep.subr.mxu0 0.0
  %2016 = vmatpush1.msra.mxu0 %v1992
  %2017 = vmatprep.subr.mxu0 0.0
  %2018 = vmatpush1.msra.mxu0 %v1993
  %2019 = vmatprep.subr.mxu0 0.0
  %2020 = vmatpush1.msra.mxu0 %v1994
  %2021 = vmatprep.subr.mxu0 0.0
  %2022 = vmatpush1.msra.mxu0 %v1995
  %2023 = vmatprep.subr.mxu0 0.0
  %2024 = vmatpush1.msra.mxu0 0.0
  %2025 = vmatprep.subr.mxu0 0.0
  %2026 = vmatpush1.msra.mxu0 0.0
  %2027 = vmatprep.subr.mxu0 0.0
  %2028 = vmatpush1.msra.mxu0 0.0
  %2029 = vmatprep.subr.mxu0 0.0
  %2030 = vmatpush1.msra.mxu0 0.0
  %2031 = vmatprep.subr.mxu0 0.0
  %2032 = vmatpush1.msra.mxu0 0.0
  %2033 = vmatprep.subr.mxu0 0.0
  %2034 = vmatpush1.msra.mxu0 0.0
  %2035 = vmatprep.subr.mxu0 0.0
  %2036 = vmatpush1.msra.mxu0 0.0
  %2037 = vmatprep.subr.mxu0 0.0
  %2038 = vmatpush1.msra.mxu0 0.0
  %2039 = vmatprep.subr.mxu0 0.0
  %2040 = vmatpush1.msra.mxu0 0.0
  %2041 = vmatprep.subr.mxu0 0.0
  %2042 = vmatpush1.msra.mxu0 0.0
  %2043 = vmatprep.subr.mxu0 0.0
  %2044 = vmatpush1.msra.mxu0 0.0
  %2045 = vmatprep.subr.mxu0 0.0
  %2046 = vmatpush1.msra.mxu0 0.0
  %2047 = vmatprep.subr.mxu0 0.0
  %2048 = vmatpush1.msra.mxu0 0.0
  %2049 = vmatprep.subr.mxu0 0.0
  %2050 = vmatpush1.msra.mxu0 0.0
  %2051 = vmatprep.subr.mxu0 0.0
  %2052 = vmatpush1.msra.mxu0 0.0
  %2053 = vmatprep.subr.mxu0 0.0
  %2054 = vmatpush1.msra.mxu0 0.0
  %2055 = vmatprep.subr.mxu0 0.0
  %2056 = vmatpush1.msra.mxu0 0.0
  %2057 = vmatprep.subr.mxu0 0.0
  %2058 = vmatpush1.msra.mxu0 0.0
  %2059 = vmatprep.subr.mxu0 0.0
  %2060 = vmatpush1.msra.mxu0 0.0
  %2061 = vmatprep.subr.mxu0 0.0
  %2062 = vmatpush1.msra.mxu0 0.0
  %2063 = vmatprep.subr.mxu0 0.0
  %2064 = vmatpush1.msra.mxu0 0.0
  %2065 = vmatprep.subr.mxu0 0.0
  %2066 = vmatpush1.msra.mxu0 0.0
  %2067 = vmatprep.subr.mxu0 0.0
  %2068 = vmatpush1.msra.mxu0 0.0
  %2069 = vmatprep.subr.mxu0 0.0
  %2070 = vmatpush1.msra.mxu0 0.0
  %2071 = vmatprep.subr.mxu0 0.0
  %2072 = vmatpush1.msra.mxu0 0.0
  %2073 = vmatprep.subr.mxu0 0.0
  %2074 = vmatpush1.msra.mxu0 0.0
  %2075 = vmatprep.subr.mxu0 0.0
  %2076 = vmatpush1.msra.mxu0 0.0
  %2077 = vmatprep.subr.mxu0 0.0
  %2078 = vmatpush1.msra.mxu0 0.0
  %2079 = vmatprep.mubr.f32.mxu0 0.0
  %2080 = vmatmul.mubr.f32.gmra.mrb[0].mxu0 %v2004
  %v2081 = vpop.f32.mrb[0].mxu0
  %v2082 = vadd.f32 %v2001, %v2081
  %v2083 = vpop.f32.mrb[0].mxu0
  %2084 = vmatprep.mubr.f32.mxu0 0.0
  %2085 = vmatmul.mubr.f32.gmra.mrb[0].mxu0 %v2007
  %v2086 = vpop.f32.mrb[0].mxu0
  %v2087 = vadd.f32 %v2001, %v2086
  %v2088 = vpop.f32.mrb[0].mxu0
  %2089 = vmatprep.mubr.f32.mxu0 0.0
  %2090 = vmatmul.mubr.f32.gmra.mrb[0].mxu0 %v2010
  %v2091 = vpop.f32.mrb[0].mxu0
  %v2092 = vadd.f32 %v2001, %v2091
  %v2093 = vpop.f32.mrb[0].mxu0
  %2094 = vmatprep.mubr.f32.mxu0 0.0
  %2095 = vmatmul.mubr.f32.gmra.mrb[0].mxu0 %v2013
  %v2096 = vpop.f32.mrb[0].mxu0
  %v2097 = vadd.f32 %v2001, %v2096
  %v2098 = vpop.f32.mrb[0].mxu0
  %2099 = vdwg.mxu0
  %v2100 = vld [vmem:[%s13] sm:$0xff]
  %v2101 = vld [vmem:[%s13 + $0x8] sm:$0xff]
  %v2102 = vld [vmem:[%s13 + $0x10] sm:$0xff]
  %v2103 = vld [vmem:[%s13 + $0x18] sm:$0xff]
  %v2104 = vld [vmem:[%s14] sm:$0x1]
  %v2106 = vsel %vm181, %v1984, 0
  %v2109 = vsel %vm181, %v2082, 0
  %v2112 = vsel %vm181, %v2087, 0
  %2114 = vmatprep.subr.mxu0 0.0
  %2115 = vmatpush1.xpose.msra.mxu0 %v2109
  %2116 = vmatprep.subr.mxu0 0.0
  %2117 = vmatpush1.xpose.msra.mxu0 %v2112
  %2118 = vmatprep.subr.mxu0 0.0
  %2119 = vmatpush1.xpose.msra.mxu0 0.0
  %2120 = vmatprep.subr.mxu0 0.0
  %2121 = vmatpush1.xpose.msra.mxu0 0.0
  %2122 = vmatprep.subr.mxu0 0.0
  %2123 = vmatpush1.xpose.msra.mxu0 0.0
  %2124 = vmatprep.subr.mxu0 0.0
  %2125 = vmatpush1.xpose.msra.mxu0 0.0
  %2126 = vmatprep.subr.mxu0 0.0
  %2127 = vmatpush1.xpose.msra.mxu0 0.0
  %2128 = vmatprep.subr.mxu0 0.0
  %2129 = vmatpush1.xpose.msra.mxu0 0.0
  %2130 = vmatprep.subr.mxu0 0.0
  %2131 = vmatpush1.xpose.msra.mxu0 0.0
  %2132 = vmatprep.subr.mxu0 0.0
  %2133 = vmatpush1.xpose.msra.mxu0 0.0
  %2134 = vmatprep.subr.mxu0 0.0
  %2135 = vmatpush1.xpose.msra.mxu0 0.0
  %2136 = vmatprep.subr.mxu0 0.0
  %2137 = vmatpush1.xpose.msra.mxu0 0.0
  %2138 = vmatprep.subr.mxu0 0.0
  %2139 = vmatpush1.xpose.msra.mxu0 0.0
  %2140 = vmatprep.subr.mxu0 0.0
  %2141 = vmatpush1.xpose.msra.mxu0 0.0
  %2142 = vmatprep.subr.mxu0 0.0
  %2143 = vmatpush1.xpose.msra.mxu0 0.0
  %2144 = vmatprep.subr.mxu0 0.0
  %2145 = vmatpush1.xpose.msra.mxu0 0.0
  %2146 = vmatprep.subr.mxu0 0.0
  %2147 = vmatpush1.xpose.msra.mxu0 0.0
  %2148 = vmatprep.subr.mxu0 0.0
  %2149 = vmatpush1.xpose.msra.mxu0 0.0
  %2150 = vmatprep.subr.mxu0 0.0
  %2151 = vmatpush1.xpose.msra.mxu0 0.0
  %2152 = vmatprep.subr.mxu0 0.0
  %2153 = vmatpush1.xpose.msra.mxu0 0.0
  %2154 = vmatprep.subr.mxu0 0.0
  %2155 = vmatpush1.xpose.msra.mxu0 0.0
  %2156 = vmatprep.subr.mxu0 0.0
  %2157 = vmatpush1.xpose.msra.mxu0 0.0
  %2158 = vmatprep.subr.mxu0 0.0
  %2159 = vmatpush1.xpose.msra.mxu0 0.0
  %2160 = vmatprep.subr.mxu0 0.0
  %2161 = vmatpush1.xpose.msra.mxu0 0.0
  %2162 = vmatprep.subr.mxu0 0.0
  %2163 = vmatpush1.xpose.msra.mxu0 0.0
  %2164 = vmatprep.subr.mxu0 0.0
  %2165 = vmatpush1.xpose.msra.mxu0 0.0
  %2166 = vmatprep.subr.mxu0 0.0
  %2167 = vmatpush1.xpose.msra.mxu0 0.0
  %2168 = vmatprep.subr.mxu0 0.0
  %2169 = vmatpush1.xpose.msra.mxu0 0.0
  %2170 = vmatprep.subr.mxu0 0.0
  %2171 = vmatpush1.xpose.msra.mxu0 0.0
  %2172 = vmatprep.subr.mxu0 0.0
  %2173 = vmatpush1.xpose.msra.mxu0 0.0
  %2174 = vmatprep.subr.mxu0 0.0
  %2175 = vmatpush1.xpose.msra.mxu0 0.0
  %2176 = vmatprep.subr.mxu0 0.0
  %2177 = vmatpush1.xpose.msra.mxu0 0.0
  %2178 = vmatprep.mubr.f32.mxu0 0.0
  %2179 = vmatmul.mubr.f32.gmra.mrb[0].mxu0 %v2106
  %v2180 = vpop.f32.mrb[0].mxu0
  %v2181 = vadd.f32 0.0, %v2180
  %v2182 = vpop.f32.mrb[0].mxu0
  %2183 = vdwg.mxu0
  %v2185 = vsel %vm181, %v1989, 0
  %v2188 = vsel %vm181, %v2092, 0
  %v2191 = vsel %vm181, %v2097, 0
  %2193 = vmatprep.subr.mxu0 0.0
  %2194 = vmatpush1.xpose.msra.mxu0 %v2188
  %2195 = vmatprep.subr.mxu0 0.0
  %2196 = vmatpush1.xpose.msra.mxu0 %v2191
  %2197 = vmatprep.subr.mxu0 0.0
  %2198 = vmatpush1.xpose.msra.mxu0 0.0
  %2199 = vmatprep.subr.mxu0 0.0
  %2200 = vmatpush1.xpose.msra.mxu0 0.0
  %2201 = vmatprep.subr.mxu0 0.0
  %2202 = vmatpush1.xpose.msra.mxu0 0.0
  %2203 = vmatprep.subr.mxu0 0.0
  %2204 = vmatpush1.xpose.msra.mxu0 0.0
  %2205 = vmatprep.subr.mxu0 0.0
  %2206 = vmatpush1.xpose.msra.mxu0 0.0
  %2207 = vmatprep.subr.mxu0 0.0
  %2208 = vmatpush1.xpose.msra.mxu0 0.0
  %2209 = vmatprep.subr.mxu0 0.0
  %2210 = vmatpush1.xpose.msra.mxu0 0.0
  %2211 = vmatprep.subr.mxu0 0.0
  %2212 = vmatpush1.xpose.msra.mxu0 0.0
  %2213 = vmatprep.subr.mxu0 0.0
  %2214 = vmatpush1.xpose.msra.mxu0 0.0
  %2215 = vmatprep.subr.mxu0 0.0
  %2216 = vmatpush1.xpose.msra.mxu0 0.0
  %2217 = vmatprep.subr.mxu0 0.0
  %2218 = vmatpush1.xpose.msra.mxu0 0.0
  %2219 = vmatprep.subr.mxu0 0.0
  %2220 = vmatpush1.xpose.msra.mxu0 0.0
  %2221 = vmatprep.subr.mxu0 0.0
  %2222 = vmatpush1.xpose.msra.mxu0 0.0
  %2223 = vmatprep.subr.mxu0 0.0
  %2224 = vmatpush1.xpose.msra.mxu0 0.0
  %2225 = vmatprep.subr.mxu0 0.0
  %2226 = vmatpush1.xpose.msra.mxu0 0.0
  %2227 = vmatprep.subr.mxu0 0.0
  %2228 = vmatpush1.xpose.msra.mxu0 0.0
  %2229 = vmatprep.subr.mxu0 0.0
  %2230 = vmatpush1.xpose.msra.mxu0 0.0
  %2231 = vmatprep.subr.mxu0 0.0
  %2232 = vmatpush1.xpose.msra.mxu0 0.0
  %2233 = vmatprep.subr.mxu0 0.0
  %2234 = vmatpush1.xpose.msra.mxu0 0.0
  %2235 = vmatprep.subr.mxu0 0.0
  %2236 = vmatpush1.xpose.msra.mxu0 0.0
  %2237 = vmatprep.subr.mxu0 0.0
  %2238 = vmatpush1.xpose.msra.mxu0 0.0
  %2239 = vmatprep.subr.mxu0 0.0
  %2240 = vmatpush1.xpose.msra.mxu0 0.0
  %2241 = vmatprep.subr.mxu0 0.0
  %2242 = vmatpush1.xpose.msra.mxu0 0.0
  %2243 = vmatprep.subr.mxu0 0.0
  %2244 = vmatpush1.xpose.msra.mxu0 0.0
  %2245 = vmatprep.subr.mxu0 0.0
  %2246 = vmatpush1.xpose.msra.mxu0 0.0
  %2247 = vmatprep.subr.mxu0 0.0
  %2248 = vmatpush1.xpose.msra.mxu0 0.0
  %2249 = vmatprep.subr.mxu0 0.0
  %2250 = vmatpush1.xpose.msra.mxu0 0.0
  %2251 = vmatprep.subr.mxu0 0.0
  %2252 = vmatpush1.xpose.msra.mxu0 0.0
  %2253 = vmatprep.subr.mxu0 0.0
  %2254 = vmatpush1.xpose.msra.mxu0 0.0
  %2255 = vmatprep.subr.mxu0 0.0
  %2256 = vmatpush1.xpose.msra.mxu0 0.0
  %2257 = vmatprep.mubr.f32.mxu0 0.0
  %2258 = vmatmul.mubr.f32.gmra.mrb[0].mxu0 %v2185
  %v2259 = vpop.f32.mrb[0].mxu0
  %v2260 = vadd.f32 0.0, %v2259
  %v2261 = vpop.f32.mrb[0].mxu0
  %2262 = vdwg.mxu0
  %v2263 = vmul.f32 %v2181, 0.35355338
  %v2264 = vmul.f32 %v2260, 0.35355338
  %vm2265 = vcmask 130048
  %v2266 = vsel %vm2265, %v2263, -inf
  %2267 = vmax.xlane.f32.xlu0 %v2266
  %v2268 = vpop.xlane.xlu0 %2267
  %v2269 = vsel %vm2265, %v2264, -inf
  %2270 = vmax.xlane.f32.xlu0 %v2269
  %v2271 = vpop.xlane.xlu0 %2270
  %v2272 = vsub.f32 %v2263, %v2268
  %v2273 = vsub.f32 %v2264, %v2271
  %v2274 = vmul.f32 %v2272, 1.442695
  %v2275 = vpow.pop %v2274
  %v2276 = vmul.f32 %v2273, 1.442695
  %v2277 = vpow.pop %v2276
  %v2278 = vsel %vm2265, %v2275, 0.0
  %2279 = vadd.xlane.f32.xlu0 %v2278
  %v2280 = vpop.xlane.xlu0 %2279
  %v2281 = vsel %vm2265, %v2277, 0.0
  %2282 = vadd.xlane.f32.xlu0 %v2281
  %v2283 = vpop.xlane.xlu0 %2282
  %v2284 = vrcp.pop %v2280
  %v2285 = vrcp.pop %v2283
  %v2286 = vmul.f32 %v2275, %v2284
  %v2287 = vmul.f32 %v2277, %v2285
  %v2288 = vadd.f32 %v2286, 0.0
  %v2289 = vadd.f32 %v2287, 0.0
  %2290 = vrot.lane.b32.xlu0 %v2082, 96
  %v2291 = vpop.permute.xlu0 %2290
  %2292 = vrot.lane.b32.xlu0 %v2087, 96
  %v2293 = vpop.permute.xlu0 %2292
  %v2297 = vsel %vm2265, %v2286, 0
  %2299 = vmatprep.subr.mxu0 0.0
  %2300 = vmatpush1.msra.mxu0 %v2291
  %2301 = vmatprep.subr.mxu0 0.0
  %2302 = vmatpush1.msra.mxu0 %v2293
  %2303 = vmatprep.subr.mxu0 0.0
  %2304 = vmatpush1.msra.mxu0 0.0
  %2305 = vmatprep.subr.mxu0 0.0
  %2306 = vmatpush1.msra.mxu0 0.0
  %2307 = vmatprep.subr.mxu0 0.0
  %2308 = vmatpush1.msra.mxu0 0.0
  %2309 = vmatprep.subr.mxu0 0.0
  %2310 = vmatpush1.msra.mxu0 0.0
  %2311 = vmatprep.subr.mxu0 0.0
  %2312 = vmatpush1.msra.mxu0 0.0
  %2313 = vmatprep.subr.mxu0 0.0
  %2314 = vmatpush1.msra.mxu0 0.0
  %2315 = vmatprep.subr.mxu0 0.0
  %2316 = vmatpush1.msra.mxu0 0.0
  %2317 = vmatprep.subr.mxu0 0.0
  %2318 = vmatpush1.msra.mxu0 0.0
  %2319 = vmatprep.subr.mxu0 0.0
  %2320 = vmatpush1.msra.mxu0 0.0
  %2321 = vmatprep.subr.mxu0 0.0
  %2322 = vmatpush1.msra.mxu0 0.0
  %2323 = vmatprep.subr.mxu0 0.0
  %2324 = vmatpush1.msra.mxu0 0.0
  %2325 = vmatprep.subr.mxu0 0.0
  %2326 = vmatpush1.msra.mxu0 0.0
  %2327 = vmatprep.subr.mxu0 0.0
  %2328 = vmatpush1.msra.mxu0 0.0
  %2329 = vmatprep.subr.mxu0 0.0
  %2330 = vmatpush1.msra.mxu0 0.0
  %2331 = vmatprep.subr.mxu0 0.0
  %2332 = vmatpush1.msra.mxu0 0.0
  %2333 = vmatprep.subr.mxu0 0.0
  %2334 = vmatpush1.msra.mxu0 0.0
  %2335 = vmatprep.subr.mxu0 0.0
  %2336 = vmatpush1.msra.mxu0 0.0
  %2337 = vmatprep.subr.mxu0 0.0
  %2338 = vmatpush1.msra.mxu0 0.0
  %2339 = vmatprep.subr.mxu0 0.0
  %2340 = vmatpush1.msra.mxu0 0.0
  %2341 = vmatprep.subr.mxu0 0.0
  %2342 = vmatpush1.msra.mxu0 0.0
  %2343 = vmatprep.subr.mxu0 0.0
  %2344 = vmatpush1.msra.mxu0 0.0
  %2345 = vmatprep.subr.mxu0 0.0
  %2346 = vmatpush1.msra.mxu0 0.0
  %2347 = vmatprep.subr.mxu0 0.0
  %2348 = vmatpush1.msra.mxu0 0.0
  %2349 = vmatprep.subr.mxu0 0.0
  %2350 = vmatpush1.msra.mxu0 0.0
  %2351 = vmatprep.subr.mxu0 0.0
  %2352 = vmatpush1.msra.mxu0 0.0
  %2353 = vmatprep.subr.mxu0 0.0
  %2354 = vmatpush1.msra.mxu0 0.0
  %2355 = vmatprep.subr.mxu0 0.0
  %2356 = vmatpush1.msra.mxu0 0.0
  %2357 = vmatprep.subr.mxu0 0.0
  %2358 = vmatpush1.msra.mxu0 0.0
  %2359 = vmatprep.subr.mxu0 0.0
  %2360 = vmatpush1.msra.mxu0 0.0
  %2361 = vmatprep.subr.mxu0 0.0
  %2362 = vmatpush1.msra.mxu0 0.0
  %2363 = vmatprep.mubr.f32.mxu0 0.0
  %2364 = vmatmul.mubr.f32.gmra.mrb[0].mxu0 %v2297
  %v2365 = vpop.f32.mrb[0].mxu0
  %v2366 = vadd.f32 0.0, %v2365
  %v2367 = vpop.f32.mrb[0].mxu0
  %2368 = vdwg.mxu0
  %2369 = vrot.lane.b32.xlu0 %v2092, 96
  %v2370 = vpop.permute.xlu0 %2369
  %2371 = vrot.lane.b32.xlu0 %v2097, 96
  %v2372 = vpop.permute.xlu0 %2371
  %v2376 = vsel %vm2265, %v2287, 0
  %2378 = vmatprep.subr.mxu0 0.0
  %2379 = vmatpush1.msra.mxu0 %v2370
  %2380 = vmatprep.subr.mxu0 0.0
  %2381 = vmatpush1.msra.mxu0 %v2372
  %2382 = vmatprep.subr.mxu0 0.0
  %2383 = vmatpush1.msra.mxu0 0.0
  %2384 = vmatprep.subr.mxu0 0.0
  %2385 = vmatpush1.msra.mxu0 0.0
  %2386 = vmatprep.subr.mxu0 0.0
  %2387 = vmatpush1.msra.mxu0 0.0
  %2388 = vmatprep.subr.mxu0 0.0
  %2389 = vmatpush1.msra.mxu0 0.0
  %2390 = vmatprep.subr.mxu0 0.0
  %2391 = vmatpush1.msra.mxu0 0.0
  %2392 = vmatprep.subr.mxu0 0.0
  %2393 = vmatpush1.msra.mxu0 0.0
  %2394 = vmatprep.subr.mxu0 0.0
  %2395 = vmatpush1.msra.mxu0 0.0
  %2396 = vmatprep.subr.mxu0 0.0
  %2397 = vmatpush1.msra.mxu0 0.0
  %2398 = vmatprep.subr.mxu0 0.0
  %2399 = vmatpush1.msra.mxu0 0.0
  %2400 = vmatprep.subr.mxu0 0.0
  %2401 = vmatpush1.msra.mxu0 0.0
  %2402 = vmatprep.subr.mxu0 0.0
  %2403 = vmatpush1.msra.mxu0 0.0
  %2404 = vmatprep.subr.mxu0 0.0
  %2405 = vmatpush1.msra.mxu0 0.0
  %2406 = vmatprep.subr.mxu0 0.0
  %2407 = vmatpush1.msra.mxu0 0.0
  %2408 = vmatprep.subr.mxu0 0.0
  %2409 = vmatpush1.msra.mxu0 0.0
  %2410 = vmatprep.subr.mxu0 0.0
  %2411 = vmatpush1.msra.mxu0 0.0
  %2412 = vmatprep.subr.mxu0 0.0
  %2413 = vmatpush1.msra.mxu0 0.0
  %2414 = vmatprep.subr.mxu0 0.0
  %2415 = vmatpush1.msra.mxu0 0.0
  %2416 = vmatprep.subr.mxu0 0.0
  %2417 = vmatpush1.msra.mxu0 0.0
  %2418 = vmatprep.subr.mxu0 0.0
  %2419 = vmatpush1.msra.mxu0 0.0
  %2420 = vmatprep.subr.mxu0 0.0
  %2421 = vmatpush1.msra.mxu0 0.0
  %2422 = vmatprep.subr.mxu0 0.0
  %2423 = vmatpush1.msra.mxu0 0.0
  %2424 = vmatprep.subr.mxu0 0.0
  %2425 = vmatpush1.msra.mxu0 0.0
  %2426 = vmatprep.subr.mxu0 0.0
  %2427 = vmatpush1.msra.mxu0 0.0
  %2428 = vmatprep.subr.mxu0 0.0
  %2429 = vmatpush1.msra.mxu0 0.0
  %2430 = vmatprep.subr.mxu0 0.0
  %2431 = vmatpush1.msra.mxu0 0.0
  %2432 = vmatprep.subr.mxu0 0.0
  %2433 = vmatpush1.msra.mxu0 0.0
  %2434 = vmatprep.subr.mxu0 0.0
  %2435 = vmatpush1.msra.mxu0 0.0
  %2436 = vmatprep.subr.mxu0 0.0
  %2437 = vmatpush1.msra.mxu0 0.0
  %2438 = vmatprep.subr.mxu0 0.0
  %2439 = vmatpush1.msra.mxu0 0.0
  %2440 = vmatprep.subr.mxu0 0.0
  %2441 = vmatpush1.msra.mxu0 0.0
  %2442 = vmatprep.mubr.f32.mxu0 0.0
  %2443 = vmatmul.mubr.f32.gmra.mrb[0].mxu0 %v2376
  %v2444 = vpop.f32.mrb[0].mxu0
  %v2445 = vadd.f32 0.0, %v2444
  %v2446 = vpop.f32.mrb[0].mxu0
  %2447 = vdwg.mxu0
  %2448 = vrot.lane.b32.xlu0 %v1984, 120
  %v2449 = vpop.permute.xlu0 %2448
  %2450 = vrot.lane.b32.xlu0 %v2082, 120
  %v2451 = vpop.permute.xlu0 %2450
  %2452 = vrot.lane.b32.xlu0 %v2087, 120
  %v2453 = vpop.permute.xlu0 %2452
  %v2454 = vsel %vm181, %v2449, 0
  %v2456 = vsel %vm181, %v2451, 0
  %v2458 = vsel %vm181, %v2453, 0
  %2460 = vmatprep.subr.mxu0 0.0
  %2461 = vmatpush1.xpose.msra.mxu0 %v2456
  %2462 = vmatprep.subr.mxu0 0.0
  %2463 = vmatpush1.xpose.msra.mxu0 %v2458
  %2464 = vmatprep.subr.mxu0 0.0
  %2465 = vmatpush1.xpose.msra.mxu0 0.0
  %2466 = vmatprep.subr.mxu0 0.0
  %2467 = vmatpush1.xpose.msra.mxu0 0.0
  %2468 = vmatprep.subr.mxu0 0.0
  %2469 = vmatpush1.xpose.msra.mxu0 0.0
  %2470 = vmatprep.subr.mxu0 0.0
  %2471 = vmatpush1.xpose.msra.mxu0 0.0
  %2472 = vmatprep.subr.mxu0 0.0
  %2473 = vmatpush1.xpose.msra.mxu0 0.0
  %2474 = vmatprep.subr.mxu0 0.0
  %2475 = vmatpush1.xpose.msra.mxu0 0.0
  %2476 = vmatprep.subr.mxu0 0.0
  %2477 = vmatpush1.xpose.msra.mxu0 0.0
  %2478 = vmatprep.subr.mxu0 0.0
  %2479 = vmatpush1.xpose.msra.mxu0 0.0
  %2480 = vmatprep.subr.mxu0 0.0
  %2481 = vmatpush1.xpose.msra.mxu0 0.0
  %2482 = vmatprep.subr.mxu0 0.0
  %2483 = vmatpush1.xpose.msra.mxu0 0.0
  %2484 = vmatprep.subr.mxu0 0.0
  %2485 = vmatpush1.xpose.msra.mxu0 0.0
  %2486 = vmatprep.subr.mxu0 0.0
  %2487 = vmatpush1.xpose.msra.mxu0 0.0
  %2488 = vmatprep.subr.mxu0 0.0
  %2489 = vmatpush1.xpose.msra.mxu0 0.0
  %2490 = vmatprep.subr.mxu0 0.0
  %2491 = vmatpush1.xpose.msra.mxu0 0.0
  %2492 = vmatprep.subr.mxu0 0.0
  %2493 = vmatpush1.xpose.msra.mxu0 0.0
  %2494 = vmatprep.subr.mxu0 0.0
  %2495 = vmatpush1.xpose.msra.mxu0 0.0
  %2496 = vmatprep.subr.mxu0 0.0
  %2497 = vmatpush1.xpose.msra.mxu0 0.0
  %2498 = vmatprep.subr.mxu0 0.0
  %2499 = vmatpush1.xpose.msra.mxu0 0.0
  %2500 = vmatprep.subr.mxu0 0.0
  %2501 = vmatpush1.xpose.msra.mxu0 0.0
  %2502 = vmatprep.subr.mxu0 0.0
  %2503 = vmatpush1.xpose.msra.mxu0 0.0
  %2504 = vmatprep.subr.mxu0 0.0
  %2505 = vmatpush1.xpose.msra.mxu0 0.0
  %2506 = vmatprep.subr.mxu0 0.0
  %2507 = vmatpush1.xpose.msra.mxu0 0.0
  %2508 = vmatprep.subr.mxu0 0.0
  %2509 = vmatpush1.xpose.msra.mxu0 0.0
  %2510 = vmatprep.subr.mxu0 0.0
  %2511 = vmatpush1.xpose.msra.mxu0 0.0
  %2512 = vmatprep.subr.mxu0 0.0
  %2513 = vmatpush1.xpose.msra.mxu0 0.0
  %2514 = vmatprep.subr.mxu0 0.0
  %2515 = vmatpush1.xpose.msra.mxu0 0.0
  %2516 = vmatprep.subr.mxu0 0.0
  %2517 = vmatpush1.xpose.msra.mxu0 0.0
  %2518 = vmatprep.subr.mxu0 0.0
  %2519 = vmatpush1.xpose.msra.mxu0 0.0
  %2520 = vmatprep.subr.mxu0 0.0
  %2521 = vmatpush1.xpose.msra.mxu0 0.0
  %2522 = vmatprep.subr.mxu0 0.0
  %2523 = vmatpush1.xpose.msra.mxu0 0.0
  %2524 = vmatprep.mubr.f32.mxu0 0.0
  %2525 = vmatmul.mubr.f32.gmra.mrb[0].mxu0 %v2454
  %v2526 = vpop.f32.mrb[0].mxu0
  %v2527 = vadd.f32 0.0, %v2526
  %v2528 = vpop.f32.mrb[0].mxu0
  %2529 = vdwg.mxu0
  %2530 = vrot.lane.b32.xlu0 %v1989, 120
  %v2531 = vpop.permute.xlu0 %2530
  %2532 = vrot.lane.b32.xlu0 %v2092, 120
  %v2533 = vpop.permute.xlu0 %2532
  %2534 = vrot.lane.b32.xlu0 %v2097, 120
  %v2535 = vpop.permute.xlu0 %2534
  %v2536 = vsel %vm181, %v2531, 0
  %v2538 = vsel %vm181, %v2533, 0
  %v2540 = vsel %vm181, %v2535, 0
  %2542 = vmatprep.subr.mxu0 0.0
  %2543 = vmatpush1.xpose.msra.mxu0 %v2538
  %2544 = vmatprep.subr.mxu0 0.0
  %2545 = vmatpush1.xpose.msra.mxu0 %v2540
  %2546 = vmatprep.subr.mxu0 0.0
  %2547 = vmatpush1.xpose.msra.mxu0 0.0
  %2548 = vmatprep.subr.mxu0 0.0
  %2549 = vmatpush1.xpose.msra.mxu0 0.0
  %2550 = vmatprep.subr.mxu0 0.0
  %2551 = vmatpush1.xpose.msra.mxu0 0.0
  %2552 = vmatprep.subr.mxu0 0.0
  %2553 = vmatpush1.xpose.msra.mxu0 0.0
  %2554 = vmatprep.subr.mxu0 0.0
  %2555 = vmatpush1.xpose.msra.mxu0 0.0
  %2556 = vmatprep.subr.mxu0 0.0
  %2557 = vmatpush1.xpose.msra.mxu0 0.0
  %2558 = vmatprep.subr.mxu0 0.0
  %2559 = vmatpush1.xpose.msra.mxu0 0.0
  %2560 = vmatprep.subr.mxu0 0.0
  %2561 = vmatpush1.xpose.msra.mxu0 0.0
  %2562 = vmatprep.subr.mxu0 0.0
  %2563 = vmatpush1.xpose.msra.mxu0 0.0
  %2564 = vmatprep.subr.mxu0 0.0
  %2565 = vmatpush1.xpose.msra.mxu0 0.0
  %2566 = vmatprep.subr.mxu0 0.0
  %2567 = vmatpush1.xpose.msra.mxu0 0.0
  %2568 = vmatprep.subr.mxu0 0.0
  %2569 = vmatpush1.xpose.msra.mxu0 0.0
  %2570 = vmatprep.subr.mxu0 0.0
  %2571 = vmatpush1.xpose.msra.mxu0 0.0
  %2572 = vmatprep.subr.mxu0 0.0
  %2573 = vmatpush1.xpose.msra.mxu0 0.0
  %2574 = vmatprep.subr.mxu0 0.0
  %2575 = vmatpush1.xpose.msra.mxu0 0.0
  %2576 = vmatprep.subr.mxu0 0.0
  %2577 = vmatpush1.xpose.msra.mxu0 0.0
  %2578 = vmatprep.subr.mxu0 0.0
  %2579 = vmatpush1.xpose.msra.mxu0 0.0
  %2580 = vmatprep.subr.mxu0 0.0
  %2581 = vmatpush1.xpose.msra.mxu0 0.0
  %2582 = vmatprep.subr.mxu0 0.0
  %2583 = vmatpush1.xpose.msra.mxu0 0.0
  %2584 = vmatprep.subr.mxu0 0.0
  %2585 = vmatpush1.xpose.msra.mxu0 0.0
  %2586 = vmatprep.subr.mxu0 0.0
  %2587 = vmatpush1.xpose.msra.mxu0 0.0
  %2588 = vmatprep.subr.mxu0 0.0
  %2589 = vmatpush1.xpose.msra.mxu0 0.0
  %2590 = vmatprep.subr.mxu0 0.0
  %2591 = vmatpush1.xpose.msra.mxu0 0.0
  %2592 = vmatprep.subr.mxu0 0.0
  %2593 = vmatpush1.xpose.msra.mxu0 0.0
  %2594 = vmatprep.subr.mxu0 0.0
  %2595 = vmatpush1.xpose.msra.mxu0 0.0
  %2596 = vmatprep.subr.mxu0 0.0
  %2597 = vmatpush1.xpose.msra.mxu0 0.0
  %2598 = vmatprep.subr.mxu0 0.0
  %2599 = vmatpush1.xpose.msra.mxu0 0.0
  %2600 = vmatprep.subr.mxu0 0.0
  %2601 = vmatpush1.xpose.msra.mxu0 0.0
  %2602 = vmatprep.subr.mxu0 0.0
  %2603 = vmatpush1.xpose.msra.mxu0 0.0
  %2604 = vmatprep.subr.mxu0 0.0
  %2605 = vmatpush1.xpose.msra.mxu0 0.0
  %2606 = vmatprep.mubr.f32.mxu0 0.0
  %2607 = vmatmul.mubr.f32.gmra.mrb[0].mxu0 %v2536
  %v2608 = vpop.f32.mrb[0].mxu0
  %v2609 = vadd.f32 0.0, %v2608
  %v2610 = vpop.f32.mrb[0].mxu0
  %2611 = vdwg.mxu0
  %v2612 = vmul.f32 %v2527, 0.35355338
  %v2613 = vmul.f32 %v2609, 0.35355338
  %v2614 = vsel %vm2265, %v2612, -inf
  %2615 = vmax.xlane.f32.xlu0 %v2614
  %v2616 = vpop.xlane.xlu0 %2615
  %v2617 = vsel %vm2265, %v2613, -inf
  %2618 = vmax.xlane.f32.xlu0 %v2617
  %v2619 = vpop.xlane.xlu0 %2618
  %v2620 = vsub.f32 %v2612, %v2616
  %v2621 = vsub.f32 %v2613, %v2619
  %v2622 = vmul.f32 %v2620, 1.442695
  %v2623 = vpow.pop %v2622
  %v2624 = vmul.f32 %v2621, 1.442695
  %v2625 = vpow.pop %v2624
  %v2626 = vsel %vm2265, %v2623, 0.0
  %2627 = vadd.xlane.f32.xlu0 %v2626
  %v2628 = vpop.xlane.xlu0 %2627
  %v2629 = vsel %vm2265, %v2625, 0.0
  %2630 = vadd.xlane.f32.xlu0 %v2629
  %v2631 = vpop.xlane.xlu0 %2630
  %v2632 = vrcp.pop %v2628
  %v2633 = vrcp.pop %v2631
  %v2634 = vmul.f32 %v2623, %v2632
  %v2635 = vmul.f32 %v2625, %v2633
  %v2636 = vadd.f32 %v2288, %v2634
  %v2637 = vadd.f32 %v2289, %v2635
  %2638 = vrot.lane.b32.xlu0 %v2082, 88
  %v2639 = vpop.permute.xlu0 %2638
  %2640 = vrot.lane.b32.xlu0 %v2087, 88
  %v2641 = vpop.permute.xlu0 %2640
  %v2645 = vsel %vm2265, %v2634, 0
  %2647 = vmatprep.subr.mxu0 0.0
  %2648 = vmatpush1.msra.mxu0 %v2639
  %2649 = vmatprep.subr.mxu0 0.0
  %2650 = vmatpush1.msra.mxu0 %v2641
  %2651 = vmatprep.subr.mxu0 0.0
  %2652 = vmatpush1.msra.mxu0 0.0
  %2653 = vmatprep.subr.mxu0 0.0
  %2654 = vmatpush1.msra.mxu0 0.0
  %2655 = vmatprep.subr.mxu0 0.0
  %2656 = vmatpush1.msra.mxu0 0.0
  %2657 = vmatprep.subr.mxu0 0.0
  %2658 = vmatpush1.msra.mxu0 0.0
  %2659 = vmatprep.subr.mxu0 0.0
  %2660 = vmatpush1.msra.mxu0 0.0
  %2661 = vmatprep.subr.mxu0 0.0
  %2662 = vmatpush1.msra.mxu0 0.0
  %2663 = vmatprep.subr.mxu0 0.0
  %2664 = vmatpush1.msra.mxu0 0.0
  %2665 = vmatprep.subr.mxu0 0.0
  %2666 = vmatpush1.msra.mxu0 0.0
  %2667 = vmatprep.subr.mxu0 0.0
  %2668 = vmatpush1.msra.mxu0 0.0
  %2669 = vmatprep.subr.mxu0 0.0
  %2670 = vmatpush1.msra.mxu0 0.0
  %2671 = vmatprep.subr.mxu0 0.0
  %2672 = vmatpush1.msra.mxu0 0.0
  %2673 = vmatprep.subr.mxu0 0.0
  %2674 = vmatpush1.msra.mxu0 0.0
  %2675 = vmatprep.subr.mxu0 0.0
  %2676 = vmatpush1.msra.mxu0 0.0
  %2677 = vmatprep.subr.mxu0 0.0
  %2678 = vmatpush1.msra.mxu0 0.0
  %2679 = vmatprep.subr.mxu0 0.0
  %2680 = vmatpush1.msra.mxu0 0.0
  %2681 = vmatprep.subr.mxu0 0.0
  %2682 = vmatpush1.msra.mxu0 0.0
  %2683 = vmatprep.subr.mxu0 0.0
  %2684 = vmatpush1.msra.mxu0 0.0
  %2685 = vmatprep.subr.mxu0 0.0
  %2686 = vmatpush1.msra.mxu0 0.0
  %2687 = vmatprep.subr.mxu0 0.0
  %2688 = vmatpush1.msra.mxu0 0.0
  %2689 = vmatprep.subr.mxu0 0.0
  %2690 = vmatpush1.msra.mxu0 0.0
  %2691 = vmatprep.subr.mxu0 0.0
  %2692 = vmatpush1.msra.mxu0 0.0
  %2693 = vmatprep.subr.mxu0 0.0
  %2694 = vmatpush1.msra.mxu0 0.0
  %2695 = vmatprep.subr.mxu0 0.0
  %2696 = vmatpush1.msra.mxu0 0.0
  %2697 = vmatprep.subr.mxu0 0.0
  %2698 = vmatpush1.msra.mxu0 0.0
  %2699 = vmatprep.subr.mxu0 0.0
  %2700 = vmatpush1.msra.mxu0 0.0
  %2701 = vmatprep.subr.mxu0 0.0
  %2702 = vmatpush1.msra.mxu0 0.0
  %2703 = vmatprep.subr.mxu0 0.0
  %2704 = vmatpush1.msra.mxu0 0.0
  %2705 = vmatprep.subr.mxu0 0.0
  %2706 = vmatpush1.msra.mxu0 0.0
  %2707 = vmatprep.subr.mxu0 0.0
  %2708 = vmatpush1.msra.mxu0 0.0
  %2709 = vmatprep.subr.mxu0 0.0
  %2710 = vmatpush1.msra.mxu0 0.0
  %2711 = vmatprep.mubr.f32.mxu0 0.0
  %2712 = vmatmul.mubr.f32.gmra.mrb[0].mxu0 %v2645
  %v2713 = vpop.f32.mrb[0].mxu0
  %v2714 = vadd.f32 0.0, %v2713
  %v2715 = vpop.f32.mrb[0].mxu0
  %2716 = vdwg.mxu0
  %2717 = vrot.lane.b32.xlu0 %v2092, 88
  %v2718 = vpop.permute.xlu0 %2717
  %2719 = vrot.lane.b32.xlu0 %v2097, 88
  %v2720 = vpop.permute.xlu0 %2719
  %v2724 = vsel %vm2265, %v2635, 0
  %2726 = vmatprep.subr.mxu0 0.0
  %2727 = vmatpush1.msra.mxu0 %v2718
  %2728 = vmatprep.subr.mxu0 0.0
  %2729 = vmatpush1.msra.mxu0 %v2720
  %2730 = vmatprep.subr.mxu0 0.0
  %2731 = vmatpush1.msra.mxu0 0.0
  %2732 = vmatprep.subr.mxu0 0.0
  %2733 = vmatpush1.msra.mxu0 0.0
  %2734 = vmatprep.subr.mxu0 0.0
  %2735 = vmatpush1.msra.mxu0 0.0
  %2736 = vmatprep.subr.mxu0 0.0
  %2737 = vmatpush1.msra.mxu0 0.0
  %2738 = vmatprep.subr.mxu0 0.0
  %2739 = vmatpush1.msra.mxu0 0.0
  %2740 = vmatprep.subr.mxu0 0.0
  %2741 = vmatpush1.msra.mxu0 0.0
  %2742 = vmatprep.subr.mxu0 0.0
  %2743 = vmatpush1.msra.mxu0 0.0
  %2744 = vmatprep.subr.mxu0 0.0
  %2745 = vmatpush1.msra.mxu0 0.0
  %2746 = vmatprep.subr.mxu0 0.0
  %2747 = vmatpush1.msra.mxu0 0.0
  %2748 = vmatprep.subr.mxu0 0.0
  %2749 = vmatpush1.msra.mxu0 0.0
  %2750 = vmatprep.subr.mxu0 0.0
  %2751 = vmatpush1.msra.mxu0 0.0
  %2752 = vmatprep.subr.mxu0 0.0
  %2753 = vmatpush1.msra.mxu0 0.0
  %2754 = vmatprep.subr.mxu0 0.0
  %2755 = vmatpush1.msra.mxu0 0.0
  %2756 = vmatprep.subr.mxu0 0.0
  %2757 = vmatpush1.msra.mxu0 0.0
  %2758 = vmatprep.subr.mxu0 0.0
  %2759 = vmatpush1.msra.mxu0 0.0
  %2760 = vmatprep.subr.mxu0 0.0
  %2761 = vmatpush1.msra.mxu0 0.0
  %2762 = vmatprep.subr.mxu0 0.0
  %2763 = vmatpush1.msra.mxu0 0.0
  %2764 = vmatprep.subr.mxu0 0.0
  %2765 = vmatpush1.msra.mxu0 0.0
  %2766 = vmatprep.subr.mxu0 0.0
  %2767 = vmatpush1.msra.mxu0 0.0
  %2768 = vmatprep.subr.mxu0 0.0
  %2769 = vmatpush1.msra.mxu0 0.0
  %2770 = vmatprep.subr.mxu0 0.0
  %2771 = vmatpush1.msra.mxu0 0.0
  %2772 = vmatprep.subr.mxu0 0.0
  %2773 = vmatpush1.msra.mxu0 0.0
  %2774 = vmatprep.subr.mxu0 0.0
  %2775 = vmatpush1.msra.mxu0 0.0
  %2776 = vmatprep.subr.mxu0 0.0
  %2777 = vmatpush1.msra.mxu0 0.0
  %2778 = vmatprep.subr.mxu0 0.0
  %2779 = vmatpush1.msra.mxu0 0.0
  %2780 = vmatprep.subr.mxu0 0.0
  %2781 = vmatpush1.msra.mxu0 0.0
  %2782 = vmatprep.subr.mxu0 0.0
  %2783 = vmatpush1.msra.mxu0 0.0
  %2784 = vmatprep.subr.mxu0 0.0
  %2785 = vmatpush1.msra.mxu0 0.0
  %2786 = vmatprep.subr.mxu0 0.0
  %2787 = vmatpush1.msra.mxu0 0.0
  %2788 = vmatprep.subr.mxu0 0.0
  %2789 = vmatpush1.msra.mxu0 0.0
  %2790 = vmatprep.mubr.f32.mxu0 0.0
  %2791 = vmatmul.mubr.f32.gmra.mrb[0].mxu0 %v2724
  %v2792 = vpop.f32.mrb[0].mxu0
  %v2793 = vadd.f32 0.0, %v2792
  %v2794 = vpop.f32.mrb[0].mxu0
  %2795 = vdwg.mxu0
  %v2797 = vsel %vm181, %v2714, 0
  %v2800 = vsel %vm181, %v2793, 0
  %2802 = vmatprep.subr.mxu0 0.0
  %2803 = vmatpush1.msra.mxu0 %v2101
  %2804 = vmatprep.subr.mxu0 0.0
  %2805 = vmatpush1.msra.mxu0 0.0
  %2806 = vmatprep.subr.mxu0 0.0
  %2807 = vmatpush1.msra.mxu0 0.0
  %2808 = vmatprep.subr.mxu0 0.0
  %2809 = vmatpush1.msra.mxu0 0.0
  %2810 = vmatprep.subr.mxu0 0.0
  %2811 = vmatpush1.msra.mxu0 0.0
  %2812 = vmatprep.subr.mxu0 0.0
  %2813 = vmatpush1.msra.mxu0 0.0
  %2814 = vmatprep.subr.mxu0 0.0
  %2815 = vmatpush1.msra.mxu0 0.0
  %2816 = vmatprep.subr.mxu0 0.0
  %2817 = vmatpush1.msra.mxu0 0.0
  %2818 = vmatprep.subr.mxu0 0.0
  %2819 = vmatpush1.msra.mxu0 0.0
  %2820 = vmatprep.subr.mxu0 0.0
  %2821 = vmatpush1.msra.mxu0 0.0
  %2822 = vmatprep.subr.mxu0 0.0
  %2823 = vmatpush1.msra.mxu0 0.0
  %2824 = vmatprep.subr.mxu0 0.0
  %2825 = vmatpush1.msra.mxu0 0.0
  %2826 = vmatprep.subr.mxu0 0.0
  %2827 = vmatpush1.msra.mxu0 0.0
  %2828 = vmatprep.subr.mxu0 0.0
  %2829 = vmatpush1.msra.mxu0 0.0
  %2830 = vmatprep.subr.mxu0 0.0
  %2831 = vmatpush1.msra.mxu0 0.0
  %2832 = vmatprep.subr.mxu0 0.0
  %2833 = vmatpush1.msra.mxu0 0.0
  %2834 = vmatprep.subr.mxu0 0.0
  %2835 = vmatpush1.msra.mxu0 0.0
  %2836 = vmatprep.subr.mxu0 0.0
  %2837 = vmatpush1.msra.mxu0 0.0
  %2838 = vmatprep.subr.mxu0 0.0
  %2839 = vmatpush1.msra.mxu0 0.0
  %2840 = vmatprep.subr.mxu0 0.0
  %2841 = vmatpush1.msra.mxu0 0.0
  %2842 = vmatprep.subr.mxu0 0.0
  %2843 = vmatpush1.msra.mxu0 0.0
  %2844 = vmatprep.subr.mxu0 0.0
  %2845 = vmatpush1.msra.mxu0 0.0
  %2846 = vmatprep.subr.mxu0 0.0
  %2847 = vmatpush1.msra.mxu0 0.0
  %2848 = vmatprep.subr.mxu0 0.0
  %2849 = vmatpush1.msra.mxu0 0.0
  %2850 = vmatprep.subr.mxu0 0.0
  %2851 = vmatpush1.msra.mxu0 0.0
  %2852 = vmatprep.subr.mxu0 0.0
  %2853 = vmatpush1.msra.mxu0 0.0
  %2854 = vmatprep.subr.mxu0 0.0
  %2855 = vmatpush1.msra.mxu0 0.0
  %2856 = vmatprep.subr.mxu0 0.0
  %2857 = vmatpush1.msra.mxu0 0.0
  %2858 = vmatprep.subr.mxu0 0.0
  %2859 = vmatpush1.msra.mxu0 0.0
  %2860 = vmatprep.subr.mxu0 0.0
  %2861 = vmatpush1.msra.mxu0 0.0
  %2862 = vmatprep.subr.mxu0 0.0
  %2863 = vmatpush1.msra.mxu0 0.0
  %2864 = vmatprep.subr.mxu0 0.0
  %2865 = vmatpush1.msra.mxu0 0.0
  %2866 = vmatprep.mubr.f32.mxu0 0.0
  %2867 = vmatmul.mubr.f32.gmra.mrb[0].mxu0 %v2797
  %v2868 = vpop.f32.mrb[0].mxu0
  %v2869 = vadd.f32 0.0, %v2868
  %v2870 = vpop.f32.mrb[0].mxu0
  %2871 = vmatprep.mubr.f32.mxu0 0.0
  %2872 = vmatmul.mubr.f32.gmra.mrb[0].mxu0 %v2800
  %v2873 = vpop.f32.mrb[0].mxu0
  %v2874 = vadd.f32 0.0, %v2873
  %v2875 = vpop.f32.mrb[0].mxu0
  %2876 = vdwg.mxu0
  %v2878 = vsel %vm181, %v2366, 0
  %v2881 = vsel %vm181, %v2445, 0
  %2883 = vmatprep.subr.mxu0 0.0
  %2884 = vmatpush1.msra.mxu0 %v2100
  %2885 = vmatprep.subr.mxu0 0.0
  %2886 = vmatpush1.msra.mxu0 0.0
  %2887 = vmatprep.subr.mxu0 0.0
  %2888 = vmatpush1.msra.mxu0 0.0
  %2889 = vmatprep.subr.mxu0 0.0
  %2890 = vmatpush1.msra.mxu0 0.0
  %2891 = vmatprep.subr.mxu0 0.0
  %2892 = vmatpush1.msra.mxu0 0.0
  %2893 = vmatprep.subr.mxu0 0.0
  %2894 = vmatpush1.msra.mxu0 0.0
  %2895 = vmatprep.subr.mxu0 0.0
  %2896 = vmatpush1.msra.mxu0 0.0
  %2897 = vmatprep.subr.mxu0 0.0
  %2898 = vmatpush1.msra.mxu0 0.0
  %2899 = vmatprep.subr.mxu0 0.0
  %2900 = vmatpush1.msra.mxu0 0.0
  %2901 = vmatprep.subr.mxu0 0.0
  %2902 = vmatpush1.msra.mxu0 0.0
  %2903 = vmatprep.subr.mxu0 0.0
  %2904 = vmatpush1.msra.mxu0 0.0
  %2905 = vmatprep.subr.mxu0 0.0
  %2906 = vmatpush1.msra.mxu0 0.0
  %2907 = vmatprep.subr.mxu0 0.0
  %2908 = vmatpush1.msra.mxu0 0.0
  %2909 = vmatprep.subr.mxu0 0.0
  %2910 = vmatpush1.msra.mxu0 0.0
  %2911 = vmatprep.subr.mxu0 0.0
  %2912 = vmatpush1.msra.mxu0 0.0
  %2913 = vmatprep.subr.mxu0 0.0
  %2914 = vmatpush1.msra.mxu0 0.0
  %2915 = vmatprep.subr.mxu0 0.0
  %2916 = vmatpush1.msra.mxu0 0.0
  %2917 = vmatprep.subr.mxu0 0.0
  %2918 = vmatpush1.msra.mxu0 0.0
  %2919 = vmatprep.subr.mxu0 0.0
  %2920 = vmatpush1.msra.mxu0 0.0
  %2921 = vmatprep.subr.mxu0 0.0
  %2922 = vmatpush1.msra.mxu0 0.0
  %2923 = vmatprep.subr.mxu0 0.0
  %2924 = vmatpush1.msra.mxu0 0.0
  %2925 = vmatprep.subr.mxu0 0.0
  %2926 = vmatpush1.msra.mxu0 0.0
  %2927 = vmatprep.subr.mxu0 0.0
  %2928 = vmatpush1.msra.mxu0 0.0
  %2929 = vmatprep.subr.mxu0 0.0
  %2930 = vmatpush1.msra.mxu0 0.0
  %2931 = vmatprep.subr.mxu0 0.0
  %2932 = vmatpush1.msra.mxu0 0.0
  %2933 = vmatprep.subr.mxu0 0.0
  %2934 = vmatpush1.msra.mxu0 0.0
  %2935 = vmatprep.subr.mxu0 0.0
  %2936 = vmatpush1.msra.mxu0 0.0
  %2937 = vmatprep.subr.mxu0 0.0
  %2938 = vmatpush1.msra.mxu0 0.0
  %2939 = vmatprep.subr.mxu0 0.0
  %2940 = vmatpush1.msra.mxu0 0.0
  %2941 = vmatprep.subr.mxu0 0.0
  %2942 = vmatpush1.msra.mxu0 0.0
  %2943 = vmatprep.subr.mxu0 0.0
  %2944 = vmatpush1.msra.mxu0 0.0
  %2945 = vmatprep.subr.mxu0 0.0
  %2946 = vmatpush1.msra.mxu0 0.0
  %2947 = vmatprep.mubr.f32.mxu0 0.0
  %2948 = vmatmul.mubr.f32.gmra.mrb[0].mxu0 %v2878
  %v2949 = vpop.f32.mrb[0].mxu0
  %v2950 = vadd.f32 %v2869, %v2949
  %v2951 = vpop.f32.mrb[0].mxu0
  %2952 = vmatprep.mubr.f32.mxu0 0.0
  %2953 = vmatmul.mubr.f32.gmra.mrb[0].mxu0 %v2881
  %v2954 = vpop.f32.mrb[0].mxu0
  %v2955 = vadd.f32 %v2874, %v2954
  %v2956 = vpop.f32.mrb[0].mxu0
  %2957 = vdwg.mxu0
  %2958 = vrot.lane.b32.xlu0 %v1984, 112
  %v2959 = vpop.permute.xlu0 %2958
  %2960 = vrot.lane.b32.xlu0 %v2082, 112
  %v2961 = vpop.permute.xlu0 %2960
  %2962 = vrot.lane.b32.xlu0 %v2087, 112
  %v2963 = vpop.permute.xlu0 %2962
  %v2964 = vsel %vm181, %v2959, 0
  %v2966 = vsel %vm181, %v2961, 0
  %v2968 = vsel %vm181, %v2963, 0
  %2970 = vmatprep.subr.mxu0 0.0
  %2971 = vmatpush1.xpose.msra.mxu0 %v2966
  %2972 = vmatprep.subr.mxu0 0.0
  %2973 = vmatpush1.xpose.msra.mxu0 %v2968
  %2974 = vmatprep.subr.mxu0 0.0
  %2975 = vmatpush1.xpose.msra.mxu0 0.0
  %2976 = vmatprep.subr.mxu0 0.0
  %2977 = vmatpush1.xpose.msra.mxu0 0.0
  %2978 = vmatprep.subr.mxu0 0.0
  %2979 = vmatpush1.xpose.msra.mxu0 0.0
  %2980 = vmatprep.subr.mxu0 0.0
  %2981 = vmatpush1.xpose.msra.mxu0 0.0
  %2982 = vmatprep.subr.mxu0 0.0
  %2983 = vmatpush1.xpose.msra.mxu0 0.0
  %2984 = vmatprep.subr.mxu0 0.0
  %2985 = vmatpush1.xpose.msra.mxu0 0.0
  %2986 = vmatprep.subr.mxu0 0.0
  %2987 = vmatpush1.xpose.msra.mxu0 0.0
  %2988 = vmatprep.subr.mxu0 0.0
  %2989 = vmatpush1.xpose.msra.mxu0 0.0
  %2990 = vmatprep.subr.mxu0 0.0
  %2991 = vmatpush1.xpose.msra.mxu0 0.0
  %2992 = vmatprep.subr.mxu0 0.0
  %2993 = vmatpush1.xpose.msra.mxu0 0.0
  %2994 = vmatprep.subr.mxu0 0.0
  %2995 = vmatpush1.xpose.msra.mxu0 0.0
  %2996 = vmatprep.subr.mxu0 0.0
  %2997 = vmatpush1.xpose.msra.mxu0 0.0
  %2998 = vmatprep.subr.mxu0 0.0
  %2999 = vmatpush1.xpose.msra.mxu0 0.0
  %3000 = vmatprep.subr.mxu0 0.0
  %3001 = vmatpush1.xpose.msra.mxu0 0.0
  %3002 = vmatprep.subr.mxu0 0.0
  %3003 = vmatpush1.xpose.msra.mxu0 0.0
  %3004 = vmatprep.subr.mxu0 0.0
  %3005 = vmatpush1.xpose.msra.mxu0 0.0
  %3006 = vmatprep.subr.mxu0 0.0
  %3007 = vmatpush1.xpose.msra.mxu0 0.0
  %3008 = vmatprep.subr.mxu0 0.0
  %3009 = vmatpush1.xpose.msra.mxu0 0.0
  %3010 = vmatprep.subr.mxu0 0.0
  %3011 = vmatpush1.xpose.msra.mxu0 0.0
  %3012 = vmatprep.subr.mxu0 0.0
  %3013 = vmatpush1.xpose.msra.mxu0 0.0
  %3014 = vmatprep.subr.mxu0 0.0
  %3015 = vmatpush1.xpose.msra.mxu0 0.0
  %3016 = vmatprep.subr.mxu0 0.0
  %3017 = vmatpush1.xpose.msra.mxu0 0.0
  %3018 = vmatprep.subr.mxu0 0.0
  %3019 = vmatpush1.xpose.msra.mxu0 0.0
  %3020 = vmatprep.subr.mxu0 0.0
  %3021 = vmatpush1.xpose.msra.mxu0 0.0
  %3022 = vmatprep.subr.mxu0 0.0
  %3023 = vmatpush1.xpose.msra.mxu0 0.0
  %3024 = vmatprep.subr.mxu0 0.0
  %3025 = vmatpush1.xpose.msra.mxu0 0.0
  %3026 = vmatprep.subr.mxu0 0.0
  %3027 = vmatpush1.xpose.msra.mxu0 0.0
  %3028 = vmatprep.subr.mxu0 0.0
  %3029 = vmatpush1.xpose.msra.mxu0 0.0
  %3030 = vmatprep.subr.mxu0 0.0
  %3031 = vmatpush1.xpose.msra.mxu0 0.0
  %3032 = vmatprep.subr.mxu0 0.0
  %3033 = vmatpush1.xpose.msra.mxu0 0.0
  %3034 = vmatprep.mubr.f32.mxu0 0.0
  %3035 = vmatmul.mubr.f32.gmra.mrb[0].mxu0 %v2964
  %v3036 = vpop.f32.mrb[0].mxu0
  %v3037 = vadd.f32 0.0, %v3036
  %v3038 = vpop.f32.mrb[0].mxu0
  %3039 = vdwg.mxu0
  %3040 = vrot.lane.b32.xlu0 %v1989, 112
  %v3041 = vpop.permute.xlu0 %3040
  %3042 = vrot.lane.b32.xlu0 %v2092, 112
  %v3043 = vpop.permute.xlu0 %3042
  %3044 = vrot.lane.b32.xlu0 %v2097, 112
  %v3045 = vpop.permute.xlu0 %3044
  %v3046 = vsel %vm181, %v3041, 0
  %v3048 = vsel %vm181, %v3043, 0
  %v3050 = vsel %vm181, %v3045, 0
  %3052 = vmatprep.subr.mxu0 0.0
  %3053 = vmatpush1.xpose.msra.mxu0 %v3048
  %3054 = vmatprep.subr.mxu0 0.0
  %3055 = vmatpush1.xpose.msra.mxu0 %v3050
  %3056 = vmatprep.subr.mxu0 0.0
  %3057 = vmatpush1.xpose.msra.mxu0 0.0
  %3058 = vmatprep.subr.mxu0 0.0
  %3059 = vmatpush1.xpose.msra.mxu0 0.0
  %3060 = vmatprep.subr.mxu0 0.0
  %3061 = vmatpush1.xpose.msra.mxu0 0.0
  %3062 = vmatprep.subr.mxu0 0.0
  %3063 = vmatpush1.xpose.msra.mxu0 0.0
  %3064 = vmatprep.subr.mxu0 0.0
  %3065 = vmatpush1.xpose.msra.mxu0 0.0
  %3066 = vmatprep.subr.mxu0 0.0
  %3067 = vmatpush1.xpose.msra.mxu0 0.0
  %3068 = vmatprep.subr.mxu0 0.0
  %3069 = vmatpush1.xpose.msra.mxu0 0.0
  %3070 = vmatprep.subr.mxu0 0.0
  %3071 = vmatpush1.xpose.msra.mxu0 0.0
  %3072 = vmatprep.subr.mxu0 0.0
  %3073 = vmatpush1.xpose.msra.mxu0 0.0
  %3074 = vmatprep.subr.mxu0 0.0
  %3075 = vmatpush1.xpose.msra.mxu0 0.0
  %3076 = vmatprep.subr.mxu0 0.0
  %3077 = vmatpush1.xpose.msra.mxu0 0.0
  %3078 = vmatprep.subr.mxu0 0.0
  %3079 = vmatpush1.xpose.msra.mxu0 0.0
  %3080 = vmatprep.subr.mxu0 0.0
  %3081 = vmatpush1.xpose.msra.mxu0 0.0
  %3082 = vmatprep.subr.mxu0 0.0
  %3083 = vmatpush1.xpose.msra.mxu0 0.0
  %3084 = vmatprep.subr.mxu0 0.0
  %3085 = vmatpush1.xpose.msra.mxu0 0.0
  %3086 = vmatprep.subr.mxu0 0.0
  %3087 = vmatpush1.xpose.msra.mxu0 0.0
  %3088 = vmatprep.subr.mxu0 0.0
  %3089 = vmatpush1.xpose.msra.mxu0 0.0
  %3090 = vmatprep.subr.mxu0 0.0
  %3091 = vmatpush1.xpose.msra.mxu0 0.0
  %3092 = vmatprep.subr.mxu0 0.0
  %3093 = vmatpush1.xpose.msra.mxu0 0.0
  %3094 = vmatprep.subr.mxu0 0.0
  %3095 = vmatpush1.xpose.msra.mxu0 0.0
  %3096 = vmatprep.subr.mxu0 0.0
  %3097 = vmatpush1.xpose.msra.mxu0 0.0
  %3098 = vmatprep.subr.mxu0 0.0
  %3099 = vmatpush1.xpose.msra.mxu0 0.0
  %3100 = vmatprep.subr.mxu0 0.0
  %3101 = vmatpush1.xpose.msra.mxu0 0.0
  %3102 = vmatprep.subr.mxu0 0.0
  %3103 = vmatpush1.xpose.msra.mxu0 0.0
  %3104 = vmatprep.subr.mxu0 0.0
  %3105 = vmatpush1.xpose.msra.mxu0 0.0
  %3106 = vmatprep.subr.mxu0 0.0
  %3107 = vmatpush1.xpose.msra.mxu0 0.0
  %3108 = vmatprep.subr.mxu0 0.0
  %3109 = vmatpush1.xpose.msra.mxu0 0.0
  %3110 = vmatprep.subr.mxu0 0.0
  %3111 = vmatpush1.xpose.msra.mxu0 0.0
  %3112 = vmatprep.subr.mxu0 0.0
  %3113 = vmatpush1.xpose.msra.mxu0 0.0
  %3114 = vmatprep.subr.mxu0 0.0
  %3115 = vmatpush1.xpose.msra.mxu0 0.0
  %3116 = vmatprep.mubr.f32.mxu0 0.0
  %3117 = vmatmul.mubr.f32.gmra.mrb[0].mxu0 %v3046
  %v3118 = vpop.f32.mrb[0].mxu0
  %v3119 = vadd.f32 0.0, %v3118
  %v3120 = vpop.f32.mrb[0].mxu0
  %3121 = vdwg.mxu0
  %v3122 = vmul.f32 %v3037, 0.35355338
  %v3123 = vmul.f32 %v3119, 0.35355338
  %v3124 = vsel %vm2265, %v3122, -inf
  %3125 = vmax.xlane.f32.xlu0 %v3124
  %v3126 = vpop.xlane.xlu0 %3125
  %v3127 = vsel %vm2265, %v3123, -inf
  %3128 = vmax.xlane.f32.xlu0 %v3127
  %v3129 = vpop.xlane.xlu0 %3128
  %v3130 = vsub.f32 %v3122, %v3126
  %v3131 = vsub.f32 %v3123, %v3129
  %v3132 = vmul.f32 %v3130, 1.442695
  %v3133 = vpow.pop %v3132
  %v3134 = vmul.f32 %v3131, 1.442695
  %v3135 = vpow.pop %v3134
  %v3136 = vsel %vm2265, %v3133, 0.0
  %3137 = vadd.xlane.f32.xlu0 %v3136
  %v3138 = vpop.xlane.xlu0 %3137
  %v3139 = vsel %vm2265, %v3135, 0.0
  %3140 = vadd.xlane.f32.xlu0 %v3139
  %v3141 = vpop.xlane.xlu0 %3140
  %v3142 = vrcp.pop %v3138
  %v3143 = vrcp.pop %v3141
  %v3144 = vmul.f32 %v3133, %v3142
  %v3145 = vmul.f32 %v3135, %v3143
  %v3146 = vadd.f32 %v2636, %v3144
  %v3147 = vadd.f32 %v2637, %v3145
  %3148 = vrot.lane.b32.xlu0 %v2082, 80
  %v3149 = vpop.permute.xlu0 %3148
  %3150 = vrot.lane.b32.xlu0 %v2087, 80
  %v3151 = vpop.permute.xlu0 %3150
  %v3155 = vsel %vm2265, %v3144, 0
  %3157 = vmatprep.subr.mxu0 0.0
  %3158 = vmatpush1.msra.mxu0 %v3149
  %3159 = vmatprep.subr.mxu0 0.0
  %3160 = vmatpush1.msra.mxu0 %v3151
  %3161 = vmatprep.subr.mxu0 0.0
  %3162 = vmatpush1.msra.mxu0 0.0
  %3163 = vmatprep.subr.mxu0 0.0
  %3164 = vmatpush1.msra.mxu0 0.0
  %3165 = vmatprep.subr.mxu0 0.0
  %3166 = vmatpush1.msra.mxu0 0.0
  %3167 = vmatprep.subr.mxu0 0.0
  %3168 = vmatpush1.msra.mxu0 0.0
  %3169 = vmatprep.subr.mxu0 0.0
  %3170 = vmatpush1.msra.mxu0 0.0
  %3171 = vmatprep.subr.mxu0 0.0
  %3172 = vmatpush1.msra.mxu0 0.0
  %3173 = vmatprep.subr.mxu0 0.0
  %3174 = vmatpush1.msra.mxu0 0.0
  %3175 = vmatprep.subr.mxu0 0.0
  %3176 = vmatpush1.msra.mxu0 0.0
  %3177 = vmatprep.subr.mxu0 0.0
  %3178 = vmatpush1.msra.mxu0 0.0
  %3179 = vmatprep.subr.mxu0 0.0
  %3180 = vmatpush1.msra.mxu0 0.0
  %3181 = vmatprep.subr.mxu0 0.0
  %3182 = vmatpush1.msra.mxu0 0.0
  %3183 = vmatprep.subr.mxu0 0.0
  %3184 = vmatpush1.msra.mxu0 0.0
  %3185 = vmatprep.subr.mxu0 0.0
  %3186 = vmatpush1.msra.mxu0 0.0
  %3187 = vmatprep.subr.mxu0 0.0
  %3188 = vmatpush1.msra.mxu0 0.0
  %3189 = vmatprep.subr.mxu0 0.0
  %3190 = vmatpush1.msra.mxu0 0.0
  %3191 = vmatprep.subr.mxu0 0.0
  %3192 = vmatpush1.msra.mxu0 0.0
  %3193 = vmatprep.subr.mxu0 0.0
  %3194 = vmatpush1.msra.mxu0 0.0
  %3195 = vmatprep.subr.mxu0 0.0
  %3196 = vmatpush1.msra.mxu0 0.0
  %3197 = vmatprep.subr.mxu0 0.0
  %3198 = vmatpush1.msra.mxu0 0.0
  %3199 = vmatprep.subr.mxu0 0.0
  %3200 = vmatpush1.msra.mxu0 0.0
  %3201 = vmatprep.subr.mxu0 0.0
  %3202 = vmatpush1.msra.mxu0 0.0
  %3203 = vmatprep.subr.mxu0 0.0
  %3204 = vmatpush1.msra.mxu0 0.0
  %3205 = vmatprep.subr.mxu0 0.0
  %3206 = vmatpush1.msra.mxu0 0.0
  %3207 = vmatprep.subr.mxu0 0.0
  %3208 = vmatpush1.msra.mxu0 0.0
  %3209 = vmatprep.subr.mxu0 0.0
  %3210 = vmatpush1.msra.mxu0 0.0
  %3211 = vmatprep.subr.mxu0 0.0
  %3212 = vmatpush1.msra.mxu0 0.0
  %3213 = vmatprep.subr.mxu0 0.0
  %3214 = vmatpush1.msra.mxu0 0.0
  %3215 = vmatprep.subr.mxu0 0.0
  %3216 = vmatpush1.msra.mxu0 0.0
  %3217 = vmatprep.subr.mxu0 0.0
  %3218 = vmatpush1.msra.mxu0 0.0
  %3219 = vmatprep.subr.mxu0 0.0
  %3220 = vmatpush1.msra.mxu0 0.0
  %3221 = vmatprep.mubr.f32.mxu0 0.0
  %3222 = vmatmul.mubr.f32.gmra.mrb[0].mxu0 %v3155
  %v3223 = vpop.f32.mrb[0].mxu0
  %v3224 = vadd.f32 0.0, %v3223
  %v3225 = vpop.f32.mrb[0].mxu0
  %3226 = vdwg.mxu0
  %3227 = vrot.lane.b32.xlu0 %v2092, 80
  %v3228 = vpop.permute.xlu0 %3227
  %3229 = vrot.lane.b32.xlu0 %v2097, 80
  %v3230 = vpop.permute.xlu0 %3229
  %v3234 = vsel %vm2265, %v3145, 0
  %3236 = vmatprep.subr.mxu0 0.0
  %3237 = vmatpush1.msra.mxu0 %v3228
  %3238 = vmatprep.subr.mxu0 0.0
  %3239 = vmatpush1.msra.mxu0 %v3230
  %3240 = vmatprep.subr.mxu0 0.0
  %3241 = vmatpush1.msra.mxu0 0.0
  %3242 = vmatprep.subr.mxu0 0.0
  %3243 = vmatpush1.msra.mxu0 0.0
  %3244 = vmatprep.subr.mxu0 0.0
  %3245 = vmatpush1.msra.mxu0 0.0
  %3246 = vmatprep.subr.mxu0 0.0
  %3247 = vmatpush1.msra.mxu0 0.0
  %3248 = vmatprep.subr.mxu0 0.0
  %3249 = vmatpush1.msra.mxu0 0.0
  %3250 = vmatprep.subr.mxu0 0.0
  %3251 = vmatpush1.msra.mxu0 0.0
  %3252 = vmatprep.subr.mxu0 0.0
  %3253 = vmatpush1.msra.mxu0 0.0
  %3254 = vmatprep.subr.mxu0 0.0
  %3255 = vmatpush1.msra.mxu0 0.0
  %3256 = vmatprep.subr.mxu0 0.0
  %3257 = vmatpush1.msra.mxu0 0.0
  %3258 = vmatprep.subr.mxu0 0.0
  %3259 = vmatpush1.msra.mxu0 0.0
  %3260 = vmatprep.subr.mxu0 0.0
  %3261 = vmatpush1.msra.mxu0 0.0
  %3262 = vmatprep.subr.mxu0 0.0
  %3263 = vmatpush1.msra.mxu0 0.0
  %3264 = vmatprep.subr.mxu0 0.0
  %3265 = vmatpush1.msra.mxu0 0.0
  %3266 = vmatprep.subr.mxu0 0.0
  %3267 = vmatpush1.msra.mxu0 0.0
  %3268 = vmatprep.subr.mxu0 0.0
  %3269 = vmatpush1.msra.mxu0 0.0
  %3270 = vmatprep.subr.mxu0 0.0
  %3271 = vmatpush1.msra.mxu0 0.0
  %3272 = vmatprep.subr.mxu0 0.0
  %3273 = vmatpush1.msra.mxu0 0.0
  %3274 = vmatprep.subr.mxu0 0.0
  %3275 = vmatpush1.msra.mxu0 0.0
  %3276 = vmatprep.subr.mxu0 0.0
  %3277 = vmatpush1.msra.mxu0 0.0
  %3278 = vmatprep.subr.mxu0 0.0
  %3279 = vmatpush1.msra.mxu0 0.0
  %3280 = vmatprep.subr.mxu0 0.0
  %3281 = vmatpush1.msra.mxu0 0.0
  %3282 = vmatprep.subr.mxu0 0.0
  %3283 = vmatpush1.msra.mxu0 0.0
  %3284 = vmatprep.subr.mxu0 0.0
  %3285 = vmatpush1.msra.mxu0 0.0
  %3286 = vmatprep.subr.mxu0 0.0
  %3287 = vmatpush1.msra.mxu0 0.0
  %3288 = vmatprep.subr.mxu0 0.0
  %3289 = vmatpush1.msra.mxu0 0.0
  %3290 = vmatprep.subr.mxu0 0.0
  %3291 = vmatpush1.msra.mxu0 0.0
  %3292 = vmatprep.subr.mxu0 0.0
  %3293 = vmatpush1.msra.mxu0 0.0
  %3294 = vmatprep.subr.mxu0 0.0
  %3295 = vmatpush1.msra.mxu0 0.0
  %3296 = vmatprep.subr.mxu0 0.0
  %3297 = vmatpush1.msra.mxu0 0.0
  %3298 = vmatprep.subr.mxu0 0.0
  %3299 = vmatpush1.msra.mxu0 0.0
  %3300 = vmatprep.mubr.f32.mxu0 0.0
  %3301 = vmatmul.mubr.f32.gmra.mrb[0].mxu0 %v3234
  %v3302 = vpop.f32.mrb[0].mxu0
  %v3303 = vadd.f32 0.0, %v3302
  %v3304 = vpop.f32.mrb[0].mxu0
  %3305 = vdwg.mxu0
  %v3307 = vsel %vm181, %v3224, 0
  %v3310 = vsel %vm181, %v3303, 0
  %3312 = vmatprep.subr.mxu0 0.0
  %3313 = vmatpush1.msra.mxu0 %v2102
  %3314 = vmatprep.subr.mxu0 0.0
  %3315 = vmatpush1.msra.mxu0 0.0
  %3316 = vmatprep.subr.mxu0 0.0
  %3317 = vmatpush1.msra.mxu0 0.0
  %3318 = vmatprep.subr.mxu0 0.0
  %3319 = vmatpush1.msra.mxu0 0.0
  %3320 = vmatprep.subr.mxu0 0.0
  %3321 = vmatpush1.msra.mxu0 0.0
  %3322 = vmatprep.subr.mxu0 0.0
  %3323 = vmatpush1.msra.mxu0 0.0
  %3324 = vmatprep.subr.mxu0 0.0
  %3325 = vmatpush1.msra.mxu0 0.0
  %3326 = vmatprep.subr.mxu0 0.0
  %3327 = vmatpush1.msra.mxu0 0.0
  %3328 = vmatprep.subr.mxu0 0.0
  %3329 = vmatpush1.msra.mxu0 0.0
  %3330 = vmatprep.subr.mxu0 0.0
  %3331 = vmatpush1.msra.mxu0 0.0
  %3332 = vmatprep.subr.mxu0 0.0
  %3333 = vmatpush1.msra.mxu0 0.0
  %3334 = vmatprep.subr.mxu0 0.0
  %3335 = vmatpush1.msra.mxu0 0.0
  %3336 = vmatprep.subr.mxu0 0.0
  %3337 = vmatpush1.msra.mxu0 0.0
  %3338 = vmatprep.subr.mxu0 0.0
  %3339 = vmatpush1.msra.mxu0 0.0
  %3340 = vmatprep.subr.mxu0 0.0
  %3341 = vmatpush1.msra.mxu0 0.0
  %3342 = vmatprep.subr.mxu0 0.0
  %3343 = vmatpush1.msra.mxu0 0.0
  %3344 = vmatprep.subr.mxu0 0.0
  %3345 = vmatpush1.msra.mxu0 0.0
  %3346 = vmatprep.subr.mxu0 0.0
  %3347 = vmatpush1.msra.mxu0 0.0
  %3348 = vmatprep.subr.mxu0 0.0
  %3349 = vmatpush1.msra.mxu0 0.0
  %3350 = vmatprep.subr.mxu0 0.0
  %3351 = vmatpush1.msra.mxu0 0.0
  %3352 = vmatprep.subr.mxu0 0.0
  %3353 = vmatpush1.msra.mxu0 0.0
  %3354 = vmatprep.subr.mxu0 0.0
  %3355 = vmatpush1.msra.mxu0 0.0
  %3356 = vmatprep.subr.mxu0 0.0
  %3357 = vmatpush1.msra.mxu0 0.0
  %3358 = vmatprep.subr.mxu0 0.0
  %3359 = vmatpush1.msra.mxu0 0.0
  %3360 = vmatprep.subr.mxu0 0.0
  %3361 = vmatpush1.msra.mxu0 0.0
  %3362 = vmatprep.subr.mxu0 0.0
  %3363 = vmatpush1.msra.mxu0 0.0
  %3364 = vmatprep.subr.mxu0 0.0
  %3365 = vmatpush1.msra.mxu0 0.0
  %3366 = vmatprep.subr.mxu0 0.0
  %3367 = vmatpush1.msra.mxu0 0.0
  %3368 = vmatprep.subr.mxu0 0.0
  %3369 = vmatpush1.msra.mxu0 0.0
  %3370 = vmatprep.subr.mxu0 0.0
  %3371 = vmatpush1.msra.mxu0 0.0
  %3372 = vmatprep.subr.mxu0 0.0
  %3373 = vmatpush1.msra.mxu0 0.0
  %3374 = vmatprep.subr.mxu0 0.0
  %3375 = vmatpush1.msra.mxu0 0.0
  %3376 = vmatprep.mubr.f32.mxu0 0.0
  %3377 = vmatmul.mubr.f32.gmra.mrb[0].mxu0 %v3307
  %v3378 = vpop.f32.mrb[0].mxu0
  %v3379 = vadd.f32 0.0, %v3378
  %v3380 = vpop.f32.mrb[0].mxu0
  %3381 = vmatprep.mubr.f32.mxu0 0.0
  %3382 = vmatmul.mubr.f32.gmra.mrb[0].mxu0 %v3310
  %v3383 = vpop.f32.mrb[0].mxu0
  %v3384 = vadd.f32 0.0, %v3383
  %v3385 = vpop.f32.mrb[0].mxu0
  %3386 = vdwg.mxu0
  %v3387 = vadd.f32 %v2950, %v3379
  %v3388 = vadd.f32 %v2955, %v3384
  %3389 = vrot.lane.b32.xlu0 %v1984, 104
  %v3390 = vpop.permute.xlu0 %3389
  %3391 = vrot.lane.b32.xlu0 %v2082, 104
  %v3392 = vpop.permute.xlu0 %3391
  %3393 = vrot.lane.b32.xlu0 %v2087, 104
  %v3394 = vpop.permute.xlu0 %3393
  %v3395 = vsel %vm181, %v3390, 0
  %v3397 = vsel %vm181, %v3392, 0
  %v3399 = vsel %vm181, %v3394, 0
  %3401 = vmatprep.subr.mxu0 0.0
  %3402 = vmatpush1.xpose.msra.mxu0 %v3397
  %3403 = vmatprep.subr.mxu0 0.0
  %3404 = vmatpush1.xpose.msra.mxu0 %v3399
  %3405 = vmatprep.subr.mxu0 0.0
  %3406 = vmatpush1.xpose.msra.mxu0 0.0
  %3407 = vmatprep.subr.mxu0 0.0
  %3408 = vmatpush1.xpose.msra.mxu0 0.0
  %3409 = vmatprep.subr.mxu0 0.0
  %3410 = vmatpush1.xpose.msra.mxu0 0.0
  %3411 = vmatprep.subr.mxu0 0.0
  %3412 = vmatpush1.xpose.msra.mxu0 0.0
  %3413 = vmatprep.subr.mxu0 0.0
  %3414 = vmatpush1.xpose.msra.mxu0 0.0
  %3415 = vmatprep.subr.mxu0 0.0
  %3416 = vmatpush1.xpose.msra.mxu0 0.0
  %3417 = vmatprep.subr.mxu0 0.0
  %3418 = vmatpush1.xpose.msra.mxu0 0.0
  %3419 = vmatprep.subr.mxu0 0.0
  %3420 = vmatpush1.xpose.msra.mxu0 0.0
  %3421 = vmatprep.subr.mxu0 0.0
  %3422 = vmatpush1.xpose.msra.mxu0 0.0
  %3423 = vmatprep.subr.mxu0 0.0
  %3424 = vmatpush1.xpose.msra.mxu0 0.0
  %3425 = vmatprep.subr.mxu0 0.0
  %3426 = vmatpush1.xpose.msra.mxu0 0.0
  %3427 = vmatprep.subr.mxu0 0.0
  %3428 = vmatpush1.xpose.msra.mxu0 0.0
  %3429 = vmatprep.subr.mxu0 0.0
  %3430 = vmatpush1.xpose.msra.mxu0 0.0
  %3431 = vmatprep.subr.mxu0 0.0
  %3432 = vmatpush1.xpose.msra.mxu0 0.0
  %3433 = vmatprep.subr.mxu0 0.0
  %3434 = vmatpush1.xpose.msra.mxu0 0.0
  %3435 = vmatprep.subr.mxu0 0.0
  %3436 = vmatpush1.xpose.msra.mxu0 0.0
  %3437 = vmatprep.subr.mxu0 0.0
  %3438 = vmatpush1.xpose.msra.mxu0 0.0
  %3439 = vmatprep.subr.mxu0 0.0
  %3440 = vmatpush1.xpose.msra.mxu0 0.0
  %3441 = vmatprep.subr.mxu0 0.0
  %3442 = vmatpush1.xpose.msra.mxu0 0.0
  %3443 = vmatprep.subr.mxu0 0.0
  %3444 = vmatpush1.xpose.msra.mxu0 0.0
  %3445 = vmatprep.subr.mxu0 0.0
  %3446 = vmatpush1.xpose.msra.mxu0 0.0
  %3447 = vmatprep.subr.mxu0 0.0
  %3448 = vmatpush1.xpose.msra.mxu0 0.0
  %3449 = vmatprep.subr.mxu0 0.0
  %3450 = vmatpush1.xpose.msra.mxu0 0.0
  %3451 = vmatprep.subr.mxu0 0.0
  %3452 = vmatpush1.xpose.msra.mxu0 0.0
  %3453 = vmatprep.subr.mxu0 0.0
  %3454 = vmatpush1.xpose.msra.mxu0 0.0
  %3455 = vmatprep.subr.mxu0 0.0
  %3456 = vmatpush1.xpose.msra.mxu0 0.0
  %3457 = vmatprep.subr.mxu0 0.0
  %3458 = vmatpush1.xpose.msra.mxu0 0.0
  %3459 = vmatprep.subr.mxu0 0.0
  %3460 = vmatpush1.xpose.msra.mxu0 0.0
  %3461 = vmatprep.subr.mxu0 0.0
  %3462 = vmatpush1.xpose.msra.mxu0 0.0
  %3463 = vmatprep.subr.mxu0 0.0
  %3464 = vmatpush1.xpose.msra.mxu0 0.0
  %3465 = vmatprep.mubr.f32.mxu0 0.0
  %3466 = vmatmul.mubr.f32.gmra.mrb[0].mxu0 %v3395
  %v3467 = vpop.f32.mrb[0].mxu0
  %v3468 = vadd.f32 0.0, %v3467
  %v3469 = vpop.f32.mrb[0].mxu0
  %3470 = vdwg.mxu0
  %3471 = vrot.lane.b32.xlu0 %v1989, 104
  %v3472 = vpop.permute.xlu0 %3471
  %3473 = vrot.lane.b32.xlu0 %v2092, 104
  %v3474 = vpop.permute.xlu0 %3473
  %3475 = vrot.lane.b32.xlu0 %v2097, 104
  %v3476 = vpop.permute.xlu0 %3475
  %v3477 = vsel %vm181, %v3472, 0
  %v3479 = vsel %vm181, %v3474, 0
  %v3481 = vsel %vm181, %v3476, 0
  %3483 = vmatprep.subr.mxu0 0.0
  %3484 = vmatpush1.xpose.msra.mxu0 %v3479
  %3485 = vmatprep.subr.mxu0 0.0
  %3486 = vmatpush1.xpose.msra.mxu0 %v3481
  %3487 = vmatprep.subr.mxu0 0.0
  %3488 = vmatpush1.xpose.msra.mxu0 0.0
  %3489 = vmatprep.subr.mxu0 0.0
  %3490 = vmatpush1.xpose.msra.mxu0 0.0
  %3491 = vmatprep.subr.mxu0 0.0
  %3492 = vmatpush1.xpose.msra.mxu0 0.0
  %3493 = vmatprep.subr.mxu0 0.0
  %3494 = vmatpush1.xpose.msra.mxu0 0.0
  %3495 = vmatprep.subr.mxu0 0.0
  %3496 = vmatpush1.xpose.msra.mxu0 0.0
  %3497 = vmatprep.subr.mxu0 0.0
  %3498 = vmatpush1.xpose.msra.mxu0 0.0
  %3499 = vmatprep.subr.mxu0 0.0
  %3500 = vmatpush1.xpose.msra.mxu0 0.0
  %3501 = vmatprep.subr.mxu0 0.0
  %3502 = vmatpush1.xpose.msra.mxu0 0.0
  %3503 = vmatprep.subr.mxu0 0.0
  %3504 = vmatpush1.xpose.msra.mxu0 0.0
  %3505 = vmatprep.subr.mxu0 0.0
  %3506 = vmatpush1.xpose.msra.mxu0 0.0
  %3507 = vmatprep.subr.mxu0 0.0
  %3508 = vmatpush1.xpose.msra.mxu0 0.0
  %3509 = vmatprep.subr.mxu0 0.0
  %3510 = vmatpush1.xpose.msra.mxu0 0.0
  %3511 = vmatprep.subr.mxu0 0.0
  %3512 = vmatpush1.xpose.msra.mxu0 0.0
  %3513 = vmatprep.subr.mxu0 0.0
  %3514 = vmatpush1.xpose.msra.mxu0 0.0
  %3515 = vmatprep.subr.mxu0 0.0
  %3516 = vmatpush1.xpose.msra.mxu0 0.0
  %3517 = vmatprep.subr.mxu0 0.0
  %3518 = vmatpush1.xpose.msra.mxu0 0.0
  %3519 = vmatprep.subr.mxu0 0.0
  %3520 = vmatpush1.xpose.msra.mxu0 0.0
  %3521 = vmatprep.subr.mxu0 0.0
  %3522 = vmatpush1.xpose.msra.mxu0 0.0
  %3523 = vmatprep.subr.mxu0 0.0
  %3524 = vmatpush1.xpose.msra.mxu0 0.0
  %3525 = vmatprep.subr.mxu0 0.0
  %3526 = vmatpush1.xpose.msra.mxu0 0.0
  %3527 = vmatprep.subr.mxu0 0.0
  %3528 = vmatpush1.xpose.msra.mxu0 0.0
  %3529 = vmatprep.subr.mxu0 0.0
  %3530 = vmatpush1.xpose.msra.mxu0 0.0
  %3531 = vmatprep.subr.mxu0 0.0
  %3532 = vmatpush1.xpose.msra.mxu0 0.0
  %3533 = vmatprep.subr.mxu0 0.0
  %3534 = vmatpush1.xpose.msra.mxu0 0.0
  %3535 = vmatprep.subr.mxu0 0.0
  %3536 = vmatpush1.xpose.msra.mxu0 0.0
  %3537 = vmatprep.subr.mxu0 0.0
  %3538 = vmatpush1.xpose.msra.mxu0 0.0
  %3539 = vmatprep.subr.mxu0 0.0
  %3540 = vmatpush1.xpose.msra.mxu0 0.0
  %3541 = vmatprep.subr.mxu0 0.0
  %3542 = vmatpush1.xpose.msra.mxu0 0.0
  %3543 = vmatprep.subr.mxu0 0.0
  %3544 = vmatpush1.xpose.msra.mxu0 0.0
  %3545 = vmatprep.subr.mxu0 0.0
  %3546 = vmatpush1.xpose.msra.mxu0 0.0
  %3547 = vmatprep.mubr.f32.mxu0 0.0
  %3548 = vmatmul.mubr.f32.gmra.mrb[0].mxu0 %v3477
  %v3549 = vpop.f32.mrb[0].mxu0
  %v3550 = vadd.f32 0.0, %v3549
  %v3551 = vpop.f32.mrb[0].mxu0
  %3552 = vdwg.mxu0
  %v3553 = vmul.f32 %v3468, 0.35355338
  %v3554 = vmul.f32 %v3550, 0.35355338
  %v3555 = vsel %vm2265, %v3553, -inf
  %3556 = vmax.xlane.f32.xlu0 %v3555
  %v3557 = vpop.xlane.xlu0 %3556
  %v3558 = vsel %vm2265, %v3554, -inf
  %3559 = vmax.xlane.f32.xlu0 %v3558
  %v3560 = vpop.xlane.xlu0 %3559
  %v3561 = vsub.f32 %v3553, %v3557
  %v3562 = vsub.f32 %v3554, %v3560
  %v3563 = vmul.f32 %v3561, 1.442695
  %v3564 = vpow.pop %v3563
  %v3565 = vmul.f32 %v3562, 1.442695
  %v3566 = vpow.pop %v3565
  %v3567 = vsel %vm2265, %v3564, 0.0
  %3568 = vadd.xlane.f32.xlu0 %v3567
  %v3569 = vpop.xlane.xlu0 %3568
  %v3570 = vsel %vm2265, %v3566, 0.0
  %3571 = vadd.xlane.f32.xlu0 %v3570
  %v3572 = vpop.xlane.xlu0 %3571
  %v3573 = vrcp.pop %v3569
  %v3574 = vrcp.pop %v3572
  %v3575 = vmul.f32 %v3564, %v3573
  %v3576 = vmul.f32 %v3566, %v3574
  %v3577 = vadd.f32 %v3146, %v3575
  %v3578 = vadd.f32 %v3147, %v3576
  %3579 = vrot.lane.b32.xlu0 %v2082, 72
  %v3580 = vpop.permute.xlu0 %3579
  %3581 = vrot.lane.b32.xlu0 %v2087, 72
  %v3582 = vpop.permute.xlu0 %3581
  %v3586 = vsel %vm2265, %v3575, 0
  %3588 = vmatprep.subr.mxu0 0.0
  %3589 = vmatpush1.msra.mxu0 %v3580
  %3590 = vmatprep.subr.mxu0 0.0
  %3591 = vmatpush1.msra.mxu0 %v3582
  %3592 = vmatprep.subr.mxu0 0.0
  %3593 = vmatpush1.msra.mxu0 0.0
  %3594 = vmatprep.subr.mxu0 0.0
  %3595 = vmatpush1.msra.mxu0 0.0
  %3596 = vmatprep.subr.mxu0 0.0
  %3597 = vmatpush1.msra.mxu0 0.0
  %3598 = vmatprep.subr.mxu0 0.0
  %3599 = vmatpush1.msra.mxu0 0.0
  %3600 = vmatprep.subr.mxu0 0.0
  %3601 = vmatpush1.msra.mxu0 0.0
  %3602 = vmatprep.subr.mxu0 0.0
  %3603 = vmatpush1.msra.mxu0 0.0
  %3604 = vmatprep.subr.mxu0 0.0
  %3605 = vmatpush1.msra.mxu0 0.0
  %3606 = vmatprep.subr.mxu0 0.0
  %3607 = vmatpush1.msra.mxu0 0.0
  %3608 = vmatprep.subr.mxu0 0.0
  %3609 = vmatpush1.msra.mxu0 0.0
  %3610 = vmatprep.subr.mxu0 0.0
  %3611 = vmatpush1.msra.mxu0 0.0
  %3612 = vmatprep.subr.mxu0 0.0
  %3613 = vmatpush1.msra.mxu0 0.0
  %3614 = vmatprep.subr.mxu0 0.0
  %3615 = vmatpush1.msra.mxu0 0.0
  %3616 = vmatprep.subr.mxu0 0.0
  %3617 = vmatpush1.msra.mxu0 0.0
  %3618 = vmatprep.subr.mxu0 0.0
  %3619 = vmatpush1.msra.mxu0 0.0
  %3620 = vmatprep.subr.mxu0 0.0
  %3621 = vmatpush1.msra.mxu0 0.0
  %3622 = vmatprep.subr.mxu0 0.0
  %3623 = vmatpush1.msra.mxu0 0.0
  %3624 = vmatprep.subr.mxu0 0.0
  %3625 = vmatpush1.msra.mxu0 0.0
  %3626 = vmatprep.subr.mxu0 0.0
  %3627 = vmatpush1.msra.mxu0 0.0
  %3628 = vmatprep.subr.mxu0 0.0
  %3629 = vmatpush1.msra.mxu0 0.0
  %3630 = vmatprep.subr.mxu0 0.0
  %3631 = vmatpush1.msra.mxu0 0.0
  %3632 = vmatprep.subr.mxu0 0.0
  %3633 = vmatpush1.msra.mxu0 0.0
  %3634 = vmatprep.subr.mxu0 0.0
  %3635 = vmatpush1.msra.mxu0 0.0
  %3636 = vmatprep.subr.mxu0 0.0
  %3637 = vmatpush1.msra.mxu0 0.0
  %3638 = vmatprep.subr.mxu0 0.0
  %3639 = vmatpush1.msra.mxu0 0.0
  %3640 = vmatprep.subr.mxu0 0.0
  %3641 = vmatpush1.msra.mxu0 0.0
  %3642 = vmatprep.subr.mxu0 0.0
  %3643 = vmatpush1.msra.mxu0 0.0
  %3644 = vmatprep.subr.mxu0 0.0
  %3645 = vmatpush1.msra.mxu0 0.0
  %3646 = vmatprep.subr.mxu0 0.0
  %3647 = vmatpush1.msra.mxu0 0.0
  %3648 = vmatprep.subr.mxu0 0.0
  %3649 = vmatpush1.msra.mxu0 0.0
  %3650 = vmatprep.subr.mxu0 0.0
  %3651 = vmatpush1.msra.mxu0 0.0
  %3652 = vmatprep.mubr.f32.mxu0 0.0
  %3653 = vmatmul.mubr.f32.gmra.mrb[0].mxu0 %v3586
  %v3654 = vpop.f32.mrb[0].mxu0
  %v3655 = vadd.f32 0.0, %v3654
  %v3656 = vpop.f32.mrb[0].mxu0
  %3657 = vdwg.mxu0
  %3658 = vrot.lane.b32.xlu0 %v2092, 72
  %v3659 = vpop.permute.xlu0 %3658
  %3660 = vrot.lane.b32.xlu0 %v2097, 72
  %v3661 = vpop.permute.xlu0 %3660
  %v3665 = vsel %vm2265, %v3576, 0
  %3667 = vmatprep.subr.mxu0 0.0
  %3668 = vmatpush1.msra.mxu0 %v3659
  %3669 = vmatprep.subr.mxu0 0.0
  %3670 = vmatpush1.msra.mxu0 %v3661
  %3671 = vmatprep.subr.mxu0 0.0
  %3672 = vmatpush1.msra.mxu0 0.0
  %3673 = vmatprep.subr.mxu0 0.0
  %3674 = vmatpush1.msra.mxu0 0.0
  %3675 = vmatprep.subr.mxu0 0.0
  %3676 = vmatpush1.msra.mxu0 0.0
  %3677 = vmatprep.subr.mxu0 0.0
  %3678 = vmatpush1.msra.mxu0 0.0
  %3679 = vmatprep.subr.mxu0 0.0
  %3680 = vmatpush1.msra.mxu0 0.0
  %3681 = vmatprep.subr.mxu0 0.0
  %3682 = vmatpush1.msra.mxu0 0.0
  %3683 = vmatprep.subr.mxu0 0.0
  %3684 = vmatpush1.msra.mxu0 0.0
  %3685 = vmatprep.subr.mxu0 0.0
  %3686 = vmatpush1.msra.mxu0 0.0
  %3687 = vmatprep.subr.mxu0 0.0
  %3688 = vmatpush1.msra.mxu0 0.0
  %3689 = vmatprep.subr.mxu0 0.0
  %3690 = vmatpush1.msra.mxu0 0.0
  %3691 = vmatprep.subr.mxu0 0.0
  %3692 = vmatpush1.msra.mxu0 0.0
  %3693 = vmatprep.subr.mxu0 0.0
  %3694 = vmatpush1.msra.mxu0 0.0
  %3695 = vmatprep.subr.mxu0 0.0
  %3696 = vmatpush1.msra.mxu0 0.0
  %3697 = vmatprep.subr.mxu0 0.0
  %3698 = vmatpush1.msra.mxu0 0.0
  %3699 = vmatprep.subr.mxu0 0.0
  %3700 = vmatpush1.msra.mxu0 0.0
  %3701 = vmatprep.subr.mxu0 0.0
  %3702 = vmatpush1.msra.mxu0 0.0
  %3703 = vmatprep.subr.mxu0 0.0
  %3704 = vmatpush1.msra.mxu0 0.0
  %3705 = vmatprep.subr.mxu0 0.0
  %3706 = vmatpush1.msra.mxu0 0.0
  %3707 = vmatprep.subr.mxu0 0.0
  %3708 = vmatpush1.msra.mxu0 0.0
  %3709 = vmatprep.subr.mxu0 0.0
  %3710 = vmatpush1.msra.mxu0 0.0
  %3711 = vmatprep.subr.mxu0 0.0
  %3712 = vmatpush1.msra.mxu0 0.0
  %3713 = vmatprep.subr.mxu0 0.0
  %3714 = vmatpush1.msra.mxu0 0.0
  %3715 = vmatprep.subr.mxu0 0.0
  %3716 = vmatpush1.msra.mxu0 0.0
  %3717 = vmatprep.subr.mxu0 0.0
  %3718 = vmatpush1.msra.mxu0 0.0
  %3719 = vmatprep.subr.mxu0 0.0
  %3720 = vmatpush1.msra.mxu0 0.0
  %3721 = vmatprep.subr.mxu0 0.0
  %3722 = vmatpush1.msra.mxu0 0.0
  %3723 = vmatprep.subr.mxu0 0.0
  %3724 = vmatpush1.msra.mxu0 0.0
  %3725 = vmatprep.subr.mxu0 0.0
  %3726 = vmatpush1.msra.mxu0 0.0
  %3727 = vmatprep.subr.mxu0 0.0
  %3728 = vmatpush1.msra.mxu0 0.0
  %3729 = vmatprep.subr.mxu0 0.0
  %3730 = vmatpush1.msra.mxu0 0.0
  %3731 = vmatprep.mubr.f32.mxu0 0.0
  %3732 = vmatmul.mubr.f32.gmra.mrb[0].mxu0 %v3665
  %v3733 = vpop.f32.mrb[0].mxu0
  %v3734 = vadd.f32 0.0, %v3733
  %v3735 = vpop.f32.mrb[0].mxu0
  %3736 = vdwg.mxu0
  %v3738 = vsel %vm181, %v3655, 0
  %v3741 = vsel %vm181, %v3734, 0
  %3743 = vmatprep.subr.mxu0 0.0
  %3744 = vmatpush1.msra.mxu0 %v2103
  %3745 = vmatprep.subr.mxu0 0.0
  %3746 = vmatpush1.msra.mxu0 0.0
  %3747 = vmatprep.subr.mxu0 0.0
  %3748 = vmatpush1.msra.mxu0 0.0
  %3749 = vmatprep.subr.mxu0 0.0
  %3750 = vmatpush1.msra.mxu0 0.0
  %3751 = vmatprep.subr.mxu0 0.0
  %3752 = vmatpush1.msra.mxu0 0.0
  %3753 = vmatprep.subr.mxu0 0.0
  %3754 = vmatpush1.msra.mxu0 0.0
  %3755 = vmatprep.subr.mxu0 0.0
  %3756 = vmatpush1.msra.mxu0 0.0
  %3757 = vmatprep.subr.mxu0 0.0
  %3758 = vmatpush1.msra.mxu0 0.0
  %3759 = vmatprep.subr.mxu0 0.0
  %3760 = vmatpush1.msra.mxu0 0.0
  %3761 = vmatprep.subr.mxu0 0.0
  %3762 = vmatpush1.msra.mxu0 0.0
  %3763 = vmatprep.subr.mxu0 0.0
  %3764 = vmatpush1.msra.mxu0 0.0
  %3765 = vmatprep.subr.mxu0 0.0
  %3766 = vmatpush1.msra.mxu0 0.0
  %3767 = vmatprep.subr.mxu0 0.0
  %3768 = vmatpush1.msra.mxu0 0.0
  %3769 = vmatprep.subr.mxu0 0.0
  %3770 = vmatpush1.msra.mxu0 0.0
  %3771 = vmatprep.subr.mxu0 0.0
  %3772 = vmatpush1.msra.mxu0 0.0
  %3773 = vmatprep.subr.mxu0 0.0
  %3774 = vmatpush1.msra.mxu0 0.0
  %3775 = vmatprep.subr.mxu0 0.0
  %3776 = vmatpush1.msra.mxu0 0.0
  %3777 = vmatprep.subr.mxu0 0.0
  %3778 = vmatpush1.msra.mxu0 0.0
  %3779 = vmatprep.subr.mxu0 0.0
  %3780 = vmatpush1.msra.mxu0 0.0
  %3781 = vmatprep.subr.mxu0 0.0
  %3782 = vmatpush1.msra.mxu0 0.0
  %3783 = vmatprep.subr.mxu0 0.0
  %3784 = vmatpush1.msra.mxu0 0.0
  %3785 = vmatprep.subr.mxu0 0.0
  %3786 = vmatpush1.msra.mxu0 0.0
  %3787 = vmatprep.subr.mxu0 0.0
  %3788 = vmatpush1.msra.mxu0 0.0
  %3789 = vmatprep.subr.mxu0 0.0
  %3790 = vmatpush1.msra.mxu0 0.0
  %3791 = vmatprep.subr.mxu0 0.0
  %3792 = vmatpush1.msra.mxu0 0.0
  %3793 = vmatprep.subr.mxu0 0.0
  %3794 = vmatpush1.msra.mxu0 0.0
  %3795 = vmatprep.subr.mxu0 0.0
  %3796 = vmatpush1.msra.mxu0 0.0
  %3797 = vmatprep.subr.mxu0 0.0
  %3798 = vmatpush1.msra.mxu0 0.0
  %3799 = vmatprep.subr.mxu0 0.0
  %3800 = vmatpush1.msra.mxu0 0.0
  %3801 = vmatprep.subr.mxu0 0.0
  %3802 = vmatpush1.msra.mxu0 0.0
  %3803 = vmatprep.subr.mxu0 0.0
  %3804 = vmatpush1.msra.mxu0 0.0
  %3805 = vmatprep.subr.mxu0 0.0
  %3806 = vmatpush1.msra.mxu0 0.0
  %3807 = vmatprep.mubr.f32.mxu0 0.0
  %3808 = vmatmul.mubr.f32.gmra.mrb[0].mxu0 %v3738
  %v3809 = vpop.f32.mrb[0].mxu0
  %v3810 = vadd.f32 0.0, %v3809
  %v3811 = vpop.f32.mrb[0].mxu0
  %3812 = vmatprep.mubr.f32.mxu0 0.0
  %3813 = vmatmul.mubr.f32.gmra.mrb[0].mxu0 %v3741
  %v3814 = vpop.f32.mrb[0].mxu0
  %v3815 = vadd.f32 0.0, %v3814
  %v3816 = vpop.f32.mrb[0].mxu0
  %3817 = vdwg.mxu0
  %v3818 = vadd.f32 %v3387, %v3810
  %v3819 = vadd.f32 %v3388, %v3815
  %v3821 = vlaneseq
  %v3822 = vshrl.u32 %v3821, 7
  %v3823 = vsub.s32 0, %v3822
  %v3824 = vrot.slane %v2104, %v3823
  %v3826 = vadd.f32 %v3818, %v3824
  %v3827 = vadd.f32 %v3819, %v3824
  %v3828 = vmul.f32 %v3577, 0.25
  %v3829 = vmul.f32 %v3578, 0.25
  %v3830 = vadd.f32 %v1894, %v3826
  %v3831 = vadd.f32 %v1895, %v3827
  %v3832 = vld [vmem:[%s15] sm:$0x1]
  %v3833 = vld [vmem:[%s16] sm:$0x1]
  %v3834 = vsel %vm91, %v3830, 0.0
  %3835 = vadd.xlane.f32.xlu0 %v3834
  %v3836 = vpop.xlane.xlu0 %3835
  %v3837 = vsel %vm91, %v3831, 0.0
  %3838 = vadd.xlane.f32.xlu0 %v3837
  %v3839 = vpop.xlane.xlu0 %3838
  %v3840 = vmul.f32 %v3836, %v1859
  %v3841 = vmul.f32 %v3839, %v1859
  %v3842 = vsub.f32 %v3830, %v3840
  %v3843 = vsub.f32 %v3831, %v3841
  %v3844 = vmul.f32 %v3842, %v3842
  %v3845 = vmul.f32 %v3843, %v3843
  %v3846 = vsel %vm91, %v3844, 0.0
  %3847 = vadd.xlane.f32.xlu0 %v3846
  %v3848 = vpop.xlane.xlu0 %3847
  %v3849 = vsel %vm91, %v3845, 0.0
  %3850 = vadd.xlane.f32.xlu0 %v3849
  %v3851 = vpop.xlane.xlu0 %3850
  %v3852 = vmul.f32 %v3848, %v1859
  %v3853 = vmul.f32 %v3851, %v1859
  %v3854 = vadd.f32 %v3852, 1e-05
  %v3855 = vadd.f32 %v3853, 1e-05
  %v3856 = vrsqrt.pop %v3854
  %v3857 = vrsqrt.pop %v3855
  %v3858 = vmul.f32 %v3842, %v3856
  %v3859 = vmul.f32 %v3843, %v3857
  %v3861 = vlaneseq
  %v3862 = vshrl.u32 %v3861, 7
  %v3863 = vsub.s32 0, %v3862
  %v3864 = vrot.slane %v3832, %v3863
  %v3866 = vmul.f32 %v3858, %v3864
  %v3867 = vmul.f32 %v3859, %v3864
  %v3869 = vlaneseq
  %v3870 = vshrl.u32 %v3869, 7
  %v3871 = vsub.s32 0, %v3870
  %v3872 = vrot.slane %v3833, %v3871
  %v3874 = vadd.f32 %v3866, %v3872
  %v3875 = vadd.f32 %v3867, %v3872
  %3876 = vst.msk [vmem:[%s24] sm:$0xff] %vm2265, %v3828
  %3877 = vst.msk [vmem:[%s24 + $0x8] sm:$0xff] %vm2265, %v3829
  %v3878 = vld [vmem:[%s17] sm:$0xff]
  %v3879 = vld [vmem:[%s17 + $0x8] sm:$0xff]
  %v3880 = vld [vmem:[%s17 + $0x10] sm:$0xff]
  %v3881 = vld [vmem:[%s17 + $0x18] sm:$0xff]
  %v3882 = vld [vmem:[%s18] sm:$0x1]
  %v3884 = vlaneseq
  %v3885 = vshrl.u32 %v3884, 7
  %v3886 = vsub.s32 0, %v3885
  %v3887 = vrot.slane %v3882, %v3886
  %v3890 = vsel %vm91, %v3874, 0
  %v3893 = vsel %vm91, %v3875, 0
  %3895 = vmatprep.subr.mxu0 0.0
  %3896 = vmatpush1.msra.mxu0 %v3878
  %3897 = vmatprep.subr.mxu0 0.0
  %3898 = vmatpush1.msra.mxu0 %v3879
  %3899 = vmatprep.subr.mxu0 0.0
  %3900 = vmatpush1.msra.mxu0 %v3880
  %3901 = vmatprep.subr.mxu0 0.0
  %3902 = vmatpush1.msra.mxu0 %v3881
  %3903 = vmatprep.subr.mxu0 0.0
  %3904 = vmatpush1.msra.mxu0 0.0
  %3905 = vmatprep.subr.mxu0 0.0
  %3906 = vmatpush1.msra.mxu0 0.0
  %3907 = vmatprep.subr.mxu0 0.0
  %3908 = vmatpush1.msra.mxu0 0.0
  %3909 = vmatprep.subr.mxu0 0.0
  %3910 = vmatpush1.msra.mxu0 0.0
  %3911 = vmatprep.subr.mxu0 0.0
  %3912 = vmatpush1.msra.mxu0 0.0
  %3913 = vmatprep.subr.mxu0 0.0
  %3914 = vmatpush1.msra.mxu0 0.0
  %3915 = vmatprep.subr.mxu0 0.0
  %3916 = vmatpush1.msra.mxu0 0.0
  %3917 = vmatprep.subr.mxu0 0.0
  %3918 = vmatpush1.msra.mxu0 0.0
  %3919 = vmatprep.subr.mxu0 0.0
  %3920 = vmatpush1.msra.mxu0 0.0
  %3921 = vmatprep.subr.mxu0 0.0
  %3922 = vmatpush1.msra.mxu0 0.0
  %3923 = vmatprep.subr.mxu0 0.0
  %3924 = vmatpush1.msra.mxu0 0.0
  %3925 = vmatprep.subr.mxu0 0.0
  %3926 = vmatpush1.msra.mxu0 0.0
  %3927 = vmatprep.subr.mxu0 0.0
  %3928 = vmatpush1.msra.mxu0 0.0
  %3929 = vmatprep.subr.mxu0 0.0
  %3930 = vmatpush1.msra.mxu0 0.0
  %3931 = vmatprep.subr.mxu0 0.0
  %3932 = vmatpush1.msra.mxu0 0.0
  %3933 = vmatprep.subr.mxu0 0.0
  %3934 = vmatpush1.msra.mxu0 0.0
  %3935 = vmatprep.subr.mxu0 0.0
  %3936 = vmatpush1.msra.mxu0 0.0
  %3937 = vmatprep.subr.mxu0 0.0
  %3938 = vmatpush1.msra.mxu0 0.0
  %3939 = vmatprep.subr.mxu0 0.0
  %3940 = vmatpush1.msra.mxu0 0.0
  %3941 = vmatprep.subr.mxu0 0.0
  %3942 = vmatpush1.msra.mxu0 0.0
  %3943 = vmatprep.subr.mxu0 0.0
  %3944 = vmatpush1.msra.mxu0 0.0
  %3945 = vmatprep.subr.mxu0 0.0
  %3946 = vmatpush1.msra.mxu0 0.0
  %3947 = vmatprep.subr.mxu0 0.0
  %3948 = vmatpush1.msra.mxu0 0.0
  %3949 = vmatprep.subr.mxu0 0.0
  %3950 = vmatpush1.msra.mxu0 0.0
  %3951 = vmatprep.subr.mxu0 0.0
  %3952 = vmatpush1.msra.mxu0 0.0
  %3953 = vmatprep.subr.mxu0 0.0
  %3954 = vmatpush1.msra.mxu0 0.0
  %3955 = vmatprep.subr.mxu0 0.0
  %3956 = vmatpush1.msra.mxu0 0.0
  %3957 = vmatprep.subr.mxu0 0.0
  %3958 = vmatpush1.msra.mxu0 0.0
  %3959 = vmatprep.mubr.f32.mxu0 0.0
  %3960 = vmatmul.mubr.f32.gmra.mrb[0].mxu0 %v3890
  %v3961 = vpop.f32.mrb[0].mxu0
  %v3962 = vadd.f32 %v3887, %v3961
  %v3963 = vpop.f32.mrb[0].mxu0
  %3964 = vmatprep.mubr.f32.mxu0 0.0
  %3965 = vmatmul.mubr.f32.gmra.mrb[0].mxu0 %v3893
  %v3966 = vpop.f32.mrb[0].mxu0
  %v3967 = vadd.f32 %v3887, %v3966
  %v3968 = vpop.f32.mrb[0].mxu0
  %3969 = vdwg.mxu0
  %v3970 = vmax.f32 %v3962, 0.0
  %v3971 = vmax.f32 %v3967, 0.0
  %v3972 = vld [vmem:[%s19] sm:$0xff]
  %v3973 = vld [vmem:[%s19 + $0x8] sm:$0xff]
  %v3974 = vld [vmem:[%s19 + $0x10] sm:$0xff]
  %v3975 = vld [vmem:[%s19 + $0x18] sm:$0xff]
  %v3976 = vld [vmem:[%s19 + $0x20] sm:$0xff]
  %v3977 = vld [vmem:[%s19 + $0x28] sm:$0xff]
  %v3978 = vld [vmem:[%s19 + $0x30] sm:$0xff]
  %v3979 = vld [vmem:[%s19 + $0x38] sm:$0xff]
  %v3980 = vld [vmem:[%s20] sm:$0x1]
  %v3982 = vlaneseq
  %v3983 = vshrl.u32 %v3982, 7
  %v3984 = vsub.s32 0, %v3983
  %v3985 = vrot.slane %v3980, %v3984
  %vm3987 = vcmask 523264
  %v3989 = vsel %vm3987, %v3970, 0
  %v3992 = vsel %vm3987, %v3971, 0
  %3994 = vmatprep.subr.mxu0 0.0
  %3995 = vmatpush1.msra.mxu0 %v3972
  %3996 = vmatprep.subr.mxu0 0.0
  %3997 = vmatpush1.msra.mxu0 %v3973
  %3998 = vmatprep.subr.mxu0 0.0
  %3999 = vmatpush1.msra.mxu0 %v3974
  %4000 = vmatprep.subr.mxu0 0.0
  %4001 = vmatpush1.msra.mxu0 %v3975
  %4002 = vmatprep.subr.mxu0 0.0
  %4003 = vmatpush1.msra.mxu0 %v3976
  %4004 = vmatprep.subr.mxu0 0.0
  %4005 = vmatpush1.msra.mxu0 %v3977
  %4006 = vmatprep.subr.mxu0 0.0
  %4007 = vmatpush1.msra.mxu0 %v3978
  %4008 = vmatprep.subr.mxu0 0.0
  %4009 = vmatpush1.msra.mxu0 %v3979
  %4010 = vmatprep.subr.mxu0 0.0
  %4011 = vmatpush1.msra.mxu0 0.0
  %4012 = vmatprep.subr.mxu0 0.0
  %4013 = vmatpush1.msra.mxu0 0.0
  %4014 = vmatprep.subr.mxu0 0.0
  %4015 = vmatpush1.msra.mxu0 0.0
  %4016 = vmatprep.subr.mxu0 0.0
  %4017 = vmatpush1.msra.mxu0 0.0
  %4018 = vmatprep.subr.mxu0 0.0
  %4019 = vmatpush1.msra.mxu0 0.0
  %4020 = vmatprep.subr.mxu0 0.0
  %4021 = vmatpush1.msra.mxu0 0.0
  %4022 = vmatprep.subr.mxu0 0.0
  %4023 = vmatpush1.msra.mxu0 0.0
  %4024 = vmatprep.subr.mxu0 0.0
  %4025 = vmatpush1.msra.mxu0 0.0
  %4026 = vmatprep.subr.mxu0 0.0
  %4027 = vmatpush1.msra.mxu0 0.0
  %4028 = vmatprep.subr.mxu0 0.0
  %4029 = vmatpush1.msra.mxu0 0.0
  %4030 = vmatprep.subr.mxu0 0.0
  %4031 = vmatpush1.msra.mxu0 0.0
  %4032 = vmatprep.subr.mxu0 0.0
  %4033 = vmatpush1.msra.mxu0 0.0
  %4034 = vmatprep.subr.mxu0 0.0
  %4035 = vmatpush1.msra.mxu0 0.0
  %4036 = vmatprep.subr.mxu0 0.0
  %4037 = vmatpush1.msra.mxu0 0.0
  %4038 = vmatprep.subr.mxu0 0.0
  %4039 = vmatpush1.msra.mxu0 0.0
  %4040 = vmatprep.subr.mxu0 0.0
  %4041 = vmatpush1.msra.mxu0 0.0
  %4042 = vmatprep.subr.mxu0 0.0
  %4043 = vmatpush1.msra.mxu0 0.0
  %4044 = vmatprep.subr.mxu0 0.0
  %4045 = vmatpush1.msra.mxu0 0.0
  %4046 = vmatprep.subr.mxu0 0.0
  %4047 = vmatpush1.msra.mxu0 0.0
  %4048 = vmatprep.subr.mxu0 0.0
  %4049 = vmatpush1.msra.mxu0 0.0
  %4050 = vmatprep.subr.mxu0 0.0
  %4051 = vmatpush1.msra.mxu0 0.0
  %4052 = vmatprep.subr.mxu0 0.0
  %4053 = vmatpush1.msra.mxu0 0.0
  %4054 = vmatprep.subr.mxu0 0.0
  %4055 = vmatpush1.msra.mxu0 0.0
  %4056 = vmatprep.subr.mxu0 0.0
  %4057 = vmatpush1.msra.mxu0 0.0
  %4058 = vmatprep.mubr.f32.mxu0 0.0
  %4059 = vmatmul.mubr.f32.gmra.mrb[0].mxu0 %v3989
  %v4060 = vpop.f32.mrb[0].mxu0
  %v4061 = vadd.f32 %v3985, %v4060
  %v4062 = vpop.f32.mrb[0].mxu0
  %4063 = vmatprep.mubr.f32.mxu0 0.0
  %4064 = vmatmul.mubr.f32.gmra.mrb[0].mxu0 %v3992
  %v4065 = vpop.f32.mrb[0].mxu0
  %v4066 = vadd.f32 %v3985, %v4065
  %v4067 = vpop.f32.mrb[0].mxu0
  %4068 = vdwg.mxu0
  %v4069 = vadd.f32 %v3874, %v4061
  %v4070 = vadd.f32 %v3875, %v4066
  %v4071 = vld [vmem:[%s21] sm:$0x1]
  %v4072 = vld [vmem:[%s22] sm:$0x1]
  %v4073 = vsel %vm91, %v4069, 0.0
  %4074 = vadd.xlane.f32.xlu0 %v4073
  %v4075 = vpop.xlane.xlu0 %4074
  %v4076 = vsel %vm91, %v4070, 0.0
  %4077 = vadd.xlane.f32.xlu0 %v4076
  %v4078 = vpop.xlane.xlu0 %4077
  %v4079 = vmul.f32 %v4075, %v1859
  %v4080 = vmul.f32 %v4078, %v1859
  %v4081 = vsub.f32 %v4069, %v4079
  %v4082 = vsub.f32 %v4070, %v4080
  %v4083 = vmul.f32 %v4081, %v4081
  %v4084 = vmul.f32 %v4082, %v4082
  %v4085 = vsel %vm91, %v4083, 0.0
  %4086 = vadd.xlane.f32.xlu0 %v4085
  %v4087 = vpop.xlane.xlu0 %4086
  %v4088 = vsel %vm91, %v4084, 0.0
  %4089 = vadd.xlane.f32.xlu0 %v4088
  %v4090 = vpop.xlane.xlu0 %4089
  %v4091 = vmul.f32 %v4087, %v1859
  %v4092 = vmul.f32 %v4090, %v1859
  %v4093 = vadd.f32 %v4091, 1e-05
  %v4094 = vadd.f32 %v4092, 1e-05
  %v4095 = vrsqrt.pop %v4093
  %v4096 = vrsqrt.pop %v4094
  %v4097 = vmul.f32 %v4081, %v4095
  %v4098 = vmul.f32 %v4082, %v4096
  %v4100 = vlaneseq
  %v4101 = vshrl.u32 %v4100, 7
  %v4102 = vsub.s32 0, %v4101
  %v4103 = vrot.slane %v4071, %v4102
  %v4105 = vmul.f32 %v4097, %v4103
  %v4106 = vmul.f32 %v4098, %v4103
  %v4108 = vlaneseq
  %v4109 = vshrl.u32 %v4108, 7
  %v4110 = vsub.s32 0, %v4109
  %v4111 = vrot.slane %v4072, %v4110
  %v4113 = vadd.f32 %v4105, %v4111
  %v4114 = vadd.f32 %v4106, %v4111
  %4115 = vst.msk [vmem:[%s23] sm:$0xff] %vm91, %v4113
  %4116 = vst.msk [vmem:[%s23 + $0x8] sm:$0xff] %vm91, %v4114
  // Predicated region
  $region94: #{_lambda_.7} parent=0 // pred_check
    _
  $region95: #{_lambda_.7} parent=0 // pred_check_branch
    %4118 = sbr.rel (0) target = $region97
  $region96: #{_lambda_.7} parent=0 // pred_region
    _
  $region97: #{_lambda_.7} parent=0 // pred_fallthru
    _
  // Predicated region
  $region98: #{_lambda_.7} parent=0 // pred_check
    _
  $region99: #{_lambda_.7} parent=0 // pred_check_branch
    %4120 = sbr.rel (0) target = $region101
  $region100: #{_lambda_.7} parent=0 // pred_region
    _
  $region101: #{_lambda_.7} parent=0 // pred_fallthru
    _
  // Predicated region
  $region102: #{_lambda_.7} parent=0 // pred_check
    _
  $region103: #{_lambda_.7} parent=0 // pred_check_branch
    %4122 = sbr.rel (0) target = $region105
  $region104: #{_lambda_.7} parent=0 // pred_region
    _
  $region105: #{_lambda_.7} parent=0 // pred_fallthru
    _
  // Predicated region
  $region106: #{_lambda_.7} parent=0 // pred_check
    _
  $region107: #{_lambda_.7} parent=0 // pred_check_branch
    %4124 = sbr.rel (0) target = $region109
  $region108: #{_lambda_.7} parent=0 // pred_region
    _
  $region109: #{_lambda_.7} parent=0 // pred_fallthru
    _

</llo_original>
